<compile_context>
chip_gen: v7x
topology: tpu7x:2x2x1
jax: 0.10.0
libtpu: 0.0.40
codegen_flags: <defaults>
</compile_context>

<pallas_src>
import functools

import jax
import jax.numpy as jnp
import numpy as np
from jax import lax
from jax.experimental import pallas as pl
from jax.experimental.pallas import tpu as pltpu


LANE = 128                      # lane width
GROUP_ALIGN = 32                # per-branch channel padding (4 * 32 = 128 lanes)
DILATIONS = (2, 4, 6)           # LightRFB depthwise dilations (branches 1..3)
HALO = 7                        # max dilation (6) + 1 for the 3x3 cat conv
HALO_BLK = 8                    # row halo is fetched as one 8-row block (>= HALO)
ACT_DTYPE = jnp.bfloat16        # Stage A -> Stage B/C activation dtype


def _ceil_to(x, m):
    return ((x + m - 1) // m) * m


def _vmem_limit_bytes():
    # Per-generation scoped-VMEM limit: ~3/4 of physical, capped at 96 MiB.
    # (v5e/v6e: 128 MiB physical -> 96 MiB; v7x: 64 MiB physical -> 48 MiB.)
    try:
        info = pltpu.get_tpu_info()
        cap = getattr(info, "vmem_capacity_bytes", None)
        if cap:
            return int(min(cap * 3 // 4, 96 * 1024 * 1024))
    except Exception:
        pass
    return 48 * 1024 * 1024


VMEM_LIMIT = _vmem_limit_bytes()


def _pick_rows(h, w, target=2048):
    """Rows per tile: multiple of 8, divides h, ~<=2048 px, prefer >=2 tiles."""
    assert h % 8 == 0 and w % 8 == 0, "spatial dims must be multiples of 8"
    cands = [r for r in range(8, h + 1, 8) if h % r == 0 and r * w <= target]
    if not cands:
        cands = [8]
    multi = [r for r in cands if h // r >= 2]
    return max(multi) if multi else max(cands)


# -----------------------------------------------------------------------------
# Stage A: fused [4x branch 1x1 conv + BN + ReLU] emitted directly in the
# concatenated ("cat") group layout, in bf16, plus the fused
# [global avg pool -> 1x1 conv -> ReLU -> 1x1 conv] MLP branch.
# Grid: (N, H/rows); the row axis is "arbitrary" because the pool accumulates.
# -----------------------------------------------------------------------------
def fused_pw_pool_mlp(x_pad, w_pw, sc_pw, sh_pw, w_mlp1, w_mlp2):
    n, h, w, cin_p = x_pad.shape
    cat_w = w_pw.shape[1]
    hid_p = w_mlp1.shape[1]
    f_p = w_mlp2.shape[1]
    ra = _pick_rows(h, w)
    nt = h // ra
    hw = h * w

    def kernel(x_ref, wpw_ref, scpw_ref, shpw_ref, w1_ref, w2_ref,
               a_ref, frame_ref, acc_ref):
        t = pl.program_id(1)
        x = x_ref[0].reshape(ra * w, cin_p)                       # (Px, cin_p)

        # Fused branch 1x1 convs: one matmul, output already in cat layout.
        y = jnp.dot(x, wpw_ref[...], preferred_element_type=jnp.float32)
        y = jnp.maximum(y * scpw_ref[...] + shpw_ref[...], 0.0)
        a_ref[0] = y.reshape(ra, w, cat_w).astype(a_ref.dtype)    # bf16 store

        # Fused global-average-pool + MLP (same x tile; no second HBM pass).
        @pl.when(t == 0)
        def _():
            acc_ref[...] = jnp.zeros_like(acc_ref)

        acc_ref[...] += jnp.sum(x, axis=0, keepdims=True)

        @pl.when(t == pl.num_programs(1) - 1)
        def _():
            mean = acc_ref[...] * (1.0 / float(hw))
            hid = jnp.maximum(
                jnp.dot(mean, w1_ref[...], preferred_element_type=jnp.float32),
                0.0)
            frame_ref[0] = jnp.dot(hid, w2_ref[...],
                                   preferred_element_type=jnp.float32)

    return pl.pallas_call(
        kernel,
        out_shape=(
            jax.ShapeDtypeStruct((n, h, w, cat_w), ACT_DTYPE),
            jax.ShapeDtypeStruct((n, 1, f_p), jnp.float32),
        ),
        grid=(n, nt),
        in_specs=[
            pl.BlockSpec((1, ra, w, cin_p), lambda i, t: (i, t, 0, 0)),
            pl.BlockSpec((cin_p, cat_w), lambda i, t: (0, 0)),
            pl.BlockSpec((1, cat_w), lambda i, t: (0, 0)),
            pl.BlockSpec((1, cat_w), lambda i, t: (0, 0)),
            pl.BlockSpec((cin_p, hid_p), lambda i, t: (0, 0)),
            pl.BlockSpec((hid_p, f_p), lambda i, t: (0, 0)),
        ],
        out_specs=(
            pl.BlockSpec((1, ra, w, cat_w), lambda i, t: (i, t, 0, 0)),
            pl.BlockSpec((1, 1, f_p), lambda i, t: (i, 0, 0)),
        ),
        scratch_shapes=[pltpu.VMEM((1, cin_p), jnp.float32)],
        compiler_params=pltpu.CompilerParams(
            # NOTE: the row axis must stay "arbitrary" (pool accumulator).
            dimension_semantics=("parallel", "arbitrary"),
            vmem_limit_bytes=VMEM_LIMIT),
    )(x_pad, w_pw, sc_pw, sh_pw, w_mlp1, w_mlp2)


# -----------------------------------------------------------------------------
# Fused Stage B+C: three dilated depthwise 3x3 convs (+BN+ReLU, branch 0 passes
# through) AND the final 3x3 conv (+BN+ReLU) in one row-tiled kernel.  The
# concatenated feature map lives only in VMEM; halos are assembled from the
# current row tile plus 8-row neighbour blocks of the same HBM tensor.
# -----------------------------------------------------------------------------
def fused_rfb_tail(a_cat, w_dw, sc_dw, sh_dw, w_cat, sc_cat, sh_cat, cg):
    n, h, w, cat_w = a_cat.shape
    cout_p = w_cat.shape[2]
    r = _pick_rows(h, w)
    nt = h // r
    rb = r // HALO_BLK                          # halo blocks per row tile
    he, we = r + 2, w + 2                       # output tile + 1-px cat halo
    c_off = HALO_BLK - 1                        # origin of the extended region

    def kernel(cur_ref, top_ref, bot_ref, wdw_ref, scdw_ref, shdw_ref,
               wcat_ref, sccat_ref, shcat_ref, o_ref, xs_ref, cs_ref):
        t = pl.program_id(1)
        nt_ = pl.num_programs(1)

        # ---- assemble the halo-padded f32 input tile in VMEM ----------------
        xs_ref[...] = jnp.zeros_like(xs_ref)
        xs_ref[HALO_BLK:HALO_BLK + r, HALO_BLK:HALO_BLK + w, :] = (
            cur_ref[0].astype(jnp.float32))

        @pl.when(t > 0)
        def _():
            xs_ref[HALO_BLK - HALO:HALO_BLK, HALO_BLK:HALO_BLK + w, :] = (
                top_ref[0, HALO_BLK - HALO:HALO_BLK, :, :].astype(jnp.float32))

        @pl.when(t < nt_ - 1)
        def _():
            xs_ref[HALO_BLK + r:HALO_BLK + r + HALO, HALO_BLK:HALO_BLK + w, :] = (
                bot_ref[0, 0:HALO, :, :].astype(jnp.float32))

        # ---- 3 dilated depthwise 3x3 convs via lane-masked full-width weights
        # (branch 0 passes through untouched; no lane-granular channel slices).
        lane = lax.broadcasted_iota(jnp.int32, (1, 1, cat_w), 2)
        pass0 = (lane < cg).astype(jnp.float32)
        wdw = wdw_ref[...]                                      # (27, 1, cat_w)

        acc = xs_ref[c_off:c_off + he, c_off:c_off + we, :] * pass0
        for g, d in enumerate(DILATIONS):
            for dj in (-1, 0, 1):
                c0 = c_off + dj * d
                for di in (-1, 0, 1):
                    k = (di + 1) * 3 + (dj + 1)
                    r0 = c_off + di * d
                    acc = acc + (xs_ref[r0:r0 + he, c0:c0 + we, :]
                                 * wdw[g * 9 + k])
        cat = jnp.maximum(acc * scdw_ref[...] + shdw_ref[...], 0.0)

        # Zero the halo ring that falls outside the image (this reproduces the
        # reference's zero padding of the concatenated tensor before conv_cat).
        row_e = lax.broadcasted_iota(jnp.int32, (he, 1, 1), 0)
        col_f = lax.broadcasted_iota(jnp.int32, (1, we, 1), 1)
        img_r = t * r - 1 + row_e
        img_c = col_f - 1
        valid = (img_r >= 0) & (img_r < h) & (img_c >= 0) & (img_c < w)
        cs_ref[...] = jnp.where(valid, cat, 0.0)

        # ---- final 3x3 conv: 9 accumulating MXU matmuls (no tap matrix) ------
        acc_mm = jnp.zeros((r * w, cout_p), jnp.float32)
        for di in range(3):
            for dj in range(3):
                k = di * 3 + dj
                tap = cs_ref[di:di + r, dj:dj + w, :].reshape(r * w, cat_w)
                acc_mm = acc_mm + jnp.dot(tap, wcat_ref[k],
                                          preferred_element_type=jnp.float32)
        y = jnp.maximum(acc_mm * sccat_ref[...] + shcat_ref[...], 0.0)
        o_ref[0] = y.reshape(r, w, cout_p)

    row_spec = pl.BlockSpec((1, r, w, cat_w), lambda i, t: (i, t, 0, 0))
    top_spec = pl.BlockSpec(
        (1, HALO_BLK, w, cat_w),
        lambda i, t: (i, jnp.maximum(t * rb - 1, 0), 0, 0))
    bot_spec = pl.BlockSpec(
        (1, HALO_BLK, w, cat_w),
        lambda i, t: (i, jnp.minimum((t + 1) * rb, h // HALO_BLK - 1), 0, 0))

    return pl.pallas_call(
        kernel,
        out_shape=jax.ShapeDtypeStruct((n, h, w, cout_p), jnp.float32),
        grid=(n, nt),
        in_specs=[
            row_spec, top_spec, bot_spec,
            pl.BlockSpec(w_dw.shape, lambda i, t: (0, 0, 0)),
            pl.BlockSpec(sc_dw.shape, lambda i, t: (0, 0)),
            pl.BlockSpec(sh_dw.shape, lambda i, t: (0, 0)),
            pl.BlockSpec(w_cat.shape, lambda i, t: (0, 0, 0)),
            pl.BlockSpec(sc_cat.shape, lambda i, t: (0, 0)),
            pl.BlockSpec(sh_cat.shape, lambda i, t: (0, 0)),
        ],
        out_specs=pl.BlockSpec((1, r, w, cout_p), lambda i, t: (i, t, 0, 0)),
        scratch_shapes=[
            pltpu.VMEM((r + 2 * HALO_BLK, w + 2 * HALO_BLK, cat_w), jnp.float32),
            pltpu.VMEM((he, we, cat_w), jnp.float32),
        ],
        compiler_params=pltpu.CompilerParams(
            dimension_semantics=("parallel", "parallel"),
            vmem_limit_bytes=VMEM_LIMIT),
    )(a_cat, a_cat, a_cat, w_dw, sc_dw, sh_dw, w_cat, sc_cat, sh_cat)


# -----------------------------------------------------------------------------
# Parameters (deterministic, eval-mode BN folded to scale/shift)
# -----------------------------------------------------------------------------
def _bn_scale_shift(key, c, eps=1e-5):
    k1, k2, k3, k4 = jax.random.split(key, 4)
    gamma = 1.0 + 0.1 * jax.random.normal(k1, (c,))
    beta = 0.1 * jax.random.normal(k2, (c,))
    mean = 0.1 * jax.random.normal(k3, (c,))
    var = jnp.abs(1.0 + 0.1 * jax.random.normal(k4, (c,)))
    scale = gamma / jnp.sqrt(var + eps)
    shift = beta - mean * scale
    return (scale.reshape(1, c).astype(jnp.float32),
            shift.reshape(1, c).astype(jnp.float32))


def init_params(key, c_in, c_out, f_ch):
    c_mid = (c_in + c_out) // 2
    keys = iter(jax.random.split(key, 64))

    def nrm(shape, s=0.2):
        return (s * jax.random.normal(next(keys), shape)).astype(jnp.float32)

    p = {}
    # mlp: Conv2d(c_in, c_out, 1, bias=False) -> ReLU -> Conv2d(c_out, f_ch, 1)
    p["mlp_w1"] = nrm((c_in, c_out))
    p["mlp_w2"] = nrm((c_out, f_ch))
    # LightRFB branches: 1x1 conv + BN + ReLU each
    p["br_pw_w"] = [nrm((c_in, c_mid)) for _ in range(4)]
    pw_bn = [_bn_scale_shift(next(keys), c_mid) for _ in range(4)]
    p["br_pw_scale"] = [s for s, _ in pw_bn]
    p["br_pw_shift"] = [t for _, t in pw_bn]
    # branches 1..3: depthwise 3x3 dilated conv + BN + ReLU
    p["br_dw_w"] = [nrm((9, c_mid)) for _ in range(3)]
    dw_bn = [_bn_scale_shift(next(keys), c_mid) for _ in range(3)]
    p["br_dw_scale"] = [s for s, _ in dw_bn]
    p["br_dw_shift"] = [t for _, t in dw_bn]
    # conv_cat: 3x3 conv (4*c_mid -> c_out) + BN + ReLU
    p["cat_w"] = nrm((9, 4 * c_mid, c_out))
    p["cat_scale"], p["cat_shift"] = _bn_scale_shift(next(keys), c_out)
    return p


def pack_params(p, c_in, c_out, f_ch):
    """Kernel-facing weights: fused, group-padded to 32 (cat width = 128)."""
    c_mid = (c_in + c_out) // 2
    cg = _ceil_to(c_mid, GROUP_ALIGN)
    cat_w = 4 * cg
    cin_p = _ceil_to(c_in, LANE)
    hid_p = _ceil_to(c_out, LANE)
    f_p = _ceil_to(f_ch, LANE)
    cout_p = _ceil_to(c_out, LANE)

    kp = {}
    # Fused branch 1x1 convs -> output already in cat group layout.
    w_pw = np.zeros((cin_p, cat_w), np.float32)
    sc_pw = np.zeros((1, cat_w), np.float32)
    sh_pw = np.zeros((1, cat_w), np.float32)
    for b in range(4):
        w_pw[:c_in, b * cg:b * cg + c_mid] = np.asarray(p["br_pw_w"][b])
        sc_pw[0, b * cg:b * cg + c_mid] = np.asarray(p["br_pw_scale"][b])[0]
        sh_pw[0, b * cg:b * cg + c_mid] = np.asarray(p["br_pw_shift"][b])[0]
    kp["w_pw"], kp["sc_pw"], kp["sh_pw"] = map(jnp.asarray, (w_pw, sc_pw, sh_pw))

    # mlp branch (pool handled in the same kernel).
    w1 = np.zeros((cin_p, hid_p), np.float32)
    w1[:c_in, :c_out] = np.asarray(p["mlp_w1"])
    w2 = np.zeros((hid_p, f_p), np.float32)
    w2[:c_out, :f_ch] = np.asarray(p["mlp_w2"])
    kp["w_mlp1"], kp["w_mlp2"] = jnp.asarray(w1), jnp.asarray(w2)

    # Depthwise 3x3 dilated convs as 27 lane-masked full-width weight rows.
    w_dw = np.zeros((27, 1, cat_w), np.float32)
    sc_dw = np.zeros((1, cat_w), np.float32)
    sh_dw = np.zeros((1, cat_w), np.float32)
    sc_dw[0, :cg] = 1.0                 # branch 0 passes through the dw stage
    for g in range(3):
        base = (g + 1) * cg
        for k in range(9):
            w_dw[g * 9 + k, 0, base:base + c_mid] = np.asarray(p["br_dw_w"][g])[k]
        sc_dw[0, base:base + c_mid] = np.asarray(p["br_dw_scale"][g])[0]
        sh_dw[0, base:base + c_mid] = np.asarray(p["br_dw_shift"][g])[0]
    kp["w_dw"], kp["sc_dw"], kp["sh_dw"] = map(jnp.asarray, (w_dw, sc_dw, sh_dw))

    # Final 3x3 cat conv: per-tap (cat_w, cout_p) weights for 9 accumulating dots.
    wc = np.zeros((9, 4, cg, cout_p), np.float32)
    wc[:, :, :c_mid, :c_out] = np.asarray(p["cat_w"]).reshape(9, 4, c_mid, c_out)
    kp["w_cat"] = jnp.asarray(wc.reshape(9, cat_w, cout_p))
    sc_cat = np.zeros((1, cout_p), np.float32)
    sh_cat = np.zeros((1, cout_p), np.float32)
    sc_cat[0, :c_out] = np.asarray(p["cat_scale"])[0]
    sh_cat[0, :c_out] = np.asarray(p["cat_shift"])[0]
    kp["sc_cat"], kp["sh_cat"] = jnp.asarray(sc_cat), jnp.asarray(sh_cat)
    return kp


# -----------------------------------------------------------------------------
# Forward (mirrors AttentionDownBlock.forward)
# -----------------------------------------------------------------------------
def attention_down_block(x_nchw, kp, c_out, f_ch):
    n, c_in, h, w = x_nchw.shape
    cin_p = _ceil_to(c_in, LANE)
    c_mid = (c_in + c_out) // 2
    cg = _ceil_to(c_mid, GROUP_ALIGN)

    x = jnp.transpose(x_nchw, (0, 2, 3, 1)).astype(jnp.float32)       # NHWC
    x = jnp.pad(x, ((0, 0), (0, 0), (0, 0), (0, cin_p - c_in)))       # lane-dense

    # Stage A: fused branch 1x1 convs (cat layout, bf16) + pooled MLP branch.
    a_cat, frame = fused_pw_pool_mlp(
        x, kp["w_pw"], kp["sc_pw"], kp["sh_pw"], kp["w_mlp1"], kp["w_mlp2"])
    x_frame = frame[:, 0, :f_ch].reshape(n, f_ch, 1, 1)

    # Fused Stage B+C: dilated depthwise convs + 3x3 cat conv, all in VMEM.
    y = fused_rfb_tail(a_cat, kp["w_dw"], kp["sc_dw"], kp["sh_dw"],
                       kp["w_cat"], kp["sc_cat"], kp["sh_cat"], cg)
    x_down = jnp.transpose(y[..., :c_out], (0, 3, 1, 2))
    return x_frame, x_down


# -----------------------------------------------------------------------------
# Pure-JAX reference (same math, unpadded f32) for a sanity check
# -----------------------------------------------------------------------------
def extract_taps(x_nhwc, dil):
    n, h, w, c = x_nhwc.shape
    xp = jnp.pad(x_nhwc, ((0, 0), (dil, dil), (dil, dil), (0, 0)))
    taps = []
    for i in range(3):
        for j in range(3):
            taps.append(
                xp[:, i * dil:i * dil + h, j * dil:j * dil + w, :].reshape(n, h * w, c))
    return jnp.stack(taps, axis=1)


_REF_DILATIONS = (None,) + DILATIONS


def reference(x_nchw, p):
    x = jnp.transpose(x_nchw, (0, 2, 3, 1)).astype(jnp.float32)
    n, h, w, c = x.shape
    xf = x.reshape(n, h * w, c)

    xm = jnp.mean(xf, axis=1)
    hid = jnp.maximum(xm @ p["mlp_w1"], 0.0)
    x_frame = (hid @ p["mlp_w2"]).reshape(n, -1, 1, 1)

    feats = []
    for b in range(4):
        y = jnp.maximum(
            jnp.einsum("nsc,cd->nsd", xf, p["br_pw_w"][b]) * p["br_pw_scale"][b]
            + p["br_pw_shift"][b], 0.0)
        if _REF_DILATIONS[b] is not None:
            k = b - 1
            taps = extract_taps(y.reshape(n, h, w, -1), _REF_DILATIONS[b])
            acc = jnp.einsum("nkse,ke->nse", taps, p["br_dw_w"][k])
            y = jnp.maximum(acc * p["br_dw_scale"][k] + p["br_dw_shift"][k], 0.0)
        feats.append(y)
    cat = jnp.concatenate(feats, axis=-1)
    taps = extract_taps(cat.reshape(n, h, w, -1), 1)
    acc = jnp.einsum("nkse,ked->nsd", taps, p["cat_w"])
    y = jnp.maximum(acc * p["cat_scale"] + p["cat_shift"], 0.0)
    x_down = jnp.transpose(y.reshape(n, h, w, -1), (0, 3, 1, 2))
    return x_frame, x_down


# -----------------------------------------------------------------------------
if __name__ == "__main__":
    key = jax.random.PRNGKey(0)
    kx, kp_key = jax.random.split(key)

    N, C_IN, C_OUT, F_CH, H, W = 2, 4, 8, 6, 16, 16
    x = jax.random.normal(kx, (N, C_IN, H, W), jnp.float32)
    params = init_params(kp_key, C_IN, C_OUT, F_CH)
    kparams = pack_params(params, C_IN, C_OUT, F_CH)   # fold/pack weights once

    fwd = jax.jit(functools.partial(attention_down_block, c_out=C_OUT, f_ch=F_CH))
    x_frame, x_down = fwd(x, kparams)
    jax.block_until_ready((x_frame, x_down))

    assert x_frame.shape == (N, F_CH, 1, 1), x_frame.shape
    assert x_down.shape == (N, C_OUT, H, W), x_down.shape

    rf, rd = reference(x, params)
    np.testing.assert_allclose(np.asarray(x_frame), np.asarray(rf),
                               rtol=1e-2, atol=1e-2)
    # x_down goes through a bf16 intermediate activation -> looser tolerance.
    np.testing.assert_allclose(np.asarray(x_down), np.asarray(rd),
                               rtol=2e-2, atol=2e-2)

    print("KERNEL_OK")
</pallas_src>

<mosaic_0001>
module attributes {stable_mosaic.version = 11 : i64} {
  func.func @kernel(%arg0: i32, %arg1: i32, %arg2: memref<1x8x16x128xf32, #tpu.memory_space<vmem>>, %arg3: memref<128x128xf32, #tpu.memory_space<vmem>>, %arg4: memref<1x128xf32, #tpu.memory_space<vmem>>, %arg5: memref<1x128xf32, #tpu.memory_space<vmem>>, %arg6: memref<128x128xf32, #tpu.memory_space<vmem>>, %arg7: memref<128x128xf32, #tpu.memory_space<vmem>>, %arg8: memref<1x8x16x128xbf16, #tpu.memory_space<vmem>>, %arg9: memref<1x1x128xf32, #tpu.memory_space<vmem>>, %arg10: memref<1x128xf32, #tpu.memory_space<vmem>>) attributes {dimension_semantics = [#tpu.dimension_semantics<parallel>, #tpu.dimension_semantics<arbitrary>], iteration_bounds = array<i64: 2, 2>, scalar_prefetch = 0 : i64, scratch_operands = 1 : i64, tpu.core_type = #tpu.core_type<tc>, window_params = [{transform_indices = @transform_0, window_bounds = array<i64: 1, 8, 16, 128>}, {pipeline_mode = #tpu.pipeline_mode<synchronous>, transform_indices = @transform_1, window_bounds = array<i64: 128, 128>}, {pipeline_mode = #tpu.pipeline_mode<synchronous>, transform_indices = @transform_2, window_bounds = array<i64: 1, 128>}, {pipeline_mode = #tpu.pipeline_mode<synchronous>, transform_indices = @transform_3, window_bounds = array<i64: 1, 128>}, {pipeline_mode = #tpu.pipeline_mode<synchronous>, transform_indices = @transform_4, window_bounds = array<i64: 128, 128>}, {pipeline_mode = #tpu.pipeline_mode<synchronous>, transform_indices = @transform_5, window_bounds = array<i64: 128, 128>}, {transform_indices = @transform_6, window_bounds = array<i64: 1, 8, 16, 128>}, {transform_indices = @transform_7, window_bounds = array<i64: 1, 1, 128>}]} {
    %c0 = arith.constant 0 : index
    %c0_0 = arith.constant 0 : index
    %c0_1 = arith.constant 0 : index
    %c0_2 = arith.constant 0 : index
    %0 = vector.load %arg2[%c0, %c0_0, %c0_1, %c0_2] : memref<1x8x16x128xf32, #tpu.memory_space<vmem>>, vector<1x8x16x128xf32>
    %1 = vector.shape_cast %0 : vector<1x8x16x128xf32> to vector<8x16x128xf32>
    %2 = vector.shape_cast %1 : vector<8x16x128xf32> to vector<128x128xf32>
    %c0_3 = arith.constant 0 : index
    %c0_4 = arith.constant 0 : index
    %3 = vector.load %arg3[%c0_3, %c0_4] : memref<128x128xf32, #tpu.memory_space<vmem>>, vector<128x128xf32>
    %cst = arith.constant dense<0.000000e+00> : vector<128x128xf32>
    %4 = tpu.matmul %2, %3, %cst {dimension_numbers = #tpu.dot_dimension_numbers<[1], [0], [0], [1], [0, 0, 1, 1], [], []>} : vector<128x128xf32>, vector<128x128xf32>, vector<128x128xf32> -> vector<128x128xf32>
    %c0_5 = arith.constant 0 : index
    %c0_6 = arith.constant 0 : index
    %5 = vector.load %arg4[%c0_5, %c0_6] : memref<1x128xf32, #tpu.memory_space<vmem>>, vector<1x128xf32>
    %6 = vector.broadcast %5 : vector<1x128xf32> to vector<128x128xf32>
    %7 = arith.mulf %4, %6 : vector<128x128xf32>
    %c0_7 = arith.constant 0 : index
    %c0_8 = arith.constant 0 : index
    %8 = vector.load %arg5[%c0_7, %c0_8] : memref<1x128xf32, #tpu.memory_space<vmem>>, vector<1x128xf32>
    %9 = vector.broadcast %8 : vector<1x128xf32> to vector<128x128xf32>
    %10 = arith.addf %7, %9 : vector<128x128xf32>
    %cst_9 = arith.constant 0.000000e+00 : f32
    %11 = vector.broadcast %cst_9 : f32 to vector<128x128xf32>
    %12 = arith.maximumf %10, %11 : vector<128x128xf32>
    %13 = vector.shape_cast %12 : vector<128x128xf32> to vector<8x16x128xf32>
    %14 = arith.truncf %13 : vector<8x16x128xf32> to vector<8x16x128xbf16>
    %c0_10 = arith.constant 0 : index
    %c0_11 = arith.constant 0 : index
    %c0_12 = arith.constant 0 : index
    %c0_13 = arith.constant 0 : index
    %15 = vector.load %arg8[%c0_10, %c0_11, %c0_12, %c0_13] : memref<1x8x16x128xbf16, #tpu.memory_space<vmem>>, vector<1x8x16x128xbf16>
    %16 = vector.shape_cast %15 : vector<1x8x16x128xbf16> to vector<8x16x128xbf16>
    %17 = vector.shape_cast %14 : vector<8x16x128xbf16> to vector<1x8x16x128xbf16>
    tpu.vector_store %arg8[%c0_10, %c0_11, %c0_12, %c0_13], %17 {strides = array<i32>} : memref<1x8x16x128xbf16, #tpu.memory_space<vmem>>, vector<1x8x16x128xbf16>,
    %c0_i32 = arith.constant 0 : i32
    %18 = arith.cmpi eq, %arg1, %c0_i32 : i32
    %19 = arith.extui %18 : i1 to i32
    %c0_i32_14 = arith.constant 0 : i32
    %20 = arith.cmpi ne, %19, %c0_i32_14 : i32
    scf.if %20 {
      %cst_21 = arith.constant 0.000000e+00 : f32
      %29 = vector.broadcast %cst_21 : f32 to vector<1x128xf32>
      %c0_22 = arith.constant 0 : index
      %c0_23 = arith.constant 0 : index
      %30 = vector.load %arg10[%c0_22, %c0_23] : memref<1x128xf32, #tpu.memory_space<vmem>>, vector<1x128xf32>
      tpu.vector_store %arg10[%c0_22, %c0_23], %29 {strides = array<i32>} : memref<1x128xf32, #tpu.memory_space<vmem>>, vector<1x128xf32>,
    } else {
    }
    %c0_15 = arith.constant 0 : index
    %c0_16 = arith.constant 0 : index
    %21 = vector.load %arg10[%c0_15, %c0_16] : memref<1x128xf32, #tpu.memory_space<vmem>>, vector<1x128xf32>
    %cst_17 = arith.constant dense<0.000000e+00> : vector<128xf32>
    %22 = vector.multi_reduction <add>, %2, %cst_17 [0] : vector<128x128xf32> to vector<128xf32>
    %23 = vector.shape_cast %22 : vector<128xf32> to vector<1x128xf32>
    %24 = arith.addf %21, %23 : vector<1x128xf32>
    %c0_18 = arith.constant 0 : index
    %c0_19 = arith.constant 0 : index
    %25 = vector.load %arg10[%c0_18, %c0_19] : memref<1x128xf32, #tpu.memory_space<vmem>>, vector<1x128xf32>
    tpu.vector_store %arg10[%c0_18, %c0_19], %24 {strides = array<i32>} : memref<1x128xf32, #tpu.memory_space<vmem>>, vector<1x128xf32>,
    %c1_i32 = arith.constant 1 : i32
    %26 = arith.cmpi eq, %arg1, %c1_i32 : i32
    %27 = arith.extui %26 : i1 to i32
    %c0_i32_20 = arith.constant 0 : i32
    %28 = arith.cmpi ne, %27, %c0_i32_20 : i32
    scf.if %28 {
      %c0_21 = arith.constant 0 : index
      %c0_22 = arith.constant 0 : index
      %29 = vector.load %arg10[%c0_21, %c0_22] : memref<1x128xf32, #tpu.memory_space<vmem>>, vector<1x128xf32>
      %cst_23 = arith.constant 3.906250e-03 : f32
      %30 = vector.broadcast %cst_23 : f32 to vector<1x128xf32>
      %31 = arith.mulf %29, %30 : vector<1x128xf32>
      %c0_24 = arith.constant 0 : index
      %c0_25 = arith.constant 0 : index
      %32 = vector.load %arg6[%c0_24, %c0_25] : memref<128x128xf32, #tpu.memory_space<vmem>>, vector<128x128xf32>
      %cst_26 = arith.constant dense<0.000000e+00> : vector<1x128xf32>
      %33 = tpu.matmul %31, %32, %cst_26 {dimension_numbers = #tpu.dot_dimension_numbers<[1], [0], [0], [1], [0, 0, 1, 1], [], []>} : vector<1x128xf32>, vector<128x128xf32>, vector<1x128xf32> -> vector<1x128xf32>
      %cst_27 = arith.constant 0.000000e+00 : f32
      %34 = vector.broadcast %cst_27 : f32 to vector<1x128xf32>
      %35 = arith.maximumf %33, %34 : vector<1x128xf32>
      %c0_28 = arith.constant 0 : index
      %c0_29 = arith.constant 0 : index
      %36 = vector.load %arg7[%c0_28, %c0_29] : memref<128x128xf32, #tpu.memory_space<vmem>>, vector<128x128xf32>
      %cst_30 = arith.constant dense<0.000000e+00> : vector<1x128xf32>
      %37 = tpu.matmul %35, %36, %cst_30 {dimension_numbers = #tpu.dot_dimension_numbers<[1], [0], [0], [1], [0, 0, 1, 1], [], []>} : vector<1x128xf32>, vector<128x128xf32>, vector<1x128xf32> -> vector<1x128xf32>
      %c0_31 = arith.constant 0 : index
      %c0_32 = arith.constant 0 : index
      %c0_33 = arith.constant 0 : index
      %38 = vector.load %arg9[%c0_31, %c0_32, %c0_33] : memref<1x1x128xf32, #tpu.memory_space<vmem>>, vector<1x1x128xf32>
      %39 = vector.shape_cast %38 : vector<1x1x128xf32> to vector<1x128xf32>
      %40 = vector.shape_cast %37 : vector<1x128xf32> to vector<1x1x128xf32>
      tpu.vector_store %arg9[%c0_31, %c0_32, %c0_33], %40 {strides = array<i32>} : memref<1x1x128xf32, #tpu.memory_space<vmem>>, vector<1x1x128xf32>,
    } else {
    }
    return
  }
  func.func @transform_0(%arg0: i32, %arg1: i32) -> (i32, i32, i32, i32) {
    %c0_i32 = arith.constant 0 : i32
    %c0_i32_0 = arith.constant 0 : i32
    %c0_i32_1 = arith.constant 0 : i32
    return %arg0, %arg1, %c0_i32, %c0_i32_0 : i32, i32, i32, i32
  }
  func.func @transform_1(%arg0: i32, %arg1: i32) -> (i32, i32) {
    %c0_i32 = arith.constant 0 : i32
    %c0_i32_0 = arith.constant 0 : i32
    %c0_i32_1 = arith.constant 0 : i32
    return %c0_i32, %c0_i32_0 : i32, i32
  }
  func.func @transform_2(%arg0: i32, %arg1: i32) -> (i32, i32) {
    %c0_i32 = arith.constant 0 : i32
    %c0_i32_0 = arith.constant 0 : i32
    %c0_i32_1 = arith.constant 0 : i32
    return %c0_i32, %c0_i32_0 : i32, i32
  }
  func.func @transform_3(%arg0: i32, %arg1: i32) -> (i32, i32) {
    %c0_i32 = arith.constant 0 : i32
    %c0_i32_0 = arith.constant 0 : i32
    %c0_i32_1 = arith.constant 0 : i32
    return %c0_i32, %c0_i32_0 : i32, i32
  }
  func.func @transform_4(%arg0: i32, %arg1: i32) -> (i32, i32) {
    %c0_i32 = arith.constant 0 : i32
    %c0_i32_0 = arith.constant 0 : i32
    %c0_i32_1 = arith.constant 0 : i32
    return %c0_i32, %c0_i32_0 : i32, i32
  }
  func.func @transform_5(%arg0: i32, %arg1: i32) -> (i32, i32) {
    %c0_i32 = arith.constant 0 : i32
    %c0_i32_0 = arith.constant 0 : i32
    %c0_i32_1 = arith.constant 0 : i32
    return %c0_i32, %c0_i32_0 : i32, i32
  }
  func.func @transform_6(%arg0: i32, %arg1: i32) -> (i32, i32, i32, i32) {
    %c0_i32 = arith.constant 0 : i32
    %c0_i32_0 = arith.constant 0 : i32
    %c0_i32_1 = arith.constant 0 : i32
    return %arg0, %arg1, %c0_i32, %c0_i32_0 : i32, i32, i32, i32
  }
  func.func @transform_7(%arg0: i32, %arg1: i32) -> (i32, i32, i32) {
    %c0_i32 = arith.constant 0 : i32
    %c0_i32_0 = arith.constant 0 : i32
    %c0_i32_1 = arith.constant 0 : i32
    return %arg0, %c0_i32, %c0_i32_0 : i32, i32, i32
  }
}

module attributes {stable_mosaic.version = 11 : i64} {
  func.func @kernel(%arg0: i32, %arg1: i32, %arg2: memref<1x8x16x128xbf16, #tpu.memory_space<vmem>>, %arg3: memref<1x8x16x128xbf16, #tpu.memory_space<vmem>>, %arg4: memref<1x8x16x128xbf16, #tpu.memory_space<vmem>>, %arg5: memref<27x1x128xf32, #tpu.memory_space<vmem>>, %arg6: memref<1x128xf32, #tpu.memory_space<vmem>>, %arg7: memref<1x128xf32, #tpu.memory_space<vmem>>, %arg8: memref<9x128x128xf32, #tpu.memory_space<vmem>>, %arg9: memref<1x128xf32, #tpu.memory_space<vmem>>, %arg10: memref<1x128xf32, #tpu.memory_space<vmem>>, %arg11: memref<1x8x16x128xf32, #tpu.memory_space<vmem>>, %arg12: memref<24x32x128xf32, #tpu.memory_space<vmem>>, %arg13: memref<10x18x128xf32, #tpu.memory_space<vmem>>) attributes {dimension_semantics = [#tpu.dimension_semantics<parallel>, #tpu.dimension_semantics<parallel>], iteration_bounds = array<i64: 2, 2>, scalar_prefetch = 0 : i64, scratch_operands = 2 : i64, tpu.core_type = #tpu.core_type<tc>, window_params = [{transform_indices = @transform_0, window_bounds = array<i64: 1, 8, 16, 128>}, {transform_indices = @transform_1, window_bounds = array<i64: 1, 8, 16, 128>}, {transform_indices = @transform_2, window_bounds = array<i64: 1, 8, 16, 128>}, {pipeline_mode = #tpu.pipeline_mode<synchronous>, transform_indices = @transform_3, window_bounds = array<i64: 27, 1, 128>}, {pipeline_mode = #tpu.pipeline_mode<synchronous>, transform_indices = @transform_4, window_bounds = array<i64: 1, 128>}, {pipeline_mode = #tpu.pipeline_mode<synchronous>, transform_indices = @transform_5, window_bounds = array<i64: 1, 128>}, {pipeline_mode = #tpu.pipeline_mode<synchronous>, transform_indices = @transform_6, window_bounds = array<i64: 9, 128, 128>}, {pipeline_mode = #tpu.pipeline_mode<synchronous>, transform_indices = @transform_7, window_bounds = array<i64: 1, 128>}, {pipeline_mode = #tpu.pipeline_mode<synchronous>, transform_indices = @transform_8, window_bounds = array<i64: 1, 128>}, {transform_indices = @transform_9, window_bounds = array<i64: 1, 8, 16, 128>}]} {
    %cst = arith.constant 0.000000e+00 : f32
    %0 = vector.broadcast %cst : f32 to vector<24x32x128xf32>
    %c0 = arith.constant 0 : index
    %c0_0 = arith.constant 0 : index
    %c0_1 = arith.constant 0 : index
    %1 = vector.load %arg12[%c0, %c0_0, %c0_1] : memref<24x32x128xf32, #tpu.memory_space<vmem>>, vector<24x32x128xf32>
    tpu.vector_store %arg12[%c0, %c0_0, %c0_1], %0 {strides = array<i32>} : memref<24x32x128xf32, #tpu.memory_space<vmem>>, vector<24x32x128xf32>,
    %c0_2 = arith.constant 0 : index
    %c0_3 = arith.constant 0 : index
    %c0_4 = arith.constant 0 : index
    %c0_5 = arith.constant 0 : index
    %2 = vector.load %arg2[%c0_2, %c0_3, %c0_4, %c0_5] : memref<1x8x16x128xbf16, #tpu.memory_space<vmem>>, vector<1x8x16x128xbf16>
    %3 = vector.shape_cast %2 : vector<1x8x16x128xbf16> to vector<8x16x128xbf16>
    %4 = arith.extf %3 : vector<8x16x128xbf16> to vector<8x16x128xf32>
    %c8 = arith.constant 8 : index
    %c8_6 = arith.constant 8 : index
    %c0_7 = arith.constant 0 : index
    %5 = vector.load %arg12[%c8, %c8_6, %c0_7] : memref<24x32x128xf32, #tpu.memory_space<vmem>>, vector<8x16x128xf32>
    tpu.vector_store %arg12[%c8, %c8_6, %c0_7], %4 {strides = array<i32>} : memref<24x32x128xf32, #tpu.memory_space<vmem>>, vector<8x16x128xf32>,
    %c0_i32 = arith.constant 0 : i32
    %6 = arith.cmpi sgt, %arg1, %c0_i32 : i32
    %7 = arith.extui %6 : i1 to i32
    %c0_i32_8 = arith.constant 0 : i32
    %8 = arith.cmpi ne, %7, %c0_i32_8 : i32
    scf.if %8 {
      %c0_174 = arith.constant 0 : index
      %c1_175 = arith.constant 1 : index
      %c0_176 = arith.constant 0 : index
      %c0_177 = arith.constant 0 : index
      %314 = vector.load %arg3[%c0_174, %c1_175, %c0_176, %c0_177] : memref<1x8x16x128xbf16, #tpu.memory_space<vmem>>, vector<1x7x16x128xbf16>
      %315 = vector.shape_cast %314 : vector<1x7x16x128xbf16> to vector<7x16x128xbf16>
      %316 = arith.extf %315 : vector<7x16x128xbf16> to vector<7x16x128xf32>
      %c1_178 = arith.constant 1 : index
      %c8_179 = arith.constant 8 : index
      %c0_180 = arith.constant 0 : index
      %317 = vector.load %arg12[%c1_178, %c8_179, %c0_180] : memref<24x32x128xf32, #tpu.memory_space<vmem>>, vector<7x16x128xf32>
      tpu.vector_store %arg12[%c1_178, %c8_179, %c0_180], %316 {strides = array<i32>} : memref<24x32x128xf32, #tpu.memory_space<vmem>>, vector<7x16x128xf32>,
    } else {
    }
    %c1_i32 = arith.constant 1 : i32
    %9 = arith.cmpi slt, %arg1, %c1_i32 : i32
    %10 = arith.extui %9 : i1 to i32
    %c0_i32_9 = arith.constant 0 : i32
    %11 = arith.cmpi ne, %10, %c0_i32_9 : i32
    scf.if %11 {
      %c0_174 = arith.constant 0 : index
      %c0_175 = arith.constant 0 : index
      %c0_176 = arith.constant 0 : index
      %c0_177 = arith.constant 0 : index
      %314 = vector.load %arg4[%c0_174, %c0_175, %c0_176, %c0_177] : memref<1x8x16x128xbf16, #tpu.memory_space<vmem>>, vector<1x7x16x128xbf16>
      %315 = vector.shape_cast %314 : vector<1x7x16x128xbf16> to vector<7x16x128xbf16>
      %316 = arith.extf %315 : vector<7x16x128xbf16> to vector<7x16x128xf32>
      %c16 = arith.constant 16 : index
      %c8_178 = arith.constant 8 : index
      %c0_179 = arith.constant 0 : index
      %317 = vector.load %arg12[%c16, %c8_178, %c0_179] : memref<24x32x128xf32, #tpu.memory_space<vmem>>, vector<7x16x128xf32>
      tpu.vector_store %arg12[%c16, %c8_178, %c0_179], %316 {strides = array<i32>} : memref<24x32x128xf32, #tpu.memory_space<vmem>>, vector<7x16x128xf32>,
    } else {
    }
    %12 = tpu.iota {dimensions = array<i32: 2>} : vector<1x1x128xi32>
    %c32_i32 = arith.constant 32 : i32
    %13 = vector.broadcast %c32_i32 : i32 to vector<1x1x128xi32>
    %14 = arith.cmpi slt, %12, %13 : vector<1x1x128xi32>
    %15 = arith.extui %14 : vector<1x1x128xi1> to vector<1x1x128xi32>
    %16 = arith.sitofp %15 : vector<1x1x128xi32> to vector<1x1x128xf32>
    %c0_10 = arith.constant 0 : index
    %c0_11 = arith.constant 0 : index
    %c0_12 = arith.constant 0 : index
    %17 = vector.load %arg5[%c0_10, %c0_11, %c0_12] : memref<27x1x128xf32, #tpu.memory_space<vmem>>, vector<27x1x128xf32>
    %c7 = arith.constant 7 : index
    %c7_13 = arith.constant 7 : index
    %c0_14 = arith.constant 0 : index
    %18 = vector.load %arg12[%c7, %c7_13, %c0_14] : memref<24x32x128xf32, #tpu.memory_space<vmem>>, vector<10x18x128xf32>
    %19 = vector.broadcast %16 : vector<1x1x128xf32> to vector<10x18x128xf32>
    %20 = arith.mulf %18, %19 : vector<10x18x128xf32>
    %c5 = arith.constant 5 : index
    %c5_15 = arith.constant 5 : index
    %c0_16 = arith.constant 0 : index
    %21 = vector.load %arg12[%c5, %c5_15, %c0_16] : memref<24x32x128xf32, #tpu.memory_space<vmem>>, vector<10x18x128xf32>
    %22 = vector.extract_strided_slice %17 {offsets = [0, 0, 0], sizes = [1, 1, 128], strides = [1, 1, 1]} : vector<27x1x128xf32> to vector<1x1x128xf32>
    %23 = vector.shape_cast %22 : vector<1x1x128xf32> to vector<1x128xf32>
    %24 = vector.shape_cast %23 : vector<1x128xf32> to vector<1x1x128xf32>
    %25 = vector.broadcast %24 : vector<1x1x128xf32> to vector<10x18x128xf32>
    %26 = arith.mulf %21, %25 : vector<10x18x128xf32>
    %27 = arith.addf %20, %26 : vector<10x18x128xf32>
    %c7_17 = arith.constant 7 : index
    %c5_18 = arith.constant 5 : index
    %c0_19 = arith.constant 0 : index
    %28 = vector.load %arg12[%c7_17, %c5_18, %c0_19] : memref<24x32x128xf32, #tpu.memory_space<vmem>>, vector<10x18x128xf32>
    %29 = vector.extract_strided_slice %17 {offsets = [3, 0, 0], sizes = [1, 1, 128], strides = [1, 1, 1]} : vector<27x1x128xf32> to vector<1x1x128xf32>
    %30 = vector.shape_cast %29 : vector<1x1x128xf32> to vector<1x128xf32>
    %31 = vector.shape_cast %30 : vector<1x128xf32> to vector<1x1x128xf32>
    %32 = vector.broadcast %31 : vector<1x1x128xf32> to vector<10x18x128xf32>
    %33 = arith.mulf %28, %32 : vector<10x18x128xf32>
    %34 = arith.addf %27, %33 : vector<10x18x128xf32>
    %c9 = arith.constant 9 : index
    %c5_20 = arith.constant 5 : index
    %c0_21 = arith.constant 0 : index
    %35 = vector.load %arg12[%c9, %c5_20, %c0_21] : memref<24x32x128xf32, #tpu.memory_space<vmem>>, vector<10x18x128xf32>
    %36 = vector.extract_strided_slice %17 {offsets = [6, 0, 0], sizes = [1, 1, 128], strides = [1, 1, 1]} : vector<27x1x128xf32> to vector<1x1x128xf32>
    %37 = vector.shape_cast %36 : vector<1x1x128xf32> to vector<1x128xf32>
    %38 = vector.shape_cast %37 : vector<1x128xf32> to vector<1x1x128xf32>
    %39 = vector.broadcast %38 : vector<1x1x128xf32> to vector<10x18x128xf32>
    %40 = arith.mulf %35, %39 : vector<10x18x128xf32>
    %41 = arith.addf %34, %40 : vector<10x18x128xf32>
    %c5_22 = arith.constant 5 : index
    %c7_23 = arith.constant 7 : index
    %c0_24 = arith.constant 0 : index
    %42 = vector.load %arg12[%c5_22, %c7_23, %c0_24] : memref<24x32x128xf32, #tpu.memory_space<vmem>>, vector<10x18x128xf32>
    %43 = vector.extract_strided_slice %17 {offsets = [1, 0, 0], sizes = [1, 1, 128], strides = [1, 1, 1]} : vector<27x1x128xf32> to vector<1x1x128xf32>
    %44 = vector.shape_cast %43 : vector<1x1x128xf32> to vector<1x128xf32>
    %45 = vector.shape_cast %44 : vector<1x128xf32> to vector<1x1x128xf32>
    %46 = vector.broadcast %45 : vector<1x1x128xf32> to vector<10x18x128xf32>
    %47 = arith.mulf %42, %46 : vector<10x18x128xf32>
    %48 = arith.addf %41, %47 : vector<10x18x128xf32>
    %c7_25 = arith.constant 7 : index
    %c7_26 = arith.constant 7 : index
    %c0_27 = arith.constant 0 : index
    %49 = vector.load %arg12[%c7_25, %c7_26, %c0_27] : memref<24x32x128xf32, #tpu.memory_space<vmem>>, vector<10x18x128xf32>
    %50 = vector.extract_strided_slice %17 {offsets = [4, 0, 0], sizes = [1, 1, 128], strides = [1, 1, 1]} : vector<27x1x128xf32> to vector<1x1x128xf32>
    %51 = vector.shape_cast %50 : vector<1x1x128xf32> to vector<1x128xf32>
    %52 = vector.shape_cast %51 : vector<1x128xf32> to vector<1x1x128xf32>
    %53 = vector.broadcast %52 : vector<1x1x128xf32> to vector<10x18x128xf32>
    %54 = arith.mulf %49, %53 : vector<10x18x128xf32>
    %55 = arith.addf %48, %54 : vector<10x18x128xf32>
    %c9_28 = arith.constant 9 : index
    %c7_29 = arith.constant 7 : index
    %c0_30 = arith.constant 0 : index
    %56 = vector.load %arg12[%c9_28, %c7_29, %c0_30] : memref<24x32x128xf32, #tpu.memory_space<vmem>>, vector<10x18x128xf32>
    %57 = vector.extract_strided_slice %17 {offsets = [7, 0, 0], sizes = [1, 1, 128], strides = [1, 1, 1]} : vector<27x1x128xf32> to vector<1x1x128xf32>
    %58 = vector.shape_cast %57 : vector<1x1x128xf32> to vector<1x128xf32>
    %59 = vector.shape_cast %58 : vector<1x128xf32> to vector<1x1x128xf32>
    %60 = vector.broadcast %59 : vector<1x1x128xf32> to vector<10x18x128xf32>
    %61 = arith.mulf %56, %60 : vector<10x18x128xf32>
    %62 = arith.addf %55, %61 : vector<10x18x128xf32>
    %c5_31 = arith.constant 5 : index
    %c9_32 = arith.constant 9 : index
    %c0_33 = arith.constant 0 : index
    %63 = vector.load %arg12[%c5_31, %c9_32, %c0_33] : memref<24x32x128xf32, #tpu.memory_space<vmem>>, vector<10x18x128xf32>
    %64 = vector.extract_strided_slice %17 {offsets = [2, 0, 0], sizes = [1, 1, 128], strides = [1, 1, 1]} : vector<27x1x128xf32> to vector<1x1x128xf32>
    %65 = vector.shape_cast %64 : vector<1x1x128xf32> to vector<1x128xf32>
    %66 = vector.shape_cast %65 : vector<1x128xf32> to vector<1x1x128xf32>
    %67 = vector.broadcast %66 : vector<1x1x128xf32> to vector<10x18x128xf32>
    %68 = arith.mulf %63, %67 : vector<10x18x128xf32>
    %69 = arith.addf %62, %68 : vector<10x18x128xf32>
    %c7_34 = arith.constant 7 : index
    %c9_35 = arith.constant 9 : index
    %c0_36 = arith.constant 0 : index
    %70 = vector.load %arg12[%c7_34, %c9_35, %c0_36] : memref<24x32x128xf32, #tpu.memory_space<vmem>>, vector<10x18x128xf32>
    %71 = vector.extract_strided_slice %17 {offsets = [5, 0, 0], sizes = [1, 1, 128], strides = [1, 1, 1]} : vector<27x1x128xf32> to vector<1x1x128xf32>
    %72 = vector.shape_cast %71 : vector<1x1x128xf32> to vector<1x128xf32>
    %73 = vector.shape_cast %72 : vector<1x128xf32> to vector<1x1x128xf32>
    %74 = vector.broadcast %73 : vector<1x1x128xf32> to vector<10x18x128xf32>
    %75 = arith.mulf %70, %74 : vector<10x18x128xf32>
    %76 = arith.addf %69, %75 : vector<10x18x128xf32>
    %c9_37 = arith.constant 9 : index
    %c9_38 = arith.constant 9 : index
    %c0_39 = arith.constant 0 : index
    %77 = vector.load %arg12[%c9_37, %c9_38, %c0_39] : memref<24x32x128xf32, #tpu.memory_space<vmem>>, vector<10x18x128xf32>
    %78 = vector.extract_strided_slice %17 {offsets = [8, 0, 0], sizes = [1, 1, 128], strides = [1, 1, 1]} : vector<27x1x128xf32> to vector<1x1x128xf32>
    %79 = vector.shape_cast %78 : vector<1x1x128xf32> to vector<1x128xf32>
    %80 = vector.shape_cast %79 : vector<1x128xf32> to vector<1x1x128xf32>
    %81 = vector.broadcast %80 : vector<1x1x128xf32> to vector<10x18x128xf32>
    %82 = arith.mulf %77, %81 : vector<10x18x128xf32>
    %83 = arith.addf %76, %82 : vector<10x18x128xf32>
    %c3 = arith.constant 3 : index
    %c3_40 = arith.constant 3 : index
    %c0_41 = arith.constant 0 : index
    %84 = vector.load %arg12[%c3, %c3_40, %c0_41] : memref<24x32x128xf32, #tpu.memory_space<vmem>>, vector<10x18x128xf32>
    %85 = vector.extract_strided_slice %17 {offsets = [9, 0, 0], sizes = [1, 1, 128], strides = [1, 1, 1]} : vector<27x1x128xf32> to vector<1x1x128xf32>
    %86 = vector.shape_cast %85 : vector<1x1x128xf32> to vector<1x128xf32>
    %87 = vector.shape_cast %86 : vector<1x128xf32> to vector<1x1x128xf32>
    %88 = vector.broadcast %87 : vector<1x1x128xf32> to vector<10x18x128xf32>
    %89 = arith.mulf %84, %88 : vector<10x18x128xf32>
    %90 = arith.addf %83, %89 : vector<10x18x128xf32>
    %c7_42 = arith.constant 7 : index
    %c3_43 = arith.constant 3 : index
    %c0_44 = arith.constant 0 : index
    %91 = vector.load %arg12[%c7_42, %c3_43, %c0_44] : memref<24x32x128xf32, #tpu.memory_space<vmem>>, vector<10x18x128xf32>
    %92 = vector.extract_strided_slice %17 {offsets = [12, 0, 0], sizes = [1, 1, 128], strides = [1, 1, 1]} : vector<27x1x128xf32> to vector<1x1x128xf32>
    %93 = vector.shape_cast %92 : vector<1x1x128xf32> to vector<1x128xf32>
    %94 = vector.shape_cast %93 : vector<1x128xf32> to vector<1x1x128xf32>
    %95 = vector.broadcast %94 : vector<1x1x128xf32> to vector<10x18x128xf32>
    %96 = arith.mulf %91, %95 : vector<10x18x128xf32>
    %97 = arith.addf %90, %96 : vector<10x18x128xf32>
    %c11 = arith.constant 11 : index
    %c3_45 = arith.constant 3 : index
    %c0_46 = arith.constant 0 : index
    %98 = vector.load %arg12[%c11, %c3_45, %c0_46] : memref<24x32x128xf32, #tpu.memory_space<vmem>>, vector<10x18x128xf32>
    %99 = vector.extract_strided_slice %17 {offsets = [15, 0, 0], sizes = [1, 1, 128], strides = [1, 1, 1]} : vector<27x1x128xf32> to vector<1x1x128xf32>
    %100 = vector.shape_cast %99 : vector<1x1x128xf32> to vector<1x128xf32>
    %101 = vector.shape_cast %100 : vector<1x128xf32> to vector<1x1x128xf32>
    %102 = vector.broadcast %101 : vector<1x1x128xf32> to vector<10x18x128xf32>
    %103 = arith.mulf %98, %102 : vector<10x18x128xf32>
    %104 = arith.addf %97, %103 : vector<10x18x128xf32>
    %c3_47 = arith.constant 3 : index
    %c7_48 = arith.constant 7 : index
    %c0_49 = arith.constant 0 : index
    %105 = vector.load %arg12[%c3_47, %c7_48, %c0_49] : memref<24x32x128xf32, #tpu.memory_space<vmem>>, vector<10x18x128xf32>
    %106 = vector.extract_strided_slice %17 {offsets = [10, 0, 0], sizes = [1, 1, 128], strides = [1, 1, 1]} : vector<27x1x128xf32> to vector<1x1x128xf32>
    %107 = vector.shape_cast %106 : vector<1x1x128xf32> to vector<1x128xf32>
    %108 = vector.shape_cast %107 : vector<1x128xf32> to vector<1x1x128xf32>
    %109 = vector.broadcast %108 : vector<1x1x128xf32> to vector<10x18x128xf32>
    %110 = arith.mulf %105, %109 : vector<10x18x128xf32>
    %111 = arith.addf %104, %110 : vector<10x18x128xf32>
    %c7_50 = arith.constant 7 : index
    %c7_51 = arith.constant 7 : index
    %c0_52 = arith.constant 0 : index
    %112 = vector.load %arg12[%c7_50, %c7_51, %c0_52] : memref<24x32x128xf32, #tpu.memory_space<vmem>>, vector<10x18x128xf32>
    %113 = vector.extract_strided_slice %17 {offsets = [13, 0, 0], sizes = [1, 1, 128], strides = [1, 1, 1]} : vector<27x1x128xf32> to vector<1x1x128xf32>
    %114 = vector.shape_cast %113 : vector<1x1x128xf32> to vector<1x128xf32>
    %115 = vector.shape_cast %114 : vector<1x128xf32> to vector<1x1x128xf32>
    %116 = vector.broadcast %115 : vector<1x1x128xf32> to vector<10x18x128xf32>
    %117 = arith.mulf %112, %116 : vector<10x18x128xf32>
    %118 = arith.addf %111, %117 : vector<10x18x128xf32>
    %c11_53 = arith.constant 11 : index
    %c7_54 = arith.constant 7 : index
    %c0_55 = arith.constant 0 : index
    %119 = vector.load %arg12[%c11_53, %c7_54, %c0_55] : memref<24x32x128xf32, #tpu.memory_space<vmem>>, vector<10x18x128xf32>
    %120 = vector.extract_strided_slice %17 {offsets = [16, 0, 0], sizes = [1, 1, 128], strides = [1, 1, 1]} : vector<27x1x128xf32> to vector<1x1x128xf32>
    %121 = vector.shape_cast %120 : vector<1x1x128xf32> to vector<1x128xf32>
    %122 = vector.shape_cast %121 : vector<1x128xf32> to vector<1x1x128xf32>
    %123 = vector.broadcast %122 : vector<1x1x128xf32> to vector<10x18x128xf32>
    %124 = arith.mulf %119, %123 : vector<10x18x128xf32>
    %125 = arith.addf %118, %124 : vector<10x18x128xf32>
    %c3_56 = arith.constant 3 : index
    %c11_57 = arith.constant 11 : index
    %c0_58 = arith.constant 0 : index
    %126 = vector.load %arg12[%c3_56, %c11_57, %c0_58] : memref<24x32x128xf32, #tpu.memory_space<vmem>>, vector<10x18x128xf32>
    %127 = vector.extract_strided_slice %17 {offsets = [11, 0, 0], sizes = [1, 1, 128], strides = [1, 1, 1]} : vector<27x1x128xf32> to vector<1x1x128xf32>
    %128 = vector.shape_cast %127 : vector<1x1x128xf32> to vector<1x128xf32>
    %129 = vector.shape_cast %128 : vector<1x128xf32> to vector<1x1x128xf32>
    %130 = vector.broadcast %129 : vector<1x1x128xf32> to vector<10x18x128xf32>
    %131 = arith.mulf %126, %130 : vector<10x18x128xf32>
    %132 = arith.addf %125, %131 : vector<10x18x128xf32>
    %c7_59 = arith.constant 7 : index
    %c11_60 = arith.constant 11 : index
    %c0_61 = arith.constant 0 : index
    %133 = vector.load %arg12[%c7_59, %c11_60, %c0_61] : memref<24x32x128xf32, #tpu.memory_space<vmem>>, vector<10x18x128xf32>
    %134 = vector.extract_strided_slice %17 {offsets = [14, 0, 0], sizes = [1, 1, 128], strides = [1, 1, 1]} : vector<27x1x128xf32> to vector<1x1x128xf32>
    %135 = vector.shape_cast %134 : vector<1x1x128xf32> to vector<1x128xf32>
    %136 = vector.shape_cast %135 : vector<1x128xf32> to vector<1x1x128xf32>
    %137 = vector.broadcast %136 : vector<1x1x128xf32> to vector<10x18x128xf32>
    %138 = arith.mulf %133, %137 : vector<10x18x128xf32>
    %139 = arith.addf %132, %138 : vector<10x18x128xf32>
    %c11_62 = arith.constant 11 : index
    %c11_63 = arith.constant 11 : index
    %c0_64 = arith.constant 0 : index
    %140 = vector.load %arg12[%c11_62, %c11_63, %c0_64] : memref<24x32x128xf32, #tpu.memory_space<vmem>>, vector<10x18x128xf32>
    %141 = vector.extract_strided_slice %17 {offsets = [17, 0, 0], sizes = [1, 1, 128], strides = [1, 1, 1]} : vector<27x1x128xf32> to vector<1x1x128xf32>
    %142 = vector.shape_cast %141 : vector<1x1x128xf32> to vector<1x128xf32>
    %143 = vector.shape_cast %142 : vector<1x128xf32> to vector<1x1x128xf32>
    %144 = vector.broadcast %143 : vector<1x1x128xf32> to vector<10x18x128xf32>
    %145 = arith.mulf %140, %144 : vector<10x18x128xf32>
    %146 = arith.addf %139, %145 : vector<10x18x128xf32>
    %c1 = arith.constant 1 : index
    %c1_65 = arith.constant 1 : index
    %c0_66 = arith.constant 0 : index
    %147 = vector.load %arg12[%c1, %c1_65, %c0_66] : memref<24x32x128xf32, #tpu.memory_space<vmem>>, vector<10x18x128xf32>
    %148 = vector.extract_strided_slice %17 {offsets = [18, 0, 0], sizes = [1, 1, 128], strides = [1, 1, 1]} : vector<27x1x128xf32> to vector<1x1x128xf32>
    %149 = vector.shape_cast %148 : vector<1x1x128xf32> to vector<1x128xf32>
    %150 = vector.shape_cast %149 : vector<1x128xf32> to vector<1x1x128xf32>
    %151 = vector.broadcast %150 : vector<1x1x128xf32> to vector<10x18x128xf32>
    %152 = arith.mulf %147, %151 : vector<10x18x128xf32>
    %153 = arith.addf %146, %152 : vector<10x18x128xf32>
    %c7_67 = arith.constant 7 : index
    %c1_68 = arith.constant 1 : index
    %c0_69 = arith.constant 0 : index
    %154 = vector.load %arg12[%c7_67, %c1_68, %c0_69] : memref<24x32x128xf32, #tpu.memory_space<vmem>>, vector<10x18x128xf32>
    %155 = vector.extract_strided_slice %17 {offsets = [21, 0, 0], sizes = [1, 1, 128], strides = [1, 1, 1]} : vector<27x1x128xf32> to vector<1x1x128xf32>
    %156 = vector.shape_cast %155 : vector<1x1x128xf32> to vector<1x128xf32>
    %157 = vector.shape_cast %156 : vector<1x128xf32> to vector<1x1x128xf32>
    %158 = vector.broadcast %157 : vector<1x1x128xf32> to vector<10x18x128xf32>
    %159 = arith.mulf %154, %158 : vector<10x18x128xf32>
    %160 = arith.addf %153, %159 : vector<10x18x128xf32>
    %c13 = arith.constant 13 : index
    %c1_70 = arith.constant 1 : index
    %c0_71 = arith.constant 0 : index
    %161 = vector.load %arg12[%c13, %c1_70, %c0_71] : memref<24x32x128xf32, #tpu.memory_space<vmem>>, vector<10x18x128xf32>
    %162 = vector.extract_strided_slice %17 {offsets = [24, 0, 0], sizes = [1, 1, 128], strides = [1, 1, 1]} : vector<27x1x128xf32> to vector<1x1x128xf32>
    %163 = vector.shape_cast %162 : vector<1x1x128xf32> to vector<1x128xf32>
    %164 = vector.shape_cast %163 : vector<1x128xf32> to vector<1x1x128xf32>
    %165 = vector.broadcast %164 : vector<1x1x128xf32> to vector<10x18x128xf32>
    %166 = arith.mulf %161, %165 : vector<10x18x128xf32>
    %167 = arith.addf %160, %166 : vector<10x18x128xf32>
    %c1_72 = arith.constant 1 : index
    %c7_73 = arith.constant 7 : index
    %c0_74 = arith.constant 0 : index
    %168 = vector.load %arg12[%c1_72, %c7_73, %c0_74] : memref<24x32x128xf32, #tpu.memory_space<vmem>>, vector<10x18x128xf32>
    %169 = vector.extract_strided_slice %17 {offsets = [19, 0, 0], sizes = [1, 1, 128], strides = [1, 1, 1]} : vector<27x1x128xf32> to vector<1x1x128xf32>
    %170 = vector.shape_cast %169 : vector<1x1x128xf32> to vector<1x128xf32>
    %171 = vector.shape_cast %170 : vector<1x128xf32> to vector<1x1x128xf32>
    %172 = vector.broadcast %171 : vector<1x1x128xf32> to vector<10x18x128xf32>
    %173 = arith.mulf %168, %172 : vector<10x18x128xf32>
    %174 = arith.addf %167, %173 : vector<10x18x128xf32>
    %c7_75 = arith.constant 7 : index
    %c7_76 = arith.constant 7 : index
    %c0_77 = arith.constant 0 : index
    %175 = vector.load %arg12[%c7_75, %c7_76, %c0_77] : memref<24x32x128xf32, #tpu.memory_space<vmem>>, vector<10x18x128xf32>
    %176 = vector.extract_strided_slice %17 {offsets = [22, 0, 0], sizes = [1, 1, 128], strides = [1, 1, 1]} : vector<27x1x128xf32> to vector<1x1x128xf32>
    %177 = vector.shape_cast %176 : vector<1x1x128xf32> to vector<1x128xf32>
    %178 = vector.shape_cast %177 : vector<1x128xf32> to vector<1x1x128xf32>
    %179 = vector.broadcast %178 : vector<1x1x128xf32> to vector<10x18x128xf32>
    %180 = arith.mulf %175, %179 : vector<10x18x128xf32>
    %181 = arith.addf %174, %180 : vector<10x18x128xf32>
    %c13_78 = arith.constant 13 : index
    %c7_79 = arith.constant 7 : index
    %c0_80 = arith.constant 0 : index
    %182 = vector.load %arg12[%c13_78, %c7_79, %c0_80] : memref<24x32x128xf32, #tpu.memory_space<vmem>>, vector<10x18x128xf32>
    %183 = vector.extract_strided_slice %17 {offsets = [25, 0, 0], sizes = [1, 1, 128], strides = [1, 1, 1]} : vector<27x1x128xf32> to vector<1x1x128xf32>
    %184 = vector.shape_cast %183 : vector<1x1x128xf32> to vector<1x128xf32>
    %185 = vector.shape_cast %184 : vector<1x128xf32> to vector<1x1x128xf32>
    %186 = vector.broadcast %185 : vector<1x1x128xf32> to vector<10x18x128xf32>
    %187 = arith.mulf %182, %186 : vector<10x18x128xf32>
    %188 = arith.addf %181, %187 : vector<10x18x128xf32>
    %c1_81 = arith.constant 1 : index
    %c13_82 = arith.constant 13 : index
    %c0_83 = arith.constant 0 : index
    %189 = vector.load %arg12[%c1_81, %c13_82, %c0_83] : memref<24x32x128xf32, #tpu.memory_space<vmem>>, vector<10x18x128xf32>
    %190 = vector.extract_strided_slice %17 {offsets = [20, 0, 0], sizes = [1, 1, 128], strides = [1, 1, 1]} : vector<27x1x128xf32> to vector<1x1x128xf32>
    %191 = vector.shape_cast %190 : vector<1x1x128xf32> to vector<1x128xf32>
    %192 = vector.shape_cast %191 : vector<1x128xf32> to vector<1x1x128xf32>
    %193 = vector.broadcast %192 : vector<1x1x128xf32> to vector<10x18x128xf32>
    %194 = arith.mulf %189, %193 : vector<10x18x128xf32>
    %195 = arith.addf %188, %194 : vector<10x18x128xf32>
    %c7_84 = arith.constant 7 : index
    %c13_85 = arith.constant 13 : index
    %c0_86 = arith.constant 0 : index
    %196 = vector.load %arg12[%c7_84, %c13_85, %c0_86] : memref<24x32x128xf32, #tpu.memory_space<vmem>>, vector<10x18x128xf32>
    %197 = vector.extract_strided_slice %17 {offsets = [23, 0, 0], sizes = [1, 1, 128], strides = [1, 1, 1]} : vector<27x1x128xf32> to vector<1x1x128xf32>
    %198 = vector.shape_cast %197 : vector<1x1x128xf32> to vector<1x128xf32>
    %199 = vector.shape_cast %198 : vector<1x128xf32> to vector<1x1x128xf32>
    %200 = vector.broadcast %199 : vector<1x1x128xf32> to vector<10x18x128xf32>
    %201 = arith.mulf %196, %200 : vector<10x18x128xf32>
    %202 = arith.addf %195, %201 : vector<10x18x128xf32>
    %c13_87 = arith.constant 13 : index
    %c13_88 = arith.constant 13 : index
    %c0_89 = arith.constant 0 : index
    %203 = vector.load %arg12[%c13_87, %c13_88, %c0_89] : memref<24x32x128xf32, #tpu.memory_space<vmem>>, vector<10x18x128xf32>
    %204 = vector.extract_strided_slice %17 {offsets = [26, 0, 0], sizes = [1, 1, 128], strides = [1, 1, 1]} : vector<27x1x128xf32> to vector<1x1x128xf32>
    %205 = vector.shape_cast %204 : vector<1x1x128xf32> to vector<1x128xf32>
    %206 = vector.shape_cast %205 : vector<1x128xf32> to vector<1x1x128xf32>
    %207 = vector.broadcast %206 : vector<1x1x128xf32> to vector<10x18x128xf32>
    %208 = arith.mulf %203, %207 : vector<10x18x128xf32>
    %209 = arith.addf %202, %208 : vector<10x18x128xf32>
    %c0_90 = arith.constant 0 : index
    %c0_91 = arith.constant 0 : index
    %210 = vector.load %arg6[%c0_90, %c0_91] : memref<1x128xf32, #tpu.memory_space<vmem>>, vector<1x128xf32>
    %211 = vector.shape_cast %210 : vector<1x128xf32> to vector<1x1x128xf32>
    %212 = vector.broadcast %211 : vector<1x1x128xf32> to vector<10x18x128xf32>
    %213 = arith.mulf %209, %212 : vector<10x18x128xf32>
    %c0_92 = arith.constant 0 : index
    %c0_93 = arith.constant 0 : index
    %214 = vector.load %arg7[%c0_92, %c0_93] : memref<1x128xf32, #tpu.memory_space<vmem>>, vector<1x128xf32>
    %215 = vector.shape_cast %214 : vector<1x128xf32> to vector<1x1x128xf32>
    %216 = vector.broadcast %215 : vector<1x1x128xf32> to vector<10x18x128xf32>
    %217 = arith.addf %213, %216 : vector<10x18x128xf32>
    %cst_94 = arith.constant 0.000000e+00 : f32
    %218 = vector.broadcast %cst_94 : f32 to vector<10x18x128xf32>
    %219 = arith.maximumf %217, %218 : vector<10x18x128xf32>
    %220 = tpu.iota {dimensions = array<i32: 0>} : vector<10x1x1xi32>
    %221 = tpu.iota {dimensions = array<i32: 1>} : vector<1x18x1xi32>
    %c8_i32 = arith.constant 8 : i32
    %222 = arith.muli %arg1, %c8_i32 : i32
    %c1_i32_95 = arith.constant 1 : i32
    %223 = arith.subi %222, %c1_i32_95 : i32
    %224 = vector.broadcast %223 : i32 to vector<10x1x1xi32>
    %225 = arith.addi %224, %220 : vector<10x1x1xi32>
    %c1_i32_96 = arith.constant 1 : i32
    %226 = vector.broadcast %c1_i32_96 : i32 to vector<1x18x1xi32>
    %227 = arith.subi %221, %226 : vector<1x18x1xi32>
    %c0_i32_97 = arith.constant 0 : i32
    %228 = vector.broadcast %c0_i32_97 : i32 to vector<10x1x1xi32>
    %229 = arith.cmpi sge, %225, %228 : vector<10x1x1xi32>
    %c16_i32 = arith.constant 16 : i32
    %230 = vector.broadcast %c16_i32 : i32 to vector<10x1x1xi32>
    %231 = arith.cmpi slt, %225, %230 : vector<10x1x1xi32>
    %232 = arith.andi %229, %231 : vector<10x1x1xi1>
    %c0_i32_98 = arith.constant 0 : i32
    %233 = vector.broadcast %c0_i32_98 : i32 to vector<1x18x1xi32>
    %234 = arith.cmpi sge, %227, %233 : vector<1x18x1xi32>
    %235 = vector.broadcast %232 : vector<10x1x1xi1> to vector<10x18x1xi1>
    %236 = vector.broadcast %234 : vector<1x18x1xi1> to vector<10x18x1xi1>
    %237 = arith.andi %235, %236 : vector<10x18x1xi1>
    %c16_i32_99 = arith.constant 16 : i32
    %238 = vector.broadcast %c16_i32_99 : i32 to vector<1x18x1xi32>
    %239 = arith.cmpi slt, %227, %238 : vector<1x18x1xi32>
    %240 = vector.broadcast %239 : vector<1x18x1xi1> to vector<10x18x1xi1>
    %241 = arith.andi %237, %240 : vector<10x18x1xi1>
    %cst_100 = arith.constant 0.000000e+00 : f32
    %242 = vector.shape_cast %241 : vector<10x18x1xi1> to vector<10x18x1xi1>
    %243 = vector.broadcast %242 : vector<10x18x1xi1> to vector<10x18x128xi1>
    %244 = vector.broadcast %cst_100 : f32 to vector<10x18x128xf32>
    %245 = arith.select %243, %219, %244 : vector<10x18x128xi1>, vector<10x18x128xf32>
    %c0_101 = arith.constant 0 : index
    %c0_102 = arith.constant 0 : index
    %c0_103 = arith.constant 0 : index
    %246 = vector.load %arg13[%c0_101, %c0_102, %c0_103] : memref<10x18x128xf32, #tpu.memory_space<vmem>>, vector<10x18x128xf32>
    tpu.vector_store %arg13[%c0_101, %c0_102, %c0_103], %245 {strides = array<i32>} : memref<10x18x128xf32, #tpu.memory_space<vmem>>, vector<10x18x128xf32>,
    %cst_104 = arith.constant 0.000000e+00 : f32
    %247 = vector.broadcast %cst_104 : f32 to vector<128x128xf32>
    %c0_105 = arith.constant 0 : index
    %c0_106 = arith.constant 0 : index
    %c0_107 = arith.constant 0 : index
    %248 = vector.load %arg13[%c0_105, %c0_106, %c0_107] : memref<10x18x128xf32, #tpu.memory_space<vmem>>, vector<8x16x128xf32>
    %249 = vector.shape_cast %248 : vector<8x16x128xf32> to vector<128x128xf32>
    %c0_108 = arith.constant 0 : index
    %c0_109 = arith.constant 0 : index
    %c0_110 = arith.constant 0 : index
    %250 = vector.load %arg8[%c0_108, %c0_109, %c0_110] : memref<9x128x128xf32, #tpu.memory_space<vmem>>, vector<1x128x128xf32>
    %251 = vector.shape_cast %250 : vector<1x128x128xf32> to vector<128x128xf32>
    %cst_111 = arith.constant dense<0.000000e+00> : vector<128x128xf32>
    %252 = tpu.matmul %249, %251, %cst_111 {dimension_numbers = #tpu.dot_dimension_numbers<[1], [0], [0], [1], [0, 0, 1, 1], [], []>} : vector<128x128xf32>, vector<128x128xf32>, vector<128x128xf32> -> vector<128x128xf32>
    %253 = arith.addf %247, %252 : vector<128x128xf32>
    %c0_112 = arith.constant 0 : index
    %c1_113 = arith.constant 1 : index
    %c0_114 = arith.constant 0 : index
    %254 = vector.load %arg13[%c0_112, %c1_113, %c0_114] : memref<10x18x128xf32, #tpu.memory_space<vmem>>, vector<8x16x128xf32>
    %255 = vector.shape_cast %254 : vector<8x16x128xf32> to vector<128x128xf32>
    %c1_115 = arith.constant 1 : index
    %c0_116 = arith.constant 0 : index
    %c0_117 = arith.constant 0 : index
    %256 = vector.load %arg8[%c1_115, %c0_116, %c0_117] : memref<9x128x128xf32, #tpu.memory_space<vmem>>, vector<1x128x128xf32>
    %257 = vector.shape_cast %256 : vector<1x128x128xf32> to vector<128x128xf32>
    %cst_118 = arith.constant dense<0.000000e+00> : vector<128x128xf32>
    %258 = tpu.matmul %255, %257, %cst_118 {dimension_numbers = #tpu.dot_dimension_numbers<[1], [0], [0], [1], [0, 0, 1, 1], [], []>} : vector<128x128xf32>, vector<128x128xf32>, vector<128x128xf32> -> vector<128x128xf32>
    %259 = arith.addf %253, %258 : vector<128x128xf32>
    %c0_119 = arith.constant 0 : index
    %c2 = arith.constant 2 : index
    %c0_120 = arith.constant 0 : index
    %260 = vector.load %arg13[%c0_119, %c2, %c0_120] : memref<10x18x128xf32, #tpu.memory_space<vmem>>, vector<8x16x128xf32>
    %261 = vector.shape_cast %260 : vector<8x16x128xf32> to vector<128x128xf32>
    %c2_121 = arith.constant 2 : index
    %c0_122 = arith.constant 0 : index
    %c0_123 = arith.constant 0 : index
    %262 = vector.load %arg8[%c2_121, %c0_122, %c0_123] : memref<9x128x128xf32, #tpu.memory_space<vmem>>, vector<1x128x128xf32>
    %263 = vector.shape_cast %262 : vector<1x128x128xf32> to vector<128x128xf32>
    %cst_124 = arith.constant dense<0.000000e+00> : vector<128x128xf32>
    %264 = tpu.matmul %261, %263, %cst_124 {dimension_numbers = #tpu.dot_dimension_numbers<[1], [0], [0], [1], [0, 0, 1, 1], [], []>} : vector<128x128xf32>, vector<128x128xf32>, vector<128x128xf32> -> vector<128x128xf32>
    %265 = arith.addf %259, %264 : vector<128x128xf32>
    %c1_125 = arith.constant 1 : index
    %c0_126 = arith.constant 0 : index
    %c0_127 = arith.constant 0 : index
    %266 = vector.load %arg13[%c1_125, %c0_126, %c0_127] : memref<10x18x128xf32, #tpu.memory_space<vmem>>, vector<8x16x128xf32>
    %267 = vector.shape_cast %266 : vector<8x16x128xf32> to vector<128x128xf32>
    %c3_128 = arith.constant 3 : index
    %c0_129 = arith.constant 0 : index
    %c0_130 = arith.constant 0 : index
    %268 = vector.load %arg8[%c3_128, %c0_129, %c0_130] : memref<9x128x128xf32, #tpu.memory_space<vmem>>, vector<1x128x128xf32>
    %269 = vector.shape_cast %268 : vector<1x128x128xf32> to vector<128x128xf32>
    %cst_131 = arith.constant dense<0.000000e+00> : vector<128x128xf32>
    %270 = tpu.matmul %267, %269, %cst_131 {dimension_numbers = #tpu.dot_dimension_numbers<[1], [0], [0], [1], [0, 0, 1, 1], [], []>} : vector<128x128xf32>, vector<128x128xf32>, vector<128x128xf32> -> vector<128x128xf32>
    %271 = arith.addf %265, %270 : vector<128x128xf32>
    %c1_132 = arith.constant 1 : index
    %c1_133 = arith.constant 1 : index
    %c0_134 = arith.constant 0 : index
    %272 = vector.load %arg13[%c1_132, %c1_133, %c0_134] : memref<10x18x128xf32, #tpu.memory_space<vmem>>, vector<8x16x128xf32>
    %273 = vector.shape_cast %272 : vector<8x16x128xf32> to vector<128x128xf32>
    %c4 = arith.constant 4 : index
    %c0_135 = arith.constant 0 : index
    %c0_136 = arith.constant 0 : index
    %274 = vector.load %arg8[%c4, %c0_135, %c0_136] : memref<9x128x128xf32, #tpu.memory_space<vmem>>, vector<1x128x128xf32>
    %275 = vector.shape_cast %274 : vector<1x128x128xf32> to vector<128x128xf32>
    %cst_137 = arith.constant dense<0.000000e+00> : vector<128x128xf32>
    %276 = tpu.matmul %273, %275, %cst_137 {dimension_numbers = #tpu.dot_dimension_numbers<[1], [0], [0], [1], [0, 0, 1, 1], [], []>} : vector<128x128xf32>, vector<128x128xf32>, vector<128x128xf32> -> vector<128x128xf32>
    %277 = arith.addf %271, %276 : vector<128x128xf32>
    %c1_138 = arith.constant 1 : index
    %c2_139 = arith.constant 2 : index
    %c0_140 = arith.constant 0 : index
    %278 = vector.load %arg13[%c1_138, %c2_139, %c0_140] : memref<10x18x128xf32, #tpu.memory_space<vmem>>, vector<8x16x128xf32>
    %279 = vector.shape_cast %278 : vector<8x16x128xf32> to vector<128x128xf32>
    %c5_141 = arith.constant 5 : index
    %c0_142 = arith.constant 0 : index
    %c0_143 = arith.constant 0 : index
    %280 = vector.load %arg8[%c5_141, %c0_142, %c0_143] : memref<9x128x128xf32, #tpu.memory_space<vmem>>, vector<1x128x128xf32>
    %281 = vector.shape_cast %280 : vector<1x128x128xf32> to vector<128x128xf32>
    %cst_144 = arith.constant dense<0.000000e+00> : vector<128x128xf32>
    %282 = tpu.matmul %279, %281, %cst_144 {dimension_numbers = #tpu.dot_dimension_numbers<[1], [0], [0], [1], [0, 0, 1, 1], [], []>} : vector<128x128xf32>, vector<128x128xf32>, vector<128x128xf32> -> vector<128x128xf32>
    %283 = arith.addf %277, %282 : vector<128x128xf32>
    %c2_145 = arith.constant 2 : index
    %c0_146 = arith.constant 0 : index
    %c0_147 = arith.constant 0 : index
    %284 = vector.load %arg13[%c2_145, %c0_146, %c0_147] : memref<10x18x128xf32, #tpu.memory_space<vmem>>, vector<8x16x128xf32>
    %285 = vector.shape_cast %284 : vector<8x16x128xf32> to vector<128x128xf32>
    %c6 = arith.constant 6 : index
    %c0_148 = arith.constant 0 : index
    %c0_149 = arith.constant 0 : index
    %286 = vector.load %arg8[%c6, %c0_148, %c0_149] : memref<9x128x128xf32, #tpu.memory_space<vmem>>, vector<1x128x128xf32>
    %287 = vector.shape_cast %286 : vector<1x128x128xf32> to vector<128x128xf32>
    %cst_150 = arith.constant dense<0.000000e+00> : vector<128x128xf32>
    %288 = tpu.matmul %285, %287, %cst_150 {dimension_numbers = #tpu.dot_dimension_numbers<[1], [0], [0], [1], [0, 0, 1, 1], [], []>} : vector<128x128xf32>, vector<128x128xf32>, vector<128x128xf32> -> vector<128x128xf32>
    %289 = arith.addf %283, %288 : vector<128x128xf32>
    %c2_151 = arith.constant 2 : index
    %c1_152 = arith.constant 1 : index
    %c0_153 = arith.constant 0 : index
    %290 = vector.load %arg13[%c2_151, %c1_152, %c0_153] : memref<10x18x128xf32, #tpu.memory_space<vmem>>, vector<8x16x128xf32>
    %291 = vector.shape_cast %290 : vector<8x16x128xf32> to vector<128x128xf32>
    %c7_154 = arith.constant 7 : index
    %c0_155 = arith.constant 0 : index
    %c0_156 = arith.constant 0 : index
    %292 = vector.load %arg8[%c7_154, %c0_155, %c0_156] : memref<9x128x128xf32, #tpu.memory_space<vmem>>, vector<1x128x128xf32>
    %293 = vector.shape_cast %292 : vector<1x128x128xf32> to vector<128x128xf32>
    %cst_157 = arith.constant dense<0.000000e+00> : vector<128x128xf32>
    %294 = tpu.matmul %291, %293, %cst_157 {dimension_numbers = #tpu.dot_dimension_numbers<[1], [0], [0], [1], [0, 0, 1, 1], [], []>} : vector<128x128xf32>, vector<128x128xf32>, vector<128x128xf32> -> vector<128x128xf32>
    %295 = arith.addf %289, %294 : vector<128x128xf32>
    %c2_158 = arith.constant 2 : index
    %c2_159 = arith.constant 2 : index
    %c0_160 = arith.constant 0 : index
    %296 = vector.load %arg13[%c2_158, %c2_159, %c0_160] : memref<10x18x128xf32, #tpu.memory_space<vmem>>, vector<8x16x128xf32>
    %297 = vector.shape_cast %296 : vector<8x16x128xf32> to vector<128x128xf32>
    %c8_161 = arith.constant 8 : index
    %c0_162 = arith.constant 0 : index
    %c0_163 = arith.constant 0 : index
    %298 = vector.load %arg8[%c8_161, %c0_162, %c0_163] : memref<9x128x128xf32, #tpu.memory_space<vmem>>, vector<1x128x128xf32>
    %299 = vector.shape_cast %298 : vector<1x128x128xf32> to vector<128x128xf32>
    %cst_164 = arith.constant dense<0.000000e+00> : vector<128x128xf32>
    %300 = tpu.matmul %297, %299, %cst_164 {dimension_numbers = #tpu.dot_dimension_numbers<[1], [0], [0], [1], [0, 0, 1, 1], [], []>} : vector<128x128xf32>, vector<128x128xf32>, vector<128x128xf32> -> vector<128x128xf32>
    %301 = arith.addf %295, %300 : vector<128x128xf32>
    %c0_165 = arith.constant 0 : index
    %c0_166 = arith.constant 0 : index
    %302 = vector.load %arg9[%c0_165, %c0_166] : memref<1x128xf32, #tpu.memory_space<vmem>>, vector<1x128xf32>
    %303 = vector.broadcast %302 : vector<1x128xf32> to vector<128x128xf32>
    %304 = arith.mulf %301, %303 : vector<128x128xf32>
    %c0_167 = arith.constant 0 : index
    %c0_168 = arith.constant 0 : index
    %305 = vector.load %arg10[%c0_167, %c0_168] : memref<1x128xf32, #tpu.memory_space<vmem>>, vector<1x128xf32>
    %306 = vector.broadcast %305 : vector<1x128xf32> to vector<128x128xf32>
    %307 = arith.addf %304, %306 : vector<128x128xf32>
    %cst_169 = arith.constant 0.000000e+00 : f32
    %308 = vector.broadcast %cst_169 : f32 to vector<128x128xf32>
    %309 = arith.maximumf %307, %308 : vector<128x128xf32>
    %310 = vector.shape_cast %309 : vector<128x128xf32> to vector<8x16x128xf32>
    %c0_170 = arith.constant 0 : index
    %c0_171 = arith.constant 0 : index
    %c0_172 = arith.constant 0 : index
    %c0_173 = arith.constant 0 : index
    %311 = vector.load %arg11[%c0_170, %c0_171, %c0_172, %c0_173] : memref<1x8x16x128xf32, #tpu.memory_space<vmem>>, vector<1x8x16x128xf32>
    %312 = vector.shape_cast %311 : vector<1x8x16x128xf32> to vector<8x16x128xf32>
    %313 = vector.shape_cast %310 : vector<8x16x128xf32> to vector<1x8x16x128xf32>
    tpu.vector_store %arg11[%c0_170, %c0_171, %c0_172, %c0_173], %313 {strides = array<i32>} : memref<1x8x16x128xf32, #tpu.memory_space<vmem>>, vector<1x8x16x128xf32>,
    return
  }
  func.func @transform_0(%arg0: i32, %arg1: i32) -> (i32, i32, i32, i32) {
    %c0_i32 = arith.constant 0 : i32
    %c0_i32_0 = arith.constant 0 : i32
    %c0_i32_1 = arith.constant 0 : i32
    return %arg0, %arg1, %c0_i32, %c0_i32_0 : i32, i32, i32, i32
  }
  func.func @transform_1(%arg0: i32, %arg1: i32) -> (i32, i32, i32, i32) {
    %c1_i32 = arith.constant 1 : i32
    %0 = arith.muli %arg1, %c1_i32 : i32
    %c1_i32_0 = arith.constant 1 : i32
    %1 = arith.subi %0, %c1_i32_0 : i32
    %c0_i32 = arith.constant 0 : i32
    %2 = arith.maxsi %1, %c0_i32 : i32
    %c0_i32_1 = arith.constant 0 : i32
    %c0_i32_2 = arith.constant 0 : i32
    %c0_i32_3 = arith.constant 0 : i32
    return %arg0, %2, %c0_i32_1, %c0_i32_2 : i32, i32, i32, i32
  }
  func.func @transform_2(%arg0: i32, %arg1: i32) -> (i32, i32, i32, i32) {
    %c1_i32 = arith.constant 1 : i32
    %0 = arith.addi %arg1, %c1_i32 : i32
    %c1_i32_0 = arith.constant 1 : i32
    %1 = arith.muli %0, %c1_i32_0 : i32
    %c1_i32_1 = arith.constant 1 : i32
    %2 = arith.minsi %1, %c1_i32_1 : i32
    %c0_i32 = arith.constant 0 : i32
    %c0_i32_2 = arith.constant 0 : i32
    %c0_i32_3 = arith.constant 0 : i32
    return %arg0, %2, %c0_i32, %c0_i32_2 : i32, i32, i32, i32
  }
  func.func @transform_3(%arg0: i32, %arg1: i32) -> (i32, i32, i32) {
    %c0_i32 = arith.constant 0 : i32
    %c0_i32_0 = arith.constant 0 : i32
    %c0_i32_1 = arith.constant 0 : i32
    %c0_i32_2 = arith.constant 0 : i32
    return %c0_i32, %c0_i32_0, %c0_i32_1 : i32, i32, i32
  }
  func.func @transform_4(%arg0: i32, %arg1: i32) -> (i32, i32) {
    %c0_i32 = arith.constant 0 : i32
    %c0_i32_0 = arith.constant 0 : i32
    %c0_i32_1 = arith.constant 0 : i32
    return %c0_i32, %c0_i32_0 : i32, i32
  }
  func.func @transform_5(%arg0: i32, %arg1: i32) -> (i32, i32) {
    %c0_i32 = arith.constant 0 : i32
    %c0_i32_0 = arith.constant 0 : i32
    %c0_i32_1 = arith.constant 0 : i32
    return %c0_i32, %c0_i32_0 : i32, i32
  }
  func.func @transform_6(%arg0: i32, %arg1: i32) -> (i32, i32, i32) {
    %c0_i32 = arith.constant 0 : i32
    %c0_i32_0 = arith.constant 0 : i32
    %c0_i32_1 = arith.constant 0 : i32
    %c0_i32_2 = arith.constant 0 : i32
    return %c0_i32, %c0_i32_0, %c0_i32_1 : i32, i32, i32
  }
  func.func @transform_7(%arg0: i32, %arg1: i32) -> (i32, i32) {
    %c0_i32 = arith.constant 0 : i32
    %c0_i32_0 = arith.constant 0 : i32
    %c0_i32_1 = arith.constant 0 : i32
    return %c0_i32, %c0_i32_0 : i32, i32
  }
  func.func @transform_8(%arg0: i32, %arg1: i32) -> (i32, i32) {
    %c0_i32 = arith.constant 0 : i32
    %c0_i32_0 = arith.constant 0 : i32
    %c0_i32_1 = arith.constant 0 : i32
    return %c0_i32, %c0_i32_0 : i32, i32
  }
  func.func @transform_9(%arg0: i32, %arg1: i32) -> (i32, i32, i32, i32) {
    %c0_i32 = arith.constant 0 : i32
    %c0_i32_0 = arith.constant 0 : i32
    %c0_i32_1 = arith.constant 0 : i32
    return %arg0, %arg1, %c0_i32, %c0_i32_0 : i32, i32, i32, i32
  }
}

</mosaic_0001>

<llo_original>
// kernel: attention_down_block.2
$region0: #{attention_down_block.2}
  #allocation0 [shape = 'u32[]', space=smem, size = 0x4, offset = 0x4, fixed_abs, tag = 'smem constant byte address 0x4 - core index']
  #allocation1 [shape = 'u32[144,128]{1,0:T(1,128)}', space=vmem, size = 0x12000, scoped, tag = 'internal scratch']
  #allocation2 [shape = 'f32[1,128]{1,0:T(1,128)}', space=vmem, size = 0x200, scoped, tag = 'scratch operand']
  %s0 = inlined_call_operand.vmem [shape: f32[2,16,16,128], index: 0, kind: input, shape index: {}]
  %s1 = inlined_call_operand.vmem [shape: f32[128,128], index: 1, kind: input, shape index: {}]
  %s2 = inlined_call_operand.vmem [shape: f32[1,128], index: 2, kind: input, shape index: {}]
  %s3 = inlined_call_operand.vmem [shape: f32[1,128], index: 3, kind: input, shape index: {}]
  %s4 = inlined_call_operand.vmem [shape: f32[128,128], index: 4, kind: input, shape index: {}]
  %s5 = inlined_call_operand.vmem [shape: f32[128,128], index: 5, kind: input, shape index: {}]
  %s6 = inlined_call_operand.vmem [shape: bf16[2,16,16,128], index: 6, kind: output, shape index: {0}]
  %s7 = inlined_call_operand.vmem [shape: f32[2,1,128], index: 7, kind: output, shape index: {1}]
  %8 = xla_tuple %s6, %s7
  %s9 = sld [smem:[#allocation0]]
  $region73: #{attention_down_block.2} parent=0
    _
  %s11 = ssub.s32 1, %s9
  %s12 = scalar_select 0, %s11, %s9
  loop: start=0, step=1, limit=6
  $region2: #{attention_down_block.2} parent=0 // loop_pre_header
    _
  $region3: #{attention_down_block.2} parent=0 // loop_header
    %s14 = sphi 0, %s18
    %p15 = scmp.ge.s32.totalorder %s14, 6
    %s21 = sphi 0, %s33
    %s22 = sphi 0, %s29
    %s23 = sphi 0, %s21
    %s24 = sphi 0, %s22
    %s25 = sphi 0, %s23
    %s26 = sphi 0, %s24
    %s38 = sphi 0, %s40
    %s41 = sphi 0, %s38
    %s42 = sphi 0, %s41
    %s58 = sphi 0, %s42
    %s62 = sphi 0, %s62
    %s64 = sphi 0, %s62
    %s65 = sphi 0, %s64
    %s79 = sphi 0, %s65
    %s83 = sphi 0, %s83
    %s85 = sphi 0, %s83
    %s86 = sphi 0, %s85
    %s100 = sphi 0, %s86
    %s104 = sphi 0, %s104
    %s106 = sphi 0, %s104
    %s107 = sphi 0, %s106
    %s121 = sphi 0, %s107
    %s125 = sphi 0, %s125
    %s127 = sphi 0, %s125
    %s128 = sphi 0, %s127
    %s142 = sphi 0, %s128
    %s146 = sphi 0, %s146
    %s148 = sphi 0, %s146
    %s149 = sphi 0, %s148
    %s163 = sphi 0, %s149
    %s171 = sphi 0, %s173
    %s174 = sphi 0, %s171
    %s175 = sphi 0, %s174
    %s191 = sphi 0, %s175
    %s197 = sphi 0, %s199
    %s200 = sphi 0, %s197
    %s201 = sphi 0, %s200
    %s217 = sphi 0, %s201
  $region4: #{attention_down_block.2} parent=0 // loop_header_branch
    %17 = sbr.rel (%p15) target = $region8
  $region5: #{attention_down_block.2} parent=0 // loop_body
    %s19 = ssub.s32 %s14, 1
    %s20 = ssub.s32 %s14, 2
    %s27 = sadd.s32 1, %s22
    %p28 = scmp.ge.s32.totalorder %s27, 2
    %s29 = scalar_select %p28, 0, %s27
    %s30 = sadd.s32 1, %s21
    %s31 = scalar_select %p28, %s30, %s21
    %p32 = scmp.ge.s32.totalorder %s31, 2
    %s33 = scalar_select %p32, 0, %s31
    %s34 = ssub.s32 %s21, %s33
    %s35 = ssub.s32 %s22, %s29
    %s36 = sor.u32 %s34, %s35
    %p37 = scmp.eq.s32.totalorder %s36, 0
    %s39 = sadd.s32 %s38, 1
    %s40 = scalar_select %p37, %s38, %s39
    %p43 = pneg %p37
    %p44 = scmp.eq.s32.totalorder %s14, 3
    %p45 = por %p43, %p44
    %p46 = scmp.ne.s32.totalorder %s38, %s41
    %p47 = scmp.eq.s32.totalorder %s14, 0
    %p48 = por %p46, %p47
    %p49 = scmp.ne.s32.totalorder %s38, %s41
    %p50 = scmp.eq.s32.totalorder %s19, 3
    %p51 = por %p49, %p50
    %p52 = scmp.ne.s32.totalorder %s41, %s42
    %p53 = scmp.eq.s32.totalorder %s19, 0
    %p54 = por %p52, %p53
    %p55 = scmp.ne.s32.totalorder %s41, %s42
    %p56 = scmp.eq.s32.totalorder %s20, 3
    %p57 = por %p55, %p56
    %p59 = scmp.ne.s32.totalorder %s42, %s58
    %p60 = scmp.eq.s32.totalorder %s20, 0
    %p61 = por %p59, %p60
    %s63 = sadd.s32 %s62, 1
    %p66 = scmp.eq.s32.totalorder %s14, 3
    %p67 = scmp.ne.s32.totalorder %s62, %s64
    %p68 = scmp.eq.s32.totalorder %s14, 0
    %p69 = por %p67, %p68
    %p70 = scmp.ne.s32.totalorder %s62, %s64
    %p71 = scmp.eq.s32.totalorder %s19, 3
    %p72 = por %p70, %p71
    %p73 = scmp.ne.s32.totalorder %s64, %s65
    %p74 = scmp.eq.s32.totalorder %s19, 0
    %p75 = por %p73, %p74
    %p76 = scmp.ne.s32.totalorder %s64, %s65
    %p77 = scmp.eq.s32.totalorder %s20, 3
    %p78 = por %p76, %p77
    %p80 = scmp.ne.s32.totalorder %s65, %s79
    %p81 = scmp.eq.s32.totalorder %s20, 0
    %p82 = por %p80, %p81
    %s84 = sadd.s32 %s83, 1
    %p87 = scmp.eq.s32.totalorder %s14, 3
    %p88 = scmp.ne.s32.totalorder %s83, %s85
    %p89 = scmp.eq.s32.totalorder %s14, 0
    %p90 = por %p88, %p89
    %p91 = scmp.ne.s32.totalorder %s83, %s85
    %p92 = scmp.eq.s32.totalorder %s19, 3
    %p93 = por %p91, %p92
    %p94 = scmp.ne.s32.totalorder %s85, %s86
    %p95 = scmp.eq.s32.totalorder %s19, 0
    %p96 = por %p94, %p95
    %p97 = scmp.ne.s32.totalorder %s85, %s86
    %p98 = scmp.eq.s32.totalorder %s20, 3
    %p99 = por %p97, %p98
    %p101 = scmp.ne.s32.totalorder %s86, %s100
    %p102 = scmp.eq.s32.totalorder %s20, 0
    %p103 = por %p101, %p102
    %s105 = sadd.s32 %s104, 1
    %p108 = scmp.eq.s32.totalorder %s14, 3
    %p109 = scmp.ne.s32.totalorder %s104, %s106
    %p110 = scmp.eq.s32.totalorder %s14, 0
    %p111 = por %p109, %p110
    %p112 = scmp.ne.s32.totalorder %s104, %s106
    %p113 = scmp.eq.s32.totalorder %s19, 3
    %p114 = por %p112, %p113
    %p115 = scmp.ne.s32.totalorder %s106, %s107
    %p116 = scmp.eq.s32.totalorder %s19, 0
    %p117 = por %p115, %p116
    %p118 = scmp.ne.s32.totalorder %s106, %s107
    %p119 = scmp.eq.s32.totalorder %s20, 3
    %p120 = por %p118, %p119
    %p122 = scmp.ne.s32.totalorder %s107, %s121
    %p123 = scmp.eq.s32.totalorder %s20, 0
    %p124 = por %p122, %p123
    %s126 = sadd.s32 %s125, 1
    %p129 = scmp.eq.s32.totalorder %s14, 3
    %p130 = scmp.ne.s32.totalorder %s125, %s127
    %p131 = scmp.eq.s32.totalorder %s14, 0
    %p132 = por %p130, %p131
    %p133 = scmp.ne.s32.totalorder %s125, %s127
    %p134 = scmp.eq.s32.totalorder %s19, 3
    %p135 = por %p133, %p134
    %p136 = scmp.ne.s32.totalorder %s127, %s128
    %p137 = scmp.eq.s32.totalorder %s19, 0
    %p138 = por %p136, %p137
    %p139 = scmp.ne.s32.totalorder %s127, %s128
    %p140 = scmp.eq.s32.totalorder %s20, 3
    %p141 = por %p139, %p140
    %p143 = scmp.ne.s32.totalorder %s128, %s142
    %p144 = scmp.eq.s32.totalorder %s20, 0
    %p145 = por %p143, %p144
    %s147 = sadd.s32 %s146, 1
    %p150 = scmp.eq.s32.totalorder %s14, 3
    %p151 = scmp.ne.s32.totalorder %s146, %s148
    %p152 = scmp.eq.s32.totalorder %s14, 0
    %p153 = por %p151, %p152
    %p154 = scmp.ne.s32.totalorder %s146, %s148
    %p155 = scmp.eq.s32.totalorder %s19, 3
    %p156 = por %p154, %p155
    %p157 = scmp.ne.s32.totalorder %s148, %s149
    %p158 = scmp.eq.s32.totalorder %s19, 0
    %p159 = por %p157, %p158
    %p160 = scmp.ne.s32.totalorder %s148, %s149
    %p161 = scmp.eq.s32.totalorder %s20, 3
    %p162 = por %p160, %p161
    %p164 = scmp.ne.s32.totalorder %s149, %s163
    %p165 = scmp.eq.s32.totalorder %s20, 0
    %p166 = por %p164, %p165
    %s167 = ssub.s32 %s21, %s33
    %s168 = ssub.s32 %s22, %s29
    %s169 = sor.u32 %s167, %s168
    %p170 = scmp.eq.s32.totalorder %s169, 0
    %s172 = sadd.s32 %s171, 1
    %s173 = scalar_select %p170, %s171, %s172
    %p176 = pneg %p170
    %p177 = scmp.eq.s32.totalorder %s14, 3
    %p178 = por %p176, %p177
    %p179 = scmp.ne.s32.totalorder %s171, %s174
    %p180 = scmp.eq.s32.totalorder %s14, 0
    %p181 = por %p179, %p180
    %p182 = scmp.ne.s32.totalorder %s171, %s174
    %p183 = scmp.eq.s32.totalorder %s19, 3
    %p184 = por %p182, %p183
    %p185 = scmp.ne.s32.totalorder %s174, %s175
    %p186 = scmp.eq.s32.totalorder %s19, 0
    %p187 = por %p185, %p186
    %p188 = scmp.ne.s32.totalorder %s174, %s175
    %p189 = scmp.eq.s32.totalorder %s20, 3
    %p190 = por %p188, %p189
    %p192 = scmp.ne.s32.totalorder %s175, %s191
    %p193 = scmp.eq.s32.totalorder %s20, 0
    %p194 = por %p192, %p193
    %s195 = ssub.s32 %s21, %s33
    %p196 = scmp.eq.s32.totalorder %s195, 0
    %s198 = sadd.s32 %s197, 1
    %s199 = scalar_select %p196, %s197, %s198
    %p202 = pneg %p196
    %p203 = scmp.eq.s32.totalorder %s14, 3
    %p204 = por %p202, %p203
    %p205 = scmp.ne.s32.totalorder %s197, %s200
    %p206 = scmp.eq.s32.totalorder %s14, 0
    %p207 = por %p205, %p206
    %p208 = scmp.ne.s32.totalorder %s197, %s200
    %p209 = scmp.eq.s32.totalorder %s19, 3
    %p210 = por %p208, %p209
    %p211 = scmp.ne.s32.totalorder %s200, %s201
    %p212 = scmp.eq.s32.totalorder %s19, 0
    %p213 = por %p211, %p212
    %p214 = scmp.ne.s32.totalorder %s200, %s201
    %p215 = scmp.eq.s32.totalorder %s20, 3
    %p216 = por %p214, %p215
    %p218 = scmp.ne.s32.totalorder %s201, %s217
    %p219 = scmp.eq.s32.totalorder %s20, 0
    %p220 = por %p218, %p219
    %p221 = scmp.le.s32.totalorder 1, %s14
    %p222 = scmp.lt.s32.totalorder %s14, 5
    %p223 = pnand %p221, %p222
    %p224 = pneg %p223
    // Predicated region
    $region9: #{attention_down_block.2} parent=5 // pred_check
      _
    $region10: #{attention_down_block.2} parent=5 // pred_check_branch
      %226 = sbr.rel (%p223) target = $region12
    $region11: #{attention_down_block.2} parent=5 // pred_region
      %s227 = ssub.s32 %s14, 1
      // Predicated region
      $region13: #{attention_down_block.2} parent=11 // pred_check
        %p228 = pneg %p75
      $region14: #{attention_down_block.2} parent=11 // pred_check_branch
        %230 = sbr.rel (%p228) target = $region16
      $region15: #{attention_down_block.2} parent=11 // pred_region
        _
      $region16: #{attention_down_block.2} parent=11 // pred_fallthru
        _
      // Predicated region
      $region17: #{attention_down_block.2} parent=11 // pred_check
        %p231 = pneg %p96
      $region18: #{attention_down_block.2} parent=11 // pred_check_branch
        %233 = sbr.rel (%p231) target = $region20
      $region19: #{attention_down_block.2} parent=11 // pred_region
        _
      $region20: #{attention_down_block.2} parent=11 // pred_fallthru
        _
      // Predicated region
      $region21: #{attention_down_block.2} parent=11 // pred_check
        %p234 = pneg %p117
      $region22: #{attention_down_block.2} parent=11 // pred_check_branch
        %236 = sbr.rel (%p234) target = $region24
      $region23: #{attention_down_block.2} parent=11 // pred_region
        _
      $region24: #{attention_down_block.2} parent=11 // pred_fallthru
        _
      // Predicated region
      $region25: #{attention_down_block.2} parent=11 // pred_check
        %p237 = pneg %p138
      $region26: #{attention_down_block.2} parent=11 // pred_check_branch
        %239 = sbr.rel (%p237) target = $region28
      $region27: #{attention_down_block.2} parent=11 // pred_region
        _
      $region28: #{attention_down_block.2} parent=11 // pred_fallthru
        _
      // Predicated region
      $region29: #{attention_down_block.2} parent=11 // pred_check
        %p240 = pneg %p159
      $region30: #{attention_down_block.2} parent=11 // pred_check_branch
        %242 = sbr.rel (%p240) target = $region32
      $region31: #{attention_down_block.2} parent=11 // pred_region
        _
      $region32: #{attention_down_block.2} parent=11 // pred_fallthru
        _
    $region12: #{attention_down_block.2} parent=5 // pred_fallthru
      _
    %p243 = scmp.lt.s32.totalorder %s14, 4
    // Predicated region
    $region33: #{attention_down_block.2} parent=5 // pred_check
      %p244 = pneg %p243
    $region34: #{attention_down_block.2} parent=5 // pred_check_branch
      %246 = sbr.rel (%p244) target = $region36
    $region35: #{attention_down_block.2} parent=5 // pred_region
      // Predicated region
      $region37: #{attention_down_block.2} parent=35 // pred_check
        %p247 = pneg %p48
      $region38: #{attention_down_block.2} parent=35 // pred_check_branch
        %249 = sbr.rel (%p247) target = $region40
      $region39: #{attention_down_block.2} parent=35 // pred_region
        %s250 = smul.u32 8, %s22
        %p251 = scmp.lt.s32.totalorder %s21, 1
        %s252 = scalar_select %p251, %s21, 1
        %p253 = scmp.lt.s32.totalorder %s250, 15
        %s254 = scalar_select %p253, %s250, 15
        %s255 = smul.addr %s254, 2
        %s256 = smul.addr %s252, 32
        %s257 = sadd.s32 %s255, %s256
        %s258 = smul.addr %s257, 8
        %s259 = scalar_lea.vmem %s0, %s258
        %s260 = smul.u32 8, %s22
      $region40: #{attention_down_block.2} parent=35 // pred_fallthru
        _
    $region36: #{attention_down_block.2} parent=5 // pred_fallthru
      _
    %p261 = scmp.le.s32.totalorder 1, %s14
    %p262 = scmp.lt.s32.totalorder %s14, 5
    %p263 = pnand %p261, %p262
    %p264 = pneg %p263
    // Predicated region
    $region41: #{attention_down_block.2} parent=5 // pred_check
      _
    $region42: #{attention_down_block.2} parent=5 // pred_check_branch
      %266 = sbr.rel (%p263) target = $region44
    $region43: #{attention_down_block.2} parent=5 // pred_region
      %s267 = ssub.s32 %s14, 1
      %s268 = smul.u32 8, %s24
      %p269 = scmp.lt.s32.totalorder %s23, 1
      %s270 = scalar_select %p269, %s23, 1
      %p271 = scmp.lt.s32.totalorder %s268, 15
      %s272 = scalar_select %p271, %s268, 15
      %s273 = smul.addr %s272, 2
      %s274 = smul.addr %s270, 32
      %s275 = sadd.s32 %s273, %s274
      %s276 = smul.addr %s275, 8
      %s277 = scalar_lea.vmem %s0, %s276
      %p278 = pneg %p54
      %p279 = pneg %p51
      %p280 = pneg %p75
      %p281 = pneg %p72
      %p282 = pneg %p96
      %p283 = pneg %p93
      %p284 = pneg %p117
      %p285 = pneg %p114
      %p286 = pneg %p138
      %p287 = pneg %p135
      %p288 = pneg %p159
      %p289 = pneg %p156
      %p290 = pneg %p187
      %p291 = pneg %p184
      %s292 = smul.u32 8, %s24
      %p293 = scmp.lt.s32.totalorder %s23, 1
      %s294 = scalar_select %p293, %s23, 1
      %p295 = scmp.lt.s32.totalorder %s292, 15
      %s296 = scalar_select %p295, %s292, 15
      %s297 = smul.addr %s296, 2
      %s298 = smul.addr %s294, 32
      %s299 = sadd.s32 %s297, %s298
      %s300 = smul.addr %s299, 4
      %s301 = scalar_lea.vmem %s6, %s300
      %p302 = pneg %p213
      %p303 = pneg %p210
      %p304 = scmp.lt.s32.totalorder %s23, 1
      %s305 = scalar_select %p304, %s23, 1
      %s306 = scalar_lea.vmem %s7, %s305
      %s307 = smul.u32 8, %s24
      %p308 = scmp.lt.s32.totalorder %s23, 1
      %s309 = scalar_select %p308, %s23, 1
      %p310 = scmp.lt.s32.totalorder %s307, 15
      %s311 = scalar_select %p310, %s307, 15
      %s312 = smul.addr %s311, 2
      %s313 = smul.addr %s309, 32
      %s314 = sadd.s32 %s312, %s313
      %s315 = smul.addr %s314, 8
      %s316 = scalar_lea.vmem %s0, %s315
      %s317 = smul.u32 8, %s24
      %s318 = smul.u32 8, %s24
      %p319 = scmp.lt.s32.totalorder %s23, 1
      %s320 = scalar_select %p319, %s23, 1
      %p321 = scmp.lt.s32.totalorder %s318, 15
      %s322 = scalar_select %p321, %s318, 15
      %s323 = smul.addr %s322, 2
      %s324 = smul.addr %s320, 32
      %s325 = sadd.s32 %s323, %s324
      %s326 = smul.addr %s325, 4
      %s327 = scalar_lea.vmem %s6, %s326
      %s328 = smul.u32 8, %s24
      %p329 = scmp.lt.s32.totalorder %s23, 1
      %s330 = scalar_select %p329, %s23, 1
      %s331 = scalar_lea.vmem %s7, %s330
      %v332 = vld [vmem:[%s316] sm:$0xff]
      %v333 = vld [vmem:[%s316 + $0x8] sm:$0xff]
      %v334 = vld [vmem:[%s316 + $0x10] sm:$0xff]
      %v335 = vld [vmem:[%s316 + $0x18] sm:$0xff]
      %v336 = vld [vmem:[%s316 + $0x20] sm:$0xff]
      %v337 = vld [vmem:[%s316 + $0x28] sm:$0xff]
      %v338 = vld [vmem:[%s316 + $0x30] sm:$0xff]
      %v339 = vld [vmem:[%s316 + $0x38] sm:$0xff]
      %v340 = vld [vmem:[%s316 + $0x40] sm:$0xff]
      %v341 = vld [vmem:[%s316 + $0x48] sm:$0xff]
      %v342 = vld [vmem:[%s316 + $0x50] sm:$0xff]
      %v343 = vld [vmem:[%s316 + $0x58] sm:$0xff]
      %v344 = vld [vmem:[%s316 + $0x60] sm:$0xff]
      %v345 = vld [vmem:[%s316 + $0x68] sm:$0xff]
      %v346 = vld [vmem:[%s316 + $0x70] sm:$0xff]
      %v347 = vld [vmem:[%s316 + $0x78] sm:$0xff]
      %v348 = vld [vmem:[%s1] sm:$0xff]
      %v349 = vld [vmem:[%s1 + $0x8] sm:$0xff]
      %v350 = vld [vmem:[%s1 + $0x10] sm:$0xff]
      %v351 = vld [vmem:[%s1 + $0x18] sm:$0xff]
      %v352 = vld [vmem:[%s1 + $0x20] sm:$0xff]
      %v353 = vld [vmem:[%s1 + $0x28] sm:$0xff]
      %v354 = vld [vmem:[%s1 + $0x30] sm:$0xff]
      %v355 = vld [vmem:[%s1 + $0x38] sm:$0xff]
      %v356 = vld [vmem:[%s1 + $0x40] sm:$0xff]
      %v357 = vld [vmem:[%s1 + $0x48] sm:$0xff]
      %v358 = vld [vmem:[%s1 + $0x50] sm:$0xff]
      %v359 = vld [vmem:[%s1 + $0x58] sm:$0xff]
      %v360 = vld [vmem:[%s1 + $0x60] sm:$0xff]
      %v361 = vld [vmem:[%s1 + $0x68] sm:$0xff]
      %v362 = vld [vmem:[%s1 + $0x70] sm:$0xff]
      %v363 = vld [vmem:[%s1 + $0x78] sm:$0xff]
      %364 = vmatprep.subr.mxu0 0.0
      %365 = vmatpush1.msra.mxu0 %v348
      %366 = vmatprep.subr.mxu0 0.0
      %367 = vmatpush1.msra.mxu0 %v349
      %368 = vmatprep.subr.mxu0 0.0
      %369 = vmatpush1.msra.mxu0 %v350
      %370 = vmatprep.subr.mxu0 0.0
      %371 = vmatpush1.msra.mxu0 %v351
      %372 = vmatprep.subr.mxu0 0.0
      %373 = vmatpush1.msra.mxu0 %v352
      %374 = vmatprep.subr.mxu0 0.0
      %375 = vmatpush1.msra.mxu0 %v353
      %376 = vmatprep.subr.mxu0 0.0
      %377 = vmatpush1.msra.mxu0 %v354
      %378 = vmatprep.subr.mxu0 0.0
      %379 = vmatpush1.msra.mxu0 %v355
      %380 = vmatprep.subr.mxu0 0.0
      %381 = vmatpush1.msra.mxu0 %v356
      %382 = vmatprep.subr.mxu0 0.0
      %383 = vmatpush1.msra.mxu0 %v357
      %384 = vmatprep.subr.mxu0 0.0
      %385 = vmatpush1.msra.mxu0 %v358
      %386 = vmatprep.subr.mxu0 0.0
      %387 = vmatpush1.msra.mxu0 %v359
      %388 = vmatprep.subr.mxu0 0.0
      %389 = vmatpush1.msra.mxu0 %v360
      %390 = vmatprep.subr.mxu0 0.0
      %391 = vmatpush1.msra.mxu0 %v361
      %392 = vmatprep.subr.mxu0 0.0
      %393 = vmatpush1.msra.mxu0 %v362
      %394 = vmatprep.subr.mxu0 0.0
      %395 = vmatpush1.msra.mxu0 %v363
      %396 = vmatprep.subr.mxu0 0.0
      %397 = vmatpush1.msra.mxu0 0.0
      %398 = vmatprep.subr.mxu0 0.0
      %399 = vmatpush1.msra.mxu0 0.0
      %400 = vmatprep.subr.mxu0 0.0
      %401 = vmatpush1.msra.mxu0 0.0
      %402 = vmatprep.subr.mxu0 0.0
      %403 = vmatpush1.msra.mxu0 0.0
      %404 = vmatprep.subr.mxu0 0.0
      %405 = vmatpush1.msra.mxu0 0.0
      %406 = vmatprep.subr.mxu0 0.0
      %407 = vmatpush1.msra.mxu0 0.0
      %408 = vmatprep.subr.mxu0 0.0
      %409 = vmatpush1.msra.mxu0 0.0
      %410 = vmatprep.subr.mxu0 0.0
      %411 = vmatpush1.msra.mxu0 0.0
      %412 = vmatprep.subr.mxu0 0.0
      %413 = vmatpush1.msra.mxu0 0.0
      %414 = vmatprep.subr.mxu0 0.0
      %415 = vmatpush1.msra.mxu0 0.0
      %416 = vmatprep.subr.mxu0 0.0
      %417 = vmatpush1.msra.mxu0 0.0
      %418 = vmatprep.subr.mxu0 0.0
      %419 = vmatpush1.msra.mxu0 0.0
      %420 = vmatprep.subr.mxu0 0.0
      %421 = vmatpush1.msra.mxu0 0.0
      %422 = vmatprep.subr.mxu0 0.0
      %423 = vmatpush1.msra.mxu0 0.0
      %424 = vmatprep.subr.mxu0 0.0
      %425 = vmatpush1.msra.mxu0 0.0
      %426 = vmatprep.subr.mxu0 0.0
      %427 = vmatpush1.msra.mxu0 0.0
      %428 = vmatprep.mubr.f32.mxu0 0.0
      %429 = vmatmul.mubr.f32.gmra.mrb[0].mxu0 %v332
      %v430 = vpop.f32.mrb[0].mxu0
      %v431 = vadd.f32 0.0, %v430
      %v432 = vpop.f32.mrb[0].mxu0
      %433 = vmatprep.mubr.f32.mxu0 0.0
      %434 = vmatmul.mubr.f32.gmra.mrb[0].mxu0 %v333
      %v435 = vpop.f32.mrb[0].mxu0
      %v436 = vadd.f32 0.0, %v435
      %v437 = vpop.f32.mrb[0].mxu0
      %438 = vmatprep.mubr.f32.mxu0 0.0
      %439 = vmatmul.mubr.f32.gmra.mrb[0].mxu0 %v334
      %v440 = vpop.f32.mrb[0].mxu0
      %v441 = vadd.f32 0.0, %v440
      %v442 = vpop.f32.mrb[0].mxu0
      %443 = vmatprep.mubr.f32.mxu0 0.0
      %444 = vmatmul.mubr.f32.gmra.mrb[0].mxu0 %v335
      %v445 = vpop.f32.mrb[0].mxu0
      %v446 = vadd.f32 0.0, %v445
      %v447 = vpop.f32.mrb[0].mxu0
      %448 = vmatprep.mubr.f32.mxu0 0.0
      %449 = vmatmul.mubr.f32.gmra.mrb[0].mxu0 %v336
      %v450 = vpop.f32.mrb[0].mxu0
      %v451 = vadd.f32 0.0, %v450
      %v452 = vpop.f32.mrb[0].mxu0
      %453 = vmatprep.mubr.f32.mxu0 0.0
      %454 = vmatmul.mubr.f32.gmra.mrb[0].mxu0 %v337
      %v455 = vpop.f32.mrb[0].mxu0
      %v456 = vadd.f32 0.0, %v455
      %v457 = vpop.f32.mrb[0].mxu0
      %458 = vmatprep.mubr.f32.mxu0 0.0
      %459 = vmatmul.mubr.f32.gmra.mrb[0].mxu0 %v338
      %v460 = vpop.f32.mrb[0].mxu0
      %v461 = vadd.f32 0.0, %v460
      %v462 = vpop.f32.mrb[0].mxu0
      %463 = vmatprep.mubr.f32.mxu0 0.0
      %464 = vmatmul.mubr.f32.gmra.mrb[0].mxu0 %v339
      %v465 = vpop.f32.mrb[0].mxu0
      %v466 = vadd.f32 0.0, %v465
      %v467 = vpop.f32.mrb[0].mxu0
      %468 = vmatprep.mubr.f32.mxu0 0.0
      %469 = vmatmul.mubr.f32.gmra.mrb[0].mxu0 %v340
      %v470 = vpop.f32.mrb[0].mxu0
      %v471 = vadd.f32 0.0, %v470
      %v472 = vpop.f32.mrb[0].mxu0
      %473 = vmatprep.mubr.f32.mxu0 0.0
      %474 = vmatmul.mubr.f32.gmra.mrb[0].mxu0 %v341
      %v475 = vpop.f32.mrb[0].mxu0
      %v476 = vadd.f32 0.0, %v475
      %v477 = vpop.f32.mrb[0].mxu0
      %478 = vmatprep.mubr.f32.mxu0 0.0
      %479 = vmatmul.mubr.f32.gmra.mrb[0].mxu0 %v342
      %v480 = vpop.f32.mrb[0].mxu0
      %v481 = vadd.f32 0.0, %v480
      %v482 = vpop.f32.mrb[0].mxu0
      %483 = vmatprep.mubr.f32.mxu0 0.0
      %484 = vmatmul.mubr.f32.gmra.mrb[0].mxu0 %v343
      %v485 = vpop.f32.mrb[0].mxu0
      %v486 = vadd.f32 0.0, %v485
      %v487 = vpop.f32.mrb[0].mxu0
      %488 = vmatprep.mubr.f32.mxu0 0.0
      %489 = vmatmul.mubr.f32.gmra.mrb[0].mxu0 %v344
      %v490 = vpop.f32.mrb[0].mxu0
      %v491 = vadd.f32 0.0, %v490
      %v492 = vpop.f32.mrb[0].mxu0
      %493 = vmatprep.mubr.f32.mxu0 0.0
      %494 = vmatmul.mubr.f32.gmra.mrb[0].mxu0 %v345
      %v495 = vpop.f32.mrb[0].mxu0
      %v496 = vadd.f32 0.0, %v495
      %v497 = vpop.f32.mrb[0].mxu0
      %498 = vmatprep.mubr.f32.mxu0 0.0
      %499 = vmatmul.mubr.f32.gmra.mrb[0].mxu0 %v346
      %v500 = vpop.f32.mrb[0].mxu0
      %v501 = vadd.f32 0.0, %v500
      %v502 = vpop.f32.mrb[0].mxu0
      %503 = vmatprep.mubr.f32.mxu0 0.0
      %504 = vmatmul.mubr.f32.gmra.mrb[0].mxu0 %v347
      %v505 = vpop.f32.mrb[0].mxu0
      %v506 = vadd.f32 0.0, %v505
      %v507 = vpop.f32.mrb[0].mxu0
      %508 = vdwg.mxu0
      %v509 = vld [vmem:[%s2] sm:$0x1]
      %v511 = vlaneseq
      %v512 = vshrl.u32 %v511, 7
      %v513 = vsub.s32 0, %v512
      %v514 = vrot.slane %v509, %v513
      %v516 = vmul.f32 %v431, %v514
      %v517 = vmul.f32 %v436, %v514
      %v518 = vmul.f32 %v441, %v514
      %v519 = vmul.f32 %v446, %v514
      %v520 = vmul.f32 %v451, %v514
      %v521 = vmul.f32 %v456, %v514
      %v522 = vmul.f32 %v461, %v514
      %v523 = vmul.f32 %v466, %v514
      %v524 = vmul.f32 %v471, %v514
      %v525 = vmul.f32 %v476, %v514
      %v526 = vmul.f32 %v481, %v514
      %v527 = vmul.f32 %v486, %v514
      %v528 = vmul.f32 %v491, %v514
      %v529 = vmul.f32 %v496, %v514
      %v530 = vmul.f32 %v501, %v514
      %v531 = vmul.f32 %v506, %v514
      %v532 = vld [vmem:[%s3] sm:$0x1]
      %v534 = vlaneseq
      %v535 = vshrl.u32 %v534, 7
      %v536 = vsub.s32 0, %v535
      %v537 = vrot.slane %v532, %v536
      %v539 = vadd.f32 %v516, %v537
      %v540 = vadd.f32 %v517, %v537
      %v541 = vadd.f32 %v518, %v537
      %v542 = vadd.f32 %v519, %v537
      %v543 = vadd.f32 %v520, %v537
      %v544 = vadd.f32 %v521, %v537
      %v545 = vadd.f32 %v522, %v537
      %v546 = vadd.f32 %v523, %v537
      %v547 = vadd.f32 %v524, %v537
      %v548 = vadd.f32 %v525, %v537
      %v549 = vadd.f32 %v526, %v537
      %v550 = vadd.f32 %v527, %v537
      %v551 = vadd.f32 %v528, %v537
      %v552 = vadd.f32 %v529, %v537
      %v553 = vadd.f32 %v530, %v537
      %v554 = vadd.f32 %v531, %v537
      %v555 = vmax.f32 %v539, 0.0
      %v556 = vmax.f32 %v540, 0.0
      %v557 = vmax.f32 %v541, 0.0
      %v558 = vmax.f32 %v542, 0.0
      %v559 = vmax.f32 %v543, 0.0
      %v560 = vmax.f32 %v544, 0.0
      %v561 = vmax.f32 %v545, 0.0
      %v562 = vmax.f32 %v546, 0.0
      %v563 = vmax.f32 %v547, 0.0
      %v564 = vmax.f32 %v548, 0.0
      %v565 = vmax.f32 %v549, 0.0
      %v566 = vmax.f32 %v550, 0.0
      %v567 = vmax.f32 %v551, 0.0
      %v568 = vmax.f32 %v552, 0.0
      %v569 = vmax.f32 %v553, 0.0
      %v570 = vmax.f32 %v554, 0.0
      %v571 = vpack.c.bf16 %v556, %v555
      %v572 = vpack.c.bf16 %v558, %v557
      %v573 = vpack.c.bf16 %v560, %v559
      %v574 = vpack.c.bf16 %v562, %v561
      %v575 = vpack.c.bf16 %v564, %v563
      %v576 = vpack.c.bf16 %v566, %v565
      %v577 = vpack.c.bf16 %v568, %v567
      %v578 = vpack.c.bf16 %v570, %v569
      %v587 = vunpack.c.l.b16 %v571
      %v588 = vunpack.c.h.b16 %v571
      %v589 = vunpack.c.l.b16 %v572
      %v590 = vunpack.c.h.b16 %v572
      %v591 = vunpack.c.l.b16 %v573
      %v592 = vunpack.c.h.b16 %v573
      %v593 = vunpack.c.l.b16 %v574
      %v594 = vunpack.c.h.b16 %v574
      %v595 = vunpack.c.l.b16 %v575
      %v596 = vunpack.c.h.b16 %v575
      %v597 = vunpack.c.l.b16 %v576
      %v598 = vunpack.c.h.b16 %v576
      %v599 = vunpack.c.l.b16 %v577
      %v600 = vunpack.c.h.b16 %v577
      %v601 = vunpack.c.l.b16 %v578
      %v602 = vunpack.c.h.b16 %v578
      %v603 = vpack.c.b16 %v587, %v587
      %v604 = vpack.c.b16 %v588, %v588
      %v605 = vpack.c.b16 %v589, %v589
      %v606 = vpack.c.b16 %v590, %v590
      %v607 = vpack.c.b16 %v591, %v591
      %v608 = vpack.c.b16 %v592, %v592
      %v609 = vpack.c.b16 %v593, %v593
      %v610 = vpack.c.b16 %v594, %v594
      %v611 = vpack.c.b16 %v595, %v595
      %v612 = vpack.c.b16 %v596, %v596
      %v613 = vpack.c.b16 %v597, %v597
      %v614 = vpack.c.b16 %v598, %v598
      %v615 = vpack.c.b16 %v599, %v599
      %v616 = vpack.c.b16 %v600, %v600
      %v617 = vpack.c.b16 %v601, %v601
      %v618 = vpack.c.b16 %v602, %v602
      %635 = vst [vmem:[%s327] sm:$0xf] %v603
      %636 = vst [vmem:[%s327 + $0x4] sm:$0xf] %v604
      %637 = vst [vmem:[%s327 + $0x8] sm:$0xf] %v605
      %638 = vst [vmem:[%s327 + $0xc] sm:$0xf] %v606
      %639 = vst [vmem:[%s327 + $0x10] sm:$0xf] %v607
      %640 = vst [vmem:[%s327 + $0x14] sm:$0xf] %v608
      %641 = vst [vmem:[%s327 + $0x18] sm:$0xf] %v609
      %642 = vst [vmem:[%s327 + $0x1c] sm:$0xf] %v610
      %643 = vst [vmem:[%s327 + $0x20] sm:$0xf] %v611
      %644 = vst [vmem:[%s327 + $0x24] sm:$0xf] %v612
      %645 = vst [vmem:[%s327 + $0x28] sm:$0xf] %v613
      %646 = vst [vmem:[%s327 + $0x2c] sm:$0xf] %v614
      %647 = vst [vmem:[%s327 + $0x30] sm:$0xf] %v615
      %648 = vst [vmem:[%s327 + $0x34] sm:$0xf] %v616
      %649 = vst [vmem:[%s327 + $0x38] sm:$0xf] %v617
      %650 = vst [vmem:[%s327 + $0x3c] sm:$0xf] %v618
      %p651 = scmp.eq.s32.totalorder %s24, 0
      // Predicated region
      $region45: #{attention_down_block.2} parent=43 // pred_check
        %p652 = pneg %p651
      $region46: #{attention_down_block.2} parent=43 // pred_check_branch
        %654 = sbr.rel (%p652) target = $region48
      $region47: #{attention_down_block.2} parent=43 // pred_region
        %655 = vst [vmem:[#allocation2] sm:$0x1] 0.0
      $region48: #{attention_down_block.2} parent=43 // pred_fallthru
        _
      %v656 = vld [vmem:[#allocation2] sm:$0x1]
      %v657 = vadd.f32 %v332, %v333
      %v658 = vadd.f32 %v657, %v334
      %v659 = vadd.f32 %v658, %v335
      %v660 = vadd.f32 %v659, %v336
      %v661 = vadd.f32 %v660, %v337
      %v662 = vadd.f32 %v661, %v338
      %v663 = vadd.f32 %v662, %v339
      %v664 = vadd.f32 %v663, %v340
      %v665 = vadd.f32 %v664, %v341
      %v666 = vadd.f32 %v665, %v342
      %v667 = vadd.f32 %v666, %v343
      %v668 = vadd.f32 %v667, %v344
      %v669 = vadd.f32 %v668, %v345
      %v670 = vadd.f32 %v669, %v346
      %v671 = vadd.f32 %v670, %v347
      %v672 = vrot.slane %v671, 4
      %v673 = vadd.f32 %v671, %v672
      %v674 = vrot.slane %v673, 2
      %v675 = vadd.f32 %v673, %v674
      %v676 = vrot.slane %v675, 1
      %v677 = vadd.f32 %v675, %v676
      %v678 = vadd.f32 %v656, %v677
      %679 = vst [vmem:[#allocation2] sm:$0x1] %v678
      %p680 = scmp.eq.s32.totalorder %s24, 1
      // Predicated region
      $region49: #{attention_down_block.2} parent=43 // pred_check
        %p681 = pneg %p680
      $region50: #{attention_down_block.2} parent=43 // pred_check_branch
        %683 = sbr.rel (%p681) target = $region52
      $region51: #{attention_down_block.2} parent=43 // pred_region
        %v684 = vld [vmem:[#allocation2] sm:$0x1]
        %v685 = vmul.f32 %v684, 0.00390625
        %v686 = vld [vmem:[%s4] sm:$0xff]
        %v687 = vld [vmem:[%s4 + $0x8] sm:$0xff]
        %v688 = vld [vmem:[%s4 + $0x10] sm:$0xff]
        %v689 = vld [vmem:[%s4 + $0x18] sm:$0xff]
        %v690 = vld [vmem:[%s4 + $0x20] sm:$0xff]
        %v691 = vld [vmem:[%s4 + $0x28] sm:$0xff]
        %v692 = vld [vmem:[%s4 + $0x30] sm:$0xff]
        %v693 = vld [vmem:[%s4 + $0x38] sm:$0xff]
        %v694 = vld [vmem:[%s4 + $0x40] sm:$0xff]
        %v695 = vld [vmem:[%s4 + $0x48] sm:$0xff]
        %v696 = vld [vmem:[%s4 + $0x50] sm:$0xff]
        %v697 = vld [vmem:[%s4 + $0x58] sm:$0xff]
        %v698 = vld [vmem:[%s4 + $0x60] sm:$0xff]
        %v699 = vld [vmem:[%s4 + $0x68] sm:$0xff]
        %v700 = vld [vmem:[%s4 + $0x70] sm:$0xff]
        %v701 = vld [vmem:[%s4 + $0x78] sm:$0xff]
        %702 = vmatprep.subr.mxu0 0.0
        %703 = vmatpush1.msra.mxu0 %v686
        %704 = vmatprep.subr.mxu0 0.0
        %705 = vmatpush1.msra.mxu0 %v687
        %706 = vmatprep.subr.mxu0 0.0
        %707 = vmatpush1.msra.mxu0 %v688
        %708 = vmatprep.subr.mxu0 0.0
        %709 = vmatpush1.msra.mxu0 %v689
        %710 = vmatprep.subr.mxu0 0.0
        %711 = vmatpush1.msra.mxu0 %v690
        %712 = vmatprep.subr.mxu0 0.0
        %713 = vmatpush1.msra.mxu0 %v691
        %714 = vmatprep.subr.mxu0 0.0
        %715 = vmatpush1.msra.mxu0 %v692
        %716 = vmatprep.subr.mxu0 0.0
        %717 = vmatpush1.msra.mxu0 %v693
        %718 = vmatprep.subr.mxu0 0.0
        %719 = vmatpush1.msra.mxu0 %v694
        %720 = vmatprep.subr.mxu0 0.0
        %721 = vmatpush1.msra.mxu0 %v695
        %722 = vmatprep.subr.mxu0 0.0
        %723 = vmatpush1.msra.mxu0 %v696
        %724 = vmatprep.subr.mxu0 0.0
        %725 = vmatpush1.msra.mxu0 %v697
        %726 = vmatprep.subr.mxu0 0.0
        %727 = vmatpush1.msra.mxu0 %v698
        %728 = vmatprep.subr.mxu0 0.0
        %729 = vmatpush1.msra.mxu0 %v699
        %730 = vmatprep.subr.mxu0 0.0
        %731 = vmatpush1.msra.mxu0 %v700
        %732 = vmatprep.subr.mxu0 0.0
        %733 = vmatpush1.msra.mxu0 %v701
        %734 = vmatprep.subr.mxu0 0.0
        %735 = vmatpush1.msra.mxu0 0.0
        %736 = vmatprep.subr.mxu0 0.0
        %737 = vmatpush1.msra.mxu0 0.0
        %738 = vmatprep.subr.mxu0 0.0
        %739 = vmatpush1.msra.mxu0 0.0
        %740 = vmatprep.subr.mxu0 0.0
        %741 = vmatpush1.msra.mxu0 0.0
        %742 = vmatprep.subr.mxu0 0.0
        %743 = vmatpush1.msra.mxu0 0.0
        %744 = vmatprep.subr.mxu0 0.0
        %745 = vmatpush1.msra.mxu0 0.0
        %746 = vmatprep.subr.mxu0 0.0
        %747 = vmatpush1.msra.mxu0 0.0
        %748 = vmatprep.subr.mxu0 0.0
        %749 = vmatpush1.msra.mxu0 0.0
        %750 = vmatprep.subr.mxu0 0.0
        %751 = vmatpush1.msra.mxu0 0.0
        %752 = vmatprep.subr.mxu0 0.0
        %753 = vmatpush1.msra.mxu0 0.0
        %754 = vmatprep.subr.mxu0 0.0
        %755 = vmatpush1.msra.mxu0 0.0
        %756 = vmatprep.subr.mxu0 0.0
        %757 = vmatpush1.msra.mxu0 0.0
        %758 = vmatprep.subr.mxu0 0.0
        %759 = vmatpush1.msra.mxu0 0.0
        %760 = vmatprep.subr.mxu0 0.0
        %761 = vmatpush1.msra.mxu0 0.0
        %762 = vmatprep.subr.mxu0 0.0
        %763 = vmatpush1.msra.mxu0 0.0
        %764 = vmatprep.subr.mxu0 0.0
        %765 = vmatpush1.msra.mxu0 0.0
        %766 = vmatprep.mubr.f32.mxu0 0.0
        %767 = vmatmul.mubr.f32.gmra.mrb[0].mxu0 %v685
        %v768 = vpop.f32.mrb[0].mxu0
        %v769 = vadd.f32 0.0, %v768
        %v770 = vpop.f32.mrb[0].mxu0
        %771 = vdwg.mxu0
        %v772 = vmax.f32 %v769, 0.0
        %v773 = vld [vmem:[%s5] sm:$0xff]
        %v774 = vld [vmem:[%s5 + $0x8] sm:$0xff]
        %v775 = vld [vmem:[%s5 + $0x10] sm:$0xff]
        %v776 = vld [vmem:[%s5 + $0x18] sm:$0xff]
        %v777 = vld [vmem:[%s5 + $0x20] sm:$0xff]
        %v778 = vld [vmem:[%s5 + $0x28] sm:$0xff]
        %v779 = vld [vmem:[%s5 + $0x30] sm:$0xff]
        %v780 = vld [vmem:[%s5 + $0x38] sm:$0xff]
        %v781 = vld [vmem:[%s5 + $0x40] sm:$0xff]
        %v782 = vld [vmem:[%s5 + $0x48] sm:$0xff]
        %v783 = vld [vmem:[%s5 + $0x50] sm:$0xff]
        %v784 = vld [vmem:[%s5 + $0x58] sm:$0xff]
        %v785 = vld [vmem:[%s5 + $0x60] sm:$0xff]
        %v786 = vld [vmem:[%s5 + $0x68] sm:$0xff]
        %v787 = vld [vmem:[%s5 + $0x70] sm:$0xff]
        %v788 = vld [vmem:[%s5 + $0x78] sm:$0xff]
        %789 = vmatprep.subr.mxu0 0.0
        %790 = vmatpush1.msra.mxu0 %v773
        %791 = vmatprep.subr.mxu0 0.0
        %792 = vmatpush1.msra.mxu0 %v774
        %793 = vmatprep.subr.mxu0 0.0
        %794 = vmatpush1.msra.mxu0 %v775
        %795 = vmatprep.subr.mxu0 0.0
        %796 = vmatpush1.msra.mxu0 %v776
        %797 = vmatprep.subr.mxu0 0.0
        %798 = vmatpush1.msra.mxu0 %v777
        %799 = vmatprep.subr.mxu0 0.0
        %800 = vmatpush1.msra.mxu0 %v778
        %801 = vmatprep.subr.mxu0 0.0
        %802 = vmatpush1.msra.mxu0 %v779
        %803 = vmatprep.subr.mxu0 0.0
        %804 = vmatpush1.msra.mxu0 %v780
        %805 = vmatprep.subr.mxu0 0.0
        %806 = vmatpush1.msra.mxu0 %v781
        %807 = vmatprep.subr.mxu0 0.0
        %808 = vmatpush1.msra.mxu0 %v782
        %809 = vmatprep.subr.mxu0 0.0
        %810 = vmatpush1.msra.mxu0 %v783
        %811 = vmatprep.subr.mxu0 0.0
        %812 = vmatpush1.msra.mxu0 %v784
        %813 = vmatprep.subr.mxu0 0.0
        %814 = vmatpush1.msra.mxu0 %v785
        %815 = vmatprep.subr.mxu0 0.0
        %816 = vmatpush1.msra.mxu0 %v786
        %817 = vmatprep.subr.mxu0 0.0
        %818 = vmatpush1.msra.mxu0 %v787
        %819 = vmatprep.subr.mxu0 0.0
        %820 = vmatpush1.msra.mxu0 %v788
        %821 = vmatprep.subr.mxu0 0.0
        %822 = vmatpush1.msra.mxu0 0.0
        %823 = vmatprep.subr.mxu0 0.0
        %824 = vmatpush1.msra.mxu0 0.0
        %825 = vmatprep.subr.mxu0 0.0
        %826 = vmatpush1.msra.mxu0 0.0
        %827 = vmatprep.subr.mxu0 0.0
        %828 = vmatpush1.msra.mxu0 0.0
        %829 = vmatprep.subr.mxu0 0.0
        %830 = vmatpush1.msra.mxu0 0.0
        %831 = vmatprep.subr.mxu0 0.0
        %832 = vmatpush1.msra.mxu0 0.0
        %833 = vmatprep.subr.mxu0 0.0
        %834 = vmatpush1.msra.mxu0 0.0
        %835 = vmatprep.subr.mxu0 0.0
        %836 = vmatpush1.msra.mxu0 0.0
        %837 = vmatprep.subr.mxu0 0.0
        %838 = vmatpush1.msra.mxu0 0.0
        %839 = vmatprep.subr.mxu0 0.0
        %840 = vmatpush1.msra.mxu0 0.0
        %841 = vmatprep.subr.mxu0 0.0
        %842 = vmatpush1.msra.mxu0 0.0
        %843 = vmatprep.subr.mxu0 0.0
        %844 = vmatpush1.msra.mxu0 0.0
        %845 = vmatprep.subr.mxu0 0.0
        %846 = vmatpush1.msra.mxu0 0.0
        %847 = vmatprep.subr.mxu0 0.0
        %848 = vmatpush1.msra.mxu0 0.0
        %849 = vmatprep.subr.mxu0 0.0
        %850 = vmatpush1.msra.mxu0 0.0
        %851 = vmatprep.subr.mxu0 0.0
        %852 = vmatpush1.msra.mxu0 0.0
        %853 = vmatprep.mubr.f32.mxu0 0.0
        %854 = vmatmul.mubr.f32.gmra.mrb[0].mxu0 %v772
        %v855 = vpop.f32.mrb[0].mxu0
        %v856 = vadd.f32 0.0, %v855
        %v857 = vpop.f32.mrb[0].mxu0
        %858 = vdwg.mxu0
        %859 = vst [vmem:[%s331] sm:$0x1] %v856
      $region52: #{attention_down_block.2} parent=43 // pred_fallthru
        _
      %s860 = smul.u32 8, %s24
      %p861 = scmp.lt.s32.totalorder %s23, 1
      %s862 = scalar_select %p861, %s23, 1
      %p863 = scmp.lt.s32.totalorder %s860, 15
      %s864 = scalar_select %p863, %s860, 15
      %s865 = smul.addr %s864, 2
      %s866 = smul.addr %s862, 32
      %s867 = sadd.s32 %s865, %s866
      %s868 = smul.addr %s867, 4
      %s869 = scalar_lea.vmem %s6, %s868
      %p870 = scmp.lt.s32.totalorder %s23, 1
      %s871 = scalar_select %p870, %s23, 1
      %s872 = scalar_lea.vmem %s7, %s871
      // Predicated region
      $region53: #{attention_down_block.2} parent=43 // pred_check
        %p873 = pneg %p184
      $region54: #{attention_down_block.2} parent=43 // pred_check_branch
        %875 = sbr.rel (%p873) target = $region56
      $region55: #{attention_down_block.2} parent=43 // pred_region
        %s876 = smul.u32 8, %s24
      $region56: #{attention_down_block.2} parent=43 // pred_fallthru
        _
      // Predicated region
      $region57: #{attention_down_block.2} parent=43 // pred_check
        %p877 = pneg %p210
      $region58: #{attention_down_block.2} parent=43 // pred_check_branch
        %879 = sbr.rel (%p877) target = $region60
      $region59: #{attention_down_block.2} parent=43 // pred_region
        _
      $region60: #{attention_down_block.2} parent=43 // pred_fallthru
        _
    $region44: #{attention_down_block.2} parent=5 // pred_fallthru
      _
    %p880 = scmp.le.s32.totalorder 2, %s14
    // Predicated region
    $region61: #{attention_down_block.2} parent=5 // pred_check
      %p881 = pneg %p880
    $region62: #{attention_down_block.2} parent=5 // pred_check_branch
      %883 = sbr.rel (%p881) target = $region64
    $region63: #{attention_down_block.2} parent=5 // pred_region
      %s884 = ssub.s32 %s14, 2
      // Predicated region
      $region65: #{attention_down_block.2} parent=63 // pred_check
        %p885 = pneg %p190
      $region66: #{attention_down_block.2} parent=63 // pred_check_branch
        %887 = sbr.rel (%p885) target = $region68
      $region67: #{attention_down_block.2} parent=63 // pred_region
        %s888 = smul.u32 8, %s26
        %p889 = scmp.lt.s32.totalorder %s25, 1
        %s890 = scalar_select %p889, %s25, 1
        %p891 = scmp.lt.s32.totalorder %s888, 15
        %s892 = scalar_select %p891, %s888, 15
        %s893 = smul.addr %s892, 2
        %s894 = smul.addr %s890, 32
        %s895 = sadd.s32 %s893, %s894
        %s896 = smul.addr %s895, 4
        %s897 = scalar_lea.vmem %s6, %s896
      $region68: #{attention_down_block.2} parent=63 // pred_fallthru
        _
      // Predicated region
      $region69: #{attention_down_block.2} parent=63 // pred_check
        %p898 = pneg %p216
      $region70: #{attention_down_block.2} parent=63 // pred_check_branch
        %900 = sbr.rel (%p898) target = $region72
      $region71: #{attention_down_block.2} parent=63 // pred_region
        %p901 = scmp.lt.s32.totalorder %s25, 1
        %s902 = scalar_select %p901, %s25, 1
        %s903 = scalar_lea.vmem %s7, %s902
      $region72: #{attention_down_block.2} parent=63 // pred_fallthru
        _
    $region64: #{attention_down_block.2} parent=5 // pred_fallthru
      _
  $region6: #{attention_down_block.2} parent=0 // loop_footer
    %s18 = sadd.s32 1, %s14
  $region7: #{attention_down_block.2} parent=0 // loop_footer_branch
    %13 = sbr.rel target = $region3
  $region8: #{attention_down_block.2} parent=0 // loop_exit
    _

// kernel: attention_down_block.3
$region0: #{attention_down_block.3}
  #allocation0 [shape = 'u32[]', space=smem, size = 0x4, offset = 0x4, fixed_abs, tag = 'smem constant byte address 0x4 - core index']
  #allocation1 [shape = 'u32[144,128]{1,0:T(1,128)}', space=vmem, size = 0x12000, scoped, tag = 'internal scratch']
  #allocation2 [shape = 'f32[24,32,128]{2,1,0:T(8,128)}', space=vmem, size = 0x60000, scoped, tag = 'scratch operand']
  #allocation3 [shape = 'f32[10,18,128]{2,1,0:T(8,128)}', space=vmem, size = 0x1e000, scoped, tag = 'scratch operand']
  %s0 = inlined_call_operand.vmem [shape: bf16[2,16,16,128], index: 0, kind: input, shape index: {}, may-alias: {0,1,2}]
  %s1 = inlined_call_operand.vmem [shape: bf16[2,16,16,128], index: 1, kind: input, shape index: {}, may-alias: {0,1,2}]
  %s2 = inlined_call_operand.vmem [shape: bf16[2,16,16,128], index: 2, kind: input, shape index: {}, may-alias: {0,1,2}]
  %s3 = inlined_call_operand.vmem [shape: f32[27,1,128], index: 3, kind: input, shape index: {}]
  %s4 = inlined_call_operand.vmem [shape: f32[1,128], index: 4, kind: input, shape index: {}]
  %s5 = inlined_call_operand.vmem [shape: f32[1,128], index: 5, kind: input, shape index: {}]
  %s6 = inlined_call_operand.vmem [shape: f32[9,128,128], index: 6, kind: input, shape index: {}]
  %s7 = inlined_call_operand.vmem [shape: f32[1,128], index: 7, kind: input, shape index: {}]
  %s8 = inlined_call_operand.vmem [shape: f32[1,128], index: 8, kind: input, shape index: {}]
  %s9 = inlined_call_operand.vmem [shape: f32[2,16,16,128], index: 9, kind: output, shape index: {}]
  %s10 = sld [smem:[#allocation0]]
  $region77: #{attention_down_block.3} parent=0
    _
  %s12 = ssub.s32 1, %s10
  %s13 = scalar_select 0, %s12, %s10
  loop: start=0, step=1, limit=6
  $region2: #{attention_down_block.3} parent=0 // loop_pre_header
    _
  $region3: #{attention_down_block.3} parent=0 // loop_header
    %s15 = sphi 0, %s19
    %p16 = scmp.ge.s32.totalorder %s15, 6
    %s22 = sphi 0, %s34
    %s23 = sphi 0, %s30
    %s24 = sphi 0, %s22
    %s25 = sphi 0, %s23
    %s26 = sphi 0, %s24
    %s27 = sphi 0, %s25
    %s39 = sphi 0, %s41
    %s42 = sphi 0, %s39
    %s43 = sphi 0, %s42
    %s59 = sphi 0, %s43
    %s73 = sphi 0, %s75
    %s76 = sphi 0, %s73
    %s77 = sphi 0, %s76
    %s93 = sphi 0, %s77
    %s107 = sphi 0, %s109
    %s110 = sphi 0, %s107
    %s111 = sphi 0, %s110
    %s127 = sphi 0, %s111
    %s131 = sphi 0, %s131
    %s133 = sphi 0, %s131
    %s134 = sphi 0, %s133
    %s148 = sphi 0, %s134
    %s152 = sphi 0, %s152
    %s154 = sphi 0, %s152
    %s155 = sphi 0, %s154
    %s169 = sphi 0, %s155
    %s173 = sphi 0, %s173
    %s175 = sphi 0, %s173
    %s176 = sphi 0, %s175
    %s190 = sphi 0, %s176
    %s194 = sphi 0, %s194
    %s196 = sphi 0, %s194
    %s197 = sphi 0, %s196
    %s211 = sphi 0, %s197
    %s215 = sphi 0, %s215
    %s217 = sphi 0, %s215
    %s218 = sphi 0, %s217
    %s232 = sphi 0, %s218
    %s236 = sphi 0, %s236
    %s238 = sphi 0, %s236
    %s239 = sphi 0, %s238
    %s253 = sphi 0, %s239
    %s261 = sphi 0, %s263
    %s264 = sphi 0, %s261
    %s265 = sphi 0, %s264
    %s281 = sphi 0, %s265
  $region4: #{attention_down_block.3} parent=0 // loop_header_branch
    %18 = sbr.rel (%p16) target = $region8
  $region5: #{attention_down_block.3} parent=0 // loop_body
    %s20 = ssub.s32 %s15, 1
    %s21 = ssub.s32 %s15, 2
    %s28 = sadd.s32 1, %s23
    %p29 = scmp.ge.s32.totalorder %s28, 2
    %s30 = scalar_select %p29, 0, %s28
    %s31 = sadd.s32 1, %s22
    %s32 = scalar_select %p29, %s31, %s22
    %p33 = scmp.ge.s32.totalorder %s32, 2
    %s34 = scalar_select %p33, 0, %s32
    %s35 = ssub.s32 %s22, %s34
    %s36 = ssub.s32 %s23, %s30
    %s37 = sor.u32 %s35, %s36
    %p38 = scmp.eq.s32.totalorder %s37, 0
    %s40 = sadd.s32 %s39, 1
    %s41 = scalar_select %p38, %s39, %s40
    %p44 = pneg %p38
    %p45 = scmp.eq.s32.totalorder %s15, 3
    %p46 = por %p44, %p45
    %p47 = scmp.ne.s32.totalorder %s39, %s42
    %p48 = scmp.eq.s32.totalorder %s15, 0
    %p49 = por %p47, %p48
    %p50 = scmp.ne.s32.totalorder %s39, %s42
    %p51 = scmp.eq.s32.totalorder %s20, 3
    %p52 = por %p50, %p51
    %p53 = scmp.ne.s32.totalorder %s42, %s43
    %p54 = scmp.eq.s32.totalorder %s20, 0
    %p55 = por %p53, %p54
    %p56 = scmp.ne.s32.totalorder %s42, %s43
    %p57 = scmp.eq.s32.totalorder %s21, 3
    %p58 = por %p56, %p57
    %p60 = scmp.ne.s32.totalorder %s43, %s59
    %p61 = scmp.eq.s32.totalorder %s21, 0
    %p62 = por %p60, %p61
    %s63 = ssub.s32 %s23, 1
    %p64 = scmp.gt.s32.totalorder %s63, 0
    %s65 = scalar_select %p64, %s63, 0
    %s66 = ssub.s32 %s30, 1
    %p67 = scmp.gt.s32.totalorder %s66, 0
    %s68 = scalar_select %p67, %s66, 0
    %s69 = ssub.s32 %s22, %s34
    %s70 = ssub.s32 %s65, %s68
    %s71 = sor.u32 %s69, %s70
    %p72 = scmp.eq.s32.totalorder %s71, 0
    %s74 = sadd.s32 %s73, 1
    %s75 = scalar_select %p72, %s73, %s74
    %p78 = pneg %p72
    %p79 = scmp.eq.s32.totalorder %s15, 3
    %p80 = por %p78, %p79
    %p81 = scmp.ne.s32.totalorder %s73, %s76
    %p82 = scmp.eq.s32.totalorder %s15, 0
    %p83 = por %p81, %p82
    %p84 = scmp.ne.s32.totalorder %s73, %s76
    %p85 = scmp.eq.s32.totalorder %s20, 3
    %p86 = por %p84, %p85
    %p87 = scmp.ne.s32.totalorder %s76, %s77
    %p88 = scmp.eq.s32.totalorder %s20, 0
    %p89 = por %p87, %p88
    %p90 = scmp.ne.s32.totalorder %s76, %s77
    %p91 = scmp.eq.s32.totalorder %s21, 3
    %p92 = por %p90, %p91
    %p94 = scmp.ne.s32.totalorder %s77, %s93
    %p95 = scmp.eq.s32.totalorder %s21, 0
    %p96 = por %p94, %p95
    %s97 = sadd.s32 %s23, 1
    %p98 = scmp.lt.s32.totalorder %s97, 1
    %s99 = scalar_select %p98, %s97, 1
    %s100 = sadd.s32 %s30, 1
    %p101 = scmp.lt.s32.totalorder %s100, 1
    %s102 = scalar_select %p101, %s100, 1
    %s103 = ssub.s32 %s22, %s34
    %s104 = ssub.s32 %s99, %s102
    %s105 = sor.u32 %s103, %s104
    %p106 = scmp.eq.s32.totalorder %s105, 0
    %s108 = sadd.s32 %s107, 1
    %s109 = scalar_select %p106, %s107, %s108
    %p112 = pneg %p106
    %p113 = scmp.eq.s32.totalorder %s15, 3
    %p114 = por %p112, %p113
    %p115 = scmp.ne.s32.totalorder %s107, %s110
    %p116 = scmp.eq.s32.totalorder %s15, 0
    %p117 = por %p115, %p116
    %p118 = scmp.ne.s32.totalorder %s107, %s110
    %p119 = scmp.eq.s32.totalorder %s20, 3
    %p120 = por %p118, %p119
    %p121 = scmp.ne.s32.totalorder %s110, %s111
    %p122 = scmp.eq.s32.totalorder %s20, 0
    %p123 = por %p121, %p122
    %p124 = scmp.ne.s32.totalorder %s110, %s111
    %p125 = scmp.eq.s32.totalorder %s21, 3
    %p126 = por %p124, %p125
    %p128 = scmp.ne.s32.totalorder %s111, %s127
    %p129 = scmp.eq.s32.totalorder %s21, 0
    %p130 = por %p128, %p129
    %s132 = sadd.s32 %s131, 1
    %p135 = scmp.eq.s32.totalorder %s15, 3
    %p136 = scmp.ne.s32.totalorder %s131, %s133
    %p137 = scmp.eq.s32.totalorder %s15, 0
    %p138 = por %p136, %p137
    %p139 = scmp.ne.s32.totalorder %s131, %s133
    %p140 = scmp.eq.s32.totalorder %s20, 3
    %p141 = por %p139, %p140
    %p142 = scmp.ne.s32.totalorder %s133, %s134
    %p143 = scmp.eq.s32.totalorder %s20, 0
    %p144 = por %p142, %p143
    %p145 = scmp.ne.s32.totalorder %s133, %s134
    %p146 = scmp.eq.s32.totalorder %s21, 3
    %p147 = por %p145, %p146
    %p149 = scmp.ne.s32.totalorder %s134, %s148
    %p150 = scmp.eq.s32.totalorder %s21, 0
    %p151 = por %p149, %p150
    %s153 = sadd.s32 %s152, 1
    %p156 = scmp.eq.s32.totalorder %s15, 3
    %p157 = scmp.ne.s32.totalorder %s152, %s154
    %p158 = scmp.eq.s32.totalorder %s15, 0
    %p159 = por %p157, %p158
    %p160 = scmp.ne.s32.totalorder %s152, %s154
    %p161 = scmp.eq.s32.totalorder %s20, 3
    %p162 = por %p160, %p161
    %p163 = scmp.ne.s32.totalorder %s154, %s155
    %p164 = scmp.eq.s32.totalorder %s20, 0
    %p165 = por %p163, %p164
    %p166 = scmp.ne.s32.totalorder %s154, %s155
    %p167 = scmp.eq.s32.totalorder %s21, 3
    %p168 = por %p166, %p167
    %p170 = scmp.ne.s32.totalorder %s155, %s169
    %p171 = scmp.eq.s32.totalorder %s21, 0
    %p172 = por %p170, %p171
    %s174 = sadd.s32 %s173, 1
    %p177 = scmp.eq.s32.totalorder %s15, 3
    %p178 = scmp.ne.s32.totalorder %s173, %s175
    %p179 = scmp.eq.s32.totalorder %s15, 0
    %p180 = por %p178, %p179
    %p181 = scmp.ne.s32.totalorder %s173, %s175
    %p182 = scmp.eq.s32.totalorder %s20, 3
    %p183 = por %p181, %p182
    %p184 = scmp.ne.s32.totalorder %s175, %s176
    %p185 = scmp.eq.s32.totalorder %s20, 0
    %p186 = por %p184, %p185
    %p187 = scmp.ne.s32.totalorder %s175, %s176
    %p188 = scmp.eq.s32.totalorder %s21, 3
    %p189 = por %p187, %p188
    %p191 = scmp.ne.s32.totalorder %s176, %s190
    %p192 = scmp.eq.s32.totalorder %s21, 0
    %p193 = por %p191, %p192
    %s195 = sadd.s32 %s194, 1
    %p198 = scmp.eq.s32.totalorder %s15, 3
    %p199 = scmp.ne.s32.totalorder %s194, %s196
    %p200 = scmp.eq.s32.totalorder %s15, 0
    %p201 = por %p199, %p200
    %p202 = scmp.ne.s32.totalorder %s194, %s196
    %p203 = scmp.eq.s32.totalorder %s20, 3
    %p204 = por %p202, %p203
    %p205 = scmp.ne.s32.totalorder %s196, %s197
    %p206 = scmp.eq.s32.totalorder %s20, 0
    %p207 = por %p205, %p206
    %p208 = scmp.ne.s32.totalorder %s196, %s197
    %p209 = scmp.eq.s32.totalorder %s21, 3
    %p210 = por %p208, %p209
    %p212 = scmp.ne.s32.totalorder %s197, %s211
    %p213 = scmp.eq.s32.totalorder %s21, 0
    %p214 = por %p212, %p213
    %s216 = sadd.s32 %s215, 1
    %p219 = scmp.eq.s32.totalorder %s15, 3
    %p220 = scmp.ne.s32.totalorder %s215, %s217
    %p221 = scmp.eq.s32.totalorder %s15, 0
    %p222 = por %p220, %p221
    %p223 = scmp.ne.s32.totalorder %s215, %s217
    %p224 = scmp.eq.s32.totalorder %s20, 3
    %p225 = por %p223, %p224
    %p226 = scmp.ne.s32.totalorder %s217, %s218
    %p227 = scmp.eq.s32.totalorder %s20, 0
    %p228 = por %p226, %p227
    %p229 = scmp.ne.s32.totalorder %s217, %s218
    %p230 = scmp.eq.s32.totalorder %s21, 3
    %p231 = por %p229, %p230
    %p233 = scmp.ne.s32.totalorder %s218, %s232
    %p234 = scmp.eq.s32.totalorder %s21, 0
    %p235 = por %p233, %p234
    %s237 = sadd.s32 %s236, 1
    %p240 = scmp.eq.s32.totalorder %s15, 3
    %p241 = scmp.ne.s32.totalorder %s236, %s238
    %p242 = scmp.eq.s32.totalorder %s15, 0
    %p243 = por %p241, %p242
    %p244 = scmp.ne.s32.totalorder %s236, %s238
    %p245 = scmp.eq.s32.totalorder %s20, 3
    %p246 = por %p244, %p245
    %p247 = scmp.ne.s32.totalorder %s238, %s239
    %p248 = scmp.eq.s32.totalorder %s20, 0
    %p249 = por %p247, %p248
    %p250 = scmp.ne.s32.totalorder %s238, %s239
    %p251 = scmp.eq.s32.totalorder %s21, 3
    %p252 = por %p250, %p251
    %p254 = scmp.ne.s32.totalorder %s239, %s253
    %p255 = scmp.eq.s32.totalorder %s21, 0
    %p256 = por %p254, %p255
    %s257 = ssub.s32 %s22, %s34
    %s258 = ssub.s32 %s23, %s30
    %s259 = sor.u32 %s257, %s258
    %p260 = scmp.eq.s32.totalorder %s259, 0
    %s262 = sadd.s32 %s261, 1
    %s263 = scalar_select %p260, %s261, %s262
    %p266 = pneg %p260
    %p267 = scmp.eq.s32.totalorder %s15, 3
    %p268 = por %p266, %p267
    %p269 = scmp.ne.s32.totalorder %s261, %s264
    %p270 = scmp.eq.s32.totalorder %s15, 0
    %p271 = por %p269, %p270
    %p272 = scmp.ne.s32.totalorder %s261, %s264
    %p273 = scmp.eq.s32.totalorder %s20, 3
    %p274 = por %p272, %p273
    %p275 = scmp.ne.s32.totalorder %s264, %s265
    %p276 = scmp.eq.s32.totalorder %s20, 0
    %p277 = por %p275, %p276
    %p278 = scmp.ne.s32.totalorder %s264, %s265
    %p279 = scmp.eq.s32.totalorder %s21, 3
    %p280 = por %p278, %p279
    %p282 = scmp.ne.s32.totalorder %s265, %s281
    %p283 = scmp.eq.s32.totalorder %s21, 0
    %p284 = por %p282, %p283
    %p285 = scmp.le.s32.totalorder 1, %s15
    %p286 = scmp.lt.s32.totalorder %s15, 5
    %p287 = pnand %p285, %p286
    %p288 = pneg %p287
    // Predicated region
    $region9: #{attention_down_block.3} parent=5 // pred_check
      _
    $region10: #{attention_down_block.3} parent=5 // pred_check_branch
      %290 = sbr.rel (%p287) target = $region12
    $region11: #{attention_down_block.3} parent=5 // pred_region
      %s291 = ssub.s32 %s15, 1
      // Predicated region
      $region13: #{attention_down_block.3} parent=11 // pred_check
        %p292 = pneg %p144
      $region14: #{attention_down_block.3} parent=11 // pred_check_branch
        %294 = sbr.rel (%p292) target = $region16
      $region15: #{attention_down_block.3} parent=11 // pred_region
        _
      $region16: #{attention_down_block.3} parent=11 // pred_fallthru
        _
      // Predicated region
      $region17: #{attention_down_block.3} parent=11 // pred_check
        %p295 = pneg %p165
      $region18: #{attention_down_block.3} parent=11 // pred_check_branch
        %297 = sbr.rel (%p295) target = $region20
      $region19: #{attention_down_block.3} parent=11 // pred_region
        _
      $region20: #{attention_down_block.3} parent=11 // pred_fallthru
        _
      // Predicated region
      $region21: #{attention_down_block.3} parent=11 // pred_check
        %p298 = pneg %p186
      $region22: #{attention_down_block.3} parent=11 // pred_check_branch
        %300 = sbr.rel (%p298) target = $region24
      $region23: #{attention_down_block.3} parent=11 // pred_region
        _
      $region24: #{attention_down_block.3} parent=11 // pred_fallthru
        _
      // Predicated region
      $region25: #{attention_down_block.3} parent=11 // pred_check
        %p301 = pneg %p207
      $region26: #{attention_down_block.3} parent=11 // pred_check_branch
        %303 = sbr.rel (%p301) target = $region28
      $region27: #{attention_down_block.3} parent=11 // pred_region
        _
      $region28: #{attention_down_block.3} parent=11 // pred_fallthru
        _
      // Predicated region
      $region29: #{attention_down_block.3} parent=11 // pred_check
        %p304 = pneg %p228
      $region30: #{attention_down_block.3} parent=11 // pred_check_branch
        %306 = sbr.rel (%p304) target = $region32
      $region31: #{attention_down_block.3} parent=11 // pred_region
        _
      $region32: #{attention_down_block.3} parent=11 // pred_fallthru
        _
      // Predicated region
      $region33: #{attention_down_block.3} parent=11 // pred_check
        %p307 = pneg %p249
      $region34: #{attention_down_block.3} parent=11 // pred_check_branch
        %309 = sbr.rel (%p307) target = $region36
      $region35: #{attention_down_block.3} parent=11 // pred_region
        _
      $region36: #{attention_down_block.3} parent=11 // pred_fallthru
        _
    $region12: #{attention_down_block.3} parent=5 // pred_fallthru
      _
    %p310 = scmp.lt.s32.totalorder %s15, 4
    // Predicated region
    $region37: #{attention_down_block.3} parent=5 // pred_check
      %p311 = pneg %p310
    $region38: #{attention_down_block.3} parent=5 // pred_check_branch
      %313 = sbr.rel (%p311) target = $region40
    $region39: #{attention_down_block.3} parent=5 // pred_region
      // Predicated region
      $region41: #{attention_down_block.3} parent=39 // pred_check
        %p314 = pneg %p49
      $region42: #{attention_down_block.3} parent=39 // pred_check_branch
        %316 = sbr.rel (%p314) target = $region44
      $region43: #{attention_down_block.3} parent=39 // pred_region
        %s317 = smul.u32 8, %s23
        %p318 = scmp.lt.s32.totalorder %s22, 1
        %s319 = scalar_select %p318, %s22, 1
        %p320 = scmp.lt.s32.totalorder %s317, 15
        %s321 = scalar_select %p320, %s317, 15
        %s322 = smul.addr %s321, 2
        %s323 = smul.addr %s319, 32
        %s324 = sadd.s32 %s322, %s323
        %s325 = smul.addr %s324, 4
        %s326 = scalar_lea.vmem %s0, %s325
        %s327 = smul.u32 8, %s23
      $region44: #{attention_down_block.3} parent=39 // pred_fallthru
        _
      // Predicated region
      $region45: #{attention_down_block.3} parent=39 // pred_check
        %p328 = pneg %p83
      $region46: #{attention_down_block.3} parent=39 // pred_check_branch
        %330 = sbr.rel (%p328) target = $region48
      $region47: #{attention_down_block.3} parent=39 // pred_region
        %s331 = ssub.s32 %s23, 1
        %p332 = scmp.gt.s32.totalorder %s331, 0
        %s333 = scalar_select %p332, %s331, 0
        %s334 = smul.u32 8, %s333
        %p335 = scmp.lt.s32.totalorder %s22, 1
        %s336 = scalar_select %p335, %s22, 1
        %p337 = scmp.lt.s32.totalorder %s334, 15
        %s338 = scalar_select %p337, %s334, 15
        %s339 = smul.addr %s338, 2
        %s340 = smul.addr %s336, 32
        %s341 = sadd.s32 %s339, %s340
        %s342 = smul.addr %s341, 4
        %s343 = scalar_lea.vmem %s1, %s342
        %s344 = ssub.s32 %s23, 1
        %p345 = scmp.gt.s32.totalorder %s344, 0
        %s346 = scalar_select %p345, %s344, 0
        %s347 = smul.u32 8, %s346
      $region48: #{attention_down_block.3} parent=39 // pred_fallthru
        _
      // Predicated region
      $region49: #{attention_down_block.3} parent=39 // pred_check
        %p348 = pneg %p117
      $region50: #{attention_down_block.3} parent=39 // pred_check_branch
        %350 = sbr.rel (%p348) target = $region52
      $region51: #{attention_down_block.3} parent=39 // pred_region
        %s351 = sadd.s32 %s23, 1
        %p352 = scmp.lt.s32.totalorder %s351, 1
        %s353 = scalar_select %p352, %s351, 1
        %s354 = smul.u32 8, %s353
        %p355 = scmp.lt.s32.totalorder %s22, 1
        %s356 = scalar_select %p355, %s22, 1
        %p357 = scmp.lt.s32.totalorder %s354, 15
        %s358 = scalar_select %p357, %s354, 15
        %s359 = smul.addr %s358, 2
        %s360 = smul.addr %s356, 32
        %s361 = sadd.s32 %s359, %s360
        %s362 = smul.addr %s361, 4
        %s363 = scalar_lea.vmem %s2, %s362
        %s364 = sadd.s32 %s23, 1
        %p365 = scmp.lt.s32.totalorder %s364, 1
        %s366 = scalar_select %p365, %s364, 1
        %s367 = smul.u32 8, %s366
      $region52: #{attention_down_block.3} parent=39 // pred_fallthru
        _
    $region40: #{attention_down_block.3} parent=5 // pred_fallthru
      _
    %p368 = scmp.le.s32.totalorder 1, %s15
    %p369 = scmp.lt.s32.totalorder %s15, 5
    %p370 = pnand %p368, %p369
    %p371 = pneg %p370
    // Predicated region
    $region53: #{attention_down_block.3} parent=5 // pred_check
      _
    $region54: #{attention_down_block.3} parent=5 // pred_check_branch
      %373 = sbr.rel (%p370) target = $region56
    $region55: #{attention_down_block.3} parent=5 // pred_region
      %s374 = ssub.s32 %s15, 1
      %s375 = smul.u32 8, %s25
      %p376 = scmp.lt.s32.totalorder %s24, 1
      %s377 = scalar_select %p376, %s24, 1
      %p378 = scmp.lt.s32.totalorder %s375, 15
      %s379 = scalar_select %p378, %s375, 15
      %s380 = smul.addr %s379, 2
      %s381 = smul.addr %s377, 32
      %s382 = sadd.s32 %s380, %s381
      %s383 = smul.addr %s382, 4
      %s384 = scalar_lea.vmem %s0, %s383
      %p385 = pneg %p55
      %p386 = pneg %p52
      %s387 = ssub.s32 %s25, 1
      %p388 = scmp.gt.s32.totalorder %s387, 0
      %s389 = scalar_select %p388, %s387, 0
      %s390 = smul.u32 8, %s389
      %p391 = scmp.lt.s32.totalorder %s24, 1
      %s392 = scalar_select %p391, %s24, 1
      %p393 = scmp.lt.s32.totalorder %s390, 15
      %s394 = scalar_select %p393, %s390, 15
      %s395 = smul.addr %s394, 2
      %s396 = smul.addr %s392, 32
      %s397 = sadd.s32 %s395, %s396
      %s398 = smul.addr %s397, 4
      %s399 = scalar_lea.vmem %s1, %s398
      %p400 = pneg %p89
      %p401 = pneg %p86
      %s402 = sadd.s32 %s25, 1
      %p403 = scmp.lt.s32.totalorder %s402, 1
      %s404 = scalar_select %p403, %s402, 1
      %s405 = smul.u32 8, %s404
      %p406 = scmp.lt.s32.totalorder %s24, 1
      %s407 = scalar_select %p406, %s24, 1
      %p408 = scmp.lt.s32.totalorder %s405, 15
      %s409 = scalar_select %p408, %s405, 15
      %s410 = smul.addr %s409, 2
      %s411 = smul.addr %s407, 32
      %s412 = sadd.s32 %s410, %s411
      %s413 = smul.addr %s412, 4
      %s414 = scalar_lea.vmem %s2, %s413
      %p415 = pneg %p123
      %p416 = pneg %p120
      %p417 = pneg %p144
      %p418 = pneg %p141
      %p419 = pneg %p165
      %p420 = pneg %p162
      %p421 = pneg %p186
      %p422 = pneg %p183
      %p423 = pneg %p207
      %p424 = pneg %p204
      %p425 = pneg %p228
      %p426 = pneg %p225
      %p427 = pneg %p249
      %p428 = pneg %p246
      %p429 = pneg %p277
      %p430 = pneg %p274
      %s431 = smul.u32 8, %s25
      %p432 = scmp.lt.s32.totalorder %s24, 1
      %s433 = scalar_select %p432, %s24, 1
      %p434 = scmp.lt.s32.totalorder %s431, 15
      %s435 = scalar_select %p434, %s431, 15
      %s436 = smul.addr %s435, 2
      %s437 = smul.addr %s433, 32
      %s438 = sadd.s32 %s436, %s437
      %s439 = smul.addr %s438, 8
      %s440 = scalar_lea.vmem %s9, %s439
      %s441 = smul.u32 8, %s25
      %p442 = scmp.lt.s32.totalorder %s24, 1
      %s443 = scalar_select %p442, %s24, 1
      %p444 = scmp.lt.s32.totalorder %s441, 15
      %s445 = scalar_select %p444, %s441, 15
      %s446 = smul.addr %s445, 2
      %s447 = smul.addr %s443, 32
      %s448 = sadd.s32 %s446, %s447
      %s449 = smul.addr %s448, 4
      %s450 = scalar_lea.vmem %s0, %s449
      %s451 = smul.u32 8, %s25
      %s452 = ssub.s32 %s25, 1
      %p453 = scmp.gt.s32.totalorder %s452, 0
      %s454 = scalar_select %p453, %s452, 0
      %s455 = smul.u32 8, %s454
      %p456 = scmp.lt.s32.totalorder %s24, 1
      %s457 = scalar_select %p456, %s24, 1
      %p458 = scmp.lt.s32.totalorder %s455, 15
      %s459 = scalar_select %p458, %s455, 15
      %s460 = smul.addr %s459, 2
      %s461 = smul.addr %s457, 32
      %s462 = sadd.s32 %s460, %s461
      %s463 = smul.addr %s462, 4
      %s464 = scalar_lea.vmem %s1, %s463
      %s465 = ssub.s32 %s25, 1
      %p466 = scmp.gt.s32.totalorder %s465, 0
      %s467 = scalar_select %p466, %s465, 0
      %s468 = smul.u32 8, %s467
      %s469 = sadd.s32 %s25, 1
      %p470 = scmp.lt.s32.totalorder %s469, 1
      %s471 = scalar_select %p470, %s469, 1
      %s472 = smul.u32 8, %s471
      %p473 = scmp.lt.s32.totalorder %s24, 1
      %s474 = scalar_select %p473, %s24, 1
      %p475 = scmp.lt.s32.totalorder %s472, 15
      %s476 = scalar_select %p475, %s472, 15
      %s477 = smul.addr %s476, 2
      %s478 = smul.addr %s474, 32
      %s479 = sadd.s32 %s477, %s478
      %s480 = smul.addr %s479, 4
      %s481 = scalar_lea.vmem %s2, %s480
      %s482 = sadd.s32 %s25, 1
      %p483 = scmp.lt.s32.totalorder %s482, 1
      %s484 = scalar_select %p483, %s482, 1
      %s485 = smul.u32 8, %s484
      %s486 = smul.u32 8, %s25
      %p487 = scmp.lt.s32.totalorder %s24, 1
      %s488 = scalar_select %p487, %s24, 1
      %p489 = scmp.lt.s32.totalorder %s486, 15
      %s490 = scalar_select %p489, %s486, 15
      %s491 = smul.addr %s490, 2
      %s492 = smul.addr %s488, 32
      %s493 = sadd.s32 %s491, %s492
      %s494 = smul.addr %s493, 8
      %s495 = scalar_lea.vmem %s9, %s494
      %s496 = smul.u32 8, %s25
      %497 = vst [vmem:[#allocation2] sm:$0xff] 0.0
      %498 = vst [vmem:[#allocation2 + $0x8] sm:$0xff] 0.0
      %499 = vst [vmem:[#allocation2 + $0x10] sm:$0xff] 0.0
      %500 = vst [vmem:[#allocation2 + $0x18] sm:$0xff] 0.0
      %501 = vst [vmem:[#allocation2 + $0x20] sm:$0xff] 0.0
      %502 = vst [vmem:[#allocation2 + $0x28] sm:$0xff] 0.0
      %503 = vst [vmem:[#allocation2 + $0x30] sm:$0xff] 0.0
      %504 = vst [vmem:[#allocation2 + $0x38] sm:$0xff] 0.0
      %505 = vst [vmem:[#allocation2 + $0x40] sm:$0xff] 0.0
      %506 = vst [vmem:[#allocation2 + $0x48] sm:$0xff] 0.0
      %507 = vst [vmem:[#allocation2 + $0x50] sm:$0xff] 0.0
      %508 = vst [vmem:[#allocation2 + $0x58] sm:$0xff] 0.0
      %509 = vst [vmem:[#allocation2 + $0x60] sm:$0xff] 0.0
      %510 = vst [vmem:[#allocation2 + $0x68] sm:$0xff] 0.0
      %511 = vst [vmem:[#allocation2 + $0x70] sm:$0xff] 0.0
      %512 = vst [vmem:[#allocation2 + $0x78] sm:$0xff] 0.0
      %513 = vst [vmem:[#allocation2 + $0x80] sm:$0xff] 0.0
      %514 = vst [vmem:[#allocation2 + $0x88] sm:$0xff] 0.0
      %515 = vst [vmem:[#allocation2 + $0x90] sm:$0xff] 0.0
      %516 = vst [vmem:[#allocation2 + $0x98] sm:$0xff] 0.0
      %517 = vst [vmem:[#allocation2 + $0xa0] sm:$0xff] 0.0
      %518 = vst [vmem:[#allocation2 + $0xa8] sm:$0xff] 0.0
      %519 = vst [vmem:[#allocation2 + $0xb0] sm:$0xff] 0.0
      %520 = vst [vmem:[#allocation2 + $0xb8] sm:$0xff] 0.0
      %521 = vst [vmem:[#allocation2 + $0xc0] sm:$0xff] 0.0
      %522 = vst [vmem:[#allocation2 + $0xc8] sm:$0xff] 0.0
      %523 = vst [vmem:[#allocation2 + $0xd0] sm:$0xff] 0.0
      %524 = vst [vmem:[#allocation2 + $0xd8] sm:$0xff] 0.0
      %525 = vst [vmem:[#allocation2 + $0xe0] sm:$0xff] 0.0
      %526 = vst [vmem:[#allocation2 + $0xe8] sm:$0xff] 0.0
      %527 = vst [vmem:[#allocation2 + $0xf0] sm:$0xff] 0.0
      %528 = vst [vmem:[#allocation2 + $0xf8] sm:$0xff] 0.0
      %529 = vst [vmem:[#allocation2 + $0x100] sm:$0xff] 0.0
      %530 = vst [vmem:[#allocation2 + $0x108] sm:$0xff] 0.0
      %531 = vst [vmem:[#allocation2 + $0x110] sm:$0xff] 0.0
      %532 = vst [vmem:[#allocation2 + $0x118] sm:$0xff] 0.0
      %533 = vst [vmem:[#allocation2 + $0x120] sm:$0xff] 0.0
      %534 = vst [vmem:[#allocation2 + $0x128] sm:$0xff] 0.0
      %535 = vst [vmem:[#allocation2 + $0x130] sm:$0xff] 0.0
      %536 = vst [vmem:[#allocation2 + $0x138] sm:$0xff] 0.0
      %537 = vst [vmem:[#allocation2 + $0x140] sm:$0xff] 0.0
      %538 = vst [vmem:[#allocation2 + $0x148] sm:$0xff] 0.0
      %539 = vst [vmem:[#allocation2 + $0x150] sm:$0xff] 0.0
      %540 = vst [vmem:[#allocation2 + $0x158] sm:$0xff] 0.0
      %541 = vst [vmem:[#allocation2 + $0x160] sm:$0xff] 0.0
      %542 = vst [vmem:[#allocation2 + $0x168] sm:$0xff] 0.0
      %543 = vst [vmem:[#allocation2 + $0x170] sm:$0xff] 0.0
      %544 = vst [vmem:[#allocation2 + $0x178] sm:$0xff] 0.0
      %545 = vst [vmem:[#allocation2 + $0x180] sm:$0xff] 0.0
      %546 = vst [vmem:[#allocation2 + $0x188] sm:$0xff] 0.0
      %547 = vst [vmem:[#allocation2 + $0x190] sm:$0xff] 0.0
      %548 = vst [vmem:[#allocation2 + $0x198] sm:$0xff] 0.0
      %549 = vst [vmem:[#allocation2 + $0x1a0] sm:$0xff] 0.0
      %550 = vst [vmem:[#allocation2 + $0x1a8] sm:$0xff] 0.0
      %551 = vst [vmem:[#allocation2 + $0x1b0] sm:$0xff] 0.0
      %552 = vst [vmem:[#allocation2 + $0x1b8] sm:$0xff] 0.0
      %553 = vst [vmem:[#allocation2 + $0x1c0] sm:$0xff] 0.0
      %554 = vst [vmem:[#allocation2 + $0x1c8] sm:$0xff] 0.0
      %555 = vst [vmem:[#allocation2 + $0x1d0] sm:$0xff] 0.0
      %556 = vst [vmem:[#allocation2 + $0x1d8] sm:$0xff] 0.0
      %557 = vst [vmem:[#allocation2 + $0x1e0] sm:$0xff] 0.0
      %558 = vst [vmem:[#allocation2 + $0x1e8] sm:$0xff] 0.0
      %559 = vst [vmem:[#allocation2 + $0x1f0] sm:$0xff] 0.0
      %560 = vst [vmem:[#allocation2 + $0x1f8] sm:$0xff] 0.0
      %561 = vst [vmem:[#allocation2 + $0x200] sm:$0xff] 0.0
      %562 = vst [vmem:[#allocation2 + $0x208] sm:$0xff] 0.0
      %563 = vst [vmem:[#allocation2 + $0x210] sm:$0xff] 0.0
      %564 = vst [vmem:[#allocation2 + $0x218] sm:$0xff] 0.0
      %565 = vst [vmem:[#allocation2 + $0x220] sm:$0xff] 0.0
      %566 = vst [vmem:[#allocation2 + $0x228] sm:$0xff] 0.0
      %567 = vst [vmem:[#allocation2 + $0x230] sm:$0xff] 0.0
      %568 = vst [vmem:[#allocation2 + $0x238] sm:$0xff] 0.0
      %569 = vst [vmem:[#allocation2 + $0x240] sm:$0xff] 0.0
      %570 = vst [vmem:[#allocation2 + $0x248] sm:$0xff] 0.0
      %571 = vst [vmem:[#allocation2 + $0x250] sm:$0xff] 0.0
      %572 = vst [vmem:[#allocation2 + $0x258] sm:$0xff] 0.0
      %573 = vst [vmem:[#allocation2 + $0x260] sm:$0xff] 0.0
      %574 = vst [vmem:[#allocation2 + $0x268] sm:$0xff] 0.0
      %575 = vst [vmem:[#allocation2 + $0x270] sm:$0xff] 0.0
      %576 = vst [vmem:[#allocation2 + $0x278] sm:$0xff] 0.0
      %577 = vst [vmem:[#allocation2 + $0x280] sm:$0xff] 0.0
      %578 = vst [vmem:[#allocation2 + $0x288] sm:$0xff] 0.0
      %579 = vst [vmem:[#allocation2 + $0x290] sm:$0xff] 0.0
      %580 = vst [vmem:[#allocation2 + $0x298] sm:$0xff] 0.0
      %581 = vst [vmem:[#allocation2 + $0x2a0] sm:$0xff] 0.0
      %582 = vst [vmem:[#allocation2 + $0x2a8] sm:$0xff] 0.0
      %583 = vst [vmem:[#allocation2 + $0x2b0] sm:$0xff] 0.0
      %584 = vst [vmem:[#allocation2 + $0x2b8] sm:$0xff] 0.0
      %585 = vst [vmem:[#allocation2 + $0x2c0] sm:$0xff] 0.0
      %586 = vst [vmem:[#allocation2 + $0x2c8] sm:$0xff] 0.0
      %587 = vst [vmem:[#allocation2 + $0x2d0] sm:$0xff] 0.0
      %588 = vst [vmem:[#allocation2 + $0x2d8] sm:$0xff] 0.0
      %589 = vst [vmem:[#allocation2 + $0x2e0] sm:$0xff] 0.0
      %590 = vst [vmem:[#allocation2 + $0x2e8] sm:$0xff] 0.0
      %591 = vst [vmem:[#allocation2 + $0x2f0] sm:$0xff] 0.0
      %592 = vst [vmem:[#allocation2 + $0x2f8] sm:$0xff] 0.0
      %v593 = vld [vmem:[%s450] sm:$0xf]
      %v594 = vld [vmem:[%s450 + $0x4] sm:$0xf]
      %v595 = vld [vmem:[%s450 + $0x8] sm:$0xf]
      %v596 = vld [vmem:[%s450 + $0xc] sm:$0xf]
      %v597 = vld [vmem:[%s450 + $0x10] sm:$0xf]
      %v598 = vld [vmem:[%s450 + $0x14] sm:$0xf]
      %v599 = vld [vmem:[%s450 + $0x18] sm:$0xf]
      %v600 = vld [vmem:[%s450 + $0x1c] sm:$0xf]
      %v601 = vld [vmem:[%s450 + $0x20] sm:$0xf]
      %v602 = vld [vmem:[%s450 + $0x24] sm:$0xf]
      %v603 = vld [vmem:[%s450 + $0x28] sm:$0xf]
      %v604 = vld [vmem:[%s450 + $0x2c] sm:$0xf]
      %v605 = vld [vmem:[%s450 + $0x30] sm:$0xf]
      %v606 = vld [vmem:[%s450 + $0x34] sm:$0xf]
      %v607 = vld [vmem:[%s450 + $0x38] sm:$0xf]
      %v608 = vld [vmem:[%s450 + $0x3c] sm:$0xf]
      %v609 = vunpack.c.l.bf16 %v593
      %v610 = vunpack.c.l.bf16 %v594
      %v611 = vunpack.c.l.bf16 %v595
      %v612 = vunpack.c.l.bf16 %v596
      %v613 = vunpack.c.l.bf16 %v597
      %v614 = vunpack.c.l.bf16 %v598
      %v615 = vunpack.c.l.bf16 %v599
      %v616 = vunpack.c.l.bf16 %v600
      %v617 = vunpack.c.l.bf16 %v601
      %v618 = vunpack.c.l.bf16 %v602
      %v619 = vunpack.c.l.bf16 %v603
      %v620 = vunpack.c.l.bf16 %v604
      %v621 = vunpack.c.l.bf16 %v605
      %v622 = vunpack.c.l.bf16 %v606
      %v623 = vunpack.c.l.bf16 %v607
      %v624 = vunpack.c.l.bf16 %v608
      %s625 = scalar_lea.vmem [#allocation2], 256
      %626 = vst [vmem:[%s625 + $0x8] sm:$0xff] %v609
      %627 = vst [vmem:[%s625 + $0x10] sm:$0xff] %v610
      %628 = vst [vmem:[%s625 + $0x28] sm:$0xff] %v611
      %629 = vst [vmem:[%s625 + $0x30] sm:$0xff] %v612
      %630 = vst [vmem:[%s625 + $0x48] sm:$0xff] %v613
      %631 = vst [vmem:[%s625 + $0x50] sm:$0xff] %v614
      %632 = vst [vmem:[%s625 + $0x68] sm:$0xff] %v615
      %633 = vst [vmem:[%s625 + $0x70] sm:$0xff] %v616
      %634 = vst [vmem:[%s625 + $0x88] sm:$0xff] %v617
      %635 = vst [vmem:[%s625 + $0x90] sm:$0xff] %v618
      %636 = vst [vmem:[%s625 + $0xa8] sm:$0xff] %v619
      %637 = vst [vmem:[%s625 + $0xb0] sm:$0xff] %v620
      %638 = vst [vmem:[%s625 + $0xc8] sm:$0xff] %v621
      %639 = vst [vmem:[%s625 + $0xd0] sm:$0xff] %v622
      %640 = vst [vmem:[%s625 + $0xe8] sm:$0xff] %v623
      %641 = vst [vmem:[%s625 + $0xf0] sm:$0xff] %v624
      %p642 = scmp.gt.s32.totalorder %s25, 0
      // Predicated region
      $region57: #{attention_down_block.3} parent=55 // pred_check
        %p643 = pneg %p642
      $region58: #{attention_down_block.3} parent=55 // pred_check_branch
        %645 = sbr.rel (%p643) target = $region60
      $region59: #{attention_down_block.3} parent=55 // pred_region
        %s646 = scalar_lea.vmem %s464, 8
        %v647 = vld [vmem:[%s646] sm:$0xf]
        %v648 = vld [vmem:[%s646 + $0x4] sm:$0xf]
        %v649 = vld [vmem:[%s646 + $0x8] sm:$0xf]
        %v650 = vld [vmem:[%s646 + $0xc] sm:$0xf]
        %v651 = vld [vmem:[%s646 + $0x10] sm:$0xf]
        %v652 = vld [vmem:[%s646 + $0x14] sm:$0xf]
        %v653 = vld [vmem:[%s646 + $0x18] sm:$0xf]
        %v654 = vld [vmem:[%s646 + $0x1c] sm:$0xf]
        %v655 = vld [vmem:[%s646 + $0x20] sm:$0xf]
        %v656 = vld [vmem:[%s646 + $0x24] sm:$0xf]
        %v657 = vld [vmem:[%s646 + $0x28] sm:$0xf]
        %v658 = vld [vmem:[%s646 + $0x2c] sm:$0xf]
        %v659 = vld [vmem:[%s646 + $0x30] sm:$0xf]
        %v660 = vld [vmem:[%s646 + $0x34] sm:$0xf]
        %v661 = vunpack.c.l.bf16 %v647
        %v662 = vunpack.c.l.bf16 %v648
        %v663 = vunpack.c.l.bf16 %v649
        %v664 = vunpack.c.l.bf16 %v650
        %v665 = vunpack.c.l.bf16 %v651
        %v666 = vunpack.c.l.bf16 %v652
        %v667 = vunpack.c.l.bf16 %v653
        %v668 = vunpack.c.l.bf16 %v654
        %v669 = vunpack.c.l.bf16 %v655
        %v670 = vunpack.c.l.bf16 %v656
        %v671 = vunpack.c.l.bf16 %v657
        %v672 = vunpack.c.l.bf16 %v658
        %v673 = vunpack.c.l.bf16 %v659
        %v674 = vunpack.c.l.bf16 %v660
        %s675 = scalar_lea.vmem [#allocation2], 32
        %676 = vst [vmem:[%s675 + $0x8] sm:$0xff] %v661
        %677 = vst [vmem:[%s675 + $0x10] sm:$0xff] %v662
        %678 = vst [vmem:[%s675 + $0x28] sm:$0xff] %v663
        %679 = vst [vmem:[%s675 + $0x30] sm:$0xff] %v664
        %680 = vst [vmem:[%s675 + $0x48] sm:$0xff] %v665
        %681 = vst [vmem:[%s675 + $0x50] sm:$0xff] %v666
        %682 = vst [vmem:[%s675 + $0x68] sm:$0xff] %v667
        %683 = vst [vmem:[%s675 + $0x70] sm:$0xff] %v668
        %684 = vst [vmem:[%s675 + $0x88] sm:$0xff] %v669
        %685 = vst [vmem:[%s675 + $0x90] sm:$0xff] %v670
        %686 = vst [vmem:[%s675 + $0xa8] sm:$0xff] %v671
        %687 = vst [vmem:[%s675 + $0xb0] sm:$0xff] %v672
        %688 = vst [vmem:[%s675 + $0xc8] sm:$0xff] %v673
        %689 = vst [vmem:[%s675 + $0xd0] sm:$0xff] %v674
      $region60: #{attention_down_block.3} parent=55 // pred_fallthru
        _
      %p690 = scmp.lt.s32.totalorder %s25, 1
      // Predicated region
      $region61: #{attention_down_block.3} parent=55 // pred_check
        %p691 = pneg %p690
      $region62: #{attention_down_block.3} parent=55 // pred_check_branch
        %693 = sbr.rel (%p691) target = $region64
      $region63: #{attention_down_block.3} parent=55 // pred_region
        %v694 = vld [vmem:[%s481] sm:$0xf]
        %v695 = vld [vmem:[%s481 + $0x4] sm:$0xf]
        %v696 = vld [vmem:[%s481 + $0x8] sm:$0xf]
        %v697 = vld [vmem:[%s481 + $0xc] sm:$0xf]
        %v698 = vld [vmem:[%s481 + $0x10] sm:$0xf]
        %v699 = vld [vmem:[%s481 + $0x14] sm:$0xf]
        %v700 = vld [vmem:[%s481 + $0x18] sm:$0xf]
        %v701 = vld [vmem:[%s481 + $0x1c] sm:$0xf]
        %v702 = vld [vmem:[%s481 + $0x20] sm:$0xf]
        %v703 = vld [vmem:[%s481 + $0x24] sm:$0xf]
        %v704 = vld [vmem:[%s481 + $0x28] sm:$0xf]
        %v705 = vld [vmem:[%s481 + $0x2c] sm:$0xf]
        %v706 = vld [vmem:[%s481 + $0x30] sm:$0xf]
        %v707 = vld [vmem:[%s481 + $0x34] sm:$0xf]
        %v708 = vunpack.c.l.bf16 %v694
        %v709 = vunpack.c.l.bf16 %v695
        %v710 = vunpack.c.l.bf16 %v696
        %v711 = vunpack.c.l.bf16 %v697
        %v712 = vunpack.c.l.bf16 %v698
        %v713 = vunpack.c.l.bf16 %v699
        %v714 = vunpack.c.l.bf16 %v700
        %v715 = vunpack.c.l.bf16 %v701
        %v716 = vunpack.c.l.bf16 %v702
        %v717 = vunpack.c.l.bf16 %v703
        %v718 = vunpack.c.l.bf16 %v704
        %v719 = vunpack.c.l.bf16 %v705
        %v720 = vunpack.c.l.bf16 %v706
        %v721 = vunpack.c.l.bf16 %v707
        %s722 = scalar_lea.vmem [#allocation2], 512
        %723 = vst [vmem:[%s722 + $0x8] sm:$0xff] %v708
        %724 = vst [vmem:[%s722 + $0x10] sm:$0xff] %v709
        %725 = vst [vmem:[%s722 + $0x28] sm:$0xff] %v710
        %726 = vst [vmem:[%s722 + $0x30] sm:$0xff] %v711
        %727 = vst [vmem:[%s722 + $0x48] sm:$0xff] %v712
        %728 = vst [vmem:[%s722 + $0x50] sm:$0xff] %v713
        %729 = vst [vmem:[%s722 + $0x68] sm:$0xff] %v714
        %730 = vst [vmem:[%s722 + $0x70] sm:$0xff] %v715
        %731 = vst [vmem:[%s722 + $0x88] sm:$0xff] %v716
        %732 = vst [vmem:[%s722 + $0x90] sm:$0xff] %v717
        %733 = vst [vmem:[%s722 + $0xa8] sm:$0xff] %v718
        %734 = vst [vmem:[%s722 + $0xb0] sm:$0xff] %v719
        %735 = vst [vmem:[%s722 + $0xc8] sm:$0xff] %v720
        %736 = vst [vmem:[%s722 + $0xd0] sm:$0xff] %v721
      $region64: #{attention_down_block.3} parent=55 // pred_fallthru
        _
      %v737 = vlaneseq
      %v738 = vand.u32 %v737, 127
      %vm739 = vcmp.lt.s32.totalorder %v738, 32
      %v740 = vsel %vm739, 1, 0
      %v741 = vcvt.s32.f32 %v740
      %v742 = vld [vmem:[%s3] sm:$0x1]
      %v743 = vld [vmem:[%s3 + $0x1] sm:$0x1]
      %v744 = vld [vmem:[%s3 + $0x2] sm:$0x1]
      %v745 = vld [vmem:[%s3 + $0x3] sm:$0x1]
      %v746 = vld [vmem:[%s3 + $0x4] sm:$0x1]
      %v747 = vld [vmem:[%s3 + $0x5] sm:$0x1]
      %v748 = vld [vmem:[%s3 + $0x6] sm:$0x1]
      %v749 = vld [vmem:[%s3 + $0x7] sm:$0x1]
      %v750 = vld [vmem:[%s3 + $0x8] sm:$0x1]
      %v751 = vld [vmem:[%s3 + $0x9] sm:$0x1]
      %v752 = vld [vmem:[%s3 + $0xa] sm:$0x1]
      %v753 = vld [vmem:[%s3 + $0xb] sm:$0x1]
      %v754 = vld [vmem:[%s3 + $0xc] sm:$0x1]
      %v755 = vld [vmem:[%s3 + $0xd] sm:$0x1]
      %v756 = vld [vmem:[%s3 + $0xe] sm:$0x1]
      %v757 = vld [vmem:[%s3 + $0xf] sm:$0x1]
      %v758 = vld [vmem:[%s3 + $0x10] sm:$0x1]
      %v759 = vld [vmem:[%s3 + $0x11] sm:$0x1]
      %v760 = vld [vmem:[%s3 + $0x12] sm:$0x1]
      %v761 = vld [vmem:[%s3 + $0x13] sm:$0x1]
      %v762 = vld [vmem:[%s3 + $0x14] sm:$0x1]
      %v763 = vld [vmem:[%s3 + $0x15] sm:$0x1]
      %v764 = vld [vmem:[%s3 + $0x16] sm:$0x1]
      %v765 = vld [vmem:[%s3 + $0x17] sm:$0x1]
      %v766 = vld [vmem:[%s3 + $0x18] sm:$0x1]
      %v767 = vld [vmem:[%s3 + $0x19] sm:$0x1]
      %v768 = vld [vmem:[%s3 + $0x1a] sm:$0x1]
      %s769 = scalar_lea.vmem [#allocation2], 224
      %v770 = vld [vmem:[%s769 + $0x7] sm:$0xff]
      %v771 = vld [vmem:[%s769 + $0xf] sm:$0xff]
      %v772 = vld [vmem:[%s769 + $0x17] sm:$0x3]
      %v773 = vld [vmem:[%s769 + $0x27] sm:$0xff]
      %v774 = vld [vmem:[%s769 + $0x2f] sm:$0xff]
      %v775 = vld [vmem:[%s769 + $0x37] sm:$0x3]
      %v776 = vld [vmem:[%s769 + $0x47] sm:$0xff]
      %v777 = vld [vmem:[%s769 + $0x4f] sm:$0xff]
      %v778 = vld [vmem:[%s769 + $0x57] sm:$0x3]
      %v779 = vld [vmem:[%s769 + $0x67] sm:$0xff]
      %v780 = vld [vmem:[%s769 + $0x6f] sm:$0xff]
      %v781 = vld [vmem:[%s769 + $0x77] sm:$0x3]
      %v782 = vld [vmem:[%s769 + $0x87] sm:$0xff]
      %v783 = vld [vmem:[%s769 + $0x8f] sm:$0xff]
      %v784 = vld [vmem:[%s769 + $0x97] sm:$0x3]
      %v785 = vld [vmem:[%s769 + $0xa7] sm:$0xff]
      %v786 = vld [vmem:[%s769 + $0xaf] sm:$0xff]
      %v787 = vld [vmem:[%s769 + $0xb7] sm:$0x3]
      %v788 = vld [vmem:[%s769 + $0xc7] sm:$0xff]
      %v789 = vld [vmem:[%s769 + $0xcf] sm:$0xff]
      %v790 = vld [vmem:[%s769 + $0xd7] sm:$0x3]
      %v791 = vld [vmem:[%s769 + $0xe7] sm:$0xff]
      %v792 = vld [vmem:[%s769 + $0xef] sm:$0xff]
      %v793 = vld [vmem:[%s769 + $0xf7] sm:$0x3]
      %v794 = vld [vmem:[%s769 + $0x107] sm:$0xff]
      %v795 = vld [vmem:[%s769 + $0x10f] sm:$0xff]
      %v796 = vld [vmem:[%s769 + $0x117] sm:$0x3]
      %v797 = vld [vmem:[%s769 + $0x127] sm:$0xff]
      %v798 = vld [vmem:[%s769 + $0x12f] sm:$0xff]
      %v799 = vld [vmem:[%s769 + $0x137] sm:$0x3]
      %v800 = vmul.f32 %v770, %v741
      %v801 = vmul.f32 %v771, %v741
      %v802 = vmul.f32 %v772, %v741
      %v803 = vmul.f32 %v773, %v741
      %v804 = vmul.f32 %v774, %v741
      %v805 = vmul.f32 %v775, %v741
      %v806 = vmul.f32 %v776, %v741
      %v807 = vmul.f32 %v777, %v741
      %v808 = vmul.f32 %v778, %v741
      %v809 = vmul.f32 %v779, %v741
      %v810 = vmul.f32 %v780, %v741
      %v811 = vmul.f32 %v781, %v741
      %v812 = vmul.f32 %v782, %v741
      %v813 = vmul.f32 %v783, %v741
      %v814 = vmul.f32 %v784, %v741
      %v815 = vmul.f32 %v785, %v741
      %v816 = vmul.f32 %v786, %v741
      %v817 = vmul.f32 %v787, %v741
      %v818 = vmul.f32 %v788, %v741
      %v819 = vmul.f32 %v789, %v741
      %v820 = vmul.f32 %v790, %v741
      %v821 = vmul.f32 %v791, %v741
      %v822 = vmul.f32 %v792, %v741
      %v823 = vmul.f32 %v793, %v741
      %v824 = vmul.f32 %v794, %v741
      %v825 = vmul.f32 %v795, %v741
      %v826 = vmul.f32 %v796, %v741
      %v827 = vmul.f32 %v797, %v741
      %v828 = vmul.f32 %v798, %v741
      %v829 = vmul.f32 %v799, %v741
      %s830 = scalar_lea.vmem [#allocation2], 160
      %v831 = vld [vmem:[%s830 + $0x5] sm:$0xff]
      %v832 = vld [vmem:[%s830 + $0xd] sm:$0xff]
      %v833 = vld [vmem:[%s830 + $0x15] sm:$0x3]
      %v834 = vld [vmem:[%s830 + $0x25] sm:$0xff]
      %v835 = vld [vmem:[%s830 + $0x2d] sm:$0xff]
      %v836 = vld [vmem:[%s830 + $0x35] sm:$0x3]
      %v837 = vld [vmem:[%s830 + $0x45] sm:$0xff]
      %v838 = vld [vmem:[%s830 + $0x4d] sm:$0xff]
      %v839 = vld [vmem:[%s830 + $0x55] sm:$0x3]
      %v840 = vld [vmem:[%s830 + $0x65] sm:$0xff]
      %v841 = vld [vmem:[%s830 + $0x6d] sm:$0xff]
      %v842 = vld [vmem:[%s830 + $0x75] sm:$0x3]
      %v843 = vld [vmem:[%s830 + $0x85] sm:$0xff]
      %v844 = vld [vmem:[%s830 + $0x8d] sm:$0xff]
      %v845 = vld [vmem:[%s830 + $0x95] sm:$0x3]
      %v846 = vld [vmem:[%s830 + $0xa5] sm:$0xff]
      %v847 = vld [vmem:[%s830 + $0xad] sm:$0xff]
      %v848 = vld [vmem:[%s830 + $0xb5] sm:$0x3]
      %v849 = vld [vmem:[%s830 + $0xc5] sm:$0xff]
      %v850 = vld [vmem:[%s830 + $0xcd] sm:$0xff]
      %v851 = vld [vmem:[%s830 + $0xd5] sm:$0x3]
      %v852 = vld [vmem:[%s830 + $0xe5] sm:$0xff]
      %v853 = vld [vmem:[%s830 + $0xed] sm:$0xff]
      %v854 = vld [vmem:[%s830 + $0xf5] sm:$0x3]
      %v855 = vld [vmem:[%s830 + $0x105] sm:$0xff]
      %v856 = vld [vmem:[%s830 + $0x10d] sm:$0xff]
      %v857 = vld [vmem:[%s830 + $0x115] sm:$0x3]
      %v858 = vld [vmem:[%s830 + $0x125] sm:$0xff]
      %v859 = vld [vmem:[%s830 + $0x12d] sm:$0xff]
      %v860 = vld [vmem:[%s830 + $0x135] sm:$0x3]
      %v862 = vlaneseq
      %v863 = vshrl.u32 %v862, 7
      %v864 = vsub.s32 0, %v863
      %v865 = vrot.slane %v742, %v864
      %v867 = vmul.f32 %v831, %v865
      %v868 = vmul.f32 %v832, %v865
      %v869 = vmul.f32 %v833, %v865
      %v870 = vmul.f32 %v834, %v865
      %v871 = vmul.f32 %v835, %v865
      %v872 = vmul.f32 %v836, %v865
      %v873 = vmul.f32 %v837, %v865
      %v874 = vmul.f32 %v838, %v865
      %v875 = vmul.f32 %v839, %v865
      %v876 = vmul.f32 %v840, %v865
      %v877 = vmul.f32 %v841, %v865
      %v878 = vmul.f32 %v842, %v865
      %v879 = vmul.f32 %v843, %v865
      %v880 = vmul.f32 %v844, %v865
      %v881 = vmul.f32 %v845, %v865
      %v882 = vmul.f32 %v846, %v865
      %v883 = vmul.f32 %v847, %v865
      %v884 = vmul.f32 %v848, %v865
      %v885 = vmul.f32 %v849, %v865
      %v886 = vmul.f32 %v850, %v865
      %v887 = vmul.f32 %v851, %v865
      %v888 = vmul.f32 %v852, %v865
      %v889 = vmul.f32 %v853, %v865
      %v890 = vmul.f32 %v854, %v865
      %v891 = vmul.f32 %v855, %v865
      %v892 = vmul.f32 %v856, %v865
      %v893 = vmul.f32 %v857, %v865
      %v894 = vmul.f32 %v858, %v865
      %v895 = vmul.f32 %v859, %v865
      %v896 = vmul.f32 %v860, %v865
      %v897 = vadd.f32 %v800, %v867
      %v898 = vadd.f32 %v801, %v868
      %v899 = vadd.f32 %v802, %v869
      %v900 = vadd.f32 %v803, %v870
      %v901 = vadd.f32 %v804, %v871
      %v902 = vadd.f32 %v805, %v872
      %v903 = vadd.f32 %v806, %v873
      %v904 = vadd.f32 %v807, %v874
      %v905 = vadd.f32 %v808, %v875
      %v906 = vadd.f32 %v809, %v876
      %v907 = vadd.f32 %v810, %v877
      %v908 = vadd.f32 %v811, %v878
      %v909 = vadd.f32 %v812, %v879
      %v910 = vadd.f32 %v813, %v880
      %v911 = vadd.f32 %v814, %v881
      %v912 = vadd.f32 %v815, %v882
      %v913 = vadd.f32 %v816, %v883
      %v914 = vadd.f32 %v817, %v884
      %v915 = vadd.f32 %v818, %v885
      %v916 = vadd.f32 %v819, %v886
      %v917 = vadd.f32 %v820, %v887
      %v918 = vadd.f32 %v821, %v888
      %v919 = vadd.f32 %v822, %v889
      %v920 = vadd.f32 %v823, %v890
      %v921 = vadd.f32 %v824, %v891
      %v922 = vadd.f32 %v825, %v892
      %v923 = vadd.f32 %v826, %v893
      %v924 = vadd.f32 %v827, %v894
      %v925 = vadd.f32 %v828, %v895
      %v926 = vadd.f32 %v829, %v896
      %v927 = vld [vmem:[%s769 + $0x5] sm:$0xff]
      %v928 = vld [vmem:[%s769 + $0xd] sm:$0xff]
      %v929 = vld [vmem:[%s769 + $0x15] sm:$0x3]
      %v930 = vld [vmem:[%s769 + $0x25] sm:$0xff]
      %v931 = vld [vmem:[%s769 + $0x2d] sm:$0xff]
      %v932 = vld [vmem:[%s769 + $0x35] sm:$0x3]
      %v933 = vld [vmem:[%s769 + $0x45] sm:$0xff]
      %v934 = vld [vmem:[%s769 + $0x4d] sm:$0xff]
      %v935 = vld [vmem:[%s769 + $0x55] sm:$0x3]
      %v936 = vld [vmem:[%s769 + $0x65] sm:$0xff]
      %v937 = vld [vmem:[%s769 + $0x6d] sm:$0xff]
      %v938 = vld [vmem:[%s769 + $0x75] sm:$0x3]
      %v939 = vld [vmem:[%s769 + $0x85] sm:$0xff]
      %v940 = vld [vmem:[%s769 + $0x8d] sm:$0xff]
      %v941 = vld [vmem:[%s769 + $0x95] sm:$0x3]
      %v942 = vld [vmem:[%s769 + $0xa5] sm:$0xff]
      %v943 = vld [vmem:[%s769 + $0xad] sm:$0xff]
      %v944 = vld [vmem:[%s769 + $0xb5] sm:$0x3]
      %v945 = vld [vmem:[%s769 + $0xc5] sm:$0xff]
      %v946 = vld [vmem:[%s769 + $0xcd] sm:$0xff]
      %v947 = vld [vmem:[%s769 + $0xd5] sm:$0x3]
      %v948 = vld [vmem:[%s769 + $0xe5] sm:$0xff]
      %v949 = vld [vmem:[%s769 + $0xed] sm:$0xff]
      %v950 = vld [vmem:[%s769 + $0xf5] sm:$0x3]
      %v951 = vld [vmem:[%s769 + $0x105] sm:$0xff]
      %v952 = vld [vmem:[%s769 + $0x10d] sm:$0xff]
      %v953 = vld [vmem:[%s769 + $0x115] sm:$0x3]
      %v954 = vld [vmem:[%s769 + $0x125] sm:$0xff]
      %v955 = vld [vmem:[%s769 + $0x12d] sm:$0xff]
      %v956 = vld [vmem:[%s769 + $0x135] sm:$0x3]
      %v958 = vlaneseq
      %v959 = vshrl.u32 %v958, 7
      %v960 = vsub.s32 0, %v959
      %v961 = vrot.slane %v745, %v960
      %v963 = vmul.f32 %v927, %v961
      %v964 = vmul.f32 %v928, %v961
      %v965 = vmul.f32 %v929, %v961
      %v966 = vmul.f32 %v930, %v961
      %v967 = vmul.f32 %v931, %v961
      %v968 = vmul.f32 %v932, %v961
      %v969 = vmul.f32 %v933, %v961
      %v970 = vmul.f32 %v934, %v961
      %v971 = vmul.f32 %v935, %v961
      %v972 = vmul.f32 %v936, %v961
      %v973 = vmul.f32 %v937, %v961
      %v974 = vmul.f32 %v938, %v961
      %v975 = vmul.f32 %v939, %v961
      %v976 = vmul.f32 %v940, %v961
      %v977 = vmul.f32 %v941, %v961
      %v978 = vmul.f32 %v942, %v961
      %v979 = vmul.f32 %v943, %v961
      %v980 = vmul.f32 %v944, %v961
      %v981 = vmul.f32 %v945, %v961
      %v982 = vmul.f32 %v946, %v961
      %v983 = vmul.f32 %v947, %v961
      %v984 = vmul.f32 %v948, %v961
      %v985 = vmul.f32 %v949, %v961
      %v986 = vmul.f32 %v950, %v961
      %v987 = vmul.f32 %v951, %v961
      %v988 = vmul.f32 %v952, %v961
      %v989 = vmul.f32 %v953, %v961
      %v990 = vmul.f32 %v954, %v961
      %v991 = vmul.f32 %v955, %v961
      %v992 = vmul.f32 %v956, %v961
      %v993 = vadd.f32 %v897, %v963
      %v994 = vadd.f32 %v898, %v964
      %v995 = vadd.f32 %v899, %v965
      %v996 = vadd.f32 %v900, %v966
      %v997 = vadd.f32 %v901, %v967
      %v998 = vadd.f32 %v902, %v968
      %v999 = vadd.f32 %v903, %v969
      %v1000 = vadd.f32 %v904, %v970
      %v1001 = vadd.f32 %v905, %v971
      %v1002 = vadd.f32 %v906, %v972
      %v1003 = vadd.f32 %v907, %v973
      %v1004 = vadd.f32 %v908, %v974
      %v1005 = vadd.f32 %v909, %v975
      %v1006 = vadd.f32 %v910, %v976
      %v1007 = vadd.f32 %v911, %v977
      %v1008 = vadd.f32 %v912, %v978
      %v1009 = vadd.f32 %v913, %v979
      %v1010 = vadd.f32 %v914, %v980
      %v1011 = vadd.f32 %v915, %v981
      %v1012 = vadd.f32 %v916, %v982
      %v1013 = vadd.f32 %v917, %v983
      %v1014 = vadd.f32 %v918, %v984
      %v1015 = vadd.f32 %v919, %v985
      %v1016 = vadd.f32 %v920, %v986
      %v1017 = vadd.f32 %v921, %v987
      %v1018 = vadd.f32 %v922, %v988
      %v1019 = vadd.f32 %v923, %v989
      %v1020 = vadd.f32 %v924, %v990
      %v1021 = vadd.f32 %v925, %v991
      %v1022 = vadd.f32 %v926, %v992
      %s1023 = scalar_lea.vmem [#allocation2], 288
      %v1024 = vld [vmem:[%s1023 + $0x5] sm:$0xff]
      %v1025 = vld [vmem:[%s1023 + $0xd] sm:$0xff]
      %v1026 = vld [vmem:[%s1023 + $0x15] sm:$0x3]
      %v1027 = vld [vmem:[%s1023 + $0x25] sm:$0xff]
      %v1028 = vld [vmem:[%s1023 + $0x2d] sm:$0xff]
      %v1029 = vld [vmem:[%s1023 + $0x35] sm:$0x3]
      %v1030 = vld [vmem:[%s1023 + $0x45] sm:$0xff]
      %v1031 = vld [vmem:[%s1023 + $0x4d] sm:$0xff]
      %v1032 = vld [vmem:[%s1023 + $0x55] sm:$0x3]
      %v1033 = vld [vmem:[%s1023 + $0x65] sm:$0xff]
      %v1034 = vld [vmem:[%s1023 + $0x6d] sm:$0xff]
      %v1035 = vld [vmem:[%s1023 + $0x75] sm:$0x3]
      %v1036 = vld [vmem:[%s1023 + $0x85] sm:$0xff]
      %v1037 = vld [vmem:[%s1023 + $0x8d] sm:$0xff]
      %v1038 = vld [vmem:[%s1023 + $0x95] sm:$0x3]
      %v1039 = vld [vmem:[%s1023 + $0xa5] sm:$0xff]
      %v1040 = vld [vmem:[%s1023 + $0xad] sm:$0xff]
      %v1041 = vld [vmem:[%s1023 + $0xb5] sm:$0x3]
      %v1042 = vld [vmem:[%s1023 + $0xc5] sm:$0xff]
      %v1043 = vld [vmem:[%s1023 + $0xcd] sm:$0xff]
      %v1044 = vld [vmem:[%s1023 + $0xd5] sm:$0x3]
      %v1045 = vld [vmem:[%s1023 + $0xe5] sm:$0xff]
      %v1046 = vld [vmem:[%s1023 + $0xed] sm:$0xff]
      %v1047 = vld [vmem:[%s1023 + $0xf5] sm:$0x3]
      %v1048 = vld [vmem:[%s1023 + $0x105] sm:$0xff]
      %v1049 = vld [vmem:[%s1023 + $0x10d] sm:$0xff]
      %v1050 = vld [vmem:[%s1023 + $0x115] sm:$0x3]
      %v1051 = vld [vmem:[%s1023 + $0x125] sm:$0xff]
      %v1052 = vld [vmem:[%s1023 + $0x12d] sm:$0xff]
      %v1053 = vld [vmem:[%s1023 + $0x135] sm:$0x3]
      %v1055 = vlaneseq
      %v1056 = vshrl.u32 %v1055, 7
      %v1057 = vsub.s32 0, %v1056
      %v1058 = vrot.slane %v748, %v1057
      %v1060 = vmul.f32 %v1024, %v1058
      %v1061 = vmul.f32 %v1025, %v1058
      %v1062 = vmul.f32 %v1026, %v1058
      %v1063 = vmul.f32 %v1027, %v1058
      %v1064 = vmul.f32 %v1028, %v1058
      %v1065 = vmul.f32 %v1029, %v1058
      %v1066 = vmul.f32 %v1030, %v1058
      %v1067 = vmul.f32 %v1031, %v1058
      %v1068 = vmul.f32 %v1032, %v1058
      %v1069 = vmul.f32 %v1033, %v1058
      %v1070 = vmul.f32 %v1034, %v1058
      %v1071 = vmul.f32 %v1035, %v1058
      %v1072 = vmul.f32 %v1036, %v1058
      %v1073 = vmul.f32 %v1037, %v1058
      %v1074 = vmul.f32 %v1038, %v1058
      %v1075 = vmul.f32 %v1039, %v1058
      %v1076 = vmul.f32 %v1040, %v1058
      %v1077 = vmul.f32 %v1041, %v1058
      %v1078 = vmul.f32 %v1042, %v1058
      %v1079 = vmul.f32 %v1043, %v1058
      %v1080 = vmul.f32 %v1044, %v1058
      %v1081 = vmul.f32 %v1045, %v1058
      %v1082 = vmul.f32 %v1046, %v1058
      %v1083 = vmul.f32 %v1047, %v1058
      %v1084 = vmul.f32 %v1048, %v1058
      %v1085 = vmul.f32 %v1049, %v1058
      %v1086 = vmul.f32 %v1050, %v1058
      %v1087 = vmul.f32 %v1051, %v1058
      %v1088 = vmul.f32 %v1052, %v1058
      %v1089 = vmul.f32 %v1053, %v1058
      %v1090 = vadd.f32 %v993, %v1060
      %v1091 = vadd.f32 %v994, %v1061
      %v1092 = vadd.f32 %v995, %v1062
      %v1093 = vadd.f32 %v996, %v1063
      %v1094 = vadd.f32 %v997, %v1064
      %v1095 = vadd.f32 %v998, %v1065
      %v1096 = vadd.f32 %v999, %v1066
      %v1097 = vadd.f32 %v1000, %v1067
      %v1098 = vadd.f32 %v1001, %v1068
      %v1099 = vadd.f32 %v1002, %v1069
      %v1100 = vadd.f32 %v1003, %v1070
      %v1101 = vadd.f32 %v1004, %v1071
      %v1102 = vadd.f32 %v1005, %v1072
      %v1103 = vadd.f32 %v1006, %v1073
      %v1104 = vadd.f32 %v1007, %v1074
      %v1105 = vadd.f32 %v1008, %v1075
      %v1106 = vadd.f32 %v1009, %v1076
      %v1107 = vadd.f32 %v1010, %v1077
      %v1108 = vadd.f32 %v1011, %v1078
      %v1109 = vadd.f32 %v1012, %v1079
      %v1110 = vadd.f32 %v1013, %v1080
      %v1111 = vadd.f32 %v1014, %v1081
      %v1112 = vadd.f32 %v1015, %v1082
      %v1113 = vadd.f32 %v1016, %v1083
      %v1114 = vadd.f32 %v1017, %v1084
      %v1115 = vadd.f32 %v1018, %v1085
      %v1116 = vadd.f32 %v1019, %v1086
      %v1117 = vadd.f32 %v1020, %v1087
      %v1118 = vadd.f32 %v1021, %v1088
      %v1119 = vadd.f32 %v1022, %v1089
      %v1120 = vld [vmem:[%s830 + $0x7] sm:$0xff]
      %v1121 = vld [vmem:[%s830 + $0xf] sm:$0xff]
      %v1122 = vld [vmem:[%s830 + $0x17] sm:$0x3]
      %v1123 = vld [vmem:[%s830 + $0x27] sm:$0xff]
      %v1124 = vld [vmem:[%s830 + $0x2f] sm:$0xff]
      %v1125 = vld [vmem:[%s830 + $0x37] sm:$0x3]
      %v1126 = vld [vmem:[%s830 + $0x47] sm:$0xff]
      %v1127 = vld [vmem:[%s830 + $0x4f] sm:$0xff]
      %v1128 = vld [vmem:[%s830 + $0x57] sm:$0x3]
      %v1129 = vld [vmem:[%s830 + $0x67] sm:$0xff]
      %v1130 = vld [vmem:[%s830 + $0x6f] sm:$0xff]
      %v1131 = vld [vmem:[%s830 + $0x77] sm:$0x3]
      %v1132 = vld [vmem:[%s830 + $0x87] sm:$0xff]
      %v1133 = vld [vmem:[%s830 + $0x8f] sm:$0xff]
      %v1134 = vld [vmem:[%s830 + $0x97] sm:$0x3]
      %v1135 = vld [vmem:[%s830 + $0xa7] sm:$0xff]
      %v1136 = vld [vmem:[%s830 + $0xaf] sm:$0xff]
      %v1137 = vld [vmem:[%s830 + $0xb7] sm:$0x3]
      %v1138 = vld [vmem:[%s830 + $0xc7] sm:$0xff]
      %v1139 = vld [vmem:[%s830 + $0xcf] sm:$0xff]
      %v1140 = vld [vmem:[%s830 + $0xd7] sm:$0x3]
      %v1141 = vld [vmem:[%s830 + $0xe7] sm:$0xff]
      %v1142 = vld [vmem:[%s830 + $0xef] sm:$0xff]
      %v1143 = vld [vmem:[%s830 + $0xf7] sm:$0x3]
      %v1144 = vld [vmem:[%s830 + $0x107] sm:$0xff]
      %v1145 = vld [vmem:[%s830 + $0x10f] sm:$0xff]
      %v1146 = vld [vmem:[%s830 + $0x117] sm:$0x3]
      %v1147 = vld [vmem:[%s830 + $0x127] sm:$0xff]
      %v1148 = vld [vmem:[%s830 + $0x12f] sm:$0xff]
      %v1149 = vld [vmem:[%s830 + $0x137] sm:$0x3]
      %v1151 = vlaneseq
      %v1152 = vshrl.u32 %v1151, 7
      %v1153 = vsub.s32 0, %v1152
      %v1154 = vrot.slane %v743, %v1153
      %v1156 = vmul.f32 %v1120, %v1154
      %v1157 = vmul.f32 %v1121, %v1154
      %v1158 = vmul.f32 %v1122, %v1154
      %v1159 = vmul.f32 %v1123, %v1154
      %v1160 = vmul.f32 %v1124, %v1154
      %v1161 = vmul.f32 %v1125, %v1154
      %v1162 = vmul.f32 %v1126, %v1154
      %v1163 = vmul.f32 %v1127, %v1154
      %v1164 = vmul.f32 %v1128, %v1154
      %v1165 = vmul.f32 %v1129, %v1154
      %v1166 = vmul.f32 %v1130, %v1154
      %v1167 = vmul.f32 %v1131, %v1154
      %v1168 = vmul.f32 %v1132, %v1154
      %v1169 = vmul.f32 %v1133, %v1154
      %v1170 = vmul.f32 %v1134, %v1154
      %v1171 = vmul.f32 %v1135, %v1154
      %v1172 = vmul.f32 %v1136, %v1154
      %v1173 = vmul.f32 %v1137, %v1154
      %v1174 = vmul.f32 %v1138, %v1154
      %v1175 = vmul.f32 %v1139, %v1154
      %v1176 = vmul.f32 %v1140, %v1154
      %v1177 = vmul.f32 %v1141, %v1154
      %v1178 = vmul.f32 %v1142, %v1154
      %v1179 = vmul.f32 %v1143, %v1154
      %v1180 = vmul.f32 %v1144, %v1154
      %v1181 = vmul.f32 %v1145, %v1154
      %v1182 = vmul.f32 %v1146, %v1154
      %v1183 = vmul.f32 %v1147, %v1154
      %v1184 = vmul.f32 %v1148, %v1154
      %v1185 = vmul.f32 %v1149, %v1154
      %v1186 = vadd.f32 %v1090, %v1156
      %v1187 = vadd.f32 %v1091, %v1157
      %v1188 = vadd.f32 %v1092, %v1158
      %v1189 = vadd.f32 %v1093, %v1159
      %v1190 = vadd.f32 %v1094, %v1160
      %v1191 = vadd.f32 %v1095, %v1161
      %v1192 = vadd.f32 %v1096, %v1162
      %v1193 = vadd.f32 %v1097, %v1163
      %v1194 = vadd.f32 %v1098, %v1164
      %v1195 = vadd.f32 %v1099, %v1165
      %v1196 = vadd.f32 %v1100, %v1166
      %v1197 = vadd.f32 %v1101, %v1167
      %v1198 = vadd.f32 %v1102, %v1168
      %v1199 = vadd.f32 %v1103, %v1169
      %v1200 = vadd.f32 %v1104, %v1170
      %v1201 = vadd.f32 %v1105, %v1171
      %v1202 = vadd.f32 %v1106, %v1172
      %v1203 = vadd.f32 %v1107, %v1173
      %v1204 = vadd.f32 %v1108, %v1174
      %v1205 = vadd.f32 %v1109, %v1175
      %v1206 = vadd.f32 %v1110, %v1176
      %v1207 = vadd.f32 %v1111, %v1177
      %v1208 = vadd.f32 %v1112, %v1178
      %v1209 = vadd.f32 %v1113, %v1179
      %v1210 = vadd.f32 %v1114, %v1180
      %v1211 = vadd.f32 %v1115, %v1181
      %v1212 = vadd.f32 %v1116, %v1182
      %v1213 = vadd.f32 %v1117, %v1183
      %v1214 = vadd.f32 %v1118, %v1184
      %v1215 = vadd.f32 %v1119, %v1185
      %v1217 = vlaneseq
      %v1218 = vshrl.u32 %v1217, 7
      %v1219 = vsub.s32 0, %v1218
      %v1220 = vrot.slane %v746, %v1219
      %v1222 = vmul.f32 %v770, %v1220
      %v1223 = vmul.f32 %v771, %v1220
      %v1224 = vmul.f32 %v772, %v1220
      %v1225 = vmul.f32 %v773, %v1220
      %v1226 = vmul.f32 %v774, %v1220
      %v1227 = vmul.f32 %v775, %v1220
      %v1228 = vmul.f32 %v776, %v1220
      %v1229 = vmul.f32 %v777, %v1220
      %v1230 = vmul.f32 %v778, %v1220
      %v1231 = vmul.f32 %v779, %v1220
      %v1232 = vmul.f32 %v780, %v1220
      %v1233 = vmul.f32 %v781, %v1220
      %v1234 = vmul.f32 %v782, %v1220
      %v1235 = vmul.f32 %v783, %v1220
      %v1236 = vmul.f32 %v784, %v1220
      %v1237 = vmul.f32 %v785, %v1220
      %v1238 = vmul.f32 %v786, %v1220
      %v1239 = vmul.f32 %v787, %v1220
      %v1240 = vmul.f32 %v788, %v1220
      %v1241 = vmul.f32 %v789, %v1220
      %v1242 = vmul.f32 %v790, %v1220
      %v1243 = vmul.f32 %v791, %v1220
      %v1244 = vmul.f32 %v792, %v1220
      %v1245 = vmul.f32 %v793, %v1220
      %v1246 = vmul.f32 %v794, %v1220
      %v1247 = vmul.f32 %v795, %v1220
      %v1248 = vmul.f32 %v796, %v1220
      %v1249 = vmul.f32 %v797, %v1220
      %v1250 = vmul.f32 %v798, %v1220
      %v1251 = vmul.f32 %v799, %v1220
      %v1252 = vadd.f32 %v1186, %v1222
      %v1253 = vadd.f32 %v1187, %v1223
      %v1254 = vadd.f32 %v1188, %v1224
      %v1255 = vadd.f32 %v1189, %v1225
      %v1256 = vadd.f32 %v1190, %v1226
      %v1257 = vadd.f32 %v1191, %v1227
      %v1258 = vadd.f32 %v1192, %v1228
      %v1259 = vadd.f32 %v1193, %v1229
      %v1260 = vadd.f32 %v1194, %v1230
      %v1261 = vadd.f32 %v1195, %v1231
      %v1262 = vadd.f32 %v1196, %v1232
      %v1263 = vadd.f32 %v1197, %v1233
      %v1264 = vadd.f32 %v1198, %v1234
      %v1265 = vadd.f32 %v1199, %v1235
      %v1266 = vadd.f32 %v1200, %v1236
      %v1267 = vadd.f32 %v1201, %v1237
      %v1268 = vadd.f32 %v1202, %v1238
      %v1269 = vadd.f32 %v1203, %v1239
      %v1270 = vadd.f32 %v1204, %v1240
      %v1271 = vadd.f32 %v1205, %v1241
      %v1272 = vadd.f32 %v1206, %v1242
      %v1273 = vadd.f32 %v1207, %v1243
      %v1274 = vadd.f32 %v1208, %v1244
      %v1275 = vadd.f32 %v1209, %v1245
      %v1276 = vadd.f32 %v1210, %v1246
      %v1277 = vadd.f32 %v1211, %v1247
      %v1278 = vadd.f32 %v1212, %v1248
      %v1279 = vadd.f32 %v1213, %v1249
      %v1280 = vadd.f32 %v1214, %v1250
      %v1281 = vadd.f32 %v1215, %v1251
      %v1282 = vld [vmem:[%s1023 + $0x7] sm:$0xff]
      %v1283 = vld [vmem:[%s1023 + $0xf] sm:$0xff]
      %v1284 = vld [vmem:[%s1023 + $0x17] sm:$0x3]
      %v1285 = vld [vmem:[%s1023 + $0x27] sm:$0xff]
      %v1286 = vld [vmem:[%s1023 + $0x2f] sm:$0xff]
      %v1287 = vld [vmem:[%s1023 + $0x37] sm:$0x3]
      %v1288 = vld [vmem:[%s1023 + $0x47] sm:$0xff]
      %v1289 = vld [vmem:[%s1023 + $0x4f] sm:$0xff]
      %v1290 = vld [vmem:[%s1023 + $0x57] sm:$0x3]
      %v1291 = vld [vmem:[%s1023 + $0x67] sm:$0xff]
      %v1292 = vld [vmem:[%s1023 + $0x6f] sm:$0xff]
      %v1293 = vld [vmem:[%s1023 + $0x77] sm:$0x3]
      %v1294 = vld [vmem:[%s1023 + $0x87] sm:$0xff]
      %v1295 = vld [vmem:[%s1023 + $0x8f] sm:$0xff]
      %v1296 = vld [vmem:[%s1023 + $0x97] sm:$0x3]
      %v1297 = vld [vmem:[%s1023 + $0xa7] sm:$0xff]
      %v1298 = vld [vmem:[%s1023 + $0xaf] sm:$0xff]
      %v1299 = vld [vmem:[%s1023 + $0xb7] sm:$0x3]
      %v1300 = vld [vmem:[%s1023 + $0xc7] sm:$0xff]
      %v1301 = vld [vmem:[%s1023 + $0xcf] sm:$0xff]
      %v1302 = vld [vmem:[%s1023 + $0xd7] sm:$0x3]
      %v1303 = vld [vmem:[%s1023 + $0xe7] sm:$0xff]
      %v1304 = vld [vmem:[%s1023 + $0xef] sm:$0xff]
      %v1305 = vld [vmem:[%s1023 + $0xf7] sm:$0x3]
      %v1306 = vld [vmem:[%s1023 + $0x107] sm:$0xff]
      %v1307 = vld [vmem:[%s1023 + $0x10f] sm:$0xff]
      %v1308 = vld [vmem:[%s1023 + $0x117] sm:$0x3]
      %v1309 = vld [vmem:[%s1023 + $0x127] sm:$0xff]
      %v1310 = vld [vmem:[%s1023 + $0x12f] sm:$0xff]
      %v1311 = vld [vmem:[%s1023 + $0x137] sm:$0x3]
      %v1313 = vlaneseq
      %v1314 = vshrl.u32 %v1313, 7
      %v1315 = vsub.s32 0, %v1314
      %v1316 = vrot.slane %v749, %v1315
      %v1318 = vmul.f32 %v1282, %v1316
      %v1319 = vmul.f32 %v1283, %v1316
      %v1320 = vmul.f32 %v1284, %v1316
      %v1321 = vmul.f32 %v1285, %v1316
      %v1322 = vmul.f32 %v1286, %v1316
      %v1323 = vmul.f32 %v1287, %v1316
      %v1324 = vmul.f32 %v1288, %v1316
      %v1325 = vmul.f32 %v1289, %v1316
      %v1326 = vmul.f32 %v1290, %v1316
      %v1327 = vmul.f32 %v1291, %v1316
      %v1328 = vmul.f32 %v1292, %v1316
      %v1329 = vmul.f32 %v1293, %v1316
      %v1330 = vmul.f32 %v1294, %v1316
      %v1331 = vmul.f32 %v1295, %v1316
      %v1332 = vmul.f32 %v1296, %v1316
      %v1333 = vmul.f32 %v1297, %v1316
      %v1334 = vmul.f32 %v1298, %v1316
      %v1335 = vmul.f32 %v1299, %v1316
      %v1336 = vmul.f32 %v1300, %v1316
      %v1337 = vmul.f32 %v1301, %v1316
      %v1338 = vmul.f32 %v1302, %v1316
      %v1339 = vmul.f32 %v1303, %v1316
      %v1340 = vmul.f32 %v1304, %v1316
      %v1341 = vmul.f32 %v1305, %v1316
      %v1342 = vmul.f32 %v1306, %v1316
      %v1343 = vmul.f32 %v1307, %v1316
      %v1344 = vmul.f32 %v1308, %v1316
      %v1345 = vmul.f32 %v1309, %v1316
      %v1346 = vmul.f32 %v1310, %v1316
      %v1347 = vmul.f32 %v1311, %v1316
      %v1348 = vadd.f32 %v1252, %v1318
      %v1349 = vadd.f32 %v1253, %v1319
      %v1350 = vadd.f32 %v1254, %v1320
      %v1351 = vadd.f32 %v1255, %v1321
      %v1352 = vadd.f32 %v1256, %v1322
      %v1353 = vadd.f32 %v1257, %v1323
      %v1354 = vadd.f32 %v1258, %v1324
      %v1355 = vadd.f32 %v1259, %v1325
      %v1356 = vadd.f32 %v1260, %v1326
      %v1357 = vadd.f32 %v1261, %v1327
      %v1358 = vadd.f32 %v1262, %v1328
      %v1359 = vadd.f32 %v1263, %v1329
      %v1360 = vadd.f32 %v1264, %v1330
      %v1361 = vadd.f32 %v1265, %v1331
      %v1362 = vadd.f32 %v1266, %v1332
      %v1363 = vadd.f32 %v1267, %v1333
      %v1364 = vadd.f32 %v1268, %v1334
      %v1365 = vadd.f32 %v1269, %v1335
      %v1366 = vadd.f32 %v1270, %v1336
      %v1367 = vadd.f32 %v1271, %v1337
      %v1368 = vadd.f32 %v1272, %v1338
      %v1369 = vadd.f32 %v1273, %v1339
      %v1370 = vadd.f32 %v1274, %v1340
      %v1371 = vadd.f32 %v1275, %v1341
      %v1372 = vadd.f32 %v1276, %v1342
      %v1373 = vadd.f32 %v1277, %v1343
      %v1374 = vadd.f32 %v1278, %v1344
      %v1375 = vadd.f32 %v1279, %v1345
      %v1376 = vadd.f32 %v1280, %v1346
      %v1377 = vadd.f32 %v1281, %v1347
      %v1378 = vld [vmem:[%s830 + $0x9] sm:$0xff]
      %v1379 = vld [vmem:[%s830 + $0x11] sm:$0xff]
      %v1380 = vld [vmem:[%s830 + $0x19] sm:$0x3]
      %v1381 = vld [vmem:[%s830 + $0x29] sm:$0xff]
      %v1382 = vld [vmem:[%s830 + $0x31] sm:$0xff]
      %v1383 = vld [vmem:[%s830 + $0x39] sm:$0x3]
      %v1384 = vld [vmem:[%s830 + $0x49] sm:$0xff]
      %v1385 = vld [vmem:[%s830 + $0x51] sm:$0xff]
      %v1386 = vld [vmem:[%s830 + $0x59] sm:$0x3]
      %v1387 = vld [vmem:[%s830 + $0x69] sm:$0xff]
      %v1388 = vld [vmem:[%s830 + $0x71] sm:$0xff]
      %v1389 = vld [vmem:[%s830 + $0x79] sm:$0x3]
      %v1390 = vld [vmem:[%s830 + $0x89] sm:$0xff]
      %v1391 = vld [vmem:[%s830 + $0x91] sm:$0xff]
      %v1392 = vld [vmem:[%s830 + $0x99] sm:$0x3]
      %v1393 = vld [vmem:[%s830 + $0xa9] sm:$0xff]
      %v1394 = vld [vmem:[%s830 + $0xb1] sm:$0xff]
      %v1395 = vld [vmem:[%s830 + $0xb9] sm:$0x3]
      %v1396 = vld [vmem:[%s830 + $0xc9] sm:$0xff]
      %v1397 = vld [vmem:[%s830 + $0xd1] sm:$0xff]
      %v1398 = vld [vmem:[%s830 + $0xd9] sm:$0x3]
      %v1399 = vld [vmem:[%s830 + $0xe9] sm:$0xff]
      %v1400 = vld [vmem:[%s830 + $0xf1] sm:$0xff]
      %v1401 = vld [vmem:[%s830 + $0xf9] sm:$0x3]
      %v1402 = vld [vmem:[%s830 + $0x109] sm:$0xff]
      %v1403 = vld [vmem:[%s830 + $0x111] sm:$0xff]
      %v1404 = vld [vmem:[%s830 + $0x119] sm:$0x3]
      %v1405 = vld [vmem:[%s830 + $0x129] sm:$0xff]
      %v1406 = vld [vmem:[%s830 + $0x131] sm:$0xff]
      %v1407 = vld [vmem:[%s830 + $0x139] sm:$0x3]
      %v1409 = vlaneseq
      %v1410 = vshrl.u32 %v1409, 7
      %v1411 = vsub.s32 0, %v1410
      %v1412 = vrot.slane %v744, %v1411
      %v1414 = vmul.f32 %v1378, %v1412
      %v1415 = vmul.f32 %v1379, %v1412
      %v1416 = vmul.f32 %v1380, %v1412
      %v1417 = vmul.f32 %v1381, %v1412
      %v1418 = vmul.f32 %v1382, %v1412
      %v1419 = vmul.f32 %v1383, %v1412
      %v1420 = vmul.f32 %v1384, %v1412
      %v1421 = vmul.f32 %v1385, %v1412
      %v1422 = vmul.f32 %v1386, %v1412
      %v1423 = vmul.f32 %v1387, %v1412
      %v1424 = vmul.f32 %v1388, %v1412
      %v1425 = vmul.f32 %v1389, %v1412
      %v1426 = vmul.f32 %v1390, %v1412
      %v1427 = vmul.f32 %v1391, %v1412
      %v1428 = vmul.f32 %v1392, %v1412
      %v1429 = vmul.f32 %v1393, %v1412
      %v1430 = vmul.f32 %v1394, %v1412
      %v1431 = vmul.f32 %v1395, %v1412
      %v1432 = vmul.f32 %v1396, %v1412
      %v1433 = vmul.f32 %v1397, %v1412
      %v1434 = vmul.f32 %v1398, %v1412
      %v1435 = vmul.f32 %v1399, %v1412
      %v1436 = vmul.f32 %v1400, %v1412
      %v1437 = vmul.f32 %v1401, %v1412
      %v1438 = vmul.f32 %v1402, %v1412
      %v1439 = vmul.f32 %v1403, %v1412
      %v1440 = vmul.f32 %v1404, %v1412
      %v1441 = vmul.f32 %v1405, %v1412
      %v1442 = vmul.f32 %v1406, %v1412
      %v1443 = vmul.f32 %v1407, %v1412
      %v1444 = vadd.f32 %v1348, %v1414
      %v1445 = vadd.f32 %v1349, %v1415
      %v1446 = vadd.f32 %v1350, %v1416
      %v1447 = vadd.f32 %v1351, %v1417
      %v1448 = vadd.f32 %v1352, %v1418
      %v1449 = vadd.f32 %v1353, %v1419
      %v1450 = vadd.f32 %v1354, %v1420
      %v1451 = vadd.f32 %v1355, %v1421
      %v1452 = vadd.f32 %v1356, %v1422
      %v1453 = vadd.f32 %v1357, %v1423
      %v1454 = vadd.f32 %v1358, %v1424
      %v1455 = vadd.f32 %v1359, %v1425
      %v1456 = vadd.f32 %v1360, %v1426
      %v1457 = vadd.f32 %v1361, %v1427
      %v1458 = vadd.f32 %v1362, %v1428
      %v1459 = vadd.f32 %v1363, %v1429
      %v1460 = vadd.f32 %v1364, %v1430
      %v1461 = vadd.f32 %v1365, %v1431
      %v1462 = vadd.f32 %v1366, %v1432
      %v1463 = vadd.f32 %v1367, %v1433
      %v1464 = vadd.f32 %v1368, %v1434
      %v1465 = vadd.f32 %v1369, %v1435
      %v1466 = vadd.f32 %v1370, %v1436
      %v1467 = vadd.f32 %v1371, %v1437
      %v1468 = vadd.f32 %v1372, %v1438
      %v1469 = vadd.f32 %v1373, %v1439
      %v1470 = vadd.f32 %v1374, %v1440
      %v1471 = vadd.f32 %v1375, %v1441
      %v1472 = vadd.f32 %v1376, %v1442
      %v1473 = vadd.f32 %v1377, %v1443
      %v1474 = vld [vmem:[%s769 + $0x9] sm:$0xff]
      %v1475 = vld [vmem:[%s769 + $0x11] sm:$0xff]
      %v1476 = vld [vmem:[%s769 + $0x19] sm:$0x3]
      %v1477 = vld [vmem:[%s769 + $0x29] sm:$0xff]
      %v1478 = vld [vmem:[%s769 + $0x31] sm:$0xff]
      %v1479 = vld [vmem:[%s769 + $0x39] sm:$0x3]
      %v1480 = vld [vmem:[%s769 + $0x49] sm:$0xff]
      %v1481 = vld [vmem:[%s769 + $0x51] sm:$0xff]
      %v1482 = vld [vmem:[%s769 + $0x59] sm:$0x3]
      %v1483 = vld [vmem:[%s769 + $0x69] sm:$0xff]
      %v1484 = vld [vmem:[%s769 + $0x71] sm:$0xff]
      %v1485 = vld [vmem:[%s769 + $0x79] sm:$0x3]
      %v1486 = vld [vmem:[%s769 + $0x89] sm:$0xff]
      %v1487 = vld [vmem:[%s769 + $0x91] sm:$0xff]
      %v1488 = vld [vmem:[%s769 + $0x99] sm:$0x3]
      %v1489 = vld [vmem:[%s769 + $0xa9] sm:$0xff]
      %v1490 = vld [vmem:[%s769 + $0xb1] sm:$0xff]
      %v1491 = vld [vmem:[%s769 + $0xb9] sm:$0x3]
      %v1492 = vld [vmem:[%s769 + $0xc9] sm:$0xff]
      %v1493 = vld [vmem:[%s769 + $0xd1] sm:$0xff]
      %v1494 = vld [vmem:[%s769 + $0xd9] sm:$0x3]
      %v1495 = vld [vmem:[%s769 + $0xe9] sm:$0xff]
      %v1496 = vld [vmem:[%s769 + $0xf1] sm:$0xff]
      %v1497 = vld [vmem:[%s769 + $0xf9] sm:$0x3]
      %v1498 = vld [vmem:[%s769 + $0x109] sm:$0xff]
      %v1499 = vld [vmem:[%s769 + $0x111] sm:$0xff]
      %v1500 = vld [vmem:[%s769 + $0x119] sm:$0x3]
      %v1501 = vld [vmem:[%s769 + $0x129] sm:$0xff]
      %v1502 = vld [vmem:[%s769 + $0x131] sm:$0xff]
      %v1503 = vld [vmem:[%s769 + $0x139] sm:$0x3]
      %v1505 = vlaneseq
      %v1506 = vshrl.u32 %v1505, 7
      %v1507 = vsub.s32 0, %v1506
      %v1508 = vrot.slane %v747, %v1507
      %v1510 = vmul.f32 %v1474, %v1508
      %v1511 = vmul.f32 %v1475, %v1508
      %v1512 = vmul.f32 %v1476, %v1508
      %v1513 = vmul.f32 %v1477, %v1508
      %v1514 = vmul.f32 %v1478, %v1508
      %v1515 = vmul.f32 %v1479, %v1508
      %v1516 = vmul.f32 %v1480, %v1508
      %v1517 = vmul.f32 %v1481, %v1508
      %v1518 = vmul.f32 %v1482, %v1508
      %v1519 = vmul.f32 %v1483, %v1508
      %v1520 = vmul.f32 %v1484, %v1508
      %v1521 = vmul.f32 %v1485, %v1508
      %v1522 = vmul.f32 %v1486, %v1508
      %v1523 = vmul.f32 %v1487, %v1508
      %v1524 = vmul.f32 %v1488, %v1508
      %v1525 = vmul.f32 %v1489, %v1508
      %v1526 = vmul.f32 %v1490, %v1508
      %v1527 = vmul.f32 %v1491, %v1508
      %v1528 = vmul.f32 %v1492, %v1508
      %v1529 = vmul.f32 %v1493, %v1508
      %v1530 = vmul.f32 %v1494, %v1508
      %v1531 = vmul.f32 %v1495, %v1508
      %v1532 = vmul.f32 %v1496, %v1508
      %v1533 = vmul.f32 %v1497, %v1508
      %v1534 = vmul.f32 %v1498, %v1508
      %v1535 = vmul.f32 %v1499, %v1508
      %v1536 = vmul.f32 %v1500, %v1508
      %v1537 = vmul.f32 %v1501, %v1508
      %v1538 = vmul.f32 %v1502, %v1508
      %v1539 = vmul.f32 %v1503, %v1508
      %v1540 = vadd.f32 %v1444, %v1510
      %v1541 = vadd.f32 %v1445, %v1511
      %v1542 = vadd.f32 %v1446, %v1512
      %v1543 = vadd.f32 %v1447, %v1513
      %v1544 = vadd.f32 %v1448, %v1514
      %v1545 = vadd.f32 %v1449, %v1515
      %v1546 = vadd.f32 %v1450, %v1516
      %v1547 = vadd.f32 %v1451, %v1517
      %v1548 = vadd.f32 %v1452, %v1518
      %v1549 = vadd.f32 %v1453, %v1519
      %v1550 = vadd.f32 %v1454, %v1520
      %v1551 = vadd.f32 %v1455, %v1521
      %v1552 = vadd.f32 %v1456, %v1522
      %v1553 = vadd.f32 %v1457, %v1523
      %v1554 = vadd.f32 %v1458, %v1524
      %v1555 = vadd.f32 %v1459, %v1525
      %v1556 = vadd.f32 %v1460, %v1526
      %v1557 = vadd.f32 %v1461, %v1527
      %v1558 = vadd.f32 %v1462, %v1528
      %v1559 = vadd.f32 %v1463, %v1529
      %v1560 = vadd.f32 %v1464, %v1530
      %v1561 = vadd.f32 %v1465, %v1531
      %v1562 = vadd.f32 %v1466, %v1532
      %v1563 = vadd.f32 %v1467, %v1533
      %v1564 = vadd.f32 %v1468, %v1534
      %v1565 = vadd.f32 %v1469, %v1535
      %v1566 = vadd.f32 %v1470, %v1536
      %v1567 = vadd.f32 %v1471, %v1537
      %v1568 = vadd.f32 %v1472, %v1538
      %v1569 = vadd.f32 %v1473, %v1539
      %v1570 = vld [vmem:[%s1023 + $0x9] sm:$0xff]
      %v1571 = vld [vmem:[%s1023 + $0x11] sm:$0xff]
      %v1572 = vld [vmem:[%s1023 + $0x19] sm:$0x3]
      %v1573 = vld [vmem:[%s1023 + $0x29] sm:$0xff]
      %v1574 = vld [vmem:[%s1023 + $0x31] sm:$0xff]
      %v1575 = vld [vmem:[%s1023 + $0x39] sm:$0x3]
      %v1576 = vld [vmem:[%s1023 + $0x49] sm:$0xff]
      %v1577 = vld [vmem:[%s1023 + $0x51] sm:$0xff]
      %v1578 = vld [vmem:[%s1023 + $0x59] sm:$0x3]
      %v1579 = vld [vmem:[%s1023 + $0x69] sm:$0xff]
      %v1580 = vld [vmem:[%s1023 + $0x71] sm:$0xff]
      %v1581 = vld [vmem:[%s1023 + $0x79] sm:$0x3]
      %v1582 = vld [vmem:[%s1023 + $0x89] sm:$0xff]
      %v1583 = vld [vmem:[%s1023 + $0x91] sm:$0xff]
      %v1584 = vld [vmem:[%s1023 + $0x99] sm:$0x3]
      %v1585 = vld [vmem:[%s1023 + $0xa9] sm:$0xff]
      %v1586 = vld [vmem:[%s1023 + $0xb1] sm:$0xff]
      %v1587 = vld [vmem:[%s1023 + $0xb9] sm:$0x3]
      %v1588 = vld [vmem:[%s1023 + $0xc9] sm:$0xff]
      %v1589 = vld [vmem:[%s1023 + $0xd1] sm:$0xff]
      %v1590 = vld [vmem:[%s1023 + $0xd9] sm:$0x3]
      %v1591 = vld [vmem:[%s1023 + $0xe9] sm:$0xff]
      %v1592 = vld [vmem:[%s1023 + $0xf1] sm:$0xff]
      %v1593 = vld [vmem:[%s1023 + $0xf9] sm:$0x3]
      %v1594 = vld [vmem:[%s1023 + $0x109] sm:$0xff]
      %v1595 = vld [vmem:[%s1023 + $0x111] sm:$0xff]
      %v1596 = vld [vmem:[%s1023 + $0x119] sm:$0x3]
      %v1597 = vld [vmem:[%s1023 + $0x129] sm:$0xff]
      %v1598 = vld [vmem:[%s1023 + $0x131] sm:$0xff]
      %v1599 = vld [vmem:[%s1023 + $0x139] sm:$0x3]
      %v1601 = vlaneseq
      %v1602 = vshrl.u32 %v1601, 7
      %v1603 = vsub.s32 0, %v1602
      %v1604 = vrot.slane %v750, %v1603
      %v1606 = vmul.f32 %v1570, %v1604
      %v1607 = vmul.f32 %v1571, %v1604
      %v1608 = vmul.f32 %v1572, %v1604
      %v1609 = vmul.f32 %v1573, %v1604
      %v1610 = vmul.f32 %v1574, %v1604
      %v1611 = vmul.f32 %v1575, %v1604
      %v1612 = vmul.f32 %v1576, %v1604
      %v1613 = vmul.f32 %v1577, %v1604
      %v1614 = vmul.f32 %v1578, %v1604
      %v1615 = vmul.f32 %v1579, %v1604
      %v1616 = vmul.f32 %v1580, %v1604
      %v1617 = vmul.f32 %v1581, %v1604
      %v1618 = vmul.f32 %v1582, %v1604
      %v1619 = vmul.f32 %v1583, %v1604
      %v1620 = vmul.f32 %v1584, %v1604
      %v1621 = vmul.f32 %v1585, %v1604
      %v1622 = vmul.f32 %v1586, %v1604
      %v1623 = vmul.f32 %v1587, %v1604
      %v1624 = vmul.f32 %v1588, %v1604
      %v1625 = vmul.f32 %v1589, %v1604
      %v1626 = vmul.f32 %v1590, %v1604
      %v1627 = vmul.f32 %v1591, %v1604
      %v1628 = vmul.f32 %v1592, %v1604
      %v1629 = vmul.f32 %v1593, %v1604
      %v1630 = vmul.f32 %v1594, %v1604
      %v1631 = vmul.f32 %v1595, %v1604
      %v1632 = vmul.f32 %v1596, %v1604
      %v1633 = vmul.f32 %v1597, %v1604
      %v1634 = vmul.f32 %v1598, %v1604
      %v1635 = vmul.f32 %v1599, %v1604
      %v1636 = vadd.f32 %v1540, %v1606
      %v1637 = vadd.f32 %v1541, %v1607
      %v1638 = vadd.f32 %v1542, %v1608
      %v1639 = vadd.f32 %v1543, %v1609
      %v1640 = vadd.f32 %v1544, %v1610
      %v1641 = vadd.f32 %v1545, %v1611
      %v1642 = vadd.f32 %v1546, %v1612
      %v1643 = vadd.f32 %v1547, %v1613
      %v1644 = vadd.f32 %v1548, %v1614
      %v1645 = vadd.f32 %v1549, %v1615
      %v1646 = vadd.f32 %v1550, %v1616
      %v1647 = vadd.f32 %v1551, %v1617
      %v1648 = vadd.f32 %v1552, %v1618
      %v1649 = vadd.f32 %v1553, %v1619
      %v1650 = vadd.f32 %v1554, %v1620
      %v1651 = vadd.f32 %v1555, %v1621
      %v1652 = vadd.f32 %v1556, %v1622
      %v1653 = vadd.f32 %v1557, %v1623
      %v1654 = vadd.f32 %v1558, %v1624
      %v1655 = vadd.f32 %v1559, %v1625
      %v1656 = vadd.f32 %v1560, %v1626
      %v1657 = vadd.f32 %v1561, %v1627
      %v1658 = vadd.f32 %v1562, %v1628
      %v1659 = vadd.f32 %v1563, %v1629
      %v1660 = vadd.f32 %v1564, %v1630
      %v1661 = vadd.f32 %v1565, %v1631
      %v1662 = vadd.f32 %v1566, %v1632
      %v1663 = vadd.f32 %v1567, %v1633
      %v1664 = vadd.f32 %v1568, %v1634
      %v1665 = vadd.f32 %v1569, %v1635
      %s1666 = scalar_lea.vmem [#allocation2], 96
      %v1667 = vld [vmem:[%s1666 + $0x3] sm:$0xff]
      %v1668 = vld [vmem:[%s1666 + $0xb] sm:$0xff]
      %v1669 = vld [vmem:[%s1666 + $0x13] sm:$0x3]
      %v1670 = vld [vmem:[%s1666 + $0x23] sm:$0xff]
      %v1671 = vld [vmem:[%s1666 + $0x2b] sm:$0xff]
      %v1672 = vld [vmem:[%s1666 + $0x33] sm:$0x3]
      %v1673 = vld [vmem:[%s1666 + $0x43] sm:$0xff]
      %v1674 = vld [vmem:[%s1666 + $0x4b] sm:$0xff]
      %v1675 = vld [vmem:[%s1666 + $0x53] sm:$0x3]
      %v1676 = vld [vmem:[%s1666 + $0x63] sm:$0xff]
      %v1677 = vld [vmem:[%s1666 + $0x6b] sm:$0xff]
      %v1678 = vld [vmem:[%s1666 + $0x73] sm:$0x3]
      %v1679 = vld [vmem:[%s1666 + $0x83] sm:$0xff]
      %v1680 = vld [vmem:[%s1666 + $0x8b] sm:$0xff]
      %v1681 = vld [vmem:[%s1666 + $0x93] sm:$0x3]
      %v1682 = vld [vmem:[%s1666 + $0xa3] sm:$0xff]
      %v1683 = vld [vmem:[%s1666 + $0xab] sm:$0xff]
      %v1684 = vld [vmem:[%s1666 + $0xb3] sm:$0x3]
      %v1685 = vld [vmem:[%s1666 + $0xc3] sm:$0xff]
      %v1686 = vld [vmem:[%s1666 + $0xcb] sm:$0xff]
      %v1687 = vld [vmem:[%s1666 + $0xd3] sm:$0x3]
      %v1688 = vld [vmem:[%s1666 + $0xe3] sm:$0xff]
      %v1689 = vld [vmem:[%s1666 + $0xeb] sm:$0xff]
      %v1690 = vld [vmem:[%s1666 + $0xf3] sm:$0x3]
      %v1691 = vld [vmem:[%s1666 + $0x103] sm:$0xff]
      %v1692 = vld [vmem:[%s1666 + $0x10b] sm:$0xff]
      %v1693 = vld [vmem:[%s1666 + $0x113] sm:$0x3]
      %v1694 = vld [vmem:[%s1666 + $0x123] sm:$0xff]
      %v1695 = vld [vmem:[%s1666 + $0x12b] sm:$0xff]
      %v1696 = vld [vmem:[%s1666 + $0x133] sm:$0x3]
      %v1698 = vlaneseq
      %v1699 = vshrl.u32 %v1698, 7
      %v1700 = vsub.s32 0, %v1699
      %v1701 = vrot.slane %v751, %v1700
      %v1703 = vmul.f32 %v1667, %v1701
      %v1704 = vmul.f32 %v1668, %v1701
      %v1705 = vmul.f32 %v1669, %v1701
      %v1706 = vmul.f32 %v1670, %v1701
      %v1707 = vmul.f32 %v1671, %v1701
      %v1708 = vmul.f32 %v1672, %v1701
      %v1709 = vmul.f32 %v1673, %v1701
      %v1710 = vmul.f32 %v1674, %v1701
      %v1711 = vmul.f32 %v1675, %v1701
      %v1712 = vmul.f32 %v1676, %v1701
      %v1713 = vmul.f32 %v1677, %v1701
      %v1714 = vmul.f32 %v1678, %v1701
      %v1715 = vmul.f32 %v1679, %v1701
      %v1716 = vmul.f32 %v1680, %v1701
      %v1717 = vmul.f32 %v1681, %v1701
      %v1718 = vmul.f32 %v1682, %v1701
      %v1719 = vmul.f32 %v1683, %v1701
      %v1720 = vmul.f32 %v1684, %v1701
      %v1721 = vmul.f32 %v1685, %v1701
      %v1722 = vmul.f32 %v1686, %v1701
      %v1723 = vmul.f32 %v1687, %v1701
      %v1724 = vmul.f32 %v1688, %v1701
      %v1725 = vmul.f32 %v1689, %v1701
      %v1726 = vmul.f32 %v1690, %v1701
      %v1727 = vmul.f32 %v1691, %v1701
      %v1728 = vmul.f32 %v1692, %v1701
      %v1729 = vmul.f32 %v1693, %v1701
      %v1730 = vmul.f32 %v1694, %v1701
      %v1731 = vmul.f32 %v1695, %v1701
      %v1732 = vmul.f32 %v1696, %v1701
      %v1733 = vadd.f32 %v1636, %v1703
      %v1734 = vadd.f32 %v1637, %v1704
      %v1735 = vadd.f32 %v1638, %v1705
      %v1736 = vadd.f32 %v1639, %v1706
      %v1737 = vadd.f32 %v1640, %v1707
      %v1738 = vadd.f32 %v1641, %v1708
      %v1739 = vadd.f32 %v1642, %v1709
      %v1740 = vadd.f32 %v1643, %v1710
      %v1741 = vadd.f32 %v1644, %v1711
      %v1742 = vadd.f32 %v1645, %v1712
      %v1743 = vadd.f32 %v1646, %v1713
      %v1744 = vadd.f32 %v1647, %v1714
      %v1745 = vadd.f32 %v1648, %v1715
      %v1746 = vadd.f32 %v1649, %v1716
      %v1747 = vadd.f32 %v1650, %v1717
      %v1748 = vadd.f32 %v1651, %v1718
      %v1749 = vadd.f32 %v1652, %v1719
      %v1750 = vadd.f32 %v1653, %v1720
      %v1751 = vadd.f32 %v1654, %v1721
      %v1752 = vadd.f32 %v1655, %v1722
      %v1753 = vadd.f32 %v1656, %v1723
      %v1754 = vadd.f32 %v1657, %v1724
      %v1755 = vadd.f32 %v1658, %v1725
      %v1756 = vadd.f32 %v1659, %v1726
      %v1757 = vadd.f32 %v1660, %v1727
      %v1758 = vadd.f32 %v1661, %v1728
      %v1759 = vadd.f32 %v1662, %v1729
      %v1760 = vadd.f32 %v1663, %v1730
      %v1761 = vadd.f32 %v1664, %v1731
      %v1762 = vadd.f32 %v1665, %v1732
      %v1763 = vld [vmem:[%s769 + $0x3] sm:$0xff]
      %v1764 = vld [vmem:[%s769 + $0xb] sm:$0xff]
      %v1765 = vld [vmem:[%s769 + $0x13] sm:$0x3]
      %v1766 = vld [vmem:[%s769 + $0x23] sm:$0xff]
      %v1767 = vld [vmem:[%s769 + $0x2b] sm:$0xff]
      %v1768 = vld [vmem:[%s769 + $0x33] sm:$0x3]
      %v1769 = vld [vmem:[%s769 + $0x43] sm:$0xff]
      %v1770 = vld [vmem:[%s769 + $0x4b] sm:$0xff]
      %v1771 = vld [vmem:[%s769 + $0x53] sm:$0x3]
      %v1772 = vld [vmem:[%s769 + $0x63] sm:$0xff]
      %v1773 = vld [vmem:[%s769 + $0x6b] sm:$0xff]
      %v1774 = vld [vmem:[%s769 + $0x73] sm:$0x3]
      %v1775 = vld [vmem:[%s769 + $0x83] sm:$0xff]
      %v1776 = vld [vmem:[%s769 + $0x8b] sm:$0xff]
      %v1777 = vld [vmem:[%s769 + $0x93] sm:$0x3]
      %v1778 = vld [vmem:[%s769 + $0xa3] sm:$0xff]
      %v1779 = vld [vmem:[%s769 + $0xab] sm:$0xff]
      %v1780 = vld [vmem:[%s769 + $0xb3] sm:$0x3]
      %v1781 = vld [vmem:[%s769 + $0xc3] sm:$0xff]
      %v1782 = vld [vmem:[%s769 + $0xcb] sm:$0xff]
      %v1783 = vld [vmem:[%s769 + $0xd3] sm:$0x3]
      %v1784 = vld [vmem:[%s769 + $0xe3] sm:$0xff]
      %v1785 = vld [vmem:[%s769 + $0xeb] sm:$0xff]
      %v1786 = vld [vmem:[%s769 + $0xf3] sm:$0x3]
      %v1787 = vld [vmem:[%s769 + $0x103] sm:$0xff]
      %v1788 = vld [vmem:[%s769 + $0x10b] sm:$0xff]
      %v1789 = vld [vmem:[%s769 + $0x113] sm:$0x3]
      %v1790 = vld [vmem:[%s769 + $0x123] sm:$0xff]
      %v1791 = vld [vmem:[%s769 + $0x12b] sm:$0xff]
      %v1792 = vld [vmem:[%s769 + $0x133] sm:$0x3]
      %v1794 = vlaneseq
      %v1795 = vshrl.u32 %v1794, 7
      %v1796 = vsub.s32 0, %v1795
      %v1797 = vrot.slane %v754, %v1796
      %v1799 = vmul.f32 %v1763, %v1797
      %v1800 = vmul.f32 %v1764, %v1797
      %v1801 = vmul.f32 %v1765, %v1797
      %v1802 = vmul.f32 %v1766, %v1797
      %v1803 = vmul.f32 %v1767, %v1797
      %v1804 = vmul.f32 %v1768, %v1797
      %v1805 = vmul.f32 %v1769, %v1797
      %v1806 = vmul.f32 %v1770, %v1797
      %v1807 = vmul.f32 %v1771, %v1797
      %v1808 = vmul.f32 %v1772, %v1797
      %v1809 = vmul.f32 %v1773, %v1797
      %v1810 = vmul.f32 %v1774, %v1797
      %v1811 = vmul.f32 %v1775, %v1797
      %v1812 = vmul.f32 %v1776, %v1797
      %v1813 = vmul.f32 %v1777, %v1797
      %v1814 = vmul.f32 %v1778, %v1797
      %v1815 = vmul.f32 %v1779, %v1797
      %v1816 = vmul.f32 %v1780, %v1797
      %v1817 = vmul.f32 %v1781, %v1797
      %v1818 = vmul.f32 %v1782, %v1797
      %v1819 = vmul.f32 %v1783, %v1797
      %v1820 = vmul.f32 %v1784, %v1797
      %v1821 = vmul.f32 %v1785, %v1797
      %v1822 = vmul.f32 %v1786, %v1797
      %v1823 = vmul.f32 %v1787, %v1797
      %v1824 = vmul.f32 %v1788, %v1797
      %v1825 = vmul.f32 %v1789, %v1797
      %v1826 = vmul.f32 %v1790, %v1797
      %v1827 = vmul.f32 %v1791, %v1797
      %v1828 = vmul.f32 %v1792, %v1797
      %v1829 = vadd.f32 %v1733, %v1799
      %v1830 = vadd.f32 %v1734, %v1800
      %v1831 = vadd.f32 %v1735, %v1801
      %v1832 = vadd.f32 %v1736, %v1802
      %v1833 = vadd.f32 %v1737, %v1803
      %v1834 = vadd.f32 %v1738, %v1804
      %v1835 = vadd.f32 %v1739, %v1805
      %v1836 = vadd.f32 %v1740, %v1806
      %v1837 = vadd.f32 %v1741, %v1807
      %v1838 = vadd.f32 %v1742, %v1808
      %v1839 = vadd.f32 %v1743, %v1809
      %v1840 = vadd.f32 %v1744, %v1810
      %v1841 = vadd.f32 %v1745, %v1811
      %v1842 = vadd.f32 %v1746, %v1812
      %v1843 = vadd.f32 %v1747, %v1813
      %v1844 = vadd.f32 %v1748, %v1814
      %v1845 = vadd.f32 %v1749, %v1815
      %v1846 = vadd.f32 %v1750, %v1816
      %v1847 = vadd.f32 %v1751, %v1817
      %v1848 = vadd.f32 %v1752, %v1818
      %v1849 = vadd.f32 %v1753, %v1819
      %v1850 = vadd.f32 %v1754, %v1820
      %v1851 = vadd.f32 %v1755, %v1821
      %v1852 = vadd.f32 %v1756, %v1822
      %v1853 = vadd.f32 %v1757, %v1823
      %v1854 = vadd.f32 %v1758, %v1824
      %v1855 = vadd.f32 %v1759, %v1825
      %v1856 = vadd.f32 %v1760, %v1826
      %v1857 = vadd.f32 %v1761, %v1827
      %v1858 = vadd.f32 %v1762, %v1828
      %s1859 = scalar_lea.vmem [#allocation2], 352
      %v1860 = vld [vmem:[%s1859 + $0x3] sm:$0xff]
      %v1861 = vld [vmem:[%s1859 + $0xb] sm:$0xff]
      %v1862 = vld [vmem:[%s1859 + $0x13] sm:$0x3]
      %v1863 = vld [vmem:[%s1859 + $0x23] sm:$0xff]
      %v1864 = vld [vmem:[%s1859 + $0x2b] sm:$0xff]
      %v1865 = vld [vmem:[%s1859 + $0x33] sm:$0x3]
      %v1866 = vld [vmem:[%s1859 + $0x43] sm:$0xff]
      %v1867 = vld [vmem:[%s1859 + $0x4b] sm:$0xff]
      %v1868 = vld [vmem:[%s1859 + $0x53] sm:$0x3]
      %v1869 = vld [vmem:[%s1859 + $0x63] sm:$0xff]
      %v1870 = vld [vmem:[%s1859 + $0x6b] sm:$0xff]
      %v1871 = vld [vmem:[%s1859 + $0x73] sm:$0x3]
      %v1872 = vld [vmem:[%s1859 + $0x83] sm:$0xff]
      %v1873 = vld [vmem:[%s1859 + $0x8b] sm:$0xff]
      %v1874 = vld [vmem:[%s1859 + $0x93] sm:$0x3]
      %v1875 = vld [vmem:[%s1859 + $0xa3] sm:$0xff]
      %v1876 = vld [vmem:[%s1859 + $0xab] sm:$0xff]
      %v1877 = vld [vmem:[%s1859 + $0xb3] sm:$0x3]
      %v1878 = vld [vmem:[%s1859 + $0xc3] sm:$0xff]
      %v1879 = vld [vmem:[%s1859 + $0xcb] sm:$0xff]
      %v1880 = vld [vmem:[%s1859 + $0xd3] sm:$0x3]
      %v1881 = vld [vmem:[%s1859 + $0xe3] sm:$0xff]
      %v1882 = vld [vmem:[%s1859 + $0xeb] sm:$0xff]
      %v1883 = vld [vmem:[%s1859 + $0xf3] sm:$0x3]
      %v1884 = vld [vmem:[%s1859 + $0x103] sm:$0xff]
      %v1885 = vld [vmem:[%s1859 + $0x10b] sm:$0xff]
      %v1886 = vld [vmem:[%s1859 + $0x113] sm:$0x3]
      %v1887 = vld [vmem:[%s1859 + $0x123] sm:$0xff]
      %v1888 = vld [vmem:[%s1859 + $0x12b] sm:$0xff]
      %v1889 = vld [vmem:[%s1859 + $0x133] sm:$0x3]
      %v1891 = vlaneseq
      %v1892 = vshrl.u32 %v1891, 7
      %v1893 = vsub.s32 0, %v1892
      %v1894 = vrot.slane %v757, %v1893
      %v1896 = vmul.f32 %v1860, %v1894
      %v1897 = vmul.f32 %v1861, %v1894
      %v1898 = vmul.f32 %v1862, %v1894
      %v1899 = vmul.f32 %v1863, %v1894
      %v1900 = vmul.f32 %v1864, %v1894
      %v1901 = vmul.f32 %v1865, %v1894
      %v1902 = vmul.f32 %v1866, %v1894
      %v1903 = vmul.f32 %v1867, %v1894
      %v1904 = vmul.f32 %v1868, %v1894
      %v1905 = vmul.f32 %v1869, %v1894
      %v1906 = vmul.f32 %v1870, %v1894
      %v1907 = vmul.f32 %v1871, %v1894
      %v1908 = vmul.f32 %v1872, %v1894
      %v1909 = vmul.f32 %v1873, %v1894
      %v1910 = vmul.f32 %v1874, %v1894
      %v1911 = vmul.f32 %v1875, %v1894
      %v1912 = vmul.f32 %v1876, %v1894
      %v1913 = vmul.f32 %v1877, %v1894
      %v1914 = vmul.f32 %v1878, %v1894
      %v1915 = vmul.f32 %v1879, %v1894
      %v1916 = vmul.f32 %v1880, %v1894
      %v1917 = vmul.f32 %v1881, %v1894
      %v1918 = vmul.f32 %v1882, %v1894
      %v1919 = vmul.f32 %v1883, %v1894
      %v1920 = vmul.f32 %v1884, %v1894
      %v1921 = vmul.f32 %v1885, %v1894
      %v1922 = vmul.f32 %v1886, %v1894
      %v1923 = vmul.f32 %v1887, %v1894
      %v1924 = vmul.f32 %v1888, %v1894
      %v1925 = vmul.f32 %v1889, %v1894
      %v1926 = vadd.f32 %v1829, %v1896
      %v1927 = vadd.f32 %v1830, %v1897
      %v1928 = vadd.f32 %v1831, %v1898
      %v1929 = vadd.f32 %v1832, %v1899
      %v1930 = vadd.f32 %v1833, %v1900
      %v1931 = vadd.f32 %v1834, %v1901
      %v1932 = vadd.f32 %v1835, %v1902
      %v1933 = vadd.f32 %v1836, %v1903
      %v1934 = vadd.f32 %v1837, %v1904
      %v1935 = vadd.f32 %v1838, %v1905
      %v1936 = vadd.f32 %v1839, %v1906
      %v1937 = vadd.f32 %v1840, %v1907
      %v1938 = vadd.f32 %v1841, %v1908
      %v1939 = vadd.f32 %v1842, %v1909
      %v1940 = vadd.f32 %v1843, %v1910
      %v1941 = vadd.f32 %v1844, %v1911
      %v1942 = vadd.f32 %v1845, %v1912
      %v1943 = vadd.f32 %v1846, %v1913
      %v1944 = vadd.f32 %v1847, %v1914
      %v1945 = vadd.f32 %v1848, %v1915
      %v1946 = vadd.f32 %v1849, %v1916
      %v1947 = vadd.f32 %v1850, %v1917
      %v1948 = vadd.f32 %v1851, %v1918
      %v1949 = vadd.f32 %v1852, %v1919
      %v1950 = vadd.f32 %v1853, %v1920
      %v1951 = vadd.f32 %v1854, %v1921
      %v1952 = vadd.f32 %v1855, %v1922
      %v1953 = vadd.f32 %v1856, %v1923
      %v1954 = vadd.f32 %v1857, %v1924
      %v1955 = vadd.f32 %v1858, %v1925
      %v1956 = vld [vmem:[%s1666 + $0x7] sm:$0xff]
      %v1957 = vld [vmem:[%s1666 + $0xf] sm:$0xff]
      %v1958 = vld [vmem:[%s1666 + $0x17] sm:$0x3]
      %v1959 = vld [vmem:[%s1666 + $0x27] sm:$0xff]
      %v1960 = vld [vmem:[%s1666 + $0x2f] sm:$0xff]
      %v1961 = vld [vmem:[%s1666 + $0x37] sm:$0x3]
      %v1962 = vld [vmem:[%s1666 + $0x47] sm:$0xff]
      %v1963 = vld [vmem:[%s1666 + $0x4f] sm:$0xff]
      %v1964 = vld [vmem:[%s1666 + $0x57] sm:$0x3]
      %v1965 = vld [vmem:[%s1666 + $0x67] sm:$0xff]
      %v1966 = vld [vmem:[%s1666 + $0x6f] sm:$0xff]
      %v1967 = vld [vmem:[%s1666 + $0x77] sm:$0x3]
      %v1968 = vld [vmem:[%s1666 + $0x87] sm:$0xff]
      %v1969 = vld [vmem:[%s1666 + $0x8f] sm:$0xff]
      %v1970 = vld [vmem:[%s1666 + $0x97] sm:$0x3]
      %v1971 = vld [vmem:[%s1666 + $0xa7] sm:$0xff]
      %v1972 = vld [vmem:[%s1666 + $0xaf] sm:$0xff]
      %v1973 = vld [vmem:[%s1666 + $0xb7] sm:$0x3]
      %v1974 = vld [vmem:[%s1666 + $0xc7] sm:$0xff]
      %v1975 = vld [vmem:[%s1666 + $0xcf] sm:$0xff]
      %v1976 = vld [vmem:[%s1666 + $0xd7] sm:$0x3]
      %v1977 = vld [vmem:[%s1666 + $0xe7] sm:$0xff]
      %v1978 = vld [vmem:[%s1666 + $0xef] sm:$0xff]
      %v1979 = vld [vmem:[%s1666 + $0xf7] sm:$0x3]
      %v1980 = vld [vmem:[%s1666 + $0x107] sm:$0xff]
      %v1981 = vld [vmem:[%s1666 + $0x10f] sm:$0xff]
      %v1982 = vld [vmem:[%s1666 + $0x117] sm:$0x3]
      %v1983 = vld [vmem:[%s1666 + $0x127] sm:$0xff]
      %v1984 = vld [vmem:[%s1666 + $0x12f] sm:$0xff]
      %v1985 = vld [vmem:[%s1666 + $0x137] sm:$0x3]
      %v1987 = vlaneseq
      %v1988 = vshrl.u32 %v1987, 7
      %v1989 = vsub.s32 0, %v1988
      %v1990 = vrot.slane %v752, %v1989
      %v1992 = vmul.f32 %v1956, %v1990
      %v1993 = vmul.f32 %v1957, %v1990
      %v1994 = vmul.f32 %v1958, %v1990
      %v1995 = vmul.f32 %v1959, %v1990
      %v1996 = vmul.f32 %v1960, %v1990
      %v1997 = vmul.f32 %v1961, %v1990
      %v1998 = vmul.f32 %v1962, %v1990
      %v1999 = vmul.f32 %v1963, %v1990
      %v2000 = vmul.f32 %v1964, %v1990
      %v2001 = vmul.f32 %v1965, %v1990
      %v2002 = vmul.f32 %v1966, %v1990
      %v2003 = vmul.f32 %v1967, %v1990
      %v2004 = vmul.f32 %v1968, %v1990
      %v2005 = vmul.f32 %v1969, %v1990
      %v2006 = vmul.f32 %v1970, %v1990
      %v2007 = vmul.f32 %v1971, %v1990
      %v2008 = vmul.f32 %v1972, %v1990
      %v2009 = vmul.f32 %v1973, %v1990
      %v2010 = vmul.f32 %v1974, %v1990
      %v2011 = vmul.f32 %v1975, %v1990
      %v2012 = vmul.f32 %v1976, %v1990
      %v2013 = vmul.f32 %v1977, %v1990
      %v2014 = vmul.f32 %v1978, %v1990
      %v2015 = vmul.f32 %v1979, %v1990
      %v2016 = vmul.f32 %v1980, %v1990
      %v2017 = vmul.f32 %v1981, %v1990
      %v2018 = vmul.f32 %v1982, %v1990
      %v2019 = vmul.f32 %v1983, %v1990
      %v2020 = vmul.f32 %v1984, %v1990
      %v2021 = vmul.f32 %v1985, %v1990
      %v2022 = vadd.f32 %v1926, %v1992
      %v2023 = vadd.f32 %v1927, %v1993
      %v2024 = vadd.f32 %v1928, %v1994
      %v2025 = vadd.f32 %v1929, %v1995
      %v2026 = vadd.f32 %v1930, %v1996
      %v2027 = vadd.f32 %v1931, %v1997
      %v2028 = vadd.f32 %v1932, %v1998
      %v2029 = vadd.f32 %v1933, %v1999
      %v2030 = vadd.f32 %v1934, %v2000
      %v2031 = vadd.f32 %v1935, %v2001
      %v2032 = vadd.f32 %v1936, %v2002
      %v2033 = vadd.f32 %v1937, %v2003
      %v2034 = vadd.f32 %v1938, %v2004
      %v2035 = vadd.f32 %v1939, %v2005
      %v2036 = vadd.f32 %v1940, %v2006
      %v2037 = vadd.f32 %v1941, %v2007
      %v2038 = vadd.f32 %v1942, %v2008
      %v2039 = vadd.f32 %v1943, %v2009
      %v2040 = vadd.f32 %v1944, %v2010
      %v2041 = vadd.f32 %v1945, %v2011
      %v2042 = vadd.f32 %v1946, %v2012
      %v2043 = vadd.f32 %v1947, %v2013
      %v2044 = vadd.f32 %v1948, %v2014
      %v2045 = vadd.f32 %v1949, %v2015
      %v2046 = vadd.f32 %v1950, %v2016
      %v2047 = vadd.f32 %v1951, %v2017
      %v2048 = vadd.f32 %v1952, %v2018
      %v2049 = vadd.f32 %v1953, %v2019
      %v2050 = vadd.f32 %v1954, %v2020
      %v2051 = vadd.f32 %v1955, %v2021
      %v2053 = vlaneseq
      %v2054 = vshrl.u32 %v2053, 7
      %v2055 = vsub.s32 0, %v2054
      %v2056 = vrot.slane %v755, %v2055
      %v2058 = vmul.f32 %v770, %v2056
      %v2059 = vmul.f32 %v771, %v2056
      %v2060 = vmul.f32 %v772, %v2056
      %v2061 = vmul.f32 %v773, %v2056
      %v2062 = vmul.f32 %v774, %v2056
      %v2063 = vmul.f32 %v775, %v2056
      %v2064 = vmul.f32 %v776, %v2056
      %v2065 = vmul.f32 %v777, %v2056
      %v2066 = vmul.f32 %v778, %v2056
      %v2067 = vmul.f32 %v779, %v2056
      %v2068 = vmul.f32 %v780, %v2056
      %v2069 = vmul.f32 %v781, %v2056
      %v2070 = vmul.f32 %v782, %v2056
      %v2071 = vmul.f32 %v783, %v2056
      %v2072 = vmul.f32 %v784, %v2056
      %v2073 = vmul.f32 %v785, %v2056
      %v2074 = vmul.f32 %v786, %v2056
      %v2075 = vmul.f32 %v787, %v2056
      %v2076 = vmul.f32 %v788, %v2056
      %v2077 = vmul.f32 %v789, %v2056
      %v2078 = vmul.f32 %v790, %v2056
      %v2079 = vmul.f32 %v791, %v2056
      %v2080 = vmul.f32 %v792, %v2056
      %v2081 = vmul.f32 %v793, %v2056
      %v2082 = vmul.f32 %v794, %v2056
      %v2083 = vmul.f32 %v795, %v2056
      %v2084 = vmul.f32 %v796, %v2056
      %v2085 = vmul.f32 %v797, %v2056
      %v2086 = vmul.f32 %v798, %v2056
      %v2087 = vmul.f32 %v799, %v2056
      %v2088 = vadd.f32 %v2022, %v2058
      %v2089 = vadd.f32 %v2023, %v2059
      %v2090 = vadd.f32 %v2024, %v2060
      %v2091 = vadd.f32 %v2025, %v2061
      %v2092 = vadd.f32 %v2026, %v2062
      %v2093 = vadd.f32 %v2027, %v2063
      %v2094 = vadd.f32 %v2028, %v2064
      %v2095 = vadd.f32 %v2029, %v2065
      %v2096 = vadd.f32 %v2030, %v2066
      %v2097 = vadd.f32 %v2031, %v2067
      %v2098 = vadd.f32 %v2032, %v2068
      %v2099 = vadd.f32 %v2033, %v2069
      %v2100 = vadd.f32 %v2034, %v2070
      %v2101 = vadd.f32 %v2035, %v2071
      %v2102 = vadd.f32 %v2036, %v2072
      %v2103 = vadd.f32 %v2037, %v2073
      %v2104 = vadd.f32 %v2038, %v2074
      %v2105 = vadd.f32 %v2039, %v2075
      %v2106 = vadd.f32 %v2040, %v2076
      %v2107 = vadd.f32 %v2041, %v2077
      %v2108 = vadd.f32 %v2042, %v2078
      %v2109 = vadd.f32 %v2043, %v2079
      %v2110 = vadd.f32 %v2044, %v2080
      %v2111 = vadd.f32 %v2045, %v2081
      %v2112 = vadd.f32 %v2046, %v2082
      %v2113 = vadd.f32 %v2047, %v2083
      %v2114 = vadd.f32 %v2048, %v2084
      %v2115 = vadd.f32 %v2049, %v2085
      %v2116 = vadd.f32 %v2050, %v2086
      %v2117 = vadd.f32 %v2051, %v2087
      %v2118 = vld [vmem:[%s1859 + $0x7] sm:$0xff]
      %v2119 = vld [vmem:[%s1859 + $0xf] sm:$0xff]
      %v2120 = vld [vmem:[%s1859 + $0x17] sm:$0x3]
      %v2121 = vld [vmem:[%s1859 + $0x27] sm:$0xff]
      %v2122 = vld [vmem:[%s1859 + $0x2f] sm:$0xff]
      %v2123 = vld [vmem:[%s1859 + $0x37] sm:$0x3]
      %v2124 = vld [vmem:[%s1859 + $0x47] sm:$0xff]
      %v2125 = vld [vmem:[%s1859 + $0x4f] sm:$0xff]
      %v2126 = vld [vmem:[%s1859 + $0x57] sm:$0x3]
      %v2127 = vld [vmem:[%s1859 + $0x67] sm:$0xff]
      %v2128 = vld [vmem:[%s1859 + $0x6f] sm:$0xff]
      %v2129 = vld [vmem:[%s1859 + $0x77] sm:$0x3]
      %v2130 = vld [vmem:[%s1859 + $0x87] sm:$0xff]
      %v2131 = vld [vmem:[%s1859 + $0x8f] sm:$0xff]
      %v2132 = vld [vmem:[%s1859 + $0x97] sm:$0x3]
      %v2133 = vld [vmem:[%s1859 + $0xa7] sm:$0xff]
      %v2134 = vld [vmem:[%s1859 + $0xaf] sm:$0xff]
      %v2135 = vld [vmem:[%s1859 + $0xb7] sm:$0x3]
      %v2136 = vld [vmem:[%s1859 + $0xc7] sm:$0xff]
      %v2137 = vld [vmem:[%s1859 + $0xcf] sm:$0xff]
      %v2138 = vld [vmem:[%s1859 + $0xd7] sm:$0x3]
      %v2139 = vld [vmem:[%s1859 + $0xe7] sm:$0xff]
      %v2140 = vld [vmem:[%s1859 + $0xef] sm:$0xff]
      %v2141 = vld [vmem:[%s1859 + $0xf7] sm:$0x3]
      %v2142 = vld [vmem:[%s1859 + $0x107] sm:$0xff]
      %v2143 = vld [vmem:[%s1859 + $0x10f] sm:$0xff]
      %v2144 = vld [vmem:[%s1859 + $0x117] sm:$0x3]
      %v2145 = vld [vmem:[%s1859 + $0x127] sm:$0xff]
      %v2146 = vld [vmem:[%s1859 + $0x12f] sm:$0xff]
      %v2147 = vld [vmem:[%s1859 + $0x137] sm:$0x3]
      %v2149 = vlaneseq
      %v2150 = vshrl.u32 %v2149, 7
      %v2151 = vsub.s32 0, %v2150
      %v2152 = vrot.slane %v758, %v2151
      %v2154 = vmul.f32 %v2118, %v2152
      %v2155 = vmul.f32 %v2119, %v2152
      %v2156 = vmul.f32 %v2120, %v2152
      %v2157 = vmul.f32 %v2121, %v2152
      %v2158 = vmul.f32 %v2122, %v2152
      %v2159 = vmul.f32 %v2123, %v2152
      %v2160 = vmul.f32 %v2124, %v2152
      %v2161 = vmul.f32 %v2125, %v2152
      %v2162 = vmul.f32 %v2126, %v2152
      %v2163 = vmul.f32 %v2127, %v2152
      %v2164 = vmul.f32 %v2128, %v2152
      %v2165 = vmul.f32 %v2129, %v2152
      %v2166 = vmul.f32 %v2130, %v2152
      %v2167 = vmul.f32 %v2131, %v2152
      %v2168 = vmul.f32 %v2132, %v2152
      %v2169 = vmul.f32 %v2133, %v2152
      %v2170 = vmul.f32 %v2134, %v2152
      %v2171 = vmul.f32 %v2135, %v2152
      %v2172 = vmul.f32 %v2136, %v2152
      %v2173 = vmul.f32 %v2137, %v2152
      %v2174 = vmul.f32 %v2138, %v2152
      %v2175 = vmul.f32 %v2139, %v2152
      %v2176 = vmul.f32 %v2140, %v2152
      %v2177 = vmul.f32 %v2141, %v2152
      %v2178 = vmul.f32 %v2142, %v2152
      %v2179 = vmul.f32 %v2143, %v2152
      %v2180 = vmul.f32 %v2144, %v2152
      %v2181 = vmul.f32 %v2145, %v2152
      %v2182 = vmul.f32 %v2146, %v2152
      %v2183 = vmul.f32 %v2147, %v2152
      %v2184 = vadd.f32 %v2088, %v2154
      %v2185 = vadd.f32 %v2089, %v2155
      %v2186 = vadd.f32 %v2090, %v2156
      %v2187 = vadd.f32 %v2091, %v2157
      %v2188 = vadd.f32 %v2092, %v2158
      %v2189 = vadd.f32 %v2093, %v2159
      %v2190 = vadd.f32 %v2094, %v2160
      %v2191 = vadd.f32 %v2095, %v2161
      %v2192 = vadd.f32 %v2096, %v2162
      %v2193 = vadd.f32 %v2097, %v2163
      %v2194 = vadd.f32 %v2098, %v2164
      %v2195 = vadd.f32 %v2099, %v2165
      %v2196 = vadd.f32 %v2100, %v2166
      %v2197 = vadd.f32 %v2101, %v2167
      %v2198 = vadd.f32 %v2102, %v2168
      %v2199 = vadd.f32 %v2103, %v2169
      %v2200 = vadd.f32 %v2104, %v2170
      %v2201 = vadd.f32 %v2105, %v2171
      %v2202 = vadd.f32 %v2106, %v2172
      %v2203 = vadd.f32 %v2107, %v2173
      %v2204 = vadd.f32 %v2108, %v2174
      %v2205 = vadd.f32 %v2109, %v2175
      %v2206 = vadd.f32 %v2110, %v2176
      %v2207 = vadd.f32 %v2111, %v2177
      %v2208 = vadd.f32 %v2112, %v2178
      %v2209 = vadd.f32 %v2113, %v2179
      %v2210 = vadd.f32 %v2114, %v2180
      %v2211 = vadd.f32 %v2115, %v2181
      %v2212 = vadd.f32 %v2116, %v2182
      %v2213 = vadd.f32 %v2117, %v2183
      %v2214 = vld [vmem:[%s1666 + $0x13] sm:$0xff]
      %v2215 = vld [vmem:[%s1666 + $0x1b] sm:$0x3]
      %v2216 = vld [vmem:[%s1666 + $0x33] sm:$0xff]
      %v2217 = vld [vmem:[%s1666 + $0x3b] sm:$0x3]
      %v2218 = vld [vmem:[%s1666 + $0x53] sm:$0xff]
      %v2219 = vld [vmem:[%s1666 + $0x5b] sm:$0x3]
      %v2220 = vld [vmem:[%s1666 + $0x73] sm:$0xff]
      %v2221 = vld [vmem:[%s1666 + $0x7b] sm:$0x3]
      %v2222 = vld [vmem:[%s1666 + $0x93] sm:$0xff]
      %v2223 = vld [vmem:[%s1666 + $0x9b] sm:$0x3]
      %v2224 = vld [vmem:[%s1666 + $0xb3] sm:$0xff]
      %v2225 = vld [vmem:[%s1666 + $0xbb] sm:$0x3]
      %v2226 = vld [vmem:[%s1666 + $0xd3] sm:$0xff]
      %v2227 = vld [vmem:[%s1666 + $0xdb] sm:$0x3]
      %v2228 = vld [vmem:[%s1666 + $0xf3] sm:$0xff]
      %v2229 = vld [vmem:[%s1666 + $0xfb] sm:$0x3]
      %v2230 = vld [vmem:[%s1666 + $0x113] sm:$0xff]
      %v2231 = vld [vmem:[%s1666 + $0x11b] sm:$0x3]
      %v2232 = vld [vmem:[%s1666 + $0x133] sm:$0xff]
      %v2233 = vld [vmem:[%s1666 + $0x13b] sm:$0x3]
      %v2235 = vlaneseq
      %v2236 = vshrl.u32 %v2235, 7
      %v2237 = vsub.s32 0, %v2236
      %v2238 = vrot.slane %v753, %v2237
      %v2240 = vmul.f32 %v1668, %v2238
      %v2241 = vmul.f32 %v2214, %v2238
      %v2242 = vmul.f32 %v2215, %v2238
      %v2243 = vmul.f32 %v1671, %v2238
      %v2244 = vmul.f32 %v2216, %v2238
      %v2245 = vmul.f32 %v2217, %v2238
      %v2246 = vmul.f32 %v1674, %v2238
      %v2247 = vmul.f32 %v2218, %v2238
      %v2248 = vmul.f32 %v2219, %v2238
      %v2249 = vmul.f32 %v1677, %v2238
      %v2250 = vmul.f32 %v2220, %v2238
      %v2251 = vmul.f32 %v2221, %v2238
      %v2252 = vmul.f32 %v1680, %v2238
      %v2253 = vmul.f32 %v2222, %v2238
      %v2254 = vmul.f32 %v2223, %v2238
      %v2255 = vmul.f32 %v1683, %v2238
      %v2256 = vmul.f32 %v2224, %v2238
      %v2257 = vmul.f32 %v2225, %v2238
      %v2258 = vmul.f32 %v1686, %v2238
      %v2259 = vmul.f32 %v2226, %v2238
      %v2260 = vmul.f32 %v2227, %v2238
      %v2261 = vmul.f32 %v1689, %v2238
      %v2262 = vmul.f32 %v2228, %v2238
      %v2263 = vmul.f32 %v2229, %v2238
      %v2264 = vmul.f32 %v1692, %v2238
      %v2265 = vmul.f32 %v2230, %v2238
      %v2266 = vmul.f32 %v2231, %v2238
      %v2267 = vmul.f32 %v1695, %v2238
      %v2268 = vmul.f32 %v2232, %v2238
      %v2269 = vmul.f32 %v2233, %v2238
      %v2270 = vadd.f32 %v2184, %v2240
      %v2271 = vadd.f32 %v2185, %v2241
      %v2272 = vadd.f32 %v2186, %v2242
      %v2273 = vadd.f32 %v2187, %v2243
      %v2274 = vadd.f32 %v2188, %v2244
      %v2275 = vadd.f32 %v2189, %v2245
      %v2276 = vadd.f32 %v2190, %v2246
      %v2277 = vadd.f32 %v2191, %v2247
      %v2278 = vadd.f32 %v2192, %v2248
      %v2279 = vadd.f32 %v2193, %v2249
      %v2280 = vadd.f32 %v2194, %v2250
      %v2281 = vadd.f32 %v2195, %v2251
      %v2282 = vadd.f32 %v2196, %v2252
      %v2283 = vadd.f32 %v2197, %v2253
      %v2284 = vadd.f32 %v2198, %v2254
      %v2285 = vadd.f32 %v2199, %v2255
      %v2286 = vadd.f32 %v2200, %v2256
      %v2287 = vadd.f32 %v2201, %v2257
      %v2288 = vadd.f32 %v2202, %v2258
      %v2289 = vadd.f32 %v2203, %v2259
      %v2290 = vadd.f32 %v2204, %v2260
      %v2291 = vadd.f32 %v2205, %v2261
      %v2292 = vadd.f32 %v2206, %v2262
      %v2293 = vadd.f32 %v2207, %v2263
      %v2294 = vadd.f32 %v2208, %v2264
      %v2295 = vadd.f32 %v2209, %v2265
      %v2296 = vadd.f32 %v2210, %v2266
      %v2297 = vadd.f32 %v2211, %v2267
      %v2298 = vadd.f32 %v2212, %v2268
      %v2299 = vadd.f32 %v2213, %v2269
      %v2300 = vld [vmem:[%s769 + $0x13] sm:$0xff]
      %v2301 = vld [vmem:[%s769 + $0x1b] sm:$0x3]
      %v2302 = vld [vmem:[%s769 + $0x33] sm:$0xff]
      %v2303 = vld [vmem:[%s769 + $0x3b] sm:$0x3]
      %v2304 = vld [vmem:[%s769 + $0x53] sm:$0xff]
      %v2305 = vld [vmem:[%s769 + $0x5b] sm:$0x3]
      %v2306 = vld [vmem:[%s769 + $0x73] sm:$0xff]
      %v2307 = vld [vmem:[%s769 + $0x7b] sm:$0x3]
      %v2308 = vld [vmem:[%s769 + $0x93] sm:$0xff]
      %v2309 = vld [vmem:[%s769 + $0x9b] sm:$0x3]
      %v2310 = vld [vmem:[%s769 + $0xb3] sm:$0xff]
      %v2311 = vld [vmem:[%s769 + $0xbb] sm:$0x3]
      %v2312 = vld [vmem:[%s769 + $0xd3] sm:$0xff]
      %v2313 = vld [vmem:[%s769 + $0xdb] sm:$0x3]
      %v2314 = vld [vmem:[%s769 + $0xf3] sm:$0xff]
      %v2315 = vld [vmem:[%s769 + $0xfb] sm:$0x3]
      %v2316 = vld [vmem:[%s769 + $0x113] sm:$0xff]
      %v2317 = vld [vmem:[%s769 + $0x11b] sm:$0x3]
      %v2318 = vld [vmem:[%s769 + $0x133] sm:$0xff]
      %v2319 = vld [vmem:[%s769 + $0x13b] sm:$0x3]
      %v2321 = vlaneseq
      %v2322 = vshrl.u32 %v2321, 7
      %v2323 = vsub.s32 0, %v2322
      %v2324 = vrot.slane %v756, %v2323
      %v2326 = vmul.f32 %v1764, %v2324
      %v2327 = vmul.f32 %v2300, %v2324
      %v2328 = vmul.f32 %v2301, %v2324
      %v2329 = vmul.f32 %v1767, %v2324
      %v2330 = vmul.f32 %v2302, %v2324
      %v2331 = vmul.f32 %v2303, %v2324
      %v2332 = vmul.f32 %v1770, %v2324
      %v2333 = vmul.f32 %v2304, %v2324
      %v2334 = vmul.f32 %v2305, %v2324
      %v2335 = vmul.f32 %v1773, %v2324
      %v2336 = vmul.f32 %v2306, %v2324
      %v2337 = vmul.f32 %v2307, %v2324
      %v2338 = vmul.f32 %v1776, %v2324
      %v2339 = vmul.f32 %v2308, %v2324
      %v2340 = vmul.f32 %v2309, %v2324
      %v2341 = vmul.f32 %v1779, %v2324
      %v2342 = vmul.f32 %v2310, %v2324
      %v2343 = vmul.f32 %v2311, %v2324
      %v2344 = vmul.f32 %v1782, %v2324
      %v2345 = vmul.f32 %v2312, %v2324
      %v2346 = vmul.f32 %v2313, %v2324
      %v2347 = vmul.f32 %v1785, %v2324
      %v2348 = vmul.f32 %v2314, %v2324
      %v2349 = vmul.f32 %v2315, %v2324
      %v2350 = vmul.f32 %v1788, %v2324
      %v2351 = vmul.f32 %v2316, %v2324
      %v2352 = vmul.f32 %v2317, %v2324
      %v2353 = vmul.f32 %v1791, %v2324
      %v2354 = vmul.f32 %v2318, %v2324
      %v2355 = vmul.f32 %v2319, %v2324
      %v2356 = vadd.f32 %v2270, %v2326
      %v2357 = vadd.f32 %v2271, %v2327
      %v2358 = vadd.f32 %v2272, %v2328
      %v2359 = vadd.f32 %v2273, %v2329
      %v2360 = vadd.f32 %v2274, %v2330
      %v2361 = vadd.f32 %v2275, %v2331
      %v2362 = vadd.f32 %v2276, %v2332
      %v2363 = vadd.f32 %v2277, %v2333
      %v2364 = vadd.f32 %v2278, %v2334
      %v2365 = vadd.f32 %v2279, %v2335
      %v2366 = vadd.f32 %v2280, %v2336
      %v2367 = vadd.f32 %v2281, %v2337
      %v2368 = vadd.f32 %v2282, %v2338
      %v2369 = vadd.f32 %v2283, %v2339
      %v2370 = vadd.f32 %v2284, %v2340
      %v2371 = vadd.f32 %v2285, %v2341
      %v2372 = vadd.f32 %v2286, %v2342
      %v2373 = vadd.f32 %v2287, %v2343
      %v2374 = vadd.f32 %v2288, %v2344
      %v2375 = vadd.f32 %v2289, %v2345
      %v2376 = vadd.f32 %v2290, %v2346
      %v2377 = vadd.f32 %v2291, %v2347
      %v2378 = vadd.f32 %v2292, %v2348
      %v2379 = vadd.f32 %v2293, %v2349
      %v2380 = vadd.f32 %v2294, %v2350
      %v2381 = vadd.f32 %v2295, %v2351
      %v2382 = vadd.f32 %v2296, %v2352
      %v2383 = vadd.f32 %v2297, %v2353
      %v2384 = vadd.f32 %v2298, %v2354
      %v2385 = vadd.f32 %v2299, %v2355
      %v2386 = vld [vmem:[%s1859 + $0x13] sm:$0xff]
      %v2387 = vld [vmem:[%s1859 + $0x1b] sm:$0x3]
      %v2388 = vld [vmem:[%s1859 + $0x33] sm:$0xff]
      %v2389 = vld [vmem:[%s1859 + $0x3b] sm:$0x3]
      %v2390 = vld [vmem:[%s1859 + $0x53] sm:$0xff]
      %v2391 = vld [vmem:[%s1859 + $0x5b] sm:$0x3]
      %v2392 = vld [vmem:[%s1859 + $0x73] sm:$0xff]
      %v2393 = vld [vmem:[%s1859 + $0x7b] sm:$0x3]
      %v2394 = vld [vmem:[%s1859 + $0x93] sm:$0xff]
      %v2395 = vld [vmem:[%s1859 + $0x9b] sm:$0x3]
      %v2396 = vld [vmem:[%s1859 + $0xb3] sm:$0xff]
      %v2397 = vld [vmem:[%s1859 + $0xbb] sm:$0x3]
      %v2398 = vld [vmem:[%s1859 + $0xd3] sm:$0xff]
      %v2399 = vld [vmem:[%s1859 + $0xdb] sm:$0x3]
      %v2400 = vld [vmem:[%s1859 + $0xf3] sm:$0xff]
      %v2401 = vld [vmem:[%s1859 + $0xfb] sm:$0x3]
      %v2402 = vld [vmem:[%s1859 + $0x113] sm:$0xff]
      %v2403 = vld [vmem:[%s1859 + $0x11b] sm:$0x3]
      %v2404 = vld [vmem:[%s1859 + $0x133] sm:$0xff]
      %v2405 = vld [vmem:[%s1859 + $0x13b] sm:$0x3]
      %v2407 = vlaneseq
      %v2408 = vshrl.u32 %v2407, 7
      %v2409 = vsub.s32 0, %v2408
      %v2410 = vrot.slane %v759, %v2409
      %v2412 = vmul.f32 %v1861, %v2410
      %v2413 = vmul.f32 %v2386, %v2410
      %v2414 = vmul.f32 %v2387, %v2410
      %v2415 = vmul.f32 %v1864, %v2410
      %v2416 = vmul.f32 %v2388, %v2410
      %v2417 = vmul.f32 %v2389, %v2410
      %v2418 = vmul.f32 %v1867, %v2410
      %v2419 = vmul.f32 %v2390, %v2410
      %v2420 = vmul.f32 %v2391, %v2410
      %v2421 = vmul.f32 %v1870, %v2410
      %v2422 = vmul.f32 %v2392, %v2410
      %v2423 = vmul.f32 %v2393, %v2410
      %v2424 = vmul.f32 %v1873, %v2410
      %v2425 = vmul.f32 %v2394, %v2410
      %v2426 = vmul.f32 %v2395, %v2410
      %v2427 = vmul.f32 %v1876, %v2410
      %v2428 = vmul.f32 %v2396, %v2410
      %v2429 = vmul.f32 %v2397, %v2410
      %v2430 = vmul.f32 %v1879, %v2410
      %v2431 = vmul.f32 %v2398, %v2410
      %v2432 = vmul.f32 %v2399, %v2410
      %v2433 = vmul.f32 %v1882, %v2410
      %v2434 = vmul.f32 %v2400, %v2410
      %v2435 = vmul.f32 %v2401, %v2410
      %v2436 = vmul.f32 %v1885, %v2410
      %v2437 = vmul.f32 %v2402, %v2410
      %v2438 = vmul.f32 %v2403, %v2410
      %v2439 = vmul.f32 %v1888, %v2410
      %v2440 = vmul.f32 %v2404, %v2410
      %v2441 = vmul.f32 %v2405, %v2410
      %v2442 = vadd.f32 %v2356, %v2412
      %v2443 = vadd.f32 %v2357, %v2413
      %v2444 = vadd.f32 %v2358, %v2414
      %v2445 = vadd.f32 %v2359, %v2415
      %v2446 = vadd.f32 %v2360, %v2416
      %v2447 = vadd.f32 %v2361, %v2417
      %v2448 = vadd.f32 %v2362, %v2418
      %v2449 = vadd.f32 %v2363, %v2419
      %v2450 = vadd.f32 %v2364, %v2420
      %v2451 = vadd.f32 %v2365, %v2421
      %v2452 = vadd.f32 %v2366, %v2422
      %v2453 = vadd.f32 %v2367, %v2423
      %v2454 = vadd.f32 %v2368, %v2424
      %v2455 = vadd.f32 %v2369, %v2425
      %v2456 = vadd.f32 %v2370, %v2426
      %v2457 = vadd.f32 %v2371, %v2427
      %v2458 = vadd.f32 %v2372, %v2428
      %v2459 = vadd.f32 %v2373, %v2429
      %v2460 = vadd.f32 %v2374, %v2430
      %v2461 = vadd.f32 %v2375, %v2431
      %v2462 = vadd.f32 %v2376, %v2432
      %v2463 = vadd.f32 %v2377, %v2433
      %v2464 = vadd.f32 %v2378, %v2434
      %v2465 = vadd.f32 %v2379, %v2435
      %v2466 = vadd.f32 %v2380, %v2436
      %v2467 = vadd.f32 %v2381, %v2437
      %v2468 = vadd.f32 %v2382, %v2438
      %v2469 = vadd.f32 %v2383, %v2439
      %v2470 = vadd.f32 %v2384, %v2440
      %v2471 = vadd.f32 %v2385, %v2441
      %s2472 = scalar_lea.vmem [#allocation2], 32
      %v2473 = vld [vmem:[%s2472 + $0x1] sm:$0xff]
      %v2474 = vld [vmem:[%s2472 + $0x9] sm:$0xff]
      %v2475 = vld [vmem:[%s2472 + $0x11] sm:$0x3]
      %v2476 = vld [vmem:[%s2472 + $0x21] sm:$0xff]
      %v2477 = vld [vmem:[%s2472 + $0x29] sm:$0xff]
      %v2478 = vld [vmem:[%s2472 + $0x31] sm:$0x3]
      %v2479 = vld [vmem:[%s2472 + $0x41] sm:$0xff]
      %v2480 = vld [vmem:[%s2472 + $0x49] sm:$0xff]
      %v2481 = vld [vmem:[%s2472 + $0x51] sm:$0x3]
      %v2482 = vld [vmem:[%s2472 + $0x61] sm:$0xff]
      %v2483 = vld [vmem:[%s2472 + $0x69] sm:$0xff]
      %v2484 = vld [vmem:[%s2472 + $0x71] sm:$0x3]
      %v2485 = vld [vmem:[%s2472 + $0x81] sm:$0xff]
      %v2486 = vld [vmem:[%s2472 + $0x89] sm:$0xff]
      %v2487 = vld [vmem:[%s2472 + $0x91] sm:$0x3]
      %v2488 = vld [vmem:[%s2472 + $0xa1] sm:$0xff]
      %v2489 = vld [vmem:[%s2472 + $0xa9] sm:$0xff]
      %v2490 = vld [vmem:[%s2472 + $0xb1] sm:$0x3]
      %v2491 = vld [vmem:[%s2472 + $0xc1] sm:$0xff]
      %v2492 = vld [vmem:[%s2472 + $0xc9] sm:$0xff]
      %v2493 = vld [vmem:[%s2472 + $0xd1] sm:$0x3]
      %v2494 = vld [vmem:[%s2472 + $0xe1] sm:$0xff]
      %v2495 = vld [vmem:[%s2472 + $0xe9] sm:$0xff]
      %v2496 = vld [vmem:[%s2472 + $0xf1] sm:$0x3]
      %v2497 = vld [vmem:[%s2472 + $0x101] sm:$0xff]
      %v2498 = vld [vmem:[%s2472 + $0x109] sm:$0xff]
      %v2499 = vld [vmem:[%s2472 + $0x111] sm:$0x3]
      %v2500 = vld [vmem:[%s2472 + $0x121] sm:$0xff]
      %v2501 = vld [vmem:[%s2472 + $0x129] sm:$0xff]
      %v2502 = vld [vmem:[%s2472 + $0x131] sm:$0x3]
      %v2504 = vlaneseq
      %v2505 = vshrl.u32 %v2504, 7
      %v2506 = vsub.s32 0, %v2505
      %v2507 = vrot.slane %v760, %v2506
      %v2509 = vmul.f32 %v2473, %v2507
      %v2510 = vmul.f32 %v2474, %v2507
      %v2511 = vmul.f32 %v2475, %v2507
      %v2512 = vmul.f32 %v2476, %v2507
      %v2513 = vmul.f32 %v2477, %v2507
      %v2514 = vmul.f32 %v2478, %v2507
      %v2515 = vmul.f32 %v2479, %v2507
      %v2516 = vmul.f32 %v2480, %v2507
      %v2517 = vmul.f32 %v2481, %v2507
      %v2518 = vmul.f32 %v2482, %v2507
      %v2519 = vmul.f32 %v2483, %v2507
      %v2520 = vmul.f32 %v2484, %v2507
      %v2521 = vmul.f32 %v2485, %v2507
      %v2522 = vmul.f32 %v2486, %v2507
      %v2523 = vmul.f32 %v2487, %v2507
      %v2524 = vmul.f32 %v2488, %v2507
      %v2525 = vmul.f32 %v2489, %v2507
      %v2526 = vmul.f32 %v2490, %v2507
      %v2527 = vmul.f32 %v2491, %v2507
      %v2528 = vmul.f32 %v2492, %v2507
      %v2529 = vmul.f32 %v2493, %v2507
      %v2530 = vmul.f32 %v2494, %v2507
      %v2531 = vmul.f32 %v2495, %v2507
      %v2532 = vmul.f32 %v2496, %v2507
      %v2533 = vmul.f32 %v2497, %v2507
      %v2534 = vmul.f32 %v2498, %v2507
      %v2535 = vmul.f32 %v2499, %v2507
      %v2536 = vmul.f32 %v2500, %v2507
      %v2537 = vmul.f32 %v2501, %v2507
      %v2538 = vmul.f32 %v2502, %v2507
      %v2539 = vadd.f32 %v2442, %v2509
      %v2540 = vadd.f32 %v2443, %v2510
      %v2541 = vadd.f32 %v2444, %v2511
      %v2542 = vadd.f32 %v2445, %v2512
      %v2543 = vadd.f32 %v2446, %v2513
      %v2544 = vadd.f32 %v2447, %v2514
      %v2545 = vadd.f32 %v2448, %v2515
      %v2546 = vadd.f32 %v2449, %v2516
      %v2547 = vadd.f32 %v2450, %v2517
      %v2548 = vadd.f32 %v2451, %v2518
      %v2549 = vadd.f32 %v2452, %v2519
      %v2550 = vadd.f32 %v2453, %v2520
      %v2551 = vadd.f32 %v2454, %v2521
      %v2552 = vadd.f32 %v2455, %v2522
      %v2553 = vadd.f32 %v2456, %v2523
      %v2554 = vadd.f32 %v2457, %v2524
      %v2555 = vadd.f32 %v2458, %v2525
      %v2556 = vadd.f32 %v2459, %v2526
      %v2557 = vadd.f32 %v2460, %v2527
      %v2558 = vadd.f32 %v2461, %v2528
      %v2559 = vadd.f32 %v2462, %v2529
      %v2560 = vadd.f32 %v2463, %v2530
      %v2561 = vadd.f32 %v2464, %v2531
      %v2562 = vadd.f32 %v2465, %v2532
      %v2563 = vadd.f32 %v2466, %v2533
      %v2564 = vadd.f32 %v2467, %v2534
      %v2565 = vadd.f32 %v2468, %v2535
      %v2566 = vadd.f32 %v2469, %v2536
      %v2567 = vadd.f32 %v2470, %v2537
      %v2568 = vadd.f32 %v2471, %v2538
      %v2569 = vld [vmem:[%s769 + $0x1] sm:$0xff]
      %v2570 = vld [vmem:[%s769 + $0x11] sm:$0x3]
      %v2571 = vld [vmem:[%s769 + $0x21] sm:$0xff]
      %v2572 = vld [vmem:[%s769 + $0x31] sm:$0x3]
      %v2573 = vld [vmem:[%s769 + $0x41] sm:$0xff]
      %v2574 = vld [vmem:[%s769 + $0x51] sm:$0x3]
      %v2575 = vld [vmem:[%s769 + $0x61] sm:$0xff]
      %v2576 = vld [vmem:[%s769 + $0x71] sm:$0x3]
      %v2577 = vld [vmem:[%s769 + $0x81] sm:$0xff]
      %v2578 = vld [vmem:[%s769 + $0x91] sm:$0x3]
      %v2579 = vld [vmem:[%s769 + $0xa1] sm:$0xff]
      %v2580 = vld [vmem:[%s769 + $0xb1] sm:$0x3]
      %v2581 = vld [vmem:[%s769 + $0xc1] sm:$0xff]
      %v2582 = vld [vmem:[%s769 + $0xd1] sm:$0x3]
      %v2583 = vld [vmem:[%s769 + $0xe1] sm:$0xff]
      %v2584 = vld [vmem:[%s769 + $0xf1] sm:$0x3]
      %v2585 = vld [vmem:[%s769 + $0x101] sm:$0xff]
      %v2586 = vld [vmem:[%s769 + $0x111] sm:$0x3]
      %v2587 = vld [vmem:[%s769 + $0x121] sm:$0xff]
      %v2588 = vld [vmem:[%s769 + $0x131] sm:$0x3]
      %v2590 = vlaneseq
      %v2591 = vshrl.u32 %v2590, 7
      %v2592 = vsub.s32 0, %v2591
      %v2593 = vrot.slane %v763, %v2592
      %v2595 = vmul.f32 %v2569, %v2593
      %v2596 = vmul.f32 %v1474, %v2593
      %v2597 = vmul.f32 %v2570, %v2593
      %v2598 = vmul.f32 %v2571, %v2593
      %v2599 = vmul.f32 %v1477, %v2593
      %v2600 = vmul.f32 %v2572, %v2593
      %v2601 = vmul.f32 %v2573, %v2593
      %v2602 = vmul.f32 %v1480, %v2593
      %v2603 = vmul.f32 %v2574, %v2593
      %v2604 = vmul.f32 %v2575, %v2593
      %v2605 = vmul.f32 %v1483, %v2593
      %v2606 = vmul.f32 %v2576, %v2593
      %v2607 = vmul.f32 %v2577, %v2593
      %v2608 = vmul.f32 %v1486, %v2593
      %v2609 = vmul.f32 %v2578, %v2593
      %v2610 = vmul.f32 %v2579, %v2593
      %v2611 = vmul.f32 %v1489, %v2593
      %v2612 = vmul.f32 %v2580, %v2593
      %v2613 = vmul.f32 %v2581, %v2593
      %v2614 = vmul.f32 %v1492, %v2593
      %v2615 = vmul.f32 %v2582, %v2593
      %v2616 = vmul.f32 %v2583, %v2593
      %v2617 = vmul.f32 %v1495, %v2593
      %v2618 = vmul.f32 %v2584, %v2593
      %v2619 = vmul.f32 %v2585, %v2593
      %v2620 = vmul.f32 %v1498, %v2593
      %v2621 = vmul.f32 %v2586, %v2593
      %v2622 = vmul.f32 %v2587, %v2593
      %v2623 = vmul.f32 %v1501, %v2593
      %v2624 = vmul.f32 %v2588, %v2593
      %v2625 = vadd.f32 %v2539, %v2595
      %v2626 = vadd.f32 %v2540, %v2596
      %v2627 = vadd.f32 %v2541, %v2597
      %v2628 = vadd.f32 %v2542, %v2598
      %v2629 = vadd.f32 %v2543, %v2599
      %v2630 = vadd.f32 %v2544, %v2600
      %v2631 = vadd.f32 %v2545, %v2601
      %v2632 = vadd.f32 %v2546, %v2602
      %v2633 = vadd.f32 %v2547, %v2603
      %v2634 = vadd.f32 %v2548, %v2604
      %v2635 = vadd.f32 %v2549, %v2605
      %v2636 = vadd.f32 %v2550, %v2606
      %v2637 = vadd.f32 %v2551, %v2607
      %v2638 = vadd.f32 %v2552, %v2608
      %v2639 = vadd.f32 %v2553, %v2609
      %v2640 = vadd.f32 %v2554, %v2610
      %v2641 = vadd.f32 %v2555, %v2611
      %v2642 = vadd.f32 %v2556, %v2612
      %v2643 = vadd.f32 %v2557, %v2613
      %v2644 = vadd.f32 %v2558, %v2614
      %v2645 = vadd.f32 %v2559, %v2615
      %v2646 = vadd.f32 %v2560, %v2616
      %v2647 = vadd.f32 %v2561, %v2617
      %v2648 = vadd.f32 %v2562, %v2618
      %v2649 = vadd.f32 %v2563, %v2619
      %v2650 = vadd.f32 %v2564, %v2620
      %v2651 = vadd.f32 %v2565, %v2621
      %v2652 = vadd.f32 %v2566, %v2622
      %v2653 = vadd.f32 %v2567, %v2623
      %v2654 = vadd.f32 %v2568, %v2624
      %s2655 = scalar_lea.vmem [#allocation2], 416
      %v2656 = vld [vmem:[%s2655 + $0x1] sm:$0xff]
      %v2657 = vld [vmem:[%s2655 + $0x9] sm:$0xff]
      %v2658 = vld [vmem:[%s2655 + $0x11] sm:$0x3]
      %v2659 = vld [vmem:[%s2655 + $0x21] sm:$0xff]
      %v2660 = vld [vmem:[%s2655 + $0x29] sm:$0xff]
      %v2661 = vld [vmem:[%s2655 + $0x31] sm:$0x3]
      %v2662 = vld [vmem:[%s2655 + $0x41] sm:$0xff]
      %v2663 = vld [vmem:[%s2655 + $0x49] sm:$0xff]
      %v2664 = vld [vmem:[%s2655 + $0x51] sm:$0x3]
      %v2665 = vld [vmem:[%s2655 + $0x61] sm:$0xff]
      %v2666 = vld [vmem:[%s2655 + $0x69] sm:$0xff]
      %v2667 = vld [vmem:[%s2655 + $0x71] sm:$0x3]
      %v2668 = vld [vmem:[%s2655 + $0x81] sm:$0xff]
      %v2669 = vld [vmem:[%s2655 + $0x89] sm:$0xff]
      %v2670 = vld [vmem:[%s2655 + $0x91] sm:$0x3]
      %v2671 = vld [vmem:[%s2655 + $0xa1] sm:$0xff]
      %v2672 = vld [vmem:[%s2655 + $0xa9] sm:$0xff]
      %v2673 = vld [vmem:[%s2655 + $0xb1] sm:$0x3]
      %v2674 = vld [vmem:[%s2655 + $0xc1] sm:$0xff]
      %v2675 = vld [vmem:[%s2655 + $0xc9] sm:$0xff]
      %v2676 = vld [vmem:[%s2655 + $0xd1] sm:$0x3]
      %v2677 = vld [vmem:[%s2655 + $0xe1] sm:$0xff]
      %v2678 = vld [vmem:[%s2655 + $0xe9] sm:$0xff]
      %v2679 = vld [vmem:[%s2655 + $0xf1] sm:$0x3]
      %v2680 = vld [vmem:[%s2655 + $0x101] sm:$0xff]
      %v2681 = vld [vmem:[%s2655 + $0x109] sm:$0xff]
      %v2682 = vld [vmem:[%s2655 + $0x111] sm:$0x3]
      %v2683 = vld [vmem:[%s2655 + $0x121] sm:$0xff]
      %v2684 = vld [vmem:[%s2655 + $0x129] sm:$0xff]
      %v2685 = vld [vmem:[%s2655 + $0x131] sm:$0x3]
      %v2687 = vlaneseq
      %v2688 = vshrl.u32 %v2687, 7
      %v2689 = vsub.s32 0, %v2688
      %v2690 = vrot.slane %v766, %v2689
      %v2692 = vmul.f32 %v2656, %v2690
      %v2693 = vmul.f32 %v2657, %v2690
      %v2694 = vmul.f32 %v2658, %v2690
      %v2695 = vmul.f32 %v2659, %v2690
      %v2696 = vmul.f32 %v2660, %v2690
      %v2697 = vmul.f32 %v2661, %v2690
      %v2698 = vmul.f32 %v2662, %v2690
      %v2699 = vmul.f32 %v2663, %v2690
      %v2700 = vmul.f32 %v2664, %v2690
      %v2701 = vmul.f32 %v2665, %v2690
      %v2702 = vmul.f32 %v2666, %v2690
      %v2703 = vmul.f32 %v2667, %v2690
      %v2704 = vmul.f32 %v2668, %v2690
      %v2705 = vmul.f32 %v2669, %v2690
      %v2706 = vmul.f32 %v2670, %v2690
      %v2707 = vmul.f32 %v2671, %v2690
      %v2708 = vmul.f32 %v2672, %v2690
      %v2709 = vmul.f32 %v2673, %v2690
      %v2710 = vmul.f32 %v2674, %v2690
      %v2711 = vmul.f32 %v2675, %v2690
      %v2712 = vmul.f32 %v2676, %v2690
      %v2713 = vmul.f32 %v2677, %v2690
      %v2714 = vmul.f32 %v2678, %v2690
      %v2715 = vmul.f32 %v2679, %v2690
      %v2716 = vmul.f32 %v2680, %v2690
      %v2717 = vmul.f32 %v2681, %v2690
      %v2718 = vmul.f32 %v2682, %v2690
      %v2719 = vmul.f32 %v2683, %v2690
      %v2720 = vmul.f32 %v2684, %v2690
      %v2721 = vmul.f32 %v2685, %v2690
      %v2722 = vadd.f32 %v2625, %v2692
      %v2723 = vadd.f32 %v2626, %v2693
      %v2724 = vadd.f32 %v2627, %v2694
      %v2725 = vadd.f32 %v2628, %v2695
      %v2726 = vadd.f32 %v2629, %v2696
      %v2727 = vadd.f32 %v2630, %v2697
      %v2728 = vadd.f32 %v2631, %v2698
      %v2729 = vadd.f32 %v2632, %v2699
      %v2730 = vadd.f32 %v2633, %v2700
      %v2731 = vadd.f32 %v2634, %v2701
      %v2732 = vadd.f32 %v2635, %v2702
      %v2733 = vadd.f32 %v2636, %v2703
      %v2734 = vadd.f32 %v2637, %v2704
      %v2735 = vadd.f32 %v2638, %v2705
      %v2736 = vadd.f32 %v2639, %v2706
      %v2737 = vadd.f32 %v2640, %v2707
      %v2738 = vadd.f32 %v2641, %v2708
      %v2739 = vadd.f32 %v2642, %v2709
      %v2740 = vadd.f32 %v2643, %v2710
      %v2741 = vadd.f32 %v2644, %v2711
      %v2742 = vadd.f32 %v2645, %v2712
      %v2743 = vadd.f32 %v2646, %v2713
      %v2744 = vadd.f32 %v2647, %v2714
      %v2745 = vadd.f32 %v2648, %v2715
      %v2746 = vadd.f32 %v2649, %v2716
      %v2747 = vadd.f32 %v2650, %v2717
      %v2748 = vadd.f32 %v2651, %v2718
      %v2749 = vadd.f32 %v2652, %v2719
      %v2750 = vadd.f32 %v2653, %v2720
      %v2751 = vadd.f32 %v2654, %v2721
      %v2752 = vld [vmem:[%s2472 + $0x7] sm:$0xff]
      %v2753 = vld [vmem:[%s2472 + $0xf] sm:$0xff]
      %v2754 = vld [vmem:[%s2472 + $0x17] sm:$0x3]
      %v2755 = vld [vmem:[%s2472 + $0x27] sm:$0xff]
      %v2756 = vld [vmem:[%s2472 + $0x2f] sm:$0xff]
      %v2757 = vld [vmem:[%s2472 + $0x37] sm:$0x3]
      %v2758 = vld [vmem:[%s2472 + $0x47] sm:$0xff]
      %v2759 = vld [vmem:[%s2472 + $0x4f] sm:$0xff]
      %v2760 = vld [vmem:[%s2472 + $0x57] sm:$0x3]
      %v2761 = vld [vmem:[%s2472 + $0x67] sm:$0xff]
      %v2762 = vld [vmem:[%s2472 + $0x6f] sm:$0xff]
      %v2763 = vld [vmem:[%s2472 + $0x77] sm:$0x3]
      %v2764 = vld [vmem:[%s2472 + $0x87] sm:$0xff]
      %v2765 = vld [vmem:[%s2472 + $0x8f] sm:$0xff]
      %v2766 = vld [vmem:[%s2472 + $0x97] sm:$0x3]
      %v2767 = vld [vmem:[%s2472 + $0xa7] sm:$0xff]
      %v2768 = vld [vmem:[%s2472 + $0xaf] sm:$0xff]
      %v2769 = vld [vmem:[%s2472 + $0xb7] sm:$0x3]
      %v2770 = vld [vmem:[%s2472 + $0xc7] sm:$0xff]
      %v2771 = vld [vmem:[%s2472 + $0xcf] sm:$0xff]
      %v2772 = vld [vmem:[%s2472 + $0xd7] sm:$0x3]
      %v2773 = vld [vmem:[%s2472 + $0xe7] sm:$0xff]
      %v2774 = vld [vmem:[%s2472 + $0xef] sm:$0xff]
      %v2775 = vld [vmem:[%s2472 + $0xf7] sm:$0x3]
      %v2776 = vld [vmem:[%s2472 + $0x107] sm:$0xff]
      %v2777 = vld [vmem:[%s2472 + $0x10f] sm:$0xff]
      %v2778 = vld [vmem:[%s2472 + $0x117] sm:$0x3]
      %v2779 = vld [vmem:[%s2472 + $0x127] sm:$0xff]
      %v2780 = vld [vmem:[%s2472 + $0x12f] sm:$0xff]
      %v2781 = vld [vmem:[%s2472 + $0x137] sm:$0x3]
      %v2783 = vlaneseq
      %v2784 = vshrl.u32 %v2783, 7
      %v2785 = vsub.s32 0, %v2784
      %v2786 = vrot.slane %v761, %v2785
      %v2788 = vmul.f32 %v2752, %v2786
      %v2789 = vmul.f32 %v2753, %v2786
      %v2790 = vmul.f32 %v2754, %v2786
      %v2791 = vmul.f32 %v2755, %v2786
      %v2792 = vmul.f32 %v2756, %v2786
      %v2793 = vmul.f32 %v2757, %v2786
      %v2794 = vmul.f32 %v2758, %v2786
      %v2795 = vmul.f32 %v2759, %v2786
      %v2796 = vmul.f32 %v2760, %v2786
      %v2797 = vmul.f32 %v2761, %v2786
      %v2798 = vmul.f32 %v2762, %v2786
      %v2799 = vmul.f32 %v2763, %v2786
      %v2800 = vmul.f32 %v2764, %v2786
      %v2801 = vmul.f32 %v2765, %v2786
      %v2802 = vmul.f32 %v2766, %v2786
      %v2803 = vmul.f32 %v2767, %v2786
      %v2804 = vmul.f32 %v2768, %v2786
      %v2805 = vmul.f32 %v2769, %v2786
      %v2806 = vmul.f32 %v2770, %v2786
      %v2807 = vmul.f32 %v2771, %v2786
      %v2808 = vmul.f32 %v2772, %v2786
      %v2809 = vmul.f32 %v2773, %v2786
      %v2810 = vmul.f32 %v2774, %v2786
      %v2811 = vmul.f32 %v2775, %v2786
      %v2812 = vmul.f32 %v2776, %v2786
      %v2813 = vmul.f32 %v2777, %v2786
      %v2814 = vmul.f32 %v2778, %v2786
      %v2815 = vmul.f32 %v2779, %v2786
      %v2816 = vmul.f32 %v2780, %v2786
      %v2817 = vmul.f32 %v2781, %v2786
      %v2818 = vadd.f32 %v2722, %v2788
      %v2819 = vadd.f32 %v2723, %v2789
      %v2820 = vadd.f32 %v2724, %v2790
      %v2821 = vadd.f32 %v2725, %v2791
      %v2822 = vadd.f32 %v2726, %v2792
      %v2823 = vadd.f32 %v2727, %v2793
      %v2824 = vadd.f32 %v2728, %v2794
      %v2825 = vadd.f32 %v2729, %v2795
      %v2826 = vadd.f32 %v2730, %v2796
      %v2827 = vadd.f32 %v2731, %v2797
      %v2828 = vadd.f32 %v2732, %v2798
      %v2829 = vadd.f32 %v2733, %v2799
      %v2830 = vadd.f32 %v2734, %v2800
      %v2831 = vadd.f32 %v2735, %v2801
      %v2832 = vadd.f32 %v2736, %v2802
      %v2833 = vadd.f32 %v2737, %v2803
      %v2834 = vadd.f32 %v2738, %v2804
      %v2835 = vadd.f32 %v2739, %v2805
      %v2836 = vadd.f32 %v2740, %v2806
      %v2837 = vadd.f32 %v2741, %v2807
      %v2838 = vadd.f32 %v2742, %v2808
      %v2839 = vadd.f32 %v2743, %v2809
      %v2840 = vadd.f32 %v2744, %v2810
      %v2841 = vadd.f32 %v2745, %v2811
      %v2842 = vadd.f32 %v2746, %v2812
      %v2843 = vadd.f32 %v2747, %v2813
      %v2844 = vadd.f32 %v2748, %v2814
      %v2845 = vadd.f32 %v2749, %v2815
      %v2846 = vadd.f32 %v2750, %v2816
      %v2847 = vadd.f32 %v2751, %v2817
      %v2849 = vlaneseq
      %v2850 = vshrl.u32 %v2849, 7
      %v2851 = vsub.s32 0, %v2850
      %v2852 = vrot.slane %v764, %v2851
      %v2854 = vmul.f32 %v770, %v2852
      %v2855 = vmul.f32 %v771, %v2852
      %v2856 = vmul.f32 %v772, %v2852
      %v2857 = vmul.f32 %v773, %v2852
      %v2858 = vmul.f32 %v774, %v2852
      %v2859 = vmul.f32 %v775, %v2852
      %v2860 = vmul.f32 %v776, %v2852
      %v2861 = vmul.f32 %v777, %v2852
      %v2862 = vmul.f32 %v778, %v2852
      %v2863 = vmul.f32 %v779, %v2852
      %v2864 = vmul.f32 %v780, %v2852
      %v2865 = vmul.f32 %v781, %v2852
      %v2866 = vmul.f32 %v782, %v2852
      %v2867 = vmul.f32 %v783, %v2852
      %v2868 = vmul.f32 %v784, %v2852
      %v2869 = vmul.f32 %v785, %v2852
      %v2870 = vmul.f32 %v786, %v2852
      %v2871 = vmul.f32 %v787, %v2852
      %v2872 = vmul.f32 %v788, %v2852
      %v2873 = vmul.f32 %v789, %v2852
      %v2874 = vmul.f32 %v790, %v2852
      %v2875 = vmul.f32 %v791, %v2852
      %v2876 = vmul.f32 %v792, %v2852
      %v2877 = vmul.f32 %v793, %v2852
      %v2878 = vmul.f32 %v794, %v2852
      %v2879 = vmul.f32 %v795, %v2852
      %v2880 = vmul.f32 %v796, %v2852
      %v2881 = vmul.f32 %v797, %v2852
      %v2882 = vmul.f32 %v798, %v2852
      %v2883 = vmul.f32 %v799, %v2852
      %v2884 = vadd.f32 %v2818, %v2854
      %v2885 = vadd.f32 %v2819, %v2855
      %v2886 = vadd.f32 %v2820, %v2856
      %v2887 = vadd.f32 %v2821, %v2857
      %v2888 = vadd.f32 %v2822, %v2858
      %v2889 = vadd.f32 %v2823, %v2859
      %v2890 = vadd.f32 %v2824, %v2860
      %v2891 = vadd.f32 %v2825, %v2861
      %v2892 = vadd.f32 %v2826, %v2862
      %v2893 = vadd.f32 %v2827, %v2863
      %v2894 = vadd.f32 %v2828, %v2864
      %v2895 = vadd.f32 %v2829, %v2865
      %v2896 = vadd.f32 %v2830, %v2866
      %v2897 = vadd.f32 %v2831, %v2867
      %v2898 = vadd.f32 %v2832, %v2868
      %v2899 = vadd.f32 %v2833, %v2869
      %v2900 = vadd.f32 %v2834, %v2870
      %v2901 = vadd.f32 %v2835, %v2871
      %v2902 = vadd.f32 %v2836, %v2872
      %v2903 = vadd.f32 %v2837, %v2873
      %v2904 = vadd.f32 %v2838, %v2874
      %v2905 = vadd.f32 %v2839, %v2875
      %v2906 = vadd.f32 %v2840, %v2876
      %v2907 = vadd.f32 %v2841, %v2877
      %v2908 = vadd.f32 %v2842, %v2878
      %v2909 = vadd.f32 %v2843, %v2879
      %v2910 = vadd.f32 %v2844, %v2880
      %v2911 = vadd.f32 %v2845, %v2881
      %v2912 = vadd.f32 %v2846, %v2882
      %v2913 = vadd.f32 %v2847, %v2883
      %v2914 = vld [vmem:[%s2655 + $0x7] sm:$0xff]
      %v2915 = vld [vmem:[%s2655 + $0xf] sm:$0xff]
      %v2916 = vld [vmem:[%s2655 + $0x17] sm:$0x3]
      %v2917 = vld [vmem:[%s2655 + $0x27] sm:$0xff]
      %v2918 = vld [vmem:[%s2655 + $0x2f] sm:$0xff]
      %v2919 = vld [vmem:[%s2655 + $0x37] sm:$0x3]
      %v2920 = vld [vmem:[%s2655 + $0x47] sm:$0xff]
      %v2921 = vld [vmem:[%s2655 + $0x4f] sm:$0xff]
      %v2922 = vld [vmem:[%s2655 + $0x57] sm:$0x3]
      %v2923 = vld [vmem:[%s2655 + $0x67] sm:$0xff]
      %v2924 = vld [vmem:[%s2655 + $0x6f] sm:$0xff]
      %v2925 = vld [vmem:[%s2655 + $0x77] sm:$0x3]
      %v2926 = vld [vmem:[%s2655 + $0x87] sm:$0xff]
      %v2927 = vld [vmem:[%s2655 + $0x8f] sm:$0xff]
      %v2928 = vld [vmem:[%s2655 + $0x97] sm:$0x3]
      %v2929 = vld [vmem:[%s2655 + $0xa7] sm:$0xff]
      %v2930 = vld [vmem:[%s2655 + $0xaf] sm:$0xff]
      %v2931 = vld [vmem:[%s2655 + $0xb7] sm:$0x3]
      %v2932 = vld [vmem:[%s2655 + $0xc7] sm:$0xff]
      %v2933 = vld [vmem:[%s2655 + $0xcf] sm:$0xff]
      %v2934 = vld [vmem:[%s2655 + $0xd7] sm:$0x3]
      %v2935 = vld [vmem:[%s2655 + $0xe7] sm:$0xff]
      %v2936 = vld [vmem:[%s2655 + $0xef] sm:$0xff]
      %v2937 = vld [vmem:[%s2655 + $0xf7] sm:$0x3]
      %v2938 = vld [vmem:[%s2655 + $0x107] sm:$0xff]
      %v2939 = vld [vmem:[%s2655 + $0x10f] sm:$0xff]
      %v2940 = vld [vmem:[%s2655 + $0x117] sm:$0x3]
      %v2941 = vld [vmem:[%s2655 + $0x127] sm:$0xff]
      %v2942 = vld [vmem:[%s2655 + $0x12f] sm:$0xff]
      %v2943 = vld [vmem:[%s2655 + $0x137] sm:$0x3]
      %v2945 = vlaneseq
      %v2946 = vshrl.u32 %v2945, 7
      %v2947 = vsub.s32 0, %v2946
      %v2948 = vrot.slane %v767, %v2947
      %v2950 = vmul.f32 %v2914, %v2948
      %v2951 = vmul.f32 %v2915, %v2948
      %v2952 = vmul.f32 %v2916, %v2948
      %v2953 = vmul.f32 %v2917, %v2948
      %v2954 = vmul.f32 %v2918, %v2948
      %v2955 = vmul.f32 %v2919, %v2948
      %v2956 = vmul.f32 %v2920, %v2948
      %v2957 = vmul.f32 %v2921, %v2948
      %v2958 = vmul.f32 %v2922, %v2948
      %v2959 = vmul.f32 %v2923, %v2948
      %v2960 = vmul.f32 %v2924, %v2948
      %v2961 = vmul.f32 %v2925, %v2948
      %v2962 = vmul.f32 %v2926, %v2948
      %v2963 = vmul.f32 %v2927, %v2948
      %v2964 = vmul.f32 %v2928, %v2948
      %v2965 = vmul.f32 %v2929, %v2948
      %v2966 = vmul.f32 %v2930, %v2948
      %v2967 = vmul.f32 %v2931, %v2948
      %v2968 = vmul.f32 %v2932, %v2948
      %v2969 = vmul.f32 %v2933, %v2948
      %v2970 = vmul.f32 %v2934, %v2948
      %v2971 = vmul.f32 %v2935, %v2948
      %v2972 = vmul.f32 %v2936, %v2948
      %v2973 = vmul.f32 %v2937, %v2948
      %v2974 = vmul.f32 %v2938, %v2948
      %v2975 = vmul.f32 %v2939, %v2948
      %v2976 = vmul.f32 %v2940, %v2948
      %v2977 = vmul.f32 %v2941, %v2948
      %v2978 = vmul.f32 %v2942, %v2948
      %v2979 = vmul.f32 %v2943, %v2948
      %v2980 = vadd.f32 %v2884, %v2950
      %v2981 = vadd.f32 %v2885, %v2951
      %v2982 = vadd.f32 %v2886, %v2952
      %v2983 = vadd.f32 %v2887, %v2953
      %v2984 = vadd.f32 %v2888, %v2954
      %v2985 = vadd.f32 %v2889, %v2955
      %v2986 = vadd.f32 %v2890, %v2956
      %v2987 = vadd.f32 %v2891, %v2957
      %v2988 = vadd.f32 %v2892, %v2958
      %v2989 = vadd.f32 %v2893, %v2959
      %v2990 = vadd.f32 %v2894, %v2960
      %v2991 = vadd.f32 %v2895, %v2961
      %v2992 = vadd.f32 %v2896, %v2962
      %v2993 = vadd.f32 %v2897, %v2963
      %v2994 = vadd.f32 %v2898, %v2964
      %v2995 = vadd.f32 %v2899, %v2965
      %v2996 = vadd.f32 %v2900, %v2966
      %v2997 = vadd.f32 %v2901, %v2967
      %v2998 = vadd.f32 %v2902, %v2968
      %v2999 = vadd.f32 %v2903, %v2969
      %v3000 = vadd.f32 %v2904, %v2970
      %v3001 = vadd.f32 %v2905, %v2971
      %v3002 = vadd.f32 %v2906, %v2972
      %v3003 = vadd.f32 %v2907, %v2973
      %v3004 = vadd.f32 %v2908, %v2974
      %v3005 = vadd.f32 %v2909, %v2975
      %v3006 = vadd.f32 %v2910, %v2976
      %v3007 = vadd.f32 %v2911, %v2977
      %v3008 = vadd.f32 %v2912, %v2978
      %v3009 = vadd.f32 %v2913, %v2979
      %v3010 = vld [vmem:[%s2472 + $0xd] sm:$0xff]
      %v3011 = vld [vmem:[%s2472 + $0x15] sm:$0xff]
      %v3012 = vld [vmem:[%s2472 + $0x1d] sm:$0x3]
      %v3013 = vld [vmem:[%s2472 + $0x2d] sm:$0xff]
      %v3014 = vld [vmem:[%s2472 + $0x35] sm:$0xff]
      %v3015 = vld [vmem:[%s2472 + $0x3d] sm:$0x3]
      %v3016 = vld [vmem:[%s2472 + $0x4d] sm:$0xff]
      %v3017 = vld [vmem:[%s2472 + $0x55] sm:$0xff]
      %v3018 = vld [vmem:[%s2472 + $0x5d] sm:$0x3]
      %v3019 = vld [vmem:[%s2472 + $0x6d] sm:$0xff]
      %v3020 = vld [vmem:[%s2472 + $0x75] sm:$0xff]
      %v3021 = vld [vmem:[%s2472 + $0x7d] sm:$0x3]
      %v3022 = vld [vmem:[%s2472 + $0x8d] sm:$0xff]
      %v3023 = vld [vmem:[%s2472 + $0x95] sm:$0xff]
      %v3024 = vld [vmem:[%s2472 + $0x9d] sm:$0x3]
      %v3025 = vld [vmem:[%s2472 + $0xad] sm:$0xff]
      %v3026 = vld [vmem:[%s2472 + $0xb5] sm:$0xff]
      %v3027 = vld [vmem:[%s2472 + $0xbd] sm:$0x3]
      %v3028 = vld [vmem:[%s2472 + $0xcd] sm:$0xff]
      %v3029 = vld [vmem:[%s2472 + $0xd5] sm:$0xff]
      %v3030 = vld [vmem:[%s2472 + $0xdd] sm:$0x3]
      %v3031 = vld [vmem:[%s2472 + $0xed] sm:$0xff]
      %v3032 = vld [vmem:[%s2472 + $0xf5] sm:$0xff]
      %v3033 = vld [vmem:[%s2472 + $0xfd] sm:$0x3]
      %v3034 = vld [vmem:[%s2472 + $0x10d] sm:$0xff]
      %v3035 = vld [vmem:[%s2472 + $0x115] sm:$0xff]
      %v3036 = vld [vmem:[%s2472 + $0x11d] sm:$0x3]
      %v3037 = vld [vmem:[%s2472 + $0x12d] sm:$0xff]
      %v3038 = vld [vmem:[%s2472 + $0x135] sm:$0xff]
      %v3039 = vld [vmem:[%s2472 + $0x13d] sm:$0x3]
      %v3041 = vlaneseq
      %v3042 = vshrl.u32 %v3041, 7
      %v3043 = vsub.s32 0, %v3042
      %v3044 = vrot.slane %v762, %v3043
      %v3046 = vmul.f32 %v3010, %v3044
      %v3047 = vmul.f32 %v3011, %v3044
      %v3048 = vmul.f32 %v3012, %v3044
      %v3049 = vmul.f32 %v3013, %v3044
      %v3050 = vmul.f32 %v3014, %v3044
      %v3051 = vmul.f32 %v3015, %v3044
      %v3052 = vmul.f32 %v3016, %v3044
      %v3053 = vmul.f32 %v3017, %v3044
      %v3054 = vmul.f32 %v3018, %v3044
      %v3055 = vmul.f32 %v3019, %v3044
      %v3056 = vmul.f32 %v3020, %v3044
      %v3057 = vmul.f32 %v3021, %v3044
      %v3058 = vmul.f32 %v3022, %v3044
      %v3059 = vmul.f32 %v3023, %v3044
      %v3060 = vmul.f32 %v3024, %v3044
      %v3061 = vmul.f32 %v3025, %v3044
      %v3062 = vmul.f32 %v3026, %v3044
      %v3063 = vmul.f32 %v3027, %v3044
      %v3064 = vmul.f32 %v3028, %v3044
      %v3065 = vmul.f32 %v3029, %v3044
      %v3066 = vmul.f32 %v3030, %v3044
      %v3067 = vmul.f32 %v3031, %v3044
      %v3068 = vmul.f32 %v3032, %v3044
      %v3069 = vmul.f32 %v3033, %v3044
      %v3070 = vmul.f32 %v3034, %v3044
      %v3071 = vmul.f32 %v3035, %v3044
      %v3072 = vmul.f32 %v3036, %v3044
      %v3073 = vmul.f32 %v3037, %v3044
      %v3074 = vmul.f32 %v3038, %v3044
      %v3075 = vmul.f32 %v3039, %v3044
      %v3076 = vadd.f32 %v2980, %v3046
      %v3077 = vadd.f32 %v2981, %v3047
      %v3078 = vadd.f32 %v2982, %v3048
      %v3079 = vadd.f32 %v2983, %v3049
      %v3080 = vadd.f32 %v2984, %v3050
      %v3081 = vadd.f32 %v2985, %v3051
      %v3082 = vadd.f32 %v2986, %v3052
      %v3083 = vadd.f32 %v2987, %v3053
      %v3084 = vadd.f32 %v2988, %v3054
      %v3085 = vadd.f32 %v2989, %v3055
      %v3086 = vadd.f32 %v2990, %v3056
      %v3087 = vadd.f32 %v2991, %v3057
      %v3088 = vadd.f32 %v2992, %v3058
      %v3089 = vadd.f32 %v2993, %v3059
      %v3090 = vadd.f32 %v2994, %v3060
      %v3091 = vadd.f32 %v2995, %v3061
      %v3092 = vadd.f32 %v2996, %v3062
      %v3093 = vadd.f32 %v2997, %v3063
      %v3094 = vadd.f32 %v2998, %v3064
      %v3095 = vadd.f32 %v2999, %v3065
      %v3096 = vadd.f32 %v3000, %v3066
      %v3097 = vadd.f32 %v3001, %v3067
      %v3098 = vadd.f32 %v3002, %v3068
      %v3099 = vadd.f32 %v3003, %v3069
      %v3100 = vadd.f32 %v3004, %v3070
      %v3101 = vadd.f32 %v3005, %v3071
      %v3102 = vadd.f32 %v3006, %v3072
      %v3103 = vadd.f32 %v3007, %v3073
      %v3104 = vadd.f32 %v3008, %v3074
      %v3105 = vadd.f32 %v3009, %v3075
      %v3106 = vld [vmem:[%s769 + $0x15] sm:$0xff]
      %v3107 = vld [vmem:[%s769 + $0x1d] sm:$0x3]
      %v3108 = vld [vmem:[%s769 + $0x35] sm:$0xff]
      %v3109 = vld [vmem:[%s769 + $0x3d] sm:$0x3]
      %v3110 = vld [vmem:[%s769 + $0x55] sm:$0xff]
      %v3111 = vld [vmem:[%s769 + $0x5d] sm:$0x3]
      %v3112 = vld [vmem:[%s769 + $0x75] sm:$0xff]
      %v3113 = vld [vmem:[%s769 + $0x7d] sm:$0x3]
      %v3114 = vld [vmem:[%s769 + $0x95] sm:$0xff]
      %v3115 = vld [vmem:[%s769 + $0x9d] sm:$0x3]
      %v3116 = vld [vmem:[%s769 + $0xb5] sm:$0xff]
      %v3117 = vld [vmem:[%s769 + $0xbd] sm:$0x3]
      %v3118 = vld [vmem:[%s769 + $0xd5] sm:$0xff]
      %v3119 = vld [vmem:[%s769 + $0xdd] sm:$0x3]
      %v3120 = vld [vmem:[%s769 + $0xf5] sm:$0xff]
      %v3121 = vld [vmem:[%s769 + $0xfd] sm:$0x3]
      %v3122 = vld [vmem:[%s769 + $0x115] sm:$0xff]
      %v3123 = vld [vmem:[%s769 + $0x11d] sm:$0x3]
      %v3124 = vld [vmem:[%s769 + $0x135] sm:$0xff]
      %v3125 = vld [vmem:[%s769 + $0x13d] sm:$0x3]
      %v3127 = vlaneseq
      %v3128 = vshrl.u32 %v3127, 7
      %v3129 = vsub.s32 0, %v3128
      %v3130 = vrot.slane %v765, %v3129
      %v3132 = vmul.f32 %v928, %v3130
      %v3133 = vmul.f32 %v3106, %v3130
      %v3134 = vmul.f32 %v3107, %v3130
      %v3135 = vmul.f32 %v931, %v3130
      %v3136 = vmul.f32 %v3108, %v3130
      %v3137 = vmul.f32 %v3109, %v3130
      %v3138 = vmul.f32 %v934, %v3130
      %v3139 = vmul.f32 %v3110, %v3130
      %v3140 = vmul.f32 %v3111, %v3130
      %v3141 = vmul.f32 %v937, %v3130
      %v3142 = vmul.f32 %v3112, %v3130
      %v3143 = vmul.f32 %v3113, %v3130
      %v3144 = vmul.f32 %v940, %v3130
      %v3145 = vmul.f32 %v3114, %v3130
      %v3146 = vmul.f32 %v3115, %v3130
      %v3147 = vmul.f32 %v943, %v3130
      %v3148 = vmul.f32 %v3116, %v3130
      %v3149 = vmul.f32 %v3117, %v3130
      %v3150 = vmul.f32 %v946, %v3130
      %v3151 = vmul.f32 %v3118, %v3130
      %v3152 = vmul.f32 %v3119, %v3130
      %v3153 = vmul.f32 %v949, %v3130
      %v3154 = vmul.f32 %v3120, %v3130
      %v3155 = vmul.f32 %v3121, %v3130
      %v3156 = vmul.f32 %v952, %v3130
      %v3157 = vmul.f32 %v3122, %v3130
      %v3158 = vmul.f32 %v3123, %v3130
      %v3159 = vmul.f32 %v955, %v3130
      %v3160 = vmul.f32 %v3124, %v3130
      %v3161 = vmul.f32 %v3125, %v3130
      %v3162 = vadd.f32 %v3076, %v3132
      %v3163 = vadd.f32 %v3077, %v3133
      %v3164 = vadd.f32 %v3078, %v3134
      %v3165 = vadd.f32 %v3079, %v3135
      %v3166 = vadd.f32 %v3080, %v3136
      %v3167 = vadd.f32 %v3081, %v3137
      %v3168 = vadd.f32 %v3082, %v3138
      %v3169 = vadd.f32 %v3083, %v3139
      %v3170 = vadd.f32 %v3084, %v3140
      %v3171 = vadd.f32 %v3085, %v3141
      %v3172 = vadd.f32 %v3086, %v3142
      %v3173 = vadd.f32 %v3087, %v3143
      %v3174 = vadd.f32 %v3088, %v3144
      %v3175 = vadd.f32 %v3089, %v3145
      %v3176 = vadd.f32 %v3090, %v3146
      %v3177 = vadd.f32 %v3091, %v3147
      %v3178 = vadd.f32 %v3092, %v3148
      %v3179 = vadd.f32 %v3093, %v3149
      %v3180 = vadd.f32 %v3094, %v3150
      %v3181 = vadd.f32 %v3095, %v3151
      %v3182 = vadd.f32 %v3096, %v3152
      %v3183 = vadd.f32 %v3097, %v3153
      %v3184 = vadd.f32 %v3098, %v3154
      %v3185 = vadd.f32 %v3099, %v3155
      %v3186 = vadd.f32 %v3100, %v3156
      %v3187 = vadd.f32 %v3101, %v3157
      %v3188 = vadd.f32 %v3102, %v3158
      %v3189 = vadd.f32 %v3103, %v3159
      %v3190 = vadd.f32 %v3104, %v3160
      %v3191 = vadd.f32 %v3105, %v3161
      %v3192 = vld [vmem:[%s2655 + $0xd] sm:$0xff]
      %v3193 = vld [vmem:[%s2655 + $0x15] sm:$0xff]
      %v3194 = vld [vmem:[%s2655 + $0x1d] sm:$0x3]
      %v3195 = vld [vmem:[%s2655 + $0x2d] sm:$0xff]
      %v3196 = vld [vmem:[%s2655 + $0x35] sm:$0xff]
      %v3197 = vld [vmem:[%s2655 + $0x3d] sm:$0x3]
      %v3198 = vld [vmem:[%s2655 + $0x4d] sm:$0xff]
      %v3199 = vld [vmem:[%s2655 + $0x55] sm:$0xff]
      %v3200 = vld [vmem:[%s2655 + $0x5d] sm:$0x3]
      %v3201 = vld [vmem:[%s2655 + $0x6d] sm:$0xff]
      %v3202 = vld [vmem:[%s2655 + $0x75] sm:$0xff]
      %v3203 = vld [vmem:[%s2655 + $0x7d] sm:$0x3]
      %v3204 = vld [vmem:[%s2655 + $0x8d] sm:$0xff]
      %v3205 = vld [vmem:[%s2655 + $0x95] sm:$0xff]
      %v3206 = vld [vmem:[%s2655 + $0x9d] sm:$0x3]
      %v3207 = vld [vmem:[%s2655 + $0xad] sm:$0xff]
      %v3208 = vld [vmem:[%s2655 + $0xb5] sm:$0xff]
      %v3209 = vld [vmem:[%s2655 + $0xbd] sm:$0x3]
      %v3210 = vld [vmem:[%s2655 + $0xcd] sm:$0xff]
      %v3211 = vld [vmem:[%s2655 + $0xd5] sm:$0xff]
      %v3212 = vld [vmem:[%s2655 + $0xdd] sm:$0x3]
      %v3213 = vld [vmem:[%s2655 + $0xed] sm:$0xff]
      %v3214 = vld [vmem:[%s2655 + $0xf5] sm:$0xff]
      %v3215 = vld [vmem:[%s2655 + $0xfd] sm:$0x3]
      %v3216 = vld [vmem:[%s2655 + $0x10d] sm:$0xff]
      %v3217 = vld [vmem:[%s2655 + $0x115] sm:$0xff]
      %v3218 = vld [vmem:[%s2655 + $0x11d] sm:$0x3]
      %v3219 = vld [vmem:[%s2655 + $0x12d] sm:$0xff]
      %v3220 = vld [vmem:[%s2655 + $0x135] sm:$0xff]
      %v3221 = vld [vmem:[%s2655 + $0x13d] sm:$0x3]
      %v3223 = vlaneseq
      %v3224 = vshrl.u32 %v3223, 7
      %v3225 = vsub.s32 0, %v3224
      %v3226 = vrot.slane %v768, %v3225
      %v3228 = vmul.f32 %v3192, %v3226
      %v3229 = vmul.f32 %v3193, %v3226
      %v3230 = vmul.f32 %v3194, %v3226
      %v3231 = vmul.f32 %v3195, %v3226
      %v3232 = vmul.f32 %v3196, %v3226
      %v3233 = vmul.f32 %v3197, %v3226
      %v3234 = vmul.f32 %v3198, %v3226
      %v3235 = vmul.f32 %v3199, %v3226
      %v3236 = vmul.f32 %v3200, %v3226
      %v3237 = vmul.f32 %v3201, %v3226
      %v3238 = vmul.f32 %v3202, %v3226
      %v3239 = vmul.f32 %v3203, %v3226
      %v3240 = vmul.f32 %v3204, %v3226
      %v3241 = vmul.f32 %v3205, %v3226
      %v3242 = vmul.f32 %v3206, %v3226
      %v3243 = vmul.f32 %v3207, %v3226
      %v3244 = vmul.f32 %v3208, %v3226
      %v3245 = vmul.f32 %v3209, %v3226
      %v3246 = vmul.f32 %v3210, %v3226
      %v3247 = vmul.f32 %v3211, %v3226
      %v3248 = vmul.f32 %v3212, %v3226
      %v3249 = vmul.f32 %v3213, %v3226
      %v3250 = vmul.f32 %v3214, %v3226
      %v3251 = vmul.f32 %v3215, %v3226
      %v3252 = vmul.f32 %v3216, %v3226
      %v3253 = vmul.f32 %v3217, %v3226
      %v3254 = vmul.f32 %v3218, %v3226
      %v3255 = vmul.f32 %v3219, %v3226
      %v3256 = vmul.f32 %v3220, %v3226
      %v3257 = vmul.f32 %v3221, %v3226
      %v3258 = vadd.f32 %v3162, %v3228
      %v3259 = vadd.f32 %v3163, %v3229
      %v3260 = vadd.f32 %v3164, %v3230
      %v3261 = vadd.f32 %v3165, %v3231
      %v3262 = vadd.f32 %v3166, %v3232
      %v3263 = vadd.f32 %v3167, %v3233
      %v3264 = vadd.f32 %v3168, %v3234
      %v3265 = vadd.f32 %v3169, %v3235
      %v3266 = vadd.f32 %v3170, %v3236
      %v3267 = vadd.f32 %v3171, %v3237
      %v3268 = vadd.f32 %v3172, %v3238
      %v3269 = vadd.f32 %v3173, %v3239
      %v3270 = vadd.f32 %v3174, %v3240
      %v3271 = vadd.f32 %v3175, %v3241
      %v3272 = vadd.f32 %v3176, %v3242
      %v3273 = vadd.f32 %v3177, %v3243
      %v3274 = vadd.f32 %v3178, %v3244
      %v3275 = vadd.f32 %v3179, %v3245
      %v3276 = vadd.f32 %v3180, %v3246
      %v3277 = vadd.f32 %v3181, %v3247
      %v3278 = vadd.f32 %v3182, %v3248
      %v3279 = vadd.f32 %v3183, %v3249
      %v3280 = vadd.f32 %v3184, %v3250
      %v3281 = vadd.f32 %v3185, %v3251
      %v3282 = vadd.f32 %v3186, %v3252
      %v3283 = vadd.f32 %v3187, %v3253
      %v3284 = vadd.f32 %v3188, %v3254
      %v3285 = vadd.f32 %v3189, %v3255
      %v3286 = vadd.f32 %v3190, %v3256
      %v3287 = vadd.f32 %v3191, %v3257
      %v3288 = vld [vmem:[%s4] sm:$0x1]
      %v3290 = vlaneseq
      %v3291 = vshrl.u32 %v3290, 7
      %v3292 = vsub.s32 0, %v3291
      %v3293 = vrot.slane %v3288, %v3292
      %v3295 = vmul.f32 %v3258, %v3293
      %v3296 = vmul.f32 %v3259, %v3293
      %v3297 = vmul.f32 %v3260, %v3293
      %v3298 = vmul.f32 %v3261, %v3293
      %v3299 = vmul.f32 %v3262, %v3293
      %v3300 = vmul.f32 %v3263, %v3293
      %v3301 = vmul.f32 %v3264, %v3293
      %v3302 = vmul.f32 %v3265, %v3293
      %v3303 = vmul.f32 %v3266, %v3293
      %v3304 = vmul.f32 %v3267, %v3293
      %v3305 = vmul.f32 %v3268, %v3293
      %v3306 = vmul.f32 %v3269, %v3293
      %v3307 = vmul.f32 %v3270, %v3293
      %v3308 = vmul.f32 %v3271, %v3293
      %v3309 = vmul.f32 %v3272, %v3293
      %v3310 = vmul.f32 %v3273, %v3293
      %v3311 = vmul.f32 %v3274, %v3293
      %v3312 = vmul.f32 %v3275, %v3293
      %v3313 = vmul.f32 %v3276, %v3293
      %v3314 = vmul.f32 %v3277, %v3293
      %v3315 = vmul.f32 %v3278, %v3293
      %v3316 = vmul.f32 %v3279, %v3293
      %v3317 = vmul.f32 %v3280, %v3293
      %v3318 = vmul.f32 %v3281, %v3293
      %v3319 = vmul.f32 %v3282, %v3293
      %v3320 = vmul.f32 %v3283, %v3293
      %v3321 = vmul.f32 %v3284, %v3293
      %v3322 = vmul.f32 %v3285, %v3293
      %v3323 = vmul.f32 %v3286, %v3293
      %v3324 = vmul.f32 %v3287, %v3293
      %v3325 = vld [vmem:[%s5] sm:$0x1]
      %v3327 = vlaneseq
      %v3328 = vshrl.u32 %v3327, 7
      %v3329 = vsub.s32 0, %v3328
      %v3330 = vrot.slane %v3325, %v3329
      %v3332 = vadd.f32 %v3295, %v3330
      %v3333 = vadd.f32 %v3296, %v3330
      %v3334 = vadd.f32 %v3297, %v3330
      %v3335 = vadd.f32 %v3298, %v3330
      %v3336 = vadd.f32 %v3299, %v3330
      %v3337 = vadd.f32 %v3300, %v3330
      %v3338 = vadd.f32 %v3301, %v3330
      %v3339 = vadd.f32 %v3302, %v3330
      %v3340 = vadd.f32 %v3303, %v3330
      %v3341 = vadd.f32 %v3304, %v3330
      %v3342 = vadd.f32 %v3305, %v3330
      %v3343 = vadd.f32 %v3306, %v3330
      %v3344 = vadd.f32 %v3307, %v3330
      %v3345 = vadd.f32 %v3308, %v3330
      %v3346 = vadd.f32 %v3309, %v3330
      %v3347 = vadd.f32 %v3310, %v3330
      %v3348 = vadd.f32 %v3311, %v3330
      %v3349 = vadd.f32 %v3312, %v3330
      %v3350 = vadd.f32 %v3313, %v3330
      %v3351 = vadd.f32 %v3314, %v3330
      %v3352 = vadd.f32 %v3315, %v3330
      %v3353 = vadd.f32 %v3316, %v3330
      %v3354 = vadd.f32 %v3317, %v3330
      %v3355 = vadd.f32 %v3318, %v3330
      %v3356 = vadd.f32 %v3319, %v3330
      %v3357 = vadd.f32 %v3320, %v3330
      %v3358 = vadd.f32 %v3321, %v3330
      %v3359 = vadd.f32 %v3322, %v3330
      %v3360 = vadd.f32 %v3323, %v3330
      %v3361 = vadd.f32 %v3324, %v3330
      %v3362 = vmax.f32 %v3332, 0.0
      %v3363 = vmax.f32 %v3333, 0.0
      %v3364 = vmax.f32 %v3334, 0.0
      %v3365 = vmax.f32 %v3335, 0.0
      %v3366 = vmax.f32 %v3336, 0.0
      %v3367 = vmax.f32 %v3337, 0.0
      %v3368 = vmax.f32 %v3338, 0.0
      %v3369 = vmax.f32 %v3339, 0.0
      %v3370 = vmax.f32 %v3340, 0.0
      %v3371 = vmax.f32 %v3341, 0.0
      %v3372 = vmax.f32 %v3342, 0.0
      %v3373 = vmax.f32 %v3343, 0.0
      %v3374 = vmax.f32 %v3344, 0.0
      %v3375 = vmax.f32 %v3345, 0.0
      %v3376 = vmax.f32 %v3346, 0.0
      %v3377 = vmax.f32 %v3347, 0.0
      %v3378 = vmax.f32 %v3348, 0.0
      %v3379 = vmax.f32 %v3349, 0.0
      %v3380 = vmax.f32 %v3350, 0.0
      %v3381 = vmax.f32 %v3351, 0.0
      %v3382 = vmax.f32 %v3352, 0.0
      %v3383 = vmax.f32 %v3353, 0.0
      %v3384 = vmax.f32 %v3354, 0.0
      %v3385 = vmax.f32 %v3355, 0.0
      %v3386 = vmax.f32 %v3356, 0.0
      %v3387 = vmax.f32 %v3357, 0.0
      %v3388 = vmax.f32 %v3358, 0.0
      %v3389 = vmax.f32 %v3359, 0.0
      %v3390 = vmax.f32 %v3360, 0.0
      %v3391 = vmax.f32 %v3361, 0.0
      %v3392 = vlaneseq
      %v3393 = vshrl.u32 %v3392, 7
      %v3394 = vadd.s32 %v3393, 8
      %v3395 = vadd.s32 %v3393, 16
      %s3396 = smul.u32 %s25, 8
      %s3397 = ssub.s32 %s3396, 1
      %v3398 = vstv %s3397
      %v3399 = vadd.s32 %v3398, 1
      %v3400 = vadd.s32 %v3398, 2
      %v3401 = vadd.s32 %v3398, 3
      %v3402 = vadd.s32 %v3398, 4
      %v3403 = vadd.s32 %v3398, 5
      %v3404 = vadd.s32 %v3398, 6
      %v3405 = vadd.s32 %v3398, 7
      %v3406 = vadd.s32 %v3398, 8
      %v3407 = vadd.s32 %v3398, 9
      %v3408 = vsub.s32 %v3393, 1
      %v3409 = vsub.s32 %v3394, 1
      %v3410 = vsub.s32 %v3395, 1
      %vm3411 = vcmp.ge.s32.totalorder %v3398, 0
      %vm3412 = vcmp.ge.s32.totalorder %v3399, 0
      %vm3413 = vcmp.ge.s32.totalorder %v3400, 0
      %vm3414 = vcmp.ge.s32.totalorder %v3401, 0
      %vm3415 = vcmp.ge.s32.totalorder %v3402, 0
      %vm3416 = vcmp.ge.s32.totalorder %v3403, 0
      %vm3417 = vcmp.ge.s32.totalorder %v3404, 0
      %vm3418 = vcmp.ge.s32.totalorder %v3405, 0
      %vm3419 = vcmp.ge.s32.totalorder %v3406, 0
      %vm3420 = vcmp.ge.s32.totalorder %v3407, 0
      %vm3421 = vcmp.lt.s32.totalorder %v3398, 16
      %vm3422 = vcmp.lt.s32.totalorder %v3399, 16
      %vm3423 = vcmp.lt.s32.totalorder %v3400, 16
      %vm3424 = vcmp.lt.s32.totalorder %v3401, 16
      %vm3425 = vcmp.lt.s32.totalorder %v3402, 16
      %vm3426 = vcmp.lt.s32.totalorder %v3403, 16
      %vm3427 = vcmp.lt.s32.totalorder %v3404, 16
      %vm3428 = vcmp.lt.s32.totalorder %v3405, 16
      %vm3429 = vcmp.lt.s32.totalorder %v3406, 16
      %vm3430 = vcmp.lt.s32.totalorder %v3407, 16
      %vm3431 = vmand %vm3411, %vm3421
      %vm3432 = vmand %vm3412, %vm3422
      %vm3433 = vmand %vm3413, %vm3423
      %vm3434 = vmand %vm3414, %vm3424
      %vm3435 = vmand %vm3415, %vm3425
      %vm3436 = vmand %vm3416, %vm3426
      %vm3437 = vmand %vm3417, %vm3427
      %vm3438 = vmand %vm3418, %vm3428
      %vm3439 = vmand %vm3419, %vm3429
      %vm3440 = vmand %vm3420, %vm3430
      %vm3441 = vcmp.ge.s32.totalorder %v3408, 0
      %vm3442 = vcmp.ge.s32.totalorder %v3409, 0
      %vm3443 = vcmp.ge.s32.totalorder %v3410, 0
      %v3444 = vsel %vm3431, 1, 0
      %v3445 = vsel %vm3432, 1, 0
      %v3446 = vsel %vm3433, 1, 0
      %v3447 = vsel %vm3434, 1, 0
      %v3448 = vsel %vm3435, 1, 0
      %v3449 = vsel %vm3436, 1, 0
      %v3450 = vsel %vm3437, 1, 0
      %v3451 = vsel %vm3438, 1, 0
      %v3452 = vsel %vm3439, 1, 0
      %v3453 = vsel %vm3440, 1, 0
      %vm3454 = vcmp.eq.s32.totalorder %v3444, 1
      %vm3455 = vcmp.eq.s32.totalorder %v3445, 1
      %vm3456 = vcmp.eq.s32.totalorder %v3446, 1
      %vm3457 = vcmp.eq.s32.totalorder %v3447, 1
      %vm3458 = vcmp.eq.s32.totalorder %v3448, 1
      %vm3459 = vcmp.eq.s32.totalorder %v3449, 1
      %vm3460 = vcmp.eq.s32.totalorder %v3450, 1
      %vm3461 = vcmp.eq.s32.totalorder %v3451, 1
      %vm3462 = vcmp.eq.s32.totalorder %v3452, 1
      %vm3463 = vcmp.eq.s32.totalorder %v3453, 1
      %v3464 = vsel %vm3441, 1, 0
      %v3465 = vsel %vm3442, 1, 0
      %v3466 = vsel %vm3443, 1, 0
      %vm3467 = vcmp.eq.s32.totalorder %v3464, 1
      %vm3468 = vcmp.eq.s32.totalorder %v3465, 1
      %vm3469 = vcmp.eq.s32.totalorder %v3466, 1
      %vm3470 = vmand %vm3454, %vm3467
      %vm3471 = vmand %vm3454, %vm3468
      %vm3472 = vmand %vm3454, %vm3469
      %vm3473 = vmand %vm3455, %vm3467
      %vm3474 = vmand %vm3455, %vm3468
      %vm3475 = vmand %vm3455, %vm3469
      %vm3476 = vmand %vm3456, %vm3467
      %vm3477 = vmand %vm3456, %vm3468
      %vm3478 = vmand %vm3456, %vm3469
      %vm3479 = vmand %vm3457, %vm3467
      %vm3480 = vmand %vm3457, %vm3468
      %vm3481 = vmand %vm3457, %vm3469
      %vm3482 = vmand %vm3458, %vm3467
      %vm3483 = vmand %vm3458, %vm3468
      %vm3484 = vmand %vm3458, %vm3469
      %vm3485 = vmand %vm3459, %vm3467
      %vm3486 = vmand %vm3459, %vm3468
      %vm3487 = vmand %vm3459, %vm3469
      %vm3488 = vmand %vm3460, %vm3467
      %vm3489 = vmand %vm3460, %vm3468
      %vm3490 = vmand %vm3460, %vm3469
      %vm3491 = vmand %vm3461, %vm3467
      %vm3492 = vmand %vm3461, %vm3468
      %vm3493 = vmand %vm3461, %vm3469
      %vm3494 = vmand %vm3462, %vm3467
      %vm3495 = vmand %vm3462, %vm3468
      %vm3496 = vmand %vm3462, %vm3469
      %vm3497 = vmand %vm3463, %vm3467
      %vm3498 = vmand %vm3463, %vm3468
      %vm3499 = vmand %vm3463, %vm3469
      %vm3500 = vcmp.lt.s32.totalorder %v3408, 16
      %vm3501 = vcmp.lt.s32.totalorder %v3409, 16
      %vm3502 = vcmp.lt.s32.totalorder %v3410, 16
      %v3503 = vsel %vm3500, 1, 0
      %v3504 = vsel %vm3501, 1, 0
      %v3505 = vsel %vm3502, 1, 0
      %vm3506 = vcmp.eq.s32.totalorder %v3503, 1
      %vm3507 = vcmp.eq.s32.totalorder %v3504, 1
      %vm3508 = vcmp.eq.s32.totalorder %v3505, 1
      %vm3509 = vmand %vm3470, %vm3506
      %vm3510 = vmand %vm3471, %vm3507
      %vm3511 = vmand %vm3472, %vm3508
      %vm3512 = vmand %vm3473, %vm3506
      %vm3513 = vmand %vm3474, %vm3507
      %vm3514 = vmand %vm3475, %vm3508
      %vm3515 = vmand %vm3476, %vm3506
      %vm3516 = vmand %vm3477, %vm3507
      %vm3517 = vmand %vm3478, %vm3508
      %vm3518 = vmand %vm3479, %vm3506
      %vm3519 = vmand %vm3480, %vm3507
      %vm3520 = vmand %vm3481, %vm3508
      %vm3521 = vmand %vm3482, %vm3506
      %vm3522 = vmand %vm3483, %vm3507
      %vm3523 = vmand %vm3484, %vm3508
      %vm3524 = vmand %vm3485, %vm3506
      %vm3525 = vmand %vm3486, %vm3507
      %vm3526 = vmand %vm3487, %vm3508
      %vm3527 = vmand %vm3488, %vm3506
      %vm3528 = vmand %vm3489, %vm3507
      %vm3529 = vmand %vm3490, %vm3508
      %vm3530 = vmand %vm3491, %vm3506
      %vm3531 = vmand %vm3492, %vm3507
      %vm3532 = vmand %vm3493, %vm3508
      %vm3533 = vmand %vm3494, %vm3506
      %vm3534 = vmand %vm3495, %vm3507
      %vm3535 = vmand %vm3496, %vm3508
      %vm3536 = vmand %vm3497, %vm3506
      %vm3537 = vmand %vm3498, %vm3507
      %vm3538 = vmand %vm3499, %vm3508
      %v3539 = vsel %vm3509, 1, 0
      %v3540 = vsel %vm3510, 1, 0
      %v3541 = vsel %vm3511, 1, 0
      %v3542 = vsel %vm3512, 1, 0
      %v3543 = vsel %vm3513, 1, 0
      %v3544 = vsel %vm3514, 1, 0
      %v3545 = vsel %vm3515, 1, 0
      %v3546 = vsel %vm3516, 1, 0
      %v3547 = vsel %vm3517, 1, 0
      %v3548 = vsel %vm3518, 1, 0
      %v3549 = vsel %vm3519, 1, 0
      %v3550 = vsel %vm3520, 1, 0
      %v3551 = vsel %vm3521, 1, 0
      %v3552 = vsel %vm3522, 1, 0
      %v3553 = vsel %vm3523, 1, 0
      %v3554 = vsel %vm3524, 1, 0
      %v3555 = vsel %vm3525, 1, 0
      %v3556 = vsel %vm3526, 1, 0
      %v3557 = vsel %vm3527, 1, 0
      %v3558 = vsel %vm3528, 1, 0
      %v3559 = vsel %vm3529, 1, 0
      %v3560 = vsel %vm3530, 1, 0
      %v3561 = vsel %vm3531, 1, 0
      %v3562 = vsel %vm3532, 1, 0
      %v3563 = vsel %vm3533, 1, 0
      %v3564 = vsel %vm3534, 1, 0
      %v3565 = vsel %vm3535, 1, 0
      %v3566 = vsel %vm3536, 1, 0
      %v3567 = vsel %vm3537, 1, 0
      %v3568 = vsel %vm3538, 1, 0
      %vm3569 = vcmp.eq.s32.totalorder %v3539, 1
      %vm3570 = vcmp.eq.s32.totalorder %v3540, 1
      %vm3571 = vcmp.eq.s32.totalorder %v3541, 1
      %vm3572 = vcmp.eq.s32.totalorder %v3542, 1
      %vm3573 = vcmp.eq.s32.totalorder %v3543, 1
      %vm3574 = vcmp.eq.s32.totalorder %v3544, 1
      %vm3575 = vcmp.eq.s32.totalorder %v3545, 1
      %vm3576 = vcmp.eq.s32.totalorder %v3546, 1
      %vm3577 = vcmp.eq.s32.totalorder %v3547, 1
      %vm3578 = vcmp.eq.s32.totalorder %v3548, 1
      %vm3579 = vcmp.eq.s32.totalorder %v3549, 1
      %vm3580 = vcmp.eq.s32.totalorder %v3550, 1
      %vm3581 = vcmp.eq.s32.totalorder %v3551, 1
      %vm3582 = vcmp.eq.s32.totalorder %v3552, 1
      %vm3583 = vcmp.eq.s32.totalorder %v3553, 1
      %vm3584 = vcmp.eq.s32.totalorder %v3554, 1
      %vm3585 = vcmp.eq.s32.totalorder %v3555, 1
      %vm3586 = vcmp.eq.s32.totalorder %v3556, 1
      %vm3587 = vcmp.eq.s32.totalorder %v3557, 1
      %vm3588 = vcmp.eq.s32.totalorder %v3558, 1
      %vm3589 = vcmp.eq.s32.totalorder %v3559, 1
      %vm3590 = vcmp.eq.s32.totalorder %v3560, 1
      %vm3591 = vcmp.eq.s32.totalorder %v3561, 1
      %vm3592 = vcmp.eq.s32.totalorder %v3562, 1
      %vm3593 = vcmp.eq.s32.totalorder %v3563, 1
      %vm3594 = vcmp.eq.s32.totalorder %v3564, 1
      %vm3595 = vcmp.eq.s32.totalorder %v3565, 1
      %vm3596 = vcmp.eq.s32.totalorder %v3566, 1
      %vm3597 = vcmp.eq.s32.totalorder %v3567, 1
      %vm3598 = vcmp.eq.s32.totalorder %v3568, 1
      %v3599 = vsel %vm3569, %v3362, 0.0
      %v3600 = vsel %vm3570, %v3363, 0.0
      %v3601 = vsel %vm3571, %v3364, 0.0
      %v3602 = vsel %vm3572, %v3365, 0.0
      %v3603 = vsel %vm3573, %v3366, 0.0
      %v3604 = vsel %vm3574, %v3367, 0.0
      %v3605 = vsel %vm3575, %v3368, 0.0
      %v3606 = vsel %vm3576, %v3369, 0.0
      %v3607 = vsel %vm3577, %v3370, 0.0
      %v3608 = vsel %vm3578, %v3371, 0.0
      %v3609 = vsel %vm3579, %v3372, 0.0
      %v3610 = vsel %vm3580, %v3373, 0.0
      %v3611 = vsel %vm3581, %v3374, 0.0
      %v3612 = vsel %vm3582, %v3375, 0.0
      %v3613 = vsel %vm3583, %v3376, 0.0
      %v3614 = vsel %vm3584, %v3377, 0.0
      %v3615 = vsel %vm3585, %v3378, 0.0
      %v3616 = vsel %vm3586, %v3379, 0.0
      %v3617 = vsel %vm3587, %v3380, 0.0
      %v3618 = vsel %vm3588, %v3381, 0.0
      %v3619 = vsel %vm3589, %v3382, 0.0
      %v3620 = vsel %vm3590, %v3383, 0.0
      %v3621 = vsel %vm3591, %v3384, 0.0
      %v3622 = vsel %vm3592, %v3385, 0.0
      %v3623 = vsel %vm3593, %v3386, 0.0
      %v3624 = vsel %vm3594, %v3387, 0.0
      %v3625 = vsel %vm3595, %v3388, 0.0
      %v3626 = vsel %vm3596, %v3389, 0.0
      %v3627 = vsel %vm3597, %v3390, 0.0
      %v3628 = vsel %vm3598, %v3391, 0.0
      %3629 = vst [vmem:[#allocation3] sm:$0xff] %v3599
      %3630 = vst [vmem:[#allocation3 + $0x8] sm:$0xff] %v3600
      %3631 = vst [vmem:[#allocation3 + $0x10] sm:$0x3] %v3601
      %3632 = vst [vmem:[#allocation3 + $0x18] sm:$0xff] %v3602
      %3633 = vst [vmem:[#allocation3 + $0x20] sm:$0xff] %v3603
      %3634 = vst [vmem:[#allocation3 + $0x28] sm:$0x3] %v3604
      %3635 = vst [vmem:[#allocation3 + $0x30] sm:$0xff] %v3605
      %3636 = vst [vmem:[#allocation3 + $0x38] sm:$0xff] %v3606
      %3637 = vst [vmem:[#allocation3 + $0x40] sm:$0x3] %v3607
      %3638 = vst [vmem:[#allocation3 + $0x48] sm:$0xff] %v3608
      %3639 = vst [vmem:[#allocation3 + $0x50] sm:$0xff] %v3609
      %3640 = vst [vmem:[#allocation3 + $0x58] sm:$0x3] %v3610
      %3641 = vst [vmem:[#allocation3 + $0x60] sm:$0xff] %v3611
      %3642 = vst [vmem:[#allocation3 + $0x68] sm:$0xff] %v3612
      %3643 = vst [vmem:[#allocation3 + $0x70] sm:$0x3] %v3613
      %3644 = vst [vmem:[#allocation3 + $0x78] sm:$0xff] %v3614
      %3645 = vst [vmem:[#allocation3 + $0x80] sm:$0xff] %v3615
      %3646 = vst [vmem:[#allocation3 + $0x88] sm:$0x3] %v3616
      %3647 = vst [vmem:[#allocation3 + $0x90] sm:$0xff] %v3617
      %3648 = vst [vmem:[#allocation3 + $0x98] sm:$0xff] %v3618
      %3649 = vst [vmem:[#allocation3 + $0xa0] sm:$0x3] %v3619
      %3650 = vst [vmem:[#allocation3 + $0xa8] sm:$0xff] %v3620
      %3651 = vst [vmem:[#allocation3 + $0xb0] sm:$0xff] %v3621
      %3652 = vst [vmem:[#allocation3 + $0xb8] sm:$0x3] %v3622
      %3653 = vst [vmem:[#allocation3 + $0xc0] sm:$0xff] %v3623
      %3654 = vst [vmem:[#allocation3 + $0xc8] sm:$0xff] %v3624
      %3655 = vst [vmem:[#allocation3 + $0xd0] sm:$0x3] %v3625
      %3656 = vst [vmem:[#allocation3 + $0xd8] sm:$0xff] %v3626
      %3657 = vst [vmem:[#allocation3 + $0xe0] sm:$0xff] %v3627
      %3658 = vst [vmem:[#allocation3 + $0xe8] sm:$0x3] %v3628
      %v3659 = vld [vmem:[#allocation3] sm:$0xff]
      %v3660 = vld [vmem:[#allocation3 + $0x8] sm:$0xff]
      %v3661 = vld [vmem:[#allocation3 + $0x18] sm:$0xff]
      %v3662 = vld [vmem:[#allocation3 + $0x20] sm:$0xff]
      %v3663 = vld [vmem:[#allocation3 + $0x30] sm:$0xff]
      %v3664 = vld [vmem:[#allocation3 + $0x38] sm:$0xff]
      %v3665 = vld [vmem:[#allocation3 + $0x48] sm:$0xff]
      %v3666 = vld [vmem:[#allocation3 + $0x50] sm:$0xff]
      %v3667 = vld [vmem:[#allocation3 + $0x60] sm:$0xff]
      %v3668 = vld [vmem:[#allocation3 + $0x68] sm:$0xff]
      %v3669 = vld [vmem:[#allocation3 + $0x78] sm:$0xff]
      %v3670 = vld [vmem:[#allocation3 + $0x80] sm:$0xff]
      %v3671 = vld [vmem:[#allocation3 + $0x90] sm:$0xff]
      %v3672 = vld [vmem:[#allocation3 + $0x98] sm:$0xff]
      %v3673 = vld [vmem:[#allocation3 + $0xa8] sm:$0xff]
      %v3674 = vld [vmem:[#allocation3 + $0xb0] sm:$0xff]
      %v3675 = vld [vmem:[%s6] sm:$0xff]
      %v3676 = vld [vmem:[%s6 + $0x8] sm:$0xff]
      %v3677 = vld [vmem:[%s6 + $0x10] sm:$0xff]
      %v3678 = vld [vmem:[%s6 + $0x18] sm:$0xff]
      %v3679 = vld [vmem:[%s6 + $0x20] sm:$0xff]
      %v3680 = vld [vmem:[%s6 + $0x28] sm:$0xff]
      %v3681 = vld [vmem:[%s6 + $0x30] sm:$0xff]
      %v3682 = vld [vmem:[%s6 + $0x38] sm:$0xff]
      %v3683 = vld [vmem:[%s6 + $0x40] sm:$0xff]
      %v3684 = vld [vmem:[%s6 + $0x48] sm:$0xff]
      %v3685 = vld [vmem:[%s6 + $0x50] sm:$0xff]
      %v3686 = vld [vmem:[%s6 + $0x58] sm:$0xff]
      %v3687 = vld [vmem:[%s6 + $0x60] sm:$0xff]
      %v3688 = vld [vmem:[%s6 + $0x68] sm:$0xff]
      %v3689 = vld [vmem:[%s6 + $0x70] sm:$0xff]
      %v3690 = vld [vmem:[%s6 + $0x78] sm:$0xff]
      %v3691 = vld [vmem:[#allocation3 + $0x1] sm:$0xff]
      %v3692 = vld [vmem:[#allocation3 + $0x9] sm:$0xff]
      %v3693 = vld [vmem:[#allocation3 + $0x19] sm:$0xff]
      %v3694 = vld [vmem:[#allocation3 + $0x21] sm:$0xff]
      %v3695 = vld [vmem:[#allocation3 + $0x31] sm:$0xff]
      %v3696 = vld [vmem:[#allocation3 + $0x39] sm:$0xff]
      %v3697 = vld [vmem:[#allocation3 + $0x49] sm:$0xff]
      %v3698 = vld [vmem:[#allocation3 + $0x51] sm:$0xff]
      %v3699 = vld [vmem:[#allocation3 + $0x61] sm:$0xff]
      %v3700 = vld [vmem:[#allocation3 + $0x69] sm:$0xff]
      %v3701 = vld [vmem:[#allocation3 + $0x79] sm:$0xff]
      %v3702 = vld [vmem:[#allocation3 + $0x81] sm:$0xff]
      %v3703 = vld [vmem:[#allocation3 + $0x91] sm:$0xff]
      %v3704 = vld [vmem:[#allocation3 + $0x99] sm:$0xff]
      %v3705 = vld [vmem:[#allocation3 + $0xa9] sm:$0xff]
      %v3706 = vld [vmem:[#allocation3 + $0xb1] sm:$0xff]
      %s3707 = scalar_lea.vmem %s6, 128
      %v3708 = vld [vmem:[%s3707] sm:$0xff]
      %v3709 = vld [vmem:[%s3707 + $0x8] sm:$0xff]
      %v3710 = vld [vmem:[%s3707 + $0x10] sm:$0xff]
      %v3711 = vld [vmem:[%s3707 + $0x18] sm:$0xff]
      %v3712 = vld [vmem:[%s3707 + $0x20] sm:$0xff]
      %v3713 = vld [vmem:[%s3707 + $0x28] sm:$0xff]
      %v3714 = vld [vmem:[%s3707 + $0x30] sm:$0xff]
      %v3715 = vld [vmem:[%s3707 + $0x38] sm:$0xff]
      %v3716 = vld [vmem:[%s3707 + $0x40] sm:$0xff]
      %v3717 = vld [vmem:[%s3707 + $0x48] sm:$0xff]
      %v3718 = vld [vmem:[%s3707 + $0x50] sm:$0xff]
      %v3719 = vld [vmem:[%s3707 + $0x58] sm:$0xff]
      %v3720 = vld [vmem:[%s3707 + $0x60] sm:$0xff]
      %v3721 = vld [vmem:[%s3707 + $0x68] sm:$0xff]
      %v3722 = vld [vmem:[%s3707 + $0x70] sm:$0xff]
      %v3723 = vld [vmem:[%s3707 + $0x78] sm:$0xff]
      %3724 = vmatprep.subr.mxu0 0.0
      %3725 = vmatpush1.msra.mxu0 %v3708
      %3726 = vmatprep.subr.mxu0 0.0
      %3727 = vmatpush1.msra.mxu0 %v3709
      %3728 = vmatprep.subr.mxu0 0.0
      %3729 = vmatpush1.msra.mxu0 %v3710
      %3730 = vmatprep.subr.mxu0 0.0
      %3731 = vmatpush1.msra.mxu0 %v3711
      %3732 = vmatprep.subr.mxu0 0.0
      %3733 = vmatpush1.msra.mxu0 %v3712
      %3734 = vmatprep.subr.mxu0 0.0
      %3735 = vmatpush1.msra.mxu0 %v3713
      %3736 = vmatprep.subr.mxu0 0.0
      %3737 = vmatpush1.msra.mxu0 %v3714
      %3738 = vmatprep.subr.mxu0 0.0
      %3739 = vmatpush1.msra.mxu0 %v3715
      %3740 = vmatprep.subr.mxu0 0.0
      %3741 = vmatpush1.msra.mxu0 %v3716
      %3742 = vmatprep.subr.mxu0 0.0
      %3743 = vmatpush1.msra.mxu0 %v3717
      %3744 = vmatprep.subr.mxu0 0.0
      %3745 = vmatpush1.msra.mxu0 %v3718
      %3746 = vmatprep.subr.mxu0 0.0
      %3747 = vmatpush1.msra.mxu0 %v3719
      %3748 = vmatprep.subr.mxu0 0.0
      %3749 = vmatpush1.msra.mxu0 %v3720
      %3750 = vmatprep.subr.mxu0 0.0
      %3751 = vmatpush1.msra.mxu0 %v3721
      %3752 = vmatprep.subr.mxu0 0.0
      %3753 = vmatpush1.msra.mxu0 %v3722
      %3754 = vmatprep.subr.mxu0 0.0
      %3755 = vmatpush1.msra.mxu0 %v3723
      %3756 = vmatprep.subr.mxu0 0.0
      %3757 = vmatpush1.msra.mxu0 0.0
      %3758 = vmatprep.subr.mxu0 0.0
      %3759 = vmatpush1.msra.mxu0 0.0
      %3760 = vmatprep.subr.mxu0 0.0
      %3761 = vmatpush1.msra.mxu0 0.0
      %3762 = vmatprep.subr.mxu0 0.0
      %3763 = vmatpush1.msra.mxu0 0.0
      %3764 = vmatprep.subr.mxu0 0.0
      %3765 = vmatpush1.msra.mxu0 0.0
      %3766 = vmatprep.subr.mxu0 0.0
      %3767 = vmatpush1.msra.mxu0 0.0
      %3768 = vmatprep.subr.mxu0 0.0
      %3769 = vmatpush1.msra.mxu0 0.0
      %3770 = vmatprep.subr.mxu0 0.0
      %3771 = vmatpush1.msra.mxu0 0.0
      %3772 = vmatprep.subr.mxu0 0.0
      %3773 = vmatpush1.msra.mxu0 0.0
      %3774 = vmatprep.subr.mxu0 0.0
      %3775 = vmatpush1.msra.mxu0 0.0
      %3776 = vmatprep.subr.mxu0 0.0
      %3777 = vmatpush1.msra.mxu0 0.0
      %3778 = vmatprep.subr.mxu0 0.0
      %3779 = vmatpush1.msra.mxu0 0.0
      %3780 = vmatprep.subr.mxu0 0.0
      %3781 = vmatpush1.msra.mxu0 0.0
      %3782 = vmatprep.subr.mxu0 0.0
      %3783 = vmatpush1.msra.mxu0 0.0
      %3784 = vmatprep.subr.mxu0 0.0
      %3785 = vmatpush1.msra.mxu0 0.0
      %3786 = vmatprep.subr.mxu0 0.0
      %3787 = vmatpush1.msra.mxu0 0.0
      %3788 = vmatprep.mubr.f32.mxu0 0.0
      %3789 = vmatmul.mubr.f32.gmra.mrb[0].mxu0 %v3691
      %v3790 = vpop.f32.mrb[0].mxu0
      %v3791 = vadd.f32 0.0, %v3790
      %v3792 = vpop.f32.mrb[0].mxu0
      %3793 = vmatprep.mubr.f32.mxu0 0.0
      %3794 = vmatmul.mubr.f32.gmra.mrb[0].mxu0 %v3692
      %v3795 = vpop.f32.mrb[0].mxu0
      %v3796 = vadd.f32 0.0, %v3795
      %v3797 = vpop.f32.mrb[0].mxu0
      %3798 = vmatprep.mubr.f32.mxu0 0.0
      %3799 = vmatmul.mubr.f32.gmra.mrb[0].mxu0 %v3693
      %v3800 = vpop.f32.mrb[0].mxu0
      %v3801 = vadd.f32 0.0, %v3800
      %v3802 = vpop.f32.mrb[0].mxu0
      %3803 = vmatprep.mubr.f32.mxu0 0.0
      %3804 = vmatmul.mubr.f32.gmra.mrb[0].mxu0 %v3694
      %v3805 = vpop.f32.mrb[0].mxu0
      %v3806 = vadd.f32 0.0, %v3805
      %v3807 = vpop.f32.mrb[0].mxu0
      %3808 = vmatprep.mubr.f32.mxu0 0.0
      %3809 = vmatmul.mubr.f32.gmra.mrb[0].mxu0 %v3695
      %v3810 = vpop.f32.mrb[0].mxu0
      %v3811 = vadd.f32 0.0, %v3810
      %v3812 = vpop.f32.mrb[0].mxu0
      %3813 = vmatprep.mubr.f32.mxu0 0.0
      %3814 = vmatmul.mubr.f32.gmra.mrb[0].mxu0 %v3696
      %v3815 = vpop.f32.mrb[0].mxu0
      %v3816 = vadd.f32 0.0, %v3815
      %v3817 = vpop.f32.mrb[0].mxu0
      %3818 = vmatprep.mubr.f32.mxu0 0.0
      %3819 = vmatmul.mubr.f32.gmra.mrb[0].mxu0 %v3697
      %v3820 = vpop.f32.mrb[0].mxu0
      %v3821 = vadd.f32 0.0, %v3820
      %v3822 = vpop.f32.mrb[0].mxu0
      %3823 = vmatprep.mubr.f32.mxu0 0.0
      %3824 = vmatmul.mubr.f32.gmra.mrb[0].mxu0 %v3698
      %v3825 = vpop.f32.mrb[0].mxu0
      %v3826 = vadd.f32 0.0, %v3825
      %v3827 = vpop.f32.mrb[0].mxu0
      %3828 = vmatprep.mubr.f32.mxu0 0.0
      %3829 = vmatmul.mubr.f32.gmra.mrb[0].mxu0 %v3699
      %v3830 = vpop.f32.mrb[0].mxu0
      %v3831 = vadd.f32 0.0, %v3830
      %v3832 = vpop.f32.mrb[0].mxu0
      %3833 = vmatprep.mubr.f32.mxu0 0.0
      %3834 = vmatmul.mubr.f32.gmra.mrb[0].mxu0 %v3700
      %v3835 = vpop.f32.mrb[0].mxu0
      %v3836 = vadd.f32 0.0, %v3835
      %v3837 = vpop.f32.mrb[0].mxu0
      %3838 = vmatprep.mubr.f32.mxu0 0.0
      %3839 = vmatmul.mubr.f32.gmra.mrb[0].mxu0 %v3701
      %v3840 = vpop.f32.mrb[0].mxu0
      %v3841 = vadd.f32 0.0, %v3840
      %v3842 = vpop.f32.mrb[0].mxu0
      %3843 = vmatprep.mubr.f32.mxu0 0.0
      %3844 = vmatmul.mubr.f32.gmra.mrb[0].mxu0 %v3702
      %v3845 = vpop.f32.mrb[0].mxu0
      %v3846 = vadd.f32 0.0, %v3845
      %v3847 = vpop.f32.mrb[0].mxu0
      %3848 = vmatprep.mubr.f32.mxu0 0.0
      %3849 = vmatmul.mubr.f32.gmra.mrb[0].mxu0 %v3703
      %v3850 = vpop.f32.mrb[0].mxu0
      %v3851 = vadd.f32 0.0, %v3850
      %v3852 = vpop.f32.mrb[0].mxu0
      %3853 = vmatprep.mubr.f32.mxu0 0.0
      %3854 = vmatmul.mubr.f32.gmra.mrb[0].mxu0 %v3704
      %v3855 = vpop.f32.mrb[0].mxu0
      %v3856 = vadd.f32 0.0, %v3855
      %v3857 = vpop.f32.mrb[0].mxu0
      %3858 = vmatprep.mubr.f32.mxu0 0.0
      %3859 = vmatmul.mubr.f32.gmra.mrb[0].mxu0 %v3705
      %v3860 = vpop.f32.mrb[0].mxu0
      %v3861 = vadd.f32 0.0, %v3860
      %v3862 = vpop.f32.mrb[0].mxu0
      %3863 = vmatprep.mubr.f32.mxu0 0.0
      %3864 = vmatmul.mubr.f32.gmra.mrb[0].mxu0 %v3706
      %v3865 = vpop.f32.mrb[0].mxu0
      %v3866 = vadd.f32 0.0, %v3865
      %v3867 = vpop.f32.mrb[0].mxu0
      %3868 = vdwg.mxu0
      %3869 = vmatprep.subr.mxu0 0.0
      %3870 = vmatpush1.msra.mxu0 %v3675
      %3871 = vmatprep.subr.mxu0 0.0
      %3872 = vmatpush1.msra.mxu0 %v3676
      %3873 = vmatprep.subr.mxu0 0.0
      %3874 = vmatpush1.msra.mxu0 %v3677
      %3875 = vmatprep.subr.mxu0 0.0
      %3876 = vmatpush1.msra.mxu0 %v3678
      %3877 = vmatprep.subr.mxu0 0.0
      %3878 = vmatpush1.msra.mxu0 %v3679
      %3879 = vmatprep.subr.mxu0 0.0
      %3880 = vmatpush1.msra.mxu0 %v3680
      %3881 = vmatprep.subr.mxu0 0.0
      %3882 = vmatpush1.msra.mxu0 %v3681
      %3883 = vmatprep.subr.mxu0 0.0
      %3884 = vmatpush1.msra.mxu0 %v3682
      %3885 = vmatprep.subr.mxu0 0.0
      %3886 = vmatpush1.msra.mxu0 %v3683
      %3887 = vmatprep.subr.mxu0 0.0
      %3888 = vmatpush1.msra.mxu0 %v3684
      %3889 = vmatprep.subr.mxu0 0.0
      %3890 = vmatpush1.msra.mxu0 %v3685
      %3891 = vmatprep.subr.mxu0 0.0
      %3892 = vmatpush1.msra.mxu0 %v3686
      %3893 = vmatprep.subr.mxu0 0.0
      %3894 = vmatpush1.msra.mxu0 %v3687
      %3895 = vmatprep.subr.mxu0 0.0
      %3896 = vmatpush1.msra.mxu0 %v3688
      %3897 = vmatprep.subr.mxu0 0.0
      %3898 = vmatpush1.msra.mxu0 %v3689
      %3899 = vmatprep.subr.mxu0 0.0
      %3900 = vmatpush1.msra.mxu0 %v3690
      %3901 = vmatprep.subr.mxu0 0.0
      %3902 = vmatpush1.msra.mxu0 0.0
      %3903 = vmatprep.subr.mxu0 0.0
      %3904 = vmatpush1.msra.mxu0 0.0
      %3905 = vmatprep.subr.mxu0 0.0
      %3906 = vmatpush1.msra.mxu0 0.0
      %3907 = vmatprep.subr.mxu0 0.0
      %3908 = vmatpush1.msra.mxu0 0.0
      %3909 = vmatprep.subr.mxu0 0.0
      %3910 = vmatpush1.msra.mxu0 0.0
      %3911 = vmatprep.subr.mxu0 0.0
      %3912 = vmatpush1.msra.mxu0 0.0
      %3913 = vmatprep.subr.mxu0 0.0
      %3914 = vmatpush1.msra.mxu0 0.0
      %3915 = vmatprep.subr.mxu0 0.0
      %3916 = vmatpush1.msra.mxu0 0.0
      %3917 = vmatprep.subr.mxu0 0.0
      %3918 = vmatpush1.msra.mxu0 0.0
      %3919 = vmatprep.subr.mxu0 0.0
      %3920 = vmatpush1.msra.mxu0 0.0
      %3921 = vmatprep.subr.mxu0 0.0
      %3922 = vmatpush1.msra.mxu0 0.0
      %3923 = vmatprep.subr.mxu0 0.0
      %3924 = vmatpush1.msra.mxu0 0.0
      %3925 = vmatprep.subr.mxu0 0.0
      %3926 = vmatpush1.msra.mxu0 0.0
      %3927 = vmatprep.subr.mxu0 0.0
      %3928 = vmatpush1.msra.mxu0 0.0
      %3929 = vmatprep.subr.mxu0 0.0
      %3930 = vmatpush1.msra.mxu0 0.0
      %3931 = vmatprep.subr.mxu0 0.0
      %3932 = vmatpush1.msra.mxu0 0.0
      %3933 = vmatprep.mubr.f32.mxu0 0.0
      %3934 = vmatmul.mubr.f32.gmra.mrb[0].mxu0 %v3659
      %v3935 = vpop.f32.mrb[0].mxu0
      %v3936 = vadd.f32 %v3791, %v3935
      %v3937 = vpop.f32.mrb[0].mxu0
      %3938 = vmatprep.mubr.f32.mxu0 0.0
      %3939 = vmatmul.mubr.f32.gmra.mrb[0].mxu0 %v3660
      %v3940 = vpop.f32.mrb[0].mxu0
      %v3941 = vadd.f32 %v3796, %v3940
      %v3942 = vpop.f32.mrb[0].mxu0
      %3943 = vmatprep.mubr.f32.mxu0 0.0
      %3944 = vmatmul.mubr.f32.gmra.mrb[0].mxu0 %v3661
      %v3945 = vpop.f32.mrb[0].mxu0
      %v3946 = vadd.f32 %v3801, %v3945
      %v3947 = vpop.f32.mrb[0].mxu0
      %3948 = vmatprep.mubr.f32.mxu0 0.0
      %3949 = vmatmul.mubr.f32.gmra.mrb[0].mxu0 %v3662
      %v3950 = vpop.f32.mrb[0].mxu0
      %v3951 = vadd.f32 %v3806, %v3950
      %v3952 = vpop.f32.mrb[0].mxu0
      %3953 = vmatprep.mubr.f32.mxu0 0.0
      %3954 = vmatmul.mubr.f32.gmra.mrb[0].mxu0 %v3663
      %v3955 = vpop.f32.mrb[0].mxu0
      %v3956 = vadd.f32 %v3811, %v3955
      %v3957 = vpop.f32.mrb[0].mxu0
      %3958 = vmatprep.mubr.f32.mxu0 0.0
      %3959 = vmatmul.mubr.f32.gmra.mrb[0].mxu0 %v3664
      %v3960 = vpop.f32.mrb[0].mxu0
      %v3961 = vadd.f32 %v3816, %v3960
      %v3962 = vpop.f32.mrb[0].mxu0
      %3963 = vmatprep.mubr.f32.mxu0 0.0
      %3964 = vmatmul.mubr.f32.gmra.mrb[0].mxu0 %v3665
      %v3965 = vpop.f32.mrb[0].mxu0
      %v3966 = vadd.f32 %v3821, %v3965
      %v3967 = vpop.f32.mrb[0].mxu0
      %3968 = vmatprep.mubr.f32.mxu0 0.0
      %3969 = vmatmul.mubr.f32.gmra.mrb[0].mxu0 %v3666
      %v3970 = vpop.f32.mrb[0].mxu0
      %v3971 = vadd.f32 %v3826, %v3970
      %v3972 = vpop.f32.mrb[0].mxu0
      %3973 = vmatprep.mubr.f32.mxu0 0.0
      %3974 = vmatmul.mubr.f32.gmra.mrb[0].mxu0 %v3667
      %v3975 = vpop.f32.mrb[0].mxu0
      %v3976 = vadd.f32 %v3831, %v3975
      %v3977 = vpop.f32.mrb[0].mxu0
      %3978 = vmatprep.mubr.f32.mxu0 0.0
      %3979 = vmatmul.mubr.f32.gmra.mrb[0].mxu0 %v3668
      %v3980 = vpop.f32.mrb[0].mxu0
      %v3981 = vadd.f32 %v3836, %v3980
      %v3982 = vpop.f32.mrb[0].mxu0
      %3983 = vmatprep.mubr.f32.mxu0 0.0
      %3984 = vmatmul.mubr.f32.gmra.mrb[0].mxu0 %v3669
      %v3985 = vpop.f32.mrb[0].mxu0
      %v3986 = vadd.f32 %v3841, %v3985
      %v3987 = vpop.f32.mrb[0].mxu0
      %3988 = vmatprep.mubr.f32.mxu0 0.0
      %3989 = vmatmul.mubr.f32.gmra.mrb[0].mxu0 %v3670
      %v3990 = vpop.f32.mrb[0].mxu0
      %v3991 = vadd.f32 %v3846, %v3990
      %v3992 = vpop.f32.mrb[0].mxu0
      %3993 = vmatprep.mubr.f32.mxu0 0.0
      %3994 = vmatmul.mubr.f32.gmra.mrb[0].mxu0 %v3671
      %v3995 = vpop.f32.mrb[0].mxu0
      %v3996 = vadd.f32 %v3851, %v3995
      %v3997 = vpop.f32.mrb[0].mxu0
      %3998 = vmatprep.mubr.f32.mxu0 0.0
      %3999 = vmatmul.mubr.f32.gmra.mrb[0].mxu0 %v3672
      %v4000 = vpop.f32.mrb[0].mxu0
      %v4001 = vadd.f32 %v3856, %v4000
      %v4002 = vpop.f32.mrb[0].mxu0
      %4003 = vmatprep.mubr.f32.mxu0 0.0
      %4004 = vmatmul.mubr.f32.gmra.mrb[0].mxu0 %v3673
      %v4005 = vpop.f32.mrb[0].mxu0
      %v4006 = vadd.f32 %v3861, %v4005
      %v4007 = vpop.f32.mrb[0].mxu0
      %4008 = vmatprep.mubr.f32.mxu0 0.0
      %4009 = vmatmul.mubr.f32.gmra.mrb[0].mxu0 %v3674
      %v4010 = vpop.f32.mrb[0].mxu0
      %v4011 = vadd.f32 %v3866, %v4010
      %v4012 = vpop.f32.mrb[0].mxu0
      %4013 = vdwg.mxu0
      %v4014 = vld [vmem:[#allocation3 + $0x2] sm:$0xff]
      %v4015 = vld [vmem:[#allocation3 + $0xa] sm:$0xff]
      %v4016 = vld [vmem:[#allocation3 + $0x1a] sm:$0xff]
      %v4017 = vld [vmem:[#allocation3 + $0x22] sm:$0xff]
      %v4018 = vld [vmem:[#allocation3 + $0x32] sm:$0xff]
      %v4019 = vld [vmem:[#allocation3 + $0x3a] sm:$0xff]
      %v4020 = vld [vmem:[#allocation3 + $0x4a] sm:$0xff]
      %v4021 = vld [vmem:[#allocation3 + $0x52] sm:$0xff]
      %v4022 = vld [vmem:[#allocation3 + $0x62] sm:$0xff]
      %v4023 = vld [vmem:[#allocation3 + $0x6a] sm:$0xff]
      %v4024 = vld [vmem:[#allocation3 + $0x7a] sm:$0xff]
      %v4025 = vld [vmem:[#allocation3 + $0x82] sm:$0xff]
      %v4026 = vld [vmem:[#allocation3 + $0x92] sm:$0xff]
      %v4027 = vld [vmem:[#allocation3 + $0x9a] sm:$0xff]
      %v4028 = vld [vmem:[#allocation3 + $0xaa] sm:$0xff]
      %v4029 = vld [vmem:[#allocation3 + $0xb2] sm:$0xff]
      %s4030 = scalar_lea.vmem %s6, 256
      %v4031 = vld [vmem:[%s4030] sm:$0xff]
      %v4032 = vld [vmem:[%s4030 + $0x8] sm:$0xff]
      %v4033 = vld [vmem:[%s4030 + $0x10] sm:$0xff]
      %v4034 = vld [vmem:[%s4030 + $0x18] sm:$0xff]
      %v4035 = vld [vmem:[%s4030 + $0x20] sm:$0xff]
      %v4036 = vld [vmem:[%s4030 + $0x28] sm:$0xff]
      %v4037 = vld [vmem:[%s4030 + $0x30] sm:$0xff]
      %v4038 = vld [vmem:[%s4030 + $0x38] sm:$0xff]
      %v4039 = vld [vmem:[%s4030 + $0x40] sm:$0xff]
      %v4040 = vld [vmem:[%s4030 + $0x48] sm:$0xff]
      %v4041 = vld [vmem:[%s4030 + $0x50] sm:$0xff]
      %v4042 = vld [vmem:[%s4030 + $0x58] sm:$0xff]
      %v4043 = vld [vmem:[%s4030 + $0x60] sm:$0xff]
      %v4044 = vld [vmem:[%s4030 + $0x68] sm:$0xff]
      %v4045 = vld [vmem:[%s4030 + $0x70] sm:$0xff]
      %v4046 = vld [vmem:[%s4030 + $0x78] sm:$0xff]
      %4047 = vmatprep.subr.mxu0 0.0
      %4048 = vmatpush1.msra.mxu0 %v4031
      %4049 = vmatprep.subr.mxu0 0.0
      %4050 = vmatpush1.msra.mxu0 %v4032
      %4051 = vmatprep.subr.mxu0 0.0
      %4052 = vmatpush1.msra.mxu0 %v4033
      %4053 = vmatprep.subr.mxu0 0.0
      %4054 = vmatpush1.msra.mxu0 %v4034
      %4055 = vmatprep.subr.mxu0 0.0
      %4056 = vmatpush1.msra.mxu0 %v4035
      %4057 = vmatprep.subr.mxu0 0.0
      %4058 = vmatpush1.msra.mxu0 %v4036
      %4059 = vmatprep.subr.mxu0 0.0
      %4060 = vmatpush1.msra.mxu0 %v4037
      %4061 = vmatprep.subr.mxu0 0.0
      %4062 = vmatpush1.msra.mxu0 %v4038
      %4063 = vmatprep.subr.mxu0 0.0
      %4064 = vmatpush1.msra.mxu0 %v4039
      %4065 = vmatprep.subr.mxu0 0.0
      %4066 = vmatpush1.msra.mxu0 %v4040
      %4067 = vmatprep.subr.mxu0 0.0
      %4068 = vmatpush1.msra.mxu0 %v4041
      %4069 = vmatprep.subr.mxu0 0.0
      %4070 = vmatpush1.msra.mxu0 %v4042
      %4071 = vmatprep.subr.mxu0 0.0
      %4072 = vmatpush1.msra.mxu0 %v4043
      %4073 = vmatprep.subr.mxu0 0.0
      %4074 = vmatpush1.msra.mxu0 %v4044
      %4075 = vmatprep.subr.mxu0 0.0
      %4076 = vmatpush1.msra.mxu0 %v4045
      %4077 = vmatprep.subr.mxu0 0.0
      %4078 = vmatpush1.msra.mxu0 %v4046
      %4079 = vmatprep.subr.mxu0 0.0
      %4080 = vmatpush1.msra.mxu0 0.0
      %4081 = vmatprep.subr.mxu0 0.0
      %4082 = vmatpush1.msra.mxu0 0.0
      %4083 = vmatprep.subr.mxu0 0.0
      %4084 = vmatpush1.msra.mxu0 0.0
      %4085 = vmatprep.subr.mxu0 0.0
      %4086 = vmatpush1.msra.mxu0 0.0
      %4087 = vmatprep.subr.mxu0 0.0
      %4088 = vmatpush1.msra.mxu0 0.0
      %4089 = vmatprep.subr.mxu0 0.0
      %4090 = vmatpush1.msra.mxu0 0.0
      %4091 = vmatprep.subr.mxu0 0.0
      %4092 = vmatpush1.msra.mxu0 0.0
      %4093 = vmatprep.subr.mxu0 0.0
      %4094 = vmatpush1.msra.mxu0 0.0
      %4095 = vmatprep.subr.mxu0 0.0
      %4096 = vmatpush1.msra.mxu0 0.0
      %4097 = vmatprep.subr.mxu0 0.0
      %4098 = vmatpush1.msra.mxu0 0.0
      %4099 = vmatprep.subr.mxu0 0.0
      %4100 = vmatpush1.msra.mxu0 0.0
      %4101 = vmatprep.subr.mxu0 0.0
      %4102 = vmatpush1.msra.mxu0 0.0
      %4103 = vmatprep.subr.mxu0 0.0
      %4104 = vmatpush1.msra.mxu0 0.0
      %4105 = vmatprep.subr.mxu0 0.0
      %4106 = vmatpush1.msra.mxu0 0.0
      %4107 = vmatprep.subr.mxu0 0.0
      %4108 = vmatpush1.msra.mxu0 0.0
      %4109 = vmatprep.subr.mxu0 0.0
      %4110 = vmatpush1.msra.mxu0 0.0
      %4111 = vmatprep.mubr.f32.mxu0 0.0
      %4112 = vmatmul.mubr.f32.gmra.mrb[0].mxu0 %v4014
      %v4113 = vpop.f32.mrb[0].mxu0
      %v4114 = vadd.f32 0.0, %v4113
      %v4115 = vpop.f32.mrb[0].mxu0
      %4116 = vmatprep.mubr.f32.mxu0 0.0
      %4117 = vmatmul.mubr.f32.gmra.mrb[0].mxu0 %v4015
      %v4118 = vpop.f32.mrb[0].mxu0
      %v4119 = vadd.f32 0.0, %v4118
      %v4120 = vpop.f32.mrb[0].mxu0
      %4121 = vmatprep.mubr.f32.mxu0 0.0
      %4122 = vmatmul.mubr.f32.gmra.mrb[0].mxu0 %v4016
      %v4123 = vpop.f32.mrb[0].mxu0
      %v4124 = vadd.f32 0.0, %v4123
      %v4125 = vpop.f32.mrb[0].mxu0
      %4126 = vmatprep.mubr.f32.mxu0 0.0
      %4127 = vmatmul.mubr.f32.gmra.mrb[0].mxu0 %v4017
      %v4128 = vpop.f32.mrb[0].mxu0
      %v4129 = vadd.f32 0.0, %v4128
      %v4130 = vpop.f32.mrb[0].mxu0
      %4131 = vmatprep.mubr.f32.mxu0 0.0
      %4132 = vmatmul.mubr.f32.gmra.mrb[0].mxu0 %v4018
      %v4133 = vpop.f32.mrb[0].mxu0
      %v4134 = vadd.f32 0.0, %v4133
      %v4135 = vpop.f32.mrb[0].mxu0
      %4136 = vmatprep.mubr.f32.mxu0 0.0
      %4137 = vmatmul.mubr.f32.gmra.mrb[0].mxu0 %v4019
      %v4138 = vpop.f32.mrb[0].mxu0
      %v4139 = vadd.f32 0.0, %v4138
      %v4140 = vpop.f32.mrb[0].mxu0
      %4141 = vmatprep.mubr.f32.mxu0 0.0
      %4142 = vmatmul.mubr.f32.gmra.mrb[0].mxu0 %v4020
      %v4143 = vpop.f32.mrb[0].mxu0
      %v4144 = vadd.f32 0.0, %v4143
      %v4145 = vpop.f32.mrb[0].mxu0
      %4146 = vmatprep.mubr.f32.mxu0 0.0
      %4147 = vmatmul.mubr.f32.gmra.mrb[0].mxu0 %v4021
      %v4148 = vpop.f32.mrb[0].mxu0
      %v4149 = vadd.f32 0.0, %v4148
      %v4150 = vpop.f32.mrb[0].mxu0
      %4151 = vmatprep.mubr.f32.mxu0 0.0
      %4152 = vmatmul.mubr.f32.gmra.mrb[0].mxu0 %v4022
      %v4153 = vpop.f32.mrb[0].mxu0
      %v4154 = vadd.f32 0.0, %v4153
      %v4155 = vpop.f32.mrb[0].mxu0
      %4156 = vmatprep.mubr.f32.mxu0 0.0
      %4157 = vmatmul.mubr.f32.gmra.mrb[0].mxu0 %v4023
      %v4158 = vpop.f32.mrb[0].mxu0
      %v4159 = vadd.f32 0.0, %v4158
      %v4160 = vpop.f32.mrb[0].mxu0
      %4161 = vmatprep.mubr.f32.mxu0 0.0
      %4162 = vmatmul.mubr.f32.gmra.mrb[0].mxu0 %v4024
      %v4163 = vpop.f32.mrb[0].mxu0
      %v4164 = vadd.f32 0.0, %v4163
      %v4165 = vpop.f32.mrb[0].mxu0
      %4166 = vmatprep.mubr.f32.mxu0 0.0
      %4167 = vmatmul.mubr.f32.gmra.mrb[0].mxu0 %v4025
      %v4168 = vpop.f32.mrb[0].mxu0
      %v4169 = vadd.f32 0.0, %v4168
      %v4170 = vpop.f32.mrb[0].mxu0
      %4171 = vmatprep.mubr.f32.mxu0 0.0
      %4172 = vmatmul.mubr.f32.gmra.mrb[0].mxu0 %v4026
      %v4173 = vpop.f32.mrb[0].mxu0
      %v4174 = vadd.f32 0.0, %v4173
      %v4175 = vpop.f32.mrb[0].mxu0
      %4176 = vmatprep.mubr.f32.mxu0 0.0
      %4177 = vmatmul.mubr.f32.gmra.mrb[0].mxu0 %v4027
      %v4178 = vpop.f32.mrb[0].mxu0
      %v4179 = vadd.f32 0.0, %v4178
      %v4180 = vpop.f32.mrb[0].mxu0
      %4181 = vmatprep.mubr.f32.mxu0 0.0
      %4182 = vmatmul.mubr.f32.gmra.mrb[0].mxu0 %v4028
      %v4183 = vpop.f32.mrb[0].mxu0
      %v4184 = vadd.f32 0.0, %v4183
      %v4185 = vpop.f32.mrb[0].mxu0
      %4186 = vmatprep.mubr.f32.mxu0 0.0
      %4187 = vmatmul.mubr.f32.gmra.mrb[0].mxu0 %v4029
      %v4188 = vpop.f32.mrb[0].mxu0
      %v4189 = vadd.f32 0.0, %v4188
      %v4190 = vpop.f32.mrb[0].mxu0
      %4191 = vdwg.mxu0
      %v4192 = vadd.f32 %v3936, %v4114
      %v4193 = vadd.f32 %v3941, %v4119
      %v4194 = vadd.f32 %v3946, %v4124
      %v4195 = vadd.f32 %v3951, %v4129
      %v4196 = vadd.f32 %v3956, %v4134
      %v4197 = vadd.f32 %v3961, %v4139
      %v4198 = vadd.f32 %v3966, %v4144
      %v4199 = vadd.f32 %v3971, %v4149
      %v4200 = vadd.f32 %v3976, %v4154
      %v4201 = vadd.f32 %v3981, %v4159
      %v4202 = vadd.f32 %v3986, %v4164
      %v4203 = vadd.f32 %v3991, %v4169
      %v4204 = vadd.f32 %v3996, %v4174
      %v4205 = vadd.f32 %v4001, %v4179
      %v4206 = vadd.f32 %v4006, %v4184
      %v4207 = vadd.f32 %v4011, %v4189
      %s4208 = scalar_lea.vmem [#allocation3], 24
      %v4209 = vld [vmem:[%s4208] sm:$0xff]
      %v4210 = vld [vmem:[%s4208 + $0x8] sm:$0xff]
      %v4211 = vld [vmem:[%s4208 + $0x18] sm:$0xff]
      %v4212 = vld [vmem:[%s4208 + $0x20] sm:$0xff]
      %v4213 = vld [vmem:[%s4208 + $0x30] sm:$0xff]
      %v4214 = vld [vmem:[%s4208 + $0x38] sm:$0xff]
      %v4215 = vld [vmem:[%s4208 + $0x48] sm:$0xff]
      %v4216 = vld [vmem:[%s4208 + $0x50] sm:$0xff]
      %v4217 = vld [vmem:[%s4208 + $0x60] sm:$0xff]
      %v4218 = vld [vmem:[%s4208 + $0x68] sm:$0xff]
      %v4219 = vld [vmem:[%s4208 + $0x78] sm:$0xff]
      %v4220 = vld [vmem:[%s4208 + $0x80] sm:$0xff]
      %v4221 = vld [vmem:[%s4208 + $0x90] sm:$0xff]
      %v4222 = vld [vmem:[%s4208 + $0x98] sm:$0xff]
      %v4223 = vld [vmem:[%s4208 + $0xa8] sm:$0xff]
      %v4224 = vld [vmem:[%s4208 + $0xb0] sm:$0xff]
      %s4225 = scalar_lea.vmem %s6, 384
      %v4226 = vld [vmem:[%s4225] sm:$0xff]
      %v4227 = vld [vmem:[%s4225 + $0x8] sm:$0xff]
      %v4228 = vld [vmem:[%s4225 + $0x10] sm:$0xff]
      %v4229 = vld [vmem:[%s4225 + $0x18] sm:$0xff]
      %v4230 = vld [vmem:[%s4225 + $0x20] sm:$0xff]
      %v4231 = vld [vmem:[%s4225 + $0x28] sm:$0xff]
      %v4232 = vld [vmem:[%s4225 + $0x30] sm:$0xff]
      %v4233 = vld [vmem:[%s4225 + $0x38] sm:$0xff]
      %v4234 = vld [vmem:[%s4225 + $0x40] sm:$0xff]
      %v4235 = vld [vmem:[%s4225 + $0x48] sm:$0xff]
      %v4236 = vld [vmem:[%s4225 + $0x50] sm:$0xff]
      %v4237 = vld [vmem:[%s4225 + $0x58] sm:$0xff]
      %v4238 = vld [vmem:[%s4225 + $0x60] sm:$0xff]
      %v4239 = vld [vmem:[%s4225 + $0x68] sm:$0xff]
      %v4240 = vld [vmem:[%s4225 + $0x70] sm:$0xff]
      %v4241 = vld [vmem:[%s4225 + $0x78] sm:$0xff]
      %4242 = vmatprep.subr.mxu0 0.0
      %4243 = vmatpush1.msra.mxu0 %v4226
      %4244 = vmatprep.subr.mxu0 0.0
      %4245 = vmatpush1.msra.mxu0 %v4227
      %4246 = vmatprep.subr.mxu0 0.0
      %4247 = vmatpush1.msra.mxu0 %v4228
      %4248 = vmatprep.subr.mxu0 0.0
      %4249 = vmatpush1.msra.mxu0 %v4229
      %4250 = vmatprep.subr.mxu0 0.0
      %4251 = vmatpush1.msra.mxu0 %v4230
      %4252 = vmatprep.subr.mxu0 0.0
      %4253 = vmatpush1.msra.mxu0 %v4231
      %4254 = vmatprep.subr.mxu0 0.0
      %4255 = vmatpush1.msra.mxu0 %v4232
      %4256 = vmatprep.subr.mxu0 0.0
      %4257 = vmatpush1.msra.mxu0 %v4233
      %4258 = vmatprep.subr.mxu0 0.0
      %4259 = vmatpush1.msra.mxu0 %v4234
      %4260 = vmatprep.subr.mxu0 0.0
      %4261 = vmatpush1.msra.mxu0 %v4235
      %4262 = vmatprep.subr.mxu0 0.0
      %4263 = vmatpush1.msra.mxu0 %v4236
      %4264 = vmatprep.subr.mxu0 0.0
      %4265 = vmatpush1.msra.mxu0 %v4237
      %4266 = vmatprep.subr.mxu0 0.0
      %4267 = vmatpush1.msra.mxu0 %v4238
      %4268 = vmatprep.subr.mxu0 0.0
      %4269 = vmatpush1.msra.mxu0 %v4239
      %4270 = vmatprep.subr.mxu0 0.0
      %4271 = vmatpush1.msra.mxu0 %v4240
      %4272 = vmatprep.subr.mxu0 0.0
      %4273 = vmatpush1.msra.mxu0 %v4241
      %4274 = vmatprep.subr.mxu0 0.0
      %4275 = vmatpush1.msra.mxu0 0.0
      %4276 = vmatprep.subr.mxu0 0.0
      %4277 = vmatpush1.msra.mxu0 0.0
      %4278 = vmatprep.subr.mxu0 0.0
      %4279 = vmatpush1.msra.mxu0 0.0
      %4280 = vmatprep.subr.mxu0 0.0
      %4281 = vmatpush1.msra.mxu0 0.0
      %4282 = vmatprep.subr.mxu0 0.0
      %4283 = vmatpush1.msra.mxu0 0.0
      %4284 = vmatprep.subr.mxu0 0.0
      %4285 = vmatpush1.msra.mxu0 0.0
      %4286 = vmatprep.subr.mxu0 0.0
      %4287 = vmatpush1.msra.mxu0 0.0
      %4288 = vmatprep.subr.mxu0 0.0
      %4289 = vmatpush1.msra.mxu0 0.0
      %4290 = vmatprep.subr.mxu0 0.0
      %4291 = vmatpush1.msra.mxu0 0.0
      %4292 = vmatprep.subr.mxu0 0.0
      %4293 = vmatpush1.msra.mxu0 0.0
      %4294 = vmatprep.subr.mxu0 0.0
      %4295 = vmatpush1.msra.mxu0 0.0
      %4296 = vmatprep.subr.mxu0 0.0
      %4297 = vmatpush1.msra.mxu0 0.0
      %4298 = vmatprep.subr.mxu0 0.0
      %4299 = vmatpush1.msra.mxu0 0.0
      %4300 = vmatprep.subr.mxu0 0.0
      %4301 = vmatpush1.msra.mxu0 0.0
      %4302 = vmatprep.subr.mxu0 0.0
      %4303 = vmatpush1.msra.mxu0 0.0
      %4304 = vmatprep.subr.mxu0 0.0
      %4305 = vmatpush1.msra.mxu0 0.0
      %4306 = vmatprep.mubr.f32.mxu0 0.0
      %4307 = vmatmul.mubr.f32.gmra.mrb[0].mxu0 %v4209
      %v4308 = vpop.f32.mrb[0].mxu0
      %v4309 = vadd.f32 0.0, %v4308
      %v4310 = vpop.f32.mrb[0].mxu0
      %4311 = vmatprep.mubr.f32.mxu0 0.0
      %4312 = vmatmul.mubr.f32.gmra.mrb[0].mxu0 %v4210
      %v4313 = vpop.f32.mrb[0].mxu0
      %v4314 = vadd.f32 0.0, %v4313
      %v4315 = vpop.f32.mrb[0].mxu0
      %4316 = vmatprep.mubr.f32.mxu0 0.0
      %4317 = vmatmul.mubr.f32.gmra.mrb[0].mxu0 %v4211
      %v4318 = vpop.f32.mrb[0].mxu0
      %v4319 = vadd.f32 0.0, %v4318
      %v4320 = vpop.f32.mrb[0].mxu0
      %4321 = vmatprep.mubr.f32.mxu0 0.0
      %4322 = vmatmul.mubr.f32.gmra.mrb[0].mxu0 %v4212
      %v4323 = vpop.f32.mrb[0].mxu0
      %v4324 = vadd.f32 0.0, %v4323
      %v4325 = vpop.f32.mrb[0].mxu0
      %4326 = vmatprep.mubr.f32.mxu0 0.0
      %4327 = vmatmul.mubr.f32.gmra.mrb[0].mxu0 %v4213
      %v4328 = vpop.f32.mrb[0].mxu0
      %v4329 = vadd.f32 0.0, %v4328
      %v4330 = vpop.f32.mrb[0].mxu0
      %4331 = vmatprep.mubr.f32.mxu0 0.0
      %4332 = vmatmul.mubr.f32.gmra.mrb[0].mxu0 %v4214
      %v4333 = vpop.f32.mrb[0].mxu0
      %v4334 = vadd.f32 0.0, %v4333
      %v4335 = vpop.f32.mrb[0].mxu0
      %4336 = vmatprep.mubr.f32.mxu0 0.0
      %4337 = vmatmul.mubr.f32.gmra.mrb[0].mxu0 %v4215
      %v4338 = vpop.f32.mrb[0].mxu0
      %v4339 = vadd.f32 0.0, %v4338
      %v4340 = vpop.f32.mrb[0].mxu0
      %4341 = vmatprep.mubr.f32.mxu0 0.0
      %4342 = vmatmul.mubr.f32.gmra.mrb[0].mxu0 %v4216
      %v4343 = vpop.f32.mrb[0].mxu0
      %v4344 = vadd.f32 0.0, %v4343
      %v4345 = vpop.f32.mrb[0].mxu0
      %4346 = vmatprep.mubr.f32.mxu0 0.0
      %4347 = vmatmul.mubr.f32.gmra.mrb[0].mxu0 %v4217
      %v4348 = vpop.f32.mrb[0].mxu0
      %v4349 = vadd.f32 0.0, %v4348
      %v4350 = vpop.f32.mrb[0].mxu0
      %4351 = vmatprep.mubr.f32.mxu0 0.0
      %4352 = vmatmul.mubr.f32.gmra.mrb[0].mxu0 %v4218
      %v4353 = vpop.f32.mrb[0].mxu0
      %v4354 = vadd.f32 0.0, %v4353
      %v4355 = vpop.f32.mrb[0].mxu0
      %4356 = vmatprep.mubr.f32.mxu0 0.0
      %4357 = vmatmul.mubr.f32.gmra.mrb[0].mxu0 %v4219
      %v4358 = vpop.f32.mrb[0].mxu0
      %v4359 = vadd.f32 0.0, %v4358
      %v4360 = vpop.f32.mrb[0].mxu0
      %4361 = vmatprep.mubr.f32.mxu0 0.0
      %4362 = vmatmul.mubr.f32.gmra.mrb[0].mxu0 %v4220
      %v4363 = vpop.f32.mrb[0].mxu0
      %v4364 = vadd.f32 0.0, %v4363
      %v4365 = vpop.f32.mrb[0].mxu0
      %4366 = vmatprep.mubr.f32.mxu0 0.0
      %4367 = vmatmul.mubr.f32.gmra.mrb[0].mxu0 %v4221
      %v4368 = vpop.f32.mrb[0].mxu0
      %v4369 = vadd.f32 0.0, %v4368
      %v4370 = vpop.f32.mrb[0].mxu0
      %4371 = vmatprep.mubr.f32.mxu0 0.0
      %4372 = vmatmul.mubr.f32.gmra.mrb[0].mxu0 %v4222
      %v4373 = vpop.f32.mrb[0].mxu0
      %v4374 = vadd.f32 0.0, %v4373
      %v4375 = vpop.f32.mrb[0].mxu0
      %4376 = vmatprep.mubr.f32.mxu0 0.0
      %4377 = vmatmul.mubr.f32.gmra.mrb[0].mxu0 %v4223
      %v4378 = vpop.f32.mrb[0].mxu0
      %v4379 = vadd.f32 0.0, %v4378
      %v4380 = vpop.f32.mrb[0].mxu0
      %4381 = vmatprep.mubr.f32.mxu0 0.0
      %4382 = vmatmul.mubr.f32.gmra.mrb[0].mxu0 %v4224
      %v4383 = vpop.f32.mrb[0].mxu0
      %v4384 = vadd.f32 0.0, %v4383
      %v4385 = vpop.f32.mrb[0].mxu0
      %4386 = vdwg.mxu0
      %v4387 = vadd.f32 %v4192, %v4309
      %v4388 = vadd.f32 %v4193, %v4314
      %v4389 = vadd.f32 %v4194, %v4319
      %v4390 = vadd.f32 %v4195, %v4324
      %v4391 = vadd.f32 %v4196, %v4329
      %v4392 = vadd.f32 %v4197, %v4334
      %v4393 = vadd.f32 %v4198, %v4339
      %v4394 = vadd.f32 %v4199, %v4344
      %v4395 = vadd.f32 %v4200, %v4349
      %v4396 = vadd.f32 %v4201, %v4354
      %v4397 = vadd.f32 %v4202, %v4359
      %v4398 = vadd.f32 %v4203, %v4364
      %v4399 = vadd.f32 %v4204, %v4369
      %v4400 = vadd.f32 %v4205, %v4374
      %v4401 = vadd.f32 %v4206, %v4379
      %v4402 = vadd.f32 %v4207, %v4384
      %v4403 = vld [vmem:[%s4208 + $0x1] sm:$0xff]
      %v4404 = vld [vmem:[%s4208 + $0x9] sm:$0xff]
      %v4405 = vld [vmem:[%s4208 + $0x19] sm:$0xff]
      %v4406 = vld [vmem:[%s4208 + $0x21] sm:$0xff]
      %v4407 = vld [vmem:[%s4208 + $0x31] sm:$0xff]
      %v4408 = vld [vmem:[%s4208 + $0x39] sm:$0xff]
      %v4409 = vld [vmem:[%s4208 + $0x49] sm:$0xff]
      %v4410 = vld [vmem:[%s4208 + $0x51] sm:$0xff]
      %v4411 = vld [vmem:[%s4208 + $0x61] sm:$0xff]
      %v4412 = vld [vmem:[%s4208 + $0x69] sm:$0xff]
      %v4413 = vld [vmem:[%s4208 + $0x79] sm:$0xff]
      %v4414 = vld [vmem:[%s4208 + $0x81] sm:$0xff]
      %v4415 = vld [vmem:[%s4208 + $0x91] sm:$0xff]
      %v4416 = vld [vmem:[%s4208 + $0x99] sm:$0xff]
      %v4417 = vld [vmem:[%s4208 + $0xa9] sm:$0xff]
      %v4418 = vld [vmem:[%s4208 + $0xb1] sm:$0xff]
      %s4419 = scalar_lea.vmem %s6, 512
      %v4420 = vld [vmem:[%s4419] sm:$0xff]
      %v4421 = vld [vmem:[%s4419 + $0x8] sm:$0xff]
      %v4422 = vld [vmem:[%s4419 + $0x10] sm:$0xff]
      %v4423 = vld [vmem:[%s4419 + $0x18] sm:$0xff]
      %v4424 = vld [vmem:[%s4419 + $0x20] sm:$0xff]
      %v4425 = vld [vmem:[%s4419 + $0x28] sm:$0xff]
      %v4426 = vld [vmem:[%s4419 + $0x30] sm:$0xff]
      %v4427 = vld [vmem:[%s4419 + $0x38] sm:$0xff]
      %v4428 = vld [vmem:[%s4419 + $0x40] sm:$0xff]
      %v4429 = vld [vmem:[%s4419 + $0x48] sm:$0xff]
      %v4430 = vld [vmem:[%s4419 + $0x50] sm:$0xff]
      %v4431 = vld [vmem:[%s4419 + $0x58] sm:$0xff]
      %v4432 = vld [vmem:[%s4419 + $0x60] sm:$0xff]
      %v4433 = vld [vmem:[%s4419 + $0x68] sm:$0xff]
      %v4434 = vld [vmem:[%s4419 + $0x70] sm:$0xff]
      %v4435 = vld [vmem:[%s4419 + $0x78] sm:$0xff]
      %4436 = vmatprep.subr.mxu0 0.0
      %4437 = vmatpush1.msra.mxu0 %v4420
      %4438 = vmatprep.subr.mxu0 0.0
      %4439 = vmatpush1.msra.mxu0 %v4421
      %4440 = vmatprep.subr.mxu0 0.0
      %4441 = vmatpush1.msra.mxu0 %v4422
      %4442 = vmatprep.subr.mxu0 0.0
      %4443 = vmatpush1.msra.mxu0 %v4423
      %4444 = vmatprep.subr.mxu0 0.0
      %4445 = vmatpush1.msra.mxu0 %v4424
      %4446 = vmatprep.subr.mxu0 0.0
      %4447 = vmatpush1.msra.mxu0 %v4425
      %4448 = vmatprep.subr.mxu0 0.0
      %4449 = vmatpush1.msra.mxu0 %v4426
      %4450 = vmatprep.subr.mxu0 0.0
      %4451 = vmatpush1.msra.mxu0 %v4427
      %4452 = vmatprep.subr.mxu0 0.0
      %4453 = vmatpush1.msra.mxu0 %v4428
      %4454 = vmatprep.subr.mxu0 0.0
      %4455 = vmatpush1.msra.mxu0 %v4429
      %4456 = vmatprep.subr.mxu0 0.0
      %4457 = vmatpush1.msra.mxu0 %v4430
      %4458 = vmatprep.subr.mxu0 0.0
      %4459 = vmatpush1.msra.mxu0 %v4431
      %4460 = vmatprep.subr.mxu0 0.0
      %4461 = vmatpush1.msra.mxu0 %v4432
      %4462 = vmatprep.subr.mxu0 0.0
      %4463 = vmatpush1.msra.mxu0 %v4433
      %4464 = vmatprep.subr.mxu0 0.0
      %4465 = vmatpush1.msra.mxu0 %v4434
      %4466 = vmatprep.subr.mxu0 0.0
      %4467 = vmatpush1.msra.mxu0 %v4435
      %4468 = vmatprep.subr.mxu0 0.0
      %4469 = vmatpush1.msra.mxu0 0.0
      %4470 = vmatprep.subr.mxu0 0.0
      %4471 = vmatpush1.msra.mxu0 0.0
      %4472 = vmatprep.subr.mxu0 0.0
      %4473 = vmatpush1.msra.mxu0 0.0
      %4474 = vmatprep.subr.mxu0 0.0
      %4475 = vmatpush1.msra.mxu0 0.0
      %4476 = vmatprep.subr.mxu0 0.0
      %4477 = vmatpush1.msra.mxu0 0.0
      %4478 = vmatprep.subr.mxu0 0.0
      %4479 = vmatpush1.msra.mxu0 0.0
      %4480 = vmatprep.subr.mxu0 0.0
      %4481 = vmatpush1.msra.mxu0 0.0
      %4482 = vmatprep.subr.mxu0 0.0
      %4483 = vmatpush1.msra.mxu0 0.0
      %4484 = vmatprep.subr.mxu0 0.0
      %4485 = vmatpush1.msra.mxu0 0.0
      %4486 = vmatprep.subr.mxu0 0.0
      %4487 = vmatpush1.msra.mxu0 0.0
      %4488 = vmatprep.subr.mxu0 0.0
      %4489 = vmatpush1.msra.mxu0 0.0
      %4490 = vmatprep.subr.mxu0 0.0
      %4491 = vmatpush1.msra.mxu0 0.0
      %4492 = vmatprep.subr.mxu0 0.0
      %4493 = vmatpush1.msra.mxu0 0.0
      %4494 = vmatprep.subr.mxu0 0.0
      %4495 = vmatpush1.msra.mxu0 0.0
      %4496 = vmatprep.subr.mxu0 0.0
      %4497 = vmatpush1.msra.mxu0 0.0
      %4498 = vmatprep.subr.mxu0 0.0
      %4499 = vmatpush1.msra.mxu0 0.0
      %4500 = vmatprep.mubr.f32.mxu0 0.0
      %4501 = vmatmul.mubr.f32.gmra.mrb[0].mxu0 %v4403
      %v4502 = vpop.f32.mrb[0].mxu0
      %v4503 = vadd.f32 0.0, %v4502
      %v4504 = vpop.f32.mrb[0].mxu0
      %4505 = vmatprep.mubr.f32.mxu0 0.0
      %4506 = vmatmul.mubr.f32.gmra.mrb[0].mxu0 %v4404
      %v4507 = vpop.f32.mrb[0].mxu0
      %v4508 = vadd.f32 0.0, %v4507
      %v4509 = vpop.f32.mrb[0].mxu0
      %4510 = vmatprep.mubr.f32.mxu0 0.0
      %4511 = vmatmul.mubr.f32.gmra.mrb[0].mxu0 %v4405
      %v4512 = vpop.f32.mrb[0].mxu0
      %v4513 = vadd.f32 0.0, %v4512
      %v4514 = vpop.f32.mrb[0].mxu0
      %4515 = vmatprep.mubr.f32.mxu0 0.0
      %4516 = vmatmul.mubr.f32.gmra.mrb[0].mxu0 %v4406
      %v4517 = vpop.f32.mrb[0].mxu0
      %v4518 = vadd.f32 0.0, %v4517
      %v4519 = vpop.f32.mrb[0].mxu0
      %4520 = vmatprep.mubr.f32.mxu0 0.0
      %4521 = vmatmul.mubr.f32.gmra.mrb[0].mxu0 %v4407
      %v4522 = vpop.f32.mrb[0].mxu0
      %v4523 = vadd.f32 0.0, %v4522
      %v4524 = vpop.f32.mrb[0].mxu0
      %4525 = vmatprep.mubr.f32.mxu0 0.0
      %4526 = vmatmul.mubr.f32.gmra.mrb[0].mxu0 %v4408
      %v4527 = vpop.f32.mrb[0].mxu0
      %v4528 = vadd.f32 0.0, %v4527
      %v4529 = vpop.f32.mrb[0].mxu0
      %4530 = vmatprep.mubr.f32.mxu0 0.0
      %4531 = vmatmul.mubr.f32.gmra.mrb[0].mxu0 %v4409
      %v4532 = vpop.f32.mrb[0].mxu0
      %v4533 = vadd.f32 0.0, %v4532
      %v4534 = vpop.f32.mrb[0].mxu0
      %4535 = vmatprep.mubr.f32.mxu0 0.0
      %4536 = vmatmul.mubr.f32.gmra.mrb[0].mxu0 %v4410
      %v4537 = vpop.f32.mrb[0].mxu0
      %v4538 = vadd.f32 0.0, %v4537
      %v4539 = vpop.f32.mrb[0].mxu0
      %4540 = vmatprep.mubr.f32.mxu0 0.0
      %4541 = vmatmul.mubr.f32.gmra.mrb[0].mxu0 %v4411
      %v4542 = vpop.f32.mrb[0].mxu0
      %v4543 = vadd.f32 0.0, %v4542
      %v4544 = vpop.f32.mrb[0].mxu0
      %4545 = vmatprep.mubr.f32.mxu0 0.0
      %4546 = vmatmul.mubr.f32.gmra.mrb[0].mxu0 %v4412
      %v4547 = vpop.f32.mrb[0].mxu0
      %v4548 = vadd.f32 0.0, %v4547
      %v4549 = vpop.f32.mrb[0].mxu0
      %4550 = vmatprep.mubr.f32.mxu0 0.0
      %4551 = vmatmul.mubr.f32.gmra.mrb[0].mxu0 %v4413
      %v4552 = vpop.f32.mrb[0].mxu0
      %v4553 = vadd.f32 0.0, %v4552
      %v4554 = vpop.f32.mrb[0].mxu0
      %4555 = vmatprep.mubr.f32.mxu0 0.0
      %4556 = vmatmul.mubr.f32.gmra.mrb[0].mxu0 %v4414
      %v4557 = vpop.f32.mrb[0].mxu0
      %v4558 = vadd.f32 0.0, %v4557
      %v4559 = vpop.f32.mrb[0].mxu0
      %4560 = vmatprep.mubr.f32.mxu0 0.0
      %4561 = vmatmul.mubr.f32.gmra.mrb[0].mxu0 %v4415
      %v4562 = vpop.f32.mrb[0].mxu0
      %v4563 = vadd.f32 0.0, %v4562
      %v4564 = vpop.f32.mrb[0].mxu0
      %4565 = vmatprep.mubr.f32.mxu0 0.0
      %4566 = vmatmul.mubr.f32.gmra.mrb[0].mxu0 %v4416
      %v4567 = vpop.f32.mrb[0].mxu0
      %v4568 = vadd.f32 0.0, %v4567
      %v4569 = vpop.f32.mrb[0].mxu0
      %4570 = vmatprep.mubr.f32.mxu0 0.0
      %4571 = vmatmul.mubr.f32.gmra.mrb[0].mxu0 %v4417
      %v4572 = vpop.f32.mrb[0].mxu0
      %v4573 = vadd.f32 0.0, %v4572
      %v4574 = vpop.f32.mrb[0].mxu0
      %4575 = vmatprep.mubr.f32.mxu0 0.0
      %4576 = vmatmul.mubr.f32.gmra.mrb[0].mxu0 %v4418
      %v4577 = vpop.f32.mrb[0].mxu0
      %v4578 = vadd.f32 0.0, %v4577
      %v4579 = vpop.f32.mrb[0].mxu0
      %4580 = vdwg.mxu0
      %v4581 = vadd.f32 %v4387, %v4503
      %v4582 = vadd.f32 %v4388, %v4508
      %v4583 = vadd.f32 %v4389, %v4513
      %v4584 = vadd.f32 %v4390, %v4518
      %v4585 = vadd.f32 %v4391, %v4523
      %v4586 = vadd.f32 %v4392, %v4528
      %v4587 = vadd.f32 %v4393, %v4533
      %v4588 = vadd.f32 %v4394, %v4538
      %v4589 = vadd.f32 %v4395, %v4543
      %v4590 = vadd.f32 %v4396, %v4548
      %v4591 = vadd.f32 %v4397, %v4553
      %v4592 = vadd.f32 %v4398, %v4558
      %v4593 = vadd.f32 %v4399, %v4563
      %v4594 = vadd.f32 %v4400, %v4568
      %v4595 = vadd.f32 %v4401, %v4573
      %v4596 = vadd.f32 %v4402, %v4578
      %v4597 = vld [vmem:[%s4208 + $0x2] sm:$0xff]
      %v4598 = vld [vmem:[%s4208 + $0xa] sm:$0xff]
      %v4599 = vld [vmem:[%s4208 + $0x1a] sm:$0xff]
      %v4600 = vld [vmem:[%s4208 + $0x22] sm:$0xff]
      %v4601 = vld [vmem:[%s4208 + $0x32] sm:$0xff]
      %v4602 = vld [vmem:[%s4208 + $0x3a] sm:$0xff]
      %v4603 = vld [vmem:[%s4208 + $0x4a] sm:$0xff]
      %v4604 = vld [vmem:[%s4208 + $0x52] sm:$0xff]
      %v4605 = vld [vmem:[%s4208 + $0x62] sm:$0xff]
      %v4606 = vld [vmem:[%s4208 + $0x6a] sm:$0xff]
      %v4607 = vld [vmem:[%s4208 + $0x7a] sm:$0xff]
      %v4608 = vld [vmem:[%s4208 + $0x82] sm:$0xff]
      %v4609 = vld [vmem:[%s4208 + $0x92] sm:$0xff]
      %v4610 = vld [vmem:[%s4208 + $0x9a] sm:$0xff]
      %v4611 = vld [vmem:[%s4208 + $0xaa] sm:$0xff]
      %v4612 = vld [vmem:[%s4208 + $0xb2] sm:$0xff]
      %s4613 = scalar_lea.vmem %s6, 640
      %v4614 = vld [vmem:[%s4613] sm:$0xff]
      %v4615 = vld [vmem:[%s4613 + $0x8] sm:$0xff]
      %v4616 = vld [vmem:[%s4613 + $0x10] sm:$0xff]
      %v4617 = vld [vmem:[%s4613 + $0x18] sm:$0xff]
      %v4618 = vld [vmem:[%s4613 + $0x20] sm:$0xff]
      %v4619 = vld [vmem:[%s4613 + $0x28] sm:$0xff]
      %v4620 = vld [vmem:[%s4613 + $0x30] sm:$0xff]
      %v4621 = vld [vmem:[%s4613 + $0x38] sm:$0xff]
      %v4622 = vld [vmem:[%s4613 + $0x40] sm:$0xff]
      %v4623 = vld [vmem:[%s4613 + $0x48] sm:$0xff]
      %v4624 = vld [vmem:[%s4613 + $0x50] sm:$0xff]
      %v4625 = vld [vmem:[%s4613 + $0x58] sm:$0xff]
      %v4626 = vld [vmem:[%s4613 + $0x60] sm:$0xff]
      %v4627 = vld [vmem:[%s4613 + $0x68] sm:$0xff]
      %v4628 = vld [vmem:[%s4613 + $0x70] sm:$0xff]
      %v4629 = vld [vmem:[%s4613 + $0x78] sm:$0xff]
      %4630 = vmatprep.subr.mxu0 0.0
      %4631 = vmatpush1.msra.mxu0 %v4614
      %4632 = vmatprep.subr.mxu0 0.0
      %4633 = vmatpush1.msra.mxu0 %v4615
      %4634 = vmatprep.subr.mxu0 0.0
      %4635 = vmatpush1.msra.mxu0 %v4616
      %4636 = vmatprep.subr.mxu0 0.0
      %4637 = vmatpush1.msra.mxu0 %v4617
      %4638 = vmatprep.subr.mxu0 0.0
      %4639 = vmatpush1.msra.mxu0 %v4618
      %4640 = vmatprep.subr.mxu0 0.0
      %4641 = vmatpush1.msra.mxu0 %v4619
      %4642 = vmatprep.subr.mxu0 0.0
      %4643 = vmatpush1.msra.mxu0 %v4620
      %4644 = vmatprep.subr.mxu0 0.0
      %4645 = vmatpush1.msra.mxu0 %v4621
      %4646 = vmatprep.subr.mxu0 0.0
      %4647 = vmatpush1.msra.mxu0 %v4622
      %4648 = vmatprep.subr.mxu0 0.0
      %4649 = vmatpush1.msra.mxu0 %v4623
      %4650 = vmatprep.subr.mxu0 0.0
      %4651 = vmatpush1.msra.mxu0 %v4624
      %4652 = vmatprep.subr.mxu0 0.0
      %4653 = vmatpush1.msra.mxu0 %v4625
      %4654 = vmatprep.subr.mxu0 0.0
      %4655 = vmatpush1.msra.mxu0 %v4626
      %4656 = vmatprep.subr.mxu0 0.0
      %4657 = vmatpush1.msra.mxu0 %v4627
      %4658 = vmatprep.subr.mxu0 0.0
      %4659 = vmatpush1.msra.mxu0 %v4628
      %4660 = vmatprep.subr.mxu0 0.0
      %4661 = vmatpush1.msra.mxu0 %v4629
      %4662 = vmatprep.subr.mxu0 0.0
      %4663 = vmatpush1.msra.mxu0 0.0
      %4664 = vmatprep.subr.mxu0 0.0
      %4665 = vmatpush1.msra.mxu0 0.0
      %4666 = vmatprep.subr.mxu0 0.0
      %4667 = vmatpush1.msra.mxu0 0.0
      %4668 = vmatprep.subr.mxu0 0.0
      %4669 = vmatpush1.msra.mxu0 0.0
      %4670 = vmatprep.subr.mxu0 0.0
      %4671 = vmatpush1.msra.mxu0 0.0
      %4672 = vmatprep.subr.mxu0 0.0
      %4673 = vmatpush1.msra.mxu0 0.0
      %4674 = vmatprep.subr.mxu0 0.0
      %4675 = vmatpush1.msra.mxu0 0.0
      %4676 = vmatprep.subr.mxu0 0.0
      %4677 = vmatpush1.msra.mxu0 0.0
      %4678 = vmatprep.subr.mxu0 0.0
      %4679 = vmatpush1.msra.mxu0 0.0
      %4680 = vmatprep.subr.mxu0 0.0
      %4681 = vmatpush1.msra.mxu0 0.0
      %4682 = vmatprep.subr.mxu0 0.0
      %4683 = vmatpush1.msra.mxu0 0.0
      %4684 = vmatprep.subr.mxu0 0.0
      %4685 = vmatpush1.msra.mxu0 0.0
      %4686 = vmatprep.subr.mxu0 0.0
      %4687 = vmatpush1.msra.mxu0 0.0
      %4688 = vmatprep.subr.mxu0 0.0
      %4689 = vmatpush1.msra.mxu0 0.0
      %4690 = vmatprep.subr.mxu0 0.0
      %4691 = vmatpush1.msra.mxu0 0.0
      %4692 = vmatprep.subr.mxu0 0.0
      %4693 = vmatpush1.msra.mxu0 0.0
      %4694 = vmatprep.mubr.f32.mxu0 0.0
      %4695 = vmatmul.mubr.f32.gmra.mrb[0].mxu0 %v4597
      %v4696 = vpop.f32.mrb[0].mxu0
      %v4697 = vadd.f32 0.0, %v4696
      %v4698 = vpop.f32.mrb[0].mxu0
      %4699 = vmatprep.mubr.f32.mxu0 0.0
      %4700 = vmatmul.mubr.f32.gmra.mrb[0].mxu0 %v4598
      %v4701 = vpop.f32.mrb[0].mxu0
      %v4702 = vadd.f32 0.0, %v4701
      %v4703 = vpop.f32.mrb[0].mxu0
      %4704 = vmatprep.mubr.f32.mxu0 0.0
      %4705 = vmatmul.mubr.f32.gmra.mrb[0].mxu0 %v4599
      %v4706 = vpop.f32.mrb[0].mxu0
      %v4707 = vadd.f32 0.0, %v4706
      %v4708 = vpop.f32.mrb[0].mxu0
      %4709 = vmatprep.mubr.f32.mxu0 0.0
      %4710 = vmatmul.mubr.f32.gmra.mrb[0].mxu0 %v4600
      %v4711 = vpop.f32.mrb[0].mxu0
      %v4712 = vadd.f32 0.0, %v4711
      %v4713 = vpop.f32.mrb[0].mxu0
      %4714 = vmatprep.mubr.f32.mxu0 0.0
      %4715 = vmatmul.mubr.f32.gmra.mrb[0].mxu0 %v4601
      %v4716 = vpop.f32.mrb[0].mxu0
      %v4717 = vadd.f32 0.0, %v4716
      %v4718 = vpop.f32.mrb[0].mxu0
      %4719 = vmatprep.mubr.f32.mxu0 0.0
      %4720 = vmatmul.mubr.f32.gmra.mrb[0].mxu0 %v4602
      %v4721 = vpop.f32.mrb[0].mxu0
      %v4722 = vadd.f32 0.0, %v4721
      %v4723 = vpop.f32.mrb[0].mxu0
      %4724 = vmatprep.mubr.f32.mxu0 0.0
      %4725 = vmatmul.mubr.f32.gmra.mrb[0].mxu0 %v4603
      %v4726 = vpop.f32.mrb[0].mxu0
      %v4727 = vadd.f32 0.0, %v4726
      %v4728 = vpop.f32.mrb[0].mxu0
      %4729 = vmatprep.mubr.f32.mxu0 0.0
      %4730 = vmatmul.mubr.f32.gmra.mrb[0].mxu0 %v4604
      %v4731 = vpop.f32.mrb[0].mxu0
      %v4732 = vadd.f32 0.0, %v4731
      %v4733 = vpop.f32.mrb[0].mxu0
      %4734 = vmatprep.mubr.f32.mxu0 0.0
      %4735 = vmatmul.mubr.f32.gmra.mrb[0].mxu0 %v4605
      %v4736 = vpop.f32.mrb[0].mxu0
      %v4737 = vadd.f32 0.0, %v4736
      %v4738 = vpop.f32.mrb[0].mxu0
      %4739 = vmatprep.mubr.f32.mxu0 0.0
      %4740 = vmatmul.mubr.f32.gmra.mrb[0].mxu0 %v4606
      %v4741 = vpop.f32.mrb[0].mxu0
      %v4742 = vadd.f32 0.0, %v4741
      %v4743 = vpop.f32.mrb[0].mxu0
      %4744 = vmatprep.mubr.f32.mxu0 0.0
      %4745 = vmatmul.mubr.f32.gmra.mrb[0].mxu0 %v4607
      %v4746 = vpop.f32.mrb[0].mxu0
      %v4747 = vadd.f32 0.0, %v4746
      %v4748 = vpop.f32.mrb[0].mxu0
      %4749 = vmatprep.mubr.f32.mxu0 0.0
      %4750 = vmatmul.mubr.f32.gmra.mrb[0].mxu0 %v4608
      %v4751 = vpop.f32.mrb[0].mxu0
      %v4752 = vadd.f32 0.0, %v4751
      %v4753 = vpop.f32.mrb[0].mxu0
      %4754 = vmatprep.mubr.f32.mxu0 0.0
      %4755 = vmatmul.mubr.f32.gmra.mrb[0].mxu0 %v4609
      %v4756 = vpop.f32.mrb[0].mxu0
      %v4757 = vadd.f32 0.0, %v4756
      %v4758 = vpop.f32.mrb[0].mxu0
      %4759 = vmatprep.mubr.f32.mxu0 0.0
      %4760 = vmatmul.mubr.f32.gmra.mrb[0].mxu0 %v4610
      %v4761 = vpop.f32.mrb[0].mxu0
      %v4762 = vadd.f32 0.0, %v4761
      %v4763 = vpop.f32.mrb[0].mxu0
      %4764 = vmatprep.mubr.f32.mxu0 0.0
      %4765 = vmatmul.mubr.f32.gmra.mrb[0].mxu0 %v4611
      %v4766 = vpop.f32.mrb[0].mxu0
      %v4767 = vadd.f32 0.0, %v4766
      %v4768 = vpop.f32.mrb[0].mxu0
      %4769 = vmatprep.mubr.f32.mxu0 0.0
      %4770 = vmatmul.mubr.f32.gmra.mrb[0].mxu0 %v4612
      %v4771 = vpop.f32.mrb[0].mxu0
      %v4772 = vadd.f32 0.0, %v4771
      %v4773 = vpop.f32.mrb[0].mxu0
      %4774 = vdwg.mxu0
      %v4775 = vadd.f32 %v4581, %v4697
      %v4776 = vadd.f32 %v4582, %v4702
      %v4777 = vadd.f32 %v4583, %v4707
      %v4778 = vadd.f32 %v4584, %v4712
      %v4779 = vadd.f32 %v4585, %v4717
      %v4780 = vadd.f32 %v4586, %v4722
      %v4781 = vadd.f32 %v4587, %v4727
      %v4782 = vadd.f32 %v4588, %v4732
      %v4783 = vadd.f32 %v4589, %v4737
      %v4784 = vadd.f32 %v4590, %v4742
      %v4785 = vadd.f32 %v4591, %v4747
      %v4786 = vadd.f32 %v4592, %v4752
      %v4787 = vadd.f32 %v4593, %v4757
      %v4788 = vadd.f32 %v4594, %v4762
      %v4789 = vadd.f32 %v4595, %v4767
      %v4790 = vadd.f32 %v4596, %v4772
      %s4791 = scalar_lea.vmem [#allocation3], 48
      %v4792 = vld [vmem:[%s4791] sm:$0xff]
      %v4793 = vld [vmem:[%s4791 + $0x8] sm:$0xff]
      %v4794 = vld [vmem:[%s4791 + $0x18] sm:$0xff]
      %v4795 = vld [vmem:[%s4791 + $0x20] sm:$0xff]
      %v4796 = vld [vmem:[%s4791 + $0x30] sm:$0xff]
      %v4797 = vld [vmem:[%s4791 + $0x38] sm:$0xff]
      %v4798 = vld [vmem:[%s4791 + $0x48] sm:$0xff]
      %v4799 = vld [vmem:[%s4791 + $0x50] sm:$0xff]
      %v4800 = vld [vmem:[%s4791 + $0x60] sm:$0xff]
      %v4801 = vld [vmem:[%s4791 + $0x68] sm:$0xff]
      %v4802 = vld [vmem:[%s4791 + $0x78] sm:$0xff]
      %v4803 = vld [vmem:[%s4791 + $0x80] sm:$0xff]
      %v4804 = vld [vmem:[%s4791 + $0x90] sm:$0xff]
      %v4805 = vld [vmem:[%s4791 + $0x98] sm:$0xff]
      %v4806 = vld [vmem:[%s4791 + $0xa8] sm:$0xff]
      %v4807 = vld [vmem:[%s4791 + $0xb0] sm:$0xff]
      %s4808 = scalar_lea.vmem %s6, 768
      %v4809 = vld [vmem:[%s4808] sm:$0xff]
      %v4810 = vld [vmem:[%s4808 + $0x8] sm:$0xff]
      %v4811 = vld [vmem:[%s4808 + $0x10] sm:$0xff]
      %v4812 = vld [vmem:[%s4808 + $0x18] sm:$0xff]
      %v4813 = vld [vmem:[%s4808 + $0x20] sm:$0xff]
      %v4814 = vld [vmem:[%s4808 + $0x28] sm:$0xff]
      %v4815 = vld [vmem:[%s4808 + $0x30] sm:$0xff]
      %v4816 = vld [vmem:[%s4808 + $0x38] sm:$0xff]
      %v4817 = vld [vmem:[%s4808 + $0x40] sm:$0xff]
      %v4818 = vld [vmem:[%s4808 + $0x48] sm:$0xff]
      %v4819 = vld [vmem:[%s4808 + $0x50] sm:$0xff]
      %v4820 = vld [vmem:[%s4808 + $0x58] sm:$0xff]
      %v4821 = vld [vmem:[%s4808 + $0x60] sm:$0xff]
      %v4822 = vld [vmem:[%s4808 + $0x68] sm:$0xff]
      %v4823 = vld [vmem:[%s4808 + $0x70] sm:$0xff]
      %v4824 = vld [vmem:[%s4808 + $0x78] sm:$0xff]
      %4825 = vmatprep.subr.mxu0 0.0
      %4826 = vmatpush1.msra.mxu0 %v4809
      %4827 = vmatprep.subr.mxu0 0.0
      %4828 = vmatpush1.msra.mxu0 %v4810
      %4829 = vmatprep.subr.mxu0 0.0
      %4830 = vmatpush1.msra.mxu0 %v4811
      %4831 = vmatprep.subr.mxu0 0.0
      %4832 = vmatpush1.msra.mxu0 %v4812
      %4833 = vmatprep.subr.mxu0 0.0
      %4834 = vmatpush1.msra.mxu0 %v4813
      %4835 = vmatprep.subr.mxu0 0.0
      %4836 = vmatpush1.msra.mxu0 %v4814
      %4837 = vmatprep.subr.mxu0 0.0
      %4838 = vmatpush1.msra.mxu0 %v4815
      %4839 = vmatprep.subr.mxu0 0.0
      %4840 = vmatpush1.msra.mxu0 %v4816
      %4841 = vmatprep.subr.mxu0 0.0
      %4842 = vmatpush1.msra.mxu0 %v4817
      %4843 = vmatprep.subr.mxu0 0.0
      %4844 = vmatpush1.msra.mxu0 %v4818
      %4845 = vmatprep.subr.mxu0 0.0
      %4846 = vmatpush1.msra.mxu0 %v4819
      %4847 = vmatprep.subr.mxu0 0.0
      %4848 = vmatpush1.msra.mxu0 %v4820
      %4849 = vmatprep.subr.mxu0 0.0
      %4850 = vmatpush1.msra.mxu0 %v4821
      %4851 = vmatprep.subr.mxu0 0.0
      %4852 = vmatpush1.msra.mxu0 %v4822
      %4853 = vmatprep.subr.mxu0 0.0
      %4854 = vmatpush1.msra.mxu0 %v4823
      %4855 = vmatprep.subr.mxu0 0.0
      %4856 = vmatpush1.msra.mxu0 %v4824
      %4857 = vmatprep.subr.mxu0 0.0
      %4858 = vmatpush1.msra.mxu0 0.0
      %4859 = vmatprep.subr.mxu0 0.0
      %4860 = vmatpush1.msra.mxu0 0.0
      %4861 = vmatprep.subr.mxu0 0.0
      %4862 = vmatpush1.msra.mxu0 0.0
      %4863 = vmatprep.subr.mxu0 0.0
      %4864 = vmatpush1.msra.mxu0 0.0
      %4865 = vmatprep.subr.mxu0 0.0
      %4866 = vmatpush1.msra.mxu0 0.0
      %4867 = vmatprep.subr.mxu0 0.0
      %4868 = vmatpush1.msra.mxu0 0.0
      %4869 = vmatprep.subr.mxu0 0.0
      %4870 = vmatpush1.msra.mxu0 0.0
      %4871 = vmatprep.subr.mxu0 0.0
      %4872 = vmatpush1.msra.mxu0 0.0
      %4873 = vmatprep.subr.mxu0 0.0
      %4874 = vmatpush1.msra.mxu0 0.0
      %4875 = vmatprep.subr.mxu0 0.0
      %4876 = vmatpush1.msra.mxu0 0.0
      %4877 = vmatprep.subr.mxu0 0.0
      %4878 = vmatpush1.msra.mxu0 0.0
      %4879 = vmatprep.subr.mxu0 0.0
      %4880 = vmatpush1.msra.mxu0 0.0
      %4881 = vmatprep.subr.mxu0 0.0
      %4882 = vmatpush1.msra.mxu0 0.0
      %4883 = vmatprep.subr.mxu0 0.0
      %4884 = vmatpush1.msra.mxu0 0.0
      %4885 = vmatprep.subr.mxu0 0.0
      %4886 = vmatpush1.msra.mxu0 0.0
      %4887 = vmatprep.subr.mxu0 0.0
      %4888 = vmatpush1.msra.mxu0 0.0
      %4889 = vmatprep.mubr.f32.mxu0 0.0
      %4890 = vmatmul.mubr.f32.gmra.mrb[0].mxu0 %v4792
      %v4891 = vpop.f32.mrb[0].mxu0
      %v4892 = vadd.f32 0.0, %v4891
      %v4893 = vpop.f32.mrb[0].mxu0
      %4894 = vmatprep.mubr.f32.mxu0 0.0
      %4895 = vmatmul.mubr.f32.gmra.mrb[0].mxu0 %v4793
      %v4896 = vpop.f32.mrb[0].mxu0
      %v4897 = vadd.f32 0.0, %v4896
      %v4898 = vpop.f32.mrb[0].mxu0
      %4899 = vmatprep.mubr.f32.mxu0 0.0
      %4900 = vmatmul.mubr.f32.gmra.mrb[0].mxu0 %v4794
      %v4901 = vpop.f32.mrb[0].mxu0
      %v4902 = vadd.f32 0.0, %v4901
      %v4903 = vpop.f32.mrb[0].mxu0
      %4904 = vmatprep.mubr.f32.mxu0 0.0
      %4905 = vmatmul.mubr.f32.gmra.mrb[0].mxu0 %v4795
      %v4906 = vpop.f32.mrb[0].mxu0
      %v4907 = vadd.f32 0.0, %v4906
      %v4908 = vpop.f32.mrb[0].mxu0
      %4909 = vmatprep.mubr.f32.mxu0 0.0
      %4910 = vmatmul.mubr.f32.gmra.mrb[0].mxu0 %v4796
      %v4911 = vpop.f32.mrb[0].mxu0
      %v4912 = vadd.f32 0.0, %v4911
      %v4913 = vpop.f32.mrb[0].mxu0
      %4914 = vmatprep.mubr.f32.mxu0 0.0
      %4915 = vmatmul.mubr.f32.gmra.mrb[0].mxu0 %v4797
      %v4916 = vpop.f32.mrb[0].mxu0
      %v4917 = vadd.f32 0.0, %v4916
      %v4918 = vpop.f32.mrb[0].mxu0
      %4919 = vmatprep.mubr.f32.mxu0 0.0
      %4920 = vmatmul.mubr.f32.gmra.mrb[0].mxu0 %v4798
      %v4921 = vpop.f32.mrb[0].mxu0
      %v4922 = vadd.f32 0.0, %v4921
      %v4923 = vpop.f32.mrb[0].mxu0
      %4924 = vmatprep.mubr.f32.mxu0 0.0
      %4925 = vmatmul.mubr.f32.gmra.mrb[0].mxu0 %v4799
      %v4926 = vpop.f32.mrb[0].mxu0
      %v4927 = vadd.f32 0.0, %v4926
      %v4928 = vpop.f32.mrb[0].mxu0
      %4929 = vmatprep.mubr.f32.mxu0 0.0
      %4930 = vmatmul.mubr.f32.gmra.mrb[0].mxu0 %v4800
      %v4931 = vpop.f32.mrb[0].mxu0
      %v4932 = vadd.f32 0.0, %v4931
      %v4933 = vpop.f32.mrb[0].mxu0
      %4934 = vmatprep.mubr.f32.mxu0 0.0
      %4935 = vmatmul.mubr.f32.gmra.mrb[0].mxu0 %v4801
      %v4936 = vpop.f32.mrb[0].mxu0
      %v4937 = vadd.f32 0.0, %v4936
      %v4938 = vpop.f32.mrb[0].mxu0
      %4939 = vmatprep.mubr.f32.mxu0 0.0
      %4940 = vmatmul.mubr.f32.gmra.mrb[0].mxu0 %v4802
      %v4941 = vpop.f32.mrb[0].mxu0
      %v4942 = vadd.f32 0.0, %v4941
      %v4943 = vpop.f32.mrb[0].mxu0
      %4944 = vmatprep.mubr.f32.mxu0 0.0
      %4945 = vmatmul.mubr.f32.gmra.mrb[0].mxu0 %v4803
      %v4946 = vpop.f32.mrb[0].mxu0
      %v4947 = vadd.f32 0.0, %v4946
      %v4948 = vpop.f32.mrb[0].mxu0
      %4949 = vmatprep.mubr.f32.mxu0 0.0
      %4950 = vmatmul.mubr.f32.gmra.mrb[0].mxu0 %v4804
      %v4951 = vpop.f32.mrb[0].mxu0
      %v4952 = vadd.f32 0.0, %v4951
      %v4953 = vpop.f32.mrb[0].mxu0
      %4954 = vmatprep.mubr.f32.mxu0 0.0
      %4955 = vmatmul.mubr.f32.gmra.mrb[0].mxu0 %v4805
      %v4956 = vpop.f32.mrb[0].mxu0
      %v4957 = vadd.f32 0.0, %v4956
      %v4958 = vpop.f32.mrb[0].mxu0
      %4959 = vmatprep.mubr.f32.mxu0 0.0
      %4960 = vmatmul.mubr.f32.gmra.mrb[0].mxu0 %v4806
      %v4961 = vpop.f32.mrb[0].mxu0
      %v4962 = vadd.f32 0.0, %v4961
      %v4963 = vpop.f32.mrb[0].mxu0
      %4964 = vmatprep.mubr.f32.mxu0 0.0
      %4965 = vmatmul.mubr.f32.gmra.mrb[0].mxu0 %v4807
      %v4966 = vpop.f32.mrb[0].mxu0
      %v4967 = vadd.f32 0.0, %v4966
      %v4968 = vpop.f32.mrb[0].mxu0
      %4969 = vdwg.mxu0
      %v4970 = vadd.f32 %v4775, %v4892
      %v4971 = vadd.f32 %v4776, %v4897
      %v4972 = vadd.f32 %v4777, %v4902
      %v4973 = vadd.f32 %v4778, %v4907
      %v4974 = vadd.f32 %v4779, %v4912
      %v4975 = vadd.f32 %v4780, %v4917
      %v4976 = vadd.f32 %v4781, %v4922
      %v4977 = vadd.f32 %v4782, %v4927
      %v4978 = vadd.f32 %v4783, %v4932
      %v4979 = vadd.f32 %v4784, %v4937
      %v4980 = vadd.f32 %v4785, %v4942
      %v4981 = vadd.f32 %v4786, %v4947
      %v4982 = vadd.f32 %v4787, %v4952
      %v4983 = vadd.f32 %v4788, %v4957
      %v4984 = vadd.f32 %v4789, %v4962
      %v4985 = vadd.f32 %v4790, %v4967
      %v4986 = vld [vmem:[%s4791 + $0x1] sm:$0xff]
      %v4987 = vld [vmem:[%s4791 + $0x9] sm:$0xff]
      %v4988 = vld [vmem:[%s4791 + $0x19] sm:$0xff]
      %v4989 = vld [vmem:[%s4791 + $0x21] sm:$0xff]
      %v4990 = vld [vmem:[%s4791 + $0x31] sm:$0xff]
      %v4991 = vld [vmem:[%s4791 + $0x39] sm:$0xff]
      %v4992 = vld [vmem:[%s4791 + $0x49] sm:$0xff]
      %v4993 = vld [vmem:[%s4791 + $0x51] sm:$0xff]
      %v4994 = vld [vmem:[%s4791 + $0x61] sm:$0xff]
      %v4995 = vld [vmem:[%s4791 + $0x69] sm:$0xff]
      %v4996 = vld [vmem:[%s4791 + $0x79] sm:$0xff]
      %v4997 = vld [vmem:[%s4791 + $0x81] sm:$0xff]
      %v4998 = vld [vmem:[%s4791 + $0x91] sm:$0xff]
      %v4999 = vld [vmem:[%s4791 + $0x99] sm:$0xff]
      %v5000 = vld [vmem:[%s4791 + $0xa9] sm:$0xff]
      %v5001 = vld [vmem:[%s4791 + $0xb1] sm:$0xff]
      %s5002 = scalar_lea.vmem %s6, 896
      %v5003 = vld [vmem:[%s5002] sm:$0xff]
      %v5004 = vld [vmem:[%s5002 + $0x8] sm:$0xff]
      %v5005 = vld [vmem:[%s5002 + $0x10] sm:$0xff]
      %v5006 = vld [vmem:[%s5002 + $0x18] sm:$0xff]
      %v5007 = vld [vmem:[%s5002 + $0x20] sm:$0xff]
      %v5008 = vld [vmem:[%s5002 + $0x28] sm:$0xff]
      %v5009 = vld [vmem:[%s5002 + $0x30] sm:$0xff]
      %v5010 = vld [vmem:[%s5002 + $0x38] sm:$0xff]
      %v5011 = vld [vmem:[%s5002 + $0x40] sm:$0xff]
      %v5012 = vld [vmem:[%s5002 + $0x48] sm:$0xff]
      %v5013 = vld [vmem:[%s5002 + $0x50] sm:$0xff]
      %v5014 = vld [vmem:[%s5002 + $0x58] sm:$0xff]
      %v5015 = vld [vmem:[%s5002 + $0x60] sm:$0xff]
      %v5016 = vld [vmem:[%s5002 + $0x68] sm:$0xff]
      %v5017 = vld [vmem:[%s5002 + $0x70] sm:$0xff]
      %v5018 = vld [vmem:[%s5002 + $0x78] sm:$0xff]
      %5019 = vmatprep.subr.mxu0 0.0
      %5020 = vmatpush1.msra.mxu0 %v5003
      %5021 = vmatprep.subr.mxu0 0.0
      %5022 = vmatpush1.msra.mxu0 %v5004
      %5023 = vmatprep.subr.mxu0 0.0
      %5024 = vmatpush1.msra.mxu0 %v5005
      %5025 = vmatprep.subr.mxu0 0.0
      %5026 = vmatpush1.msra.mxu0 %v5006
      %5027 = vmatprep.subr.mxu0 0.0
      %5028 = vmatpush1.msra.mxu0 %v5007
      %5029 = vmatprep.subr.mxu0 0.0
      %5030 = vmatpush1.msra.mxu0 %v5008
      %5031 = vmatprep.subr.mxu0 0.0
      %5032 = vmatpush1.msra.mxu0 %v5009
      %5033 = vmatprep.subr.mxu0 0.0
      %5034 = vmatpush1.msra.mxu0 %v5010
      %5035 = vmatprep.subr.mxu0 0.0
      %5036 = vmatpush1.msra.mxu0 %v5011
      %5037 = vmatprep.subr.mxu0 0.0
      %5038 = vmatpush1.msra.mxu0 %v5012
      %5039 = vmatprep.subr.mxu0 0.0
      %5040 = vmatpush1.msra.mxu0 %v5013
      %5041 = vmatprep.subr.mxu0 0.0
      %5042 = vmatpush1.msra.mxu0 %v5014
      %5043 = vmatprep.subr.mxu0 0.0
      %5044 = vmatpush1.msra.mxu0 %v5015
      %5045 = vmatprep.subr.mxu0 0.0
      %5046 = vmatpush1.msra.mxu0 %v5016
      %5047 = vmatprep.subr.mxu0 0.0
      %5048 = vmatpush1.msra.mxu0 %v5017
      %5049 = vmatprep.subr.mxu0 0.0
      %5050 = vmatpush1.msra.mxu0 %v5018
      %5051 = vmatprep.subr.mxu0 0.0
      %5052 = vmatpush1.msra.mxu0 0.0
      %5053 = vmatprep.subr.mxu0 0.0
      %5054 = vmatpush1.msra.mxu0 0.0
      %5055 = vmatprep.subr.mxu0 0.0
      %5056 = vmatpush1.msra.mxu0 0.0
      %5057 = vmatprep.subr.mxu0 0.0
      %5058 = vmatpush1.msra.mxu0 0.0
      %5059 = vmatprep.subr.mxu0 0.0
      %5060 = vmatpush1.msra.mxu0 0.0
      %5061 = vmatprep.subr.mxu0 0.0
      %5062 = vmatpush1.msra.mxu0 0.0
      %5063 = vmatprep.subr.mxu0 0.0
      %5064 = vmatpush1.msra.mxu0 0.0
      %5065 = vmatprep.subr.mxu0 0.0
      %5066 = vmatpush1.msra.mxu0 0.0
      %5067 = vmatprep.subr.mxu0 0.0
      %5068 = vmatpush1.msra.mxu0 0.0
      %5069 = vmatprep.subr.mxu0 0.0
      %5070 = vmatpush1.msra.mxu0 0.0
      %5071 = vmatprep.subr.mxu0 0.0
      %5072 = vmatpush1.msra.mxu0 0.0
      %5073 = vmatprep.subr.mxu0 0.0
      %5074 = vmatpush1.msra.mxu0 0.0
      %5075 = vmatprep.subr.mxu0 0.0
      %5076 = vmatpush1.msra.mxu0 0.0
      %5077 = vmatprep.subr.mxu0 0.0
      %5078 = vmatpush1.msra.mxu0 0.0
      %5079 = vmatprep.subr.mxu0 0.0
      %5080 = vmatpush1.msra.mxu0 0.0
      %5081 = vmatprep.subr.mxu0 0.0
      %5082 = vmatpush1.msra.mxu0 0.0
      %5083 = vmatprep.mubr.f32.mxu0 0.0
      %5084 = vmatmul.mubr.f32.gmra.mrb[0].mxu0 %v4986
      %v5085 = vpop.f32.mrb[0].mxu0
      %v5086 = vadd.f32 0.0, %v5085
      %v5087 = vpop.f32.mrb[0].mxu0
      %5088 = vmatprep.mubr.f32.mxu0 0.0
      %5089 = vmatmul.mubr.f32.gmra.mrb[0].mxu0 %v4987
      %v5090 = vpop.f32.mrb[0].mxu0
      %v5091 = vadd.f32 0.0, %v5090
      %v5092 = vpop.f32.mrb[0].mxu0
      %5093 = vmatprep.mubr.f32.mxu0 0.0
      %5094 = vmatmul.mubr.f32.gmra.mrb[0].mxu0 %v4988
      %v5095 = vpop.f32.mrb[0].mxu0
      %v5096 = vadd.f32 0.0, %v5095
      %v5097 = vpop.f32.mrb[0].mxu0
      %5098 = vmatprep.mubr.f32.mxu0 0.0
      %5099 = vmatmul.mubr.f32.gmra.mrb[0].mxu0 %v4989
      %v5100 = vpop.f32.mrb[0].mxu0
      %v5101 = vadd.f32 0.0, %v5100
      %v5102 = vpop.f32.mrb[0].mxu0
      %5103 = vmatprep.mubr.f32.mxu0 0.0
      %5104 = vmatmul.mubr.f32.gmra.mrb[0].mxu0 %v4990
      %v5105 = vpop.f32.mrb[0].mxu0
      %v5106 = vadd.f32 0.0, %v5105
      %v5107 = vpop.f32.mrb[0].mxu0
      %5108 = vmatprep.mubr.f32.mxu0 0.0
      %5109 = vmatmul.mubr.f32.gmra.mrb[0].mxu0 %v4991
      %v5110 = vpop.f32.mrb[0].mxu0
      %v5111 = vadd.f32 0.0, %v5110
      %v5112 = vpop.f32.mrb[0].mxu0
      %5113 = vmatprep.mubr.f32.mxu0 0.0
      %5114 = vmatmul.mubr.f32.gmra.mrb[0].mxu0 %v4992
      %v5115 = vpop.f32.mrb[0].mxu0
      %v5116 = vadd.f32 0.0, %v5115
      %v5117 = vpop.f32.mrb[0].mxu0
      %5118 = vmatprep.mubr.f32.mxu0 0.0
      %5119 = vmatmul.mubr.f32.gmra.mrb[0].mxu0 %v4993
      %v5120 = vpop.f32.mrb[0].mxu0
      %v5121 = vadd.f32 0.0, %v5120
      %v5122 = vpop.f32.mrb[0].mxu0
      %5123 = vmatprep.mubr.f32.mxu0 0.0
      %5124 = vmatmul.mubr.f32.gmra.mrb[0].mxu0 %v4994
      %v5125 = vpop.f32.mrb[0].mxu0
      %v5126 = vadd.f32 0.0, %v5125
      %v5127 = vpop.f32.mrb[0].mxu0
      %5128 = vmatprep.mubr.f32.mxu0 0.0
      %5129 = vmatmul.mubr.f32.gmra.mrb[0].mxu0 %v4995
      %v5130 = vpop.f32.mrb[0].mxu0
      %v5131 = vadd.f32 0.0, %v5130
      %v5132 = vpop.f32.mrb[0].mxu0
      %5133 = vmatprep.mubr.f32.mxu0 0.0
      %5134 = vmatmul.mubr.f32.gmra.mrb[0].mxu0 %v4996
      %v5135 = vpop.f32.mrb[0].mxu0
      %v5136 = vadd.f32 0.0, %v5135
      %v5137 = vpop.f32.mrb[0].mxu0
      %5138 = vmatprep.mubr.f32.mxu0 0.0
      %5139 = vmatmul.mubr.f32.gmra.mrb[0].mxu0 %v4997
      %v5140 = vpop.f32.mrb[0].mxu0
      %v5141 = vadd.f32 0.0, %v5140
      %v5142 = vpop.f32.mrb[0].mxu0
      %5143 = vmatprep.mubr.f32.mxu0 0.0
      %5144 = vmatmul.mubr.f32.gmra.mrb[0].mxu0 %v4998
      %v5145 = vpop.f32.mrb[0].mxu0
      %v5146 = vadd.f32 0.0, %v5145
      %v5147 = vpop.f32.mrb[0].mxu0
      %5148 = vmatprep.mubr.f32.mxu0 0.0
      %5149 = vmatmul.mubr.f32.gmra.mrb[0].mxu0 %v4999
      %v5150 = vpop.f32.mrb[0].mxu0
      %v5151 = vadd.f32 0.0, %v5150
      %v5152 = vpop.f32.mrb[0].mxu0
      %5153 = vmatprep.mubr.f32.mxu0 0.0
      %5154 = vmatmul.mubr.f32.gmra.mrb[0].mxu0 %v5000
      %v5155 = vpop.f32.mrb[0].mxu0
      %v5156 = vadd.f32 0.0, %v5155
      %v5157 = vpop.f32.mrb[0].mxu0
      %5158 = vmatprep.mubr.f32.mxu0 0.0
      %5159 = vmatmul.mubr.f32.gmra.mrb[0].mxu0 %v5001
      %v5160 = vpop.f32.mrb[0].mxu0
      %v5161 = vadd.f32 0.0, %v5160
      %v5162 = vpop.f32.mrb[0].mxu0
      %5163 = vdwg.mxu0
      %v5164 = vadd.f32 %v4970, %v5086
      %v5165 = vadd.f32 %v4971, %v5091
      %v5166 = vadd.f32 %v4972, %v5096
      %v5167 = vadd.f32 %v4973, %v5101
      %v5168 = vadd.f32 %v4974, %v5106
      %v5169 = vadd.f32 %v4975, %v5111
      %v5170 = vadd.f32 %v4976, %v5116
      %v5171 = vadd.f32 %v4977, %v5121
      %v5172 = vadd.f32 %v4978, %v5126
      %v5173 = vadd.f32 %v4979, %v5131
      %v5174 = vadd.f32 %v4980, %v5136
      %v5175 = vadd.f32 %v4981, %v5141
      %v5176 = vadd.f32 %v4982, %v5146
      %v5177 = vadd.f32 %v4983, %v5151
      %v5178 = vadd.f32 %v4984, %v5156
      %v5179 = vadd.f32 %v4985, %v5161
      %v5180 = vld [vmem:[%s4791 + $0x2] sm:$0xff]
      %v5181 = vld [vmem:[%s4791 + $0xa] sm:$0xff]
      %v5182 = vld [vmem:[%s4791 + $0x1a] sm:$0xff]
      %v5183 = vld [vmem:[%s4791 + $0x22] sm:$0xff]
      %v5184 = vld [vmem:[%s4791 + $0x32] sm:$0xff]
      %v5185 = vld [vmem:[%s4791 + $0x3a] sm:$0xff]
      %v5186 = vld [vmem:[%s4791 + $0x4a] sm:$0xff]
      %v5187 = vld [vmem:[%s4791 + $0x52] sm:$0xff]
      %v5188 = vld [vmem:[%s4791 + $0x62] sm:$0xff]
      %v5189 = vld [vmem:[%s4791 + $0x6a] sm:$0xff]
      %v5190 = vld [vmem:[%s4791 + $0x7a] sm:$0xff]
      %v5191 = vld [vmem:[%s4791 + $0x82] sm:$0xff]
      %v5192 = vld [vmem:[%s4791 + $0x92] sm:$0xff]
      %v5193 = vld [vmem:[%s4791 + $0x9a] sm:$0xff]
      %v5194 = vld [vmem:[%s4791 + $0xaa] sm:$0xff]
      %v5195 = vld [vmem:[%s4791 + $0xb2] sm:$0xff]
      %s5196 = scalar_lea.vmem %s6, 1024
      %v5197 = vld [vmem:[%s5196] sm:$0xff]
      %v5198 = vld [vmem:[%s5196 + $0x8] sm:$0xff]
      %v5199 = vld [vmem:[%s5196 + $0x10] sm:$0xff]
      %v5200 = vld [vmem:[%s5196 + $0x18] sm:$0xff]
      %v5201 = vld [vmem:[%s5196 + $0x20] sm:$0xff]
      %v5202 = vld [vmem:[%s5196 + $0x28] sm:$0xff]
      %v5203 = vld [vmem:[%s5196 + $0x30] sm:$0xff]
      %v5204 = vld [vmem:[%s5196 + $0x38] sm:$0xff]
      %v5205 = vld [vmem:[%s5196 + $0x40] sm:$0xff]
      %v5206 = vld [vmem:[%s5196 + $0x48] sm:$0xff]
      %v5207 = vld [vmem:[%s5196 + $0x50] sm:$0xff]
      %v5208 = vld [vmem:[%s5196 + $0x58] sm:$0xff]
      %v5209 = vld [vmem:[%s5196 + $0x60] sm:$0xff]
      %v5210 = vld [vmem:[%s5196 + $0x68] sm:$0xff]
      %v5211 = vld [vmem:[%s5196 + $0x70] sm:$0xff]
      %v5212 = vld [vmem:[%s5196 + $0x78] sm:$0xff]
      %5213 = vmatprep.subr.mxu0 0.0
      %5214 = vmatpush1.msra.mxu0 %v5197
      %5215 = vmatprep.subr.mxu0 0.0
      %5216 = vmatpush1.msra.mxu0 %v5198
      %5217 = vmatprep.subr.mxu0 0.0
      %5218 = vmatpush1.msra.mxu0 %v5199
      %5219 = vmatprep.subr.mxu0 0.0
      %5220 = vmatpush1.msra.mxu0 %v5200
      %5221 = vmatprep.subr.mxu0 0.0
      %5222 = vmatpush1.msra.mxu0 %v5201
      %5223 = vmatprep.subr.mxu0 0.0
      %5224 = vmatpush1.msra.mxu0 %v5202
      %5225 = vmatprep.subr.mxu0 0.0
      %5226 = vmatpush1.msra.mxu0 %v5203
      %5227 = vmatprep.subr.mxu0 0.0
      %5228 = vmatpush1.msra.mxu0 %v5204
      %5229 = vmatprep.subr.mxu0 0.0
      %5230 = vmatpush1.msra.mxu0 %v5205
      %5231 = vmatprep.subr.mxu0 0.0
      %5232 = vmatpush1.msra.mxu0 %v5206
      %5233 = vmatprep.subr.mxu0 0.0
      %5234 = vmatpush1.msra.mxu0 %v5207
      %5235 = vmatprep.subr.mxu0 0.0
      %5236 = vmatpush1.msra.mxu0 %v5208
      %5237 = vmatprep.subr.mxu0 0.0
      %5238 = vmatpush1.msra.mxu0 %v5209
      %5239 = vmatprep.subr.mxu0 0.0
      %5240 = vmatpush1.msra.mxu0 %v5210
      %5241 = vmatprep.subr.mxu0 0.0
      %5242 = vmatpush1.msra.mxu0 %v5211
      %5243 = vmatprep.subr.mxu0 0.0
      %5244 = vmatpush1.msra.mxu0 %v5212
      %5245 = vmatprep.subr.mxu0 0.0
      %5246 = vmatpush1.msra.mxu0 0.0
      %5247 = vmatprep.subr.mxu0 0.0
      %5248 = vmatpush1.msra.mxu0 0.0
      %5249 = vmatprep.subr.mxu0 0.0
      %5250 = vmatpush1.msra.mxu0 0.0
      %5251 = vmatprep.subr.mxu0 0.0
      %5252 = vmatpush1.msra.mxu0 0.0
      %5253 = vmatprep.subr.mxu0 0.0
      %5254 = vmatpush1.msra.mxu0 0.0
      %5255 = vmatprep.subr.mxu0 0.0
      %5256 = vmatpush1.msra.mxu0 0.0
      %5257 = vmatprep.subr.mxu0 0.0
      %5258 = vmatpush1.msra.mxu0 0.0
      %5259 = vmatprep.subr.mxu0 0.0
      %5260 = vmatpush1.msra.mxu0 0.0
      %5261 = vmatprep.subr.mxu0 0.0
      %5262 = vmatpush1.msra.mxu0 0.0
      %5263 = vmatprep.subr.mxu0 0.0
      %5264 = vmatpush1.msra.mxu0 0.0
      %5265 = vmatprep.subr.mxu0 0.0
      %5266 = vmatpush1.msra.mxu0 0.0
      %5267 = vmatprep.subr.mxu0 0.0
      %5268 = vmatpush1.msra.mxu0 0.0
      %5269 = vmatprep.subr.mxu0 0.0
      %5270 = vmatpush1.msra.mxu0 0.0
      %5271 = vmatprep.subr.mxu0 0.0
      %5272 = vmatpush1.msra.mxu0 0.0
      %5273 = vmatprep.subr.mxu0 0.0
      %5274 = vmatpush1.msra.mxu0 0.0
      %5275 = vmatprep.subr.mxu0 0.0
      %5276 = vmatpush1.msra.mxu0 0.0
      %5277 = vmatprep.mubr.f32.mxu0 0.0
      %5278 = vmatmul.mubr.f32.gmra.mrb[0].mxu0 %v5180
      %v5279 = vpop.f32.mrb[0].mxu0
      %v5280 = vadd.f32 0.0, %v5279
      %v5281 = vpop.f32.mrb[0].mxu0
      %5282 = vmatprep.mubr.f32.mxu0 0.0
      %5283 = vmatmul.mubr.f32.gmra.mrb[0].mxu0 %v5181
      %v5284 = vpop.f32.mrb[0].mxu0
      %v5285 = vadd.f32 0.0, %v5284
      %v5286 = vpop.f32.mrb[0].mxu0
      %5287 = vmatprep.mubr.f32.mxu0 0.0
      %5288 = vmatmul.mubr.f32.gmra.mrb[0].mxu0 %v5182
      %v5289 = vpop.f32.mrb[0].mxu0
      %v5290 = vadd.f32 0.0, %v5289
      %v5291 = vpop.f32.mrb[0].mxu0
      %5292 = vmatprep.mubr.f32.mxu0 0.0
      %5293 = vmatmul.mubr.f32.gmra.mrb[0].mxu0 %v5183
      %v5294 = vpop.f32.mrb[0].mxu0
      %v5295 = vadd.f32 0.0, %v5294
      %v5296 = vpop.f32.mrb[0].mxu0
      %5297 = vmatprep.mubr.f32.mxu0 0.0
      %5298 = vmatmul.mubr.f32.gmra.mrb[0].mxu0 %v5184
      %v5299 = vpop.f32.mrb[0].mxu0
      %v5300 = vadd.f32 0.0, %v5299
      %v5301 = vpop.f32.mrb[0].mxu0
      %5302 = vmatprep.mubr.f32.mxu0 0.0
      %5303 = vmatmul.mubr.f32.gmra.mrb[0].mxu0 %v5185
      %v5304 = vpop.f32.mrb[0].mxu0
      %v5305 = vadd.f32 0.0, %v5304
      %v5306 = vpop.f32.mrb[0].mxu0
      %5307 = vmatprep.mubr.f32.mxu0 0.0
      %5308 = vmatmul.mubr.f32.gmra.mrb[0].mxu0 %v5186
      %v5309 = vpop.f32.mrb[0].mxu0
      %v5310 = vadd.f32 0.0, %v5309
      %v5311 = vpop.f32.mrb[0].mxu0
      %5312 = vmatprep.mubr.f32.mxu0 0.0
      %5313 = vmatmul.mubr.f32.gmra.mrb[0].mxu0 %v5187
      %v5314 = vpop.f32.mrb[0].mxu0
      %v5315 = vadd.f32 0.0, %v5314
      %v5316 = vpop.f32.mrb[0].mxu0
      %5317 = vmatprep.mubr.f32.mxu0 0.0
      %5318 = vmatmul.mubr.f32.gmra.mrb[0].mxu0 %v5188
      %v5319 = vpop.f32.mrb[0].mxu0
      %v5320 = vadd.f32 0.0, %v5319
      %v5321 = vpop.f32.mrb[0].mxu0
      %5322 = vmatprep.mubr.f32.mxu0 0.0
      %5323 = vmatmul.mubr.f32.gmra.mrb[0].mxu0 %v5189
      %v5324 = vpop.f32.mrb[0].mxu0
      %v5325 = vadd.f32 0.0, %v5324
      %v5326 = vpop.f32.mrb[0].mxu0
      %5327 = vmatprep.mubr.f32.mxu0 0.0
      %5328 = vmatmul.mubr.f32.gmra.mrb[0].mxu0 %v5190
      %v5329 = vpop.f32.mrb[0].mxu0
      %v5330 = vadd.f32 0.0, %v5329
      %v5331 = vpop.f32.mrb[0].mxu0
      %5332 = vmatprep.mubr.f32.mxu0 0.0
      %5333 = vmatmul.mubr.f32.gmra.mrb[0].mxu0 %v5191
      %v5334 = vpop.f32.mrb[0].mxu0
      %v5335 = vadd.f32 0.0, %v5334
      %v5336 = vpop.f32.mrb[0].mxu0
      %5337 = vmatprep.mubr.f32.mxu0 0.0
      %5338 = vmatmul.mubr.f32.gmra.mrb[0].mxu0 %v5192
      %v5339 = vpop.f32.mrb[0].mxu0
      %v5340 = vadd.f32 0.0, %v5339
      %v5341 = vpop.f32.mrb[0].mxu0
      %5342 = vmatprep.mubr.f32.mxu0 0.0
      %5343 = vmatmul.mubr.f32.gmra.mrb[0].mxu0 %v5193
      %v5344 = vpop.f32.mrb[0].mxu0
      %v5345 = vadd.f32 0.0, %v5344
      %v5346 = vpop.f32.mrb[0].mxu0
      %5347 = vmatprep.mubr.f32.mxu0 0.0
      %5348 = vmatmul.mubr.f32.gmra.mrb[0].mxu0 %v5194
      %v5349 = vpop.f32.mrb[0].mxu0
      %v5350 = vadd.f32 0.0, %v5349
      %v5351 = vpop.f32.mrb[0].mxu0
      %5352 = vmatprep.mubr.f32.mxu0 0.0
      %5353 = vmatmul.mubr.f32.gmra.mrb[0].mxu0 %v5195
      %v5354 = vpop.f32.mrb[0].mxu0
      %v5355 = vadd.f32 0.0, %v5354
      %v5356 = vpop.f32.mrb[0].mxu0
      %5357 = vdwg.mxu0
      %v5358 = vadd.f32 %v5164, %v5280
      %v5359 = vadd.f32 %v5165, %v5285
      %v5360 = vadd.f32 %v5166, %v5290
      %v5361 = vadd.f32 %v5167, %v5295
      %v5362 = vadd.f32 %v5168, %v5300
      %v5363 = vadd.f32 %v5169, %v5305
      %v5364 = vadd.f32 %v5170, %v5310
      %v5365 = vadd.f32 %v5171, %v5315
      %v5366 = vadd.f32 %v5172, %v5320
      %v5367 = vadd.f32 %v5173, %v5325
      %v5368 = vadd.f32 %v5174, %v5330
      %v5369 = vadd.f32 %v5175, %v5335
      %v5370 = vadd.f32 %v5176, %v5340
      %v5371 = vadd.f32 %v5177, %v5345
      %v5372 = vadd.f32 %v5178, %v5350
      %v5373 = vadd.f32 %v5179, %v5355
      %v5374 = vld [vmem:[%s7] sm:$0x1]
      %v5376 = vlaneseq
      %v5377 = vshrl.u32 %v5376, 7
      %v5378 = vsub.s32 0, %v5377
      %v5379 = vrot.slane %v5374, %v5378
      %v5381 = vmul.f32 %v5358, %v5379
      %v5382 = vmul.f32 %v5359, %v5379
      %v5383 = vmul.f32 %v5360, %v5379
      %v5384 = vmul.f32 %v5361, %v5379
      %v5385 = vmul.f32 %v5362, %v5379
      %v5386 = vmul.f32 %v5363, %v5379
      %v5387 = vmul.f32 %v5364, %v5379
      %v5388 = vmul.f32 %v5365, %v5379
      %v5389 = vmul.f32 %v5366, %v5379
      %v5390 = vmul.f32 %v5367, %v5379
      %v5391 = vmul.f32 %v5368, %v5379
      %v5392 = vmul.f32 %v5369, %v5379
      %v5393 = vmul.f32 %v5370, %v5379
      %v5394 = vmul.f32 %v5371, %v5379
      %v5395 = vmul.f32 %v5372, %v5379
      %v5396 = vmul.f32 %v5373, %v5379
      %v5397 = vld [vmem:[%s8] sm:$0x1]
      %v5399 = vlaneseq
      %v5400 = vshrl.u32 %v5399, 7
      %v5401 = vsub.s32 0, %v5400
      %v5402 = vrot.slane %v5397, %v5401
      %v5404 = vadd.f32 %v5381, %v5402
      %v5405 = vadd.f32 %v5382, %v5402
      %v5406 = vadd.f32 %v5383, %v5402
      %v5407 = vadd.f32 %v5384, %v5402
      %v5408 = vadd.f32 %v5385, %v5402
      %v5409 = vadd.f32 %v5386, %v5402
      %v5410 = vadd.f32 %v5387, %v5402
      %v5411 = vadd.f32 %v5388, %v5402
      %v5412 = vadd.f32 %v5389, %v5402
      %v5413 = vadd.f32 %v5390, %v5402
      %v5414 = vadd.f32 %v5391, %v5402
      %v5415 = vadd.f32 %v5392, %v5402
      %v5416 = vadd.f32 %v5393, %v5402
      %v5417 = vadd.f32 %v5394, %v5402
      %v5418 = vadd.f32 %v5395, %v5402
      %v5419 = vadd.f32 %v5396, %v5402
      %v5420 = vmax.f32 %v5404, 0.0
      %v5421 = vmax.f32 %v5405, 0.0
      %v5422 = vmax.f32 %v5406, 0.0
      %v5423 = vmax.f32 %v5407, 0.0
      %v5424 = vmax.f32 %v5408, 0.0
      %v5425 = vmax.f32 %v5409, 0.0
      %v5426 = vmax.f32 %v5410, 0.0
      %v5427 = vmax.f32 %v5411, 0.0
      %v5428 = vmax.f32 %v5412, 0.0
      %v5429 = vmax.f32 %v5413, 0.0
      %v5430 = vmax.f32 %v5414, 0.0
      %v5431 = vmax.f32 %v5415, 0.0
      %v5432 = vmax.f32 %v5416, 0.0
      %v5433 = vmax.f32 %v5417, 0.0
      %v5434 = vmax.f32 %v5418, 0.0
      %v5435 = vmax.f32 %v5419, 0.0
      %5436 = vst [vmem:[%s495] sm:$0xff] %v5420
      %5437 = vst [vmem:[%s495 + $0x8] sm:$0xff] %v5421
      %5438 = vst [vmem:[%s495 + $0x10] sm:$0xff] %v5422
      %5439 = vst [vmem:[%s495 + $0x18] sm:$0xff] %v5423
      %5440 = vst [vmem:[%s495 + $0x20] sm:$0xff] %v5424
      %5441 = vst [vmem:[%s495 + $0x28] sm:$0xff] %v5425
      %5442 = vst [vmem:[%s495 + $0x30] sm:$0xff] %v5426
      %5443 = vst [vmem:[%s495 + $0x38] sm:$0xff] %v5427
      %5444 = vst [vmem:[%s495 + $0x40] sm:$0xff] %v5428
      %5445 = vst [vmem:[%s495 + $0x48] sm:$0xff] %v5429
      %5446 = vst [vmem:[%s495 + $0x50] sm:$0xff] %v5430
      %5447 = vst [vmem:[%s495 + $0x58] sm:$0xff] %v5431
      %5448 = vst [vmem:[%s495 + $0x60] sm:$0xff] %v5432
      %5449 = vst [vmem:[%s495 + $0x68] sm:$0xff] %v5433
      %5450 = vst [vmem:[%s495 + $0x70] sm:$0xff] %v5434
      %5451 = vst [vmem:[%s495 + $0x78] sm:$0xff] %v5435
      %s5452 = smul.u32 8, %s25
      %p5453 = scmp.lt.s32.totalorder %s24, 1
      %s5454 = scalar_select %p5453, %s24, 1
      %p5455 = scmp.lt.s32.totalorder %s5452, 15
      %s5456 = scalar_select %p5455, %s5452, 15
      %s5457 = smul.addr %s5456, 2
      %s5458 = smul.addr %s5454, 32
      %s5459 = sadd.s32 %s5457, %s5458
      %s5460 = smul.addr %s5459, 8
      %s5461 = scalar_lea.vmem %s9, %s5460
      // Predicated region
      $region65: #{attention_down_block.3} parent=55 // pred_check
        %p5462 = pneg %p274
      $region66: #{attention_down_block.3} parent=55 // pred_check_branch
        %5464 = sbr.rel (%p5462) target = $region68
      $region67: #{attention_down_block.3} parent=55 // pred_region
        %s5465 = smul.u32 8, %s25
      $region68: #{attention_down_block.3} parent=55 // pred_fallthru
        _
    $region56: #{attention_down_block.3} parent=5 // pred_fallthru
      _
    %p5466 = scmp.le.s32.totalorder 2, %s15
    // Predicated region
    $region69: #{attention_down_block.3} parent=5 // pred_check
      %p5467 = pneg %p5466
    $region70: #{attention_down_block.3} parent=5 // pred_check_branch
      %5469 = sbr.rel (%p5467) target = $region72
    $region71: #{attention_down_block.3} parent=5 // pred_region
      %s5470 = ssub.s32 %s15, 2
      // Predicated region
      $region73: #{attention_down_block.3} parent=71 // pred_check
        %p5471 = pneg %p280
      $region74: #{attention_down_block.3} parent=71 // pred_check_branch
        %5473 = sbr.rel (%p5471) target = $region76
      $region75: #{attention_down_block.3} parent=71 // pred_region
        %s5474 = smul.u32 8, %s27
        %p5475 = scmp.lt.s32.totalorder %s26, 1
        %s5476 = scalar_select %p5475, %s26, 1
        %p5477 = scmp.lt.s32.totalorder %s5474, 15
        %s5478 = scalar_select %p5477, %s5474, 15
        %s5479 = smul.addr %s5478, 2
        %s5480 = smul.addr %s5476, 32
        %s5481 = sadd.s32 %s5479, %s5480
        %s5482 = smul.addr %s5481, 8
        %s5483 = scalar_lea.vmem %s9, %s5482
      $region76: #{attention_down_block.3} parent=71 // pred_fallthru
        _
    $region72: #{attention_down_block.3} parent=5 // pred_fallthru
      _
  $region6: #{attention_down_block.3} parent=0 // loop_footer
    %s19 = sadd.s32 1, %s15
  $region7: #{attention_down_block.3} parent=0 // loop_footer_branch
    %14 = sbr.rel target = $region3
  $region8: #{attention_down_block.3} parent=0 // loop_exit
    _

</llo_original>
